<compile_context>
chip_gen: v5e
topology: v5e:2x2
jax: 0.10.0
libtpu: 0.0.40
codegen_flags: <defaults>
</compile_context>

<pallas_src>
import functools

import jax
import jax.numpy as jnp
from jax import lax
from jax.experimental import pallas as pl
from jax.experimental.pallas import tpu as pltpu


# ------------------------------ block-size heuristics --------------------------------

def _pick_batch_block(n, max_blk=8):
    """Largest divisor of n that is <= max_blk while keeping >= 2 grid blocks."""
    best = 1
    for b in range(1, min(max_blk, n) + 1):
        if n % b == 0 and (n // b >= 2 or n == 1):
            best = b
    return best


def _pick_strip(h, w, b, target_rows=256):
    """Largest even divisor of h with b*hs*w <= target_rows (keeps acc ~8 vregs)."""
    best = None
    for hs in range(2, h + 1, 2):
        if h % hs == 0 and b * hs * w <= target_rows:
            best = hs
    return best if best is not None else 2


# --------------------------- wrapper-side layout plumbing -----------------------------

def _im2col_full(x, k):
    """(N,H,W,C) -> (N,H,W,K*K*C); channel order (ky, kx, c). Lane-dense layer-1 input."""
    p = (k - 1) // 2
    n, h, w, c = x.shape
    xp = jnp.pad(x, ((0, 0), (p, p), (p, p), (0, 0)))
    cols = [xp[:, ky:ky + h, kx:kx + w, :] for ky in range(k) for kx in range(k)]
    return jnp.concatenate(cols, axis=-1)


def _fold_kx(x, k):
    """(N,H,W,C) -> (N,H+K-1,W,K*C); kx folded into channels, ky halo kept in rows."""
    p = (k - 1) // 2
    n, h, w, c = x.shape
    xp = jnp.pad(x, ((0, 0), (p, p), (p, p), (0, 0)))
    cols = [xp[:, :, kx:kx + w, :] for kx in range(k)]
    return jnp.concatenate(cols, axis=-1)


def _nchw_flatten_perm(h, w, c):
    """perm[h*W*C + w*C + c] = c*H*W + h*W + w  (NHWC flatten -> PyTorch NCHW flatten)."""
    hi = jnp.arange(h).reshape(h, 1, 1)
    wi = jnp.arange(w).reshape(1, w, 1)
    ci = jnp.arange(c).reshape(1, 1, c)
    return (ci * h * w + hi * w + wi).reshape(-1)


# ------------------------- fused conv-as-matmul + pool kernel -------------------------

def conv_pool_kernel(x_ref, w_ref, b_ref, o_ref, scr, *, B, H, W, CK, Cout, T, HS):
    """x_ref: (B, H+T-1, W, CK) bf16, w_ref: (T, CK, Cout) bf16, b_ref: (1, Cout) f32,
    o_ref: (B, H//2, W//2, Cout) bf16, scr: VMEM (B*HS, W, Cout) f32.

    Conv = T accumulated MXU matmuls with contraction CK; 2x2 max-pool fused. Work is
    strip-mined over H in strips of HS output rows to bound accumulator vreg pressure.
    """
    W2, HS2 = W // 2, HS // 2
    M = B * HS * W
    for h0 in range(0, H, HS):
        acc = jnp.zeros((M, Cout), jnp.float32)
        for t in range(T):
            patch = x_ref[:, h0 + t:h0 + t + HS, :, :]           # (B, HS, W, CK) bf16
            acc = acc + jnp.dot(patch.reshape(M, CK), w_ref[t],
                                preferred_element_type=jnp.float32)
        scr[...] = (acc + b_ref[...]).reshape(B * HS, W, Cout)    # bias fused, f32
        # 2x2 max-pool: pool W via stride-2 reads, pool H via leading-dim regroup.
        row_max = jnp.maximum(scr[:, pl.ds(0, W2, stride=2), :],
                              scr[:, pl.ds(1, W2, stride=2), :])  # (B*HS, W2, Cout)
        pooled = jnp.max(row_max.reshape(B * HS2, 2, W2, Cout), axis=1)
        o_ref[:, h0 // 2:h0 // 2 + HS2, :, :] = (
            pooled.reshape(B, HS2, W2, Cout).astype(o_ref.dtype))


def conv_matmul_pool(xk, w_folded, b):
    """xk: (N, H+T-1, W, CK) bf16, w_folded: (T, CK, Cout), b: (Cout,) f32
    -> (N, H//2, W//2, Cout) bf16."""
    N, H_in, W, CK = xk.shape
    T, _, Cout = w_folded.shape
    H = H_in - T + 1
    B = _pick_batch_block(N)
    HS = _pick_strip(H, W, B)
    kern = functools.partial(conv_pool_kernel, B=B, H=H, W=W, CK=CK, Cout=Cout, T=T, HS=HS)
    return pl.pallas_call(
        kern,
        out_shape=jax.ShapeDtypeStruct((N, H // 2, W // 2, Cout), jnp.bfloat16),
        grid=(N // B,),
        in_specs=[
            pl.BlockSpec((B, H_in, W, CK), lambda n: (n, 0, 0, 0)),
            pl.BlockSpec((T, CK, Cout), lambda n: (0, 0, 0)),
            pl.BlockSpec((1, Cout), lambda n: (0, 0)),
        ],
        out_specs=pl.BlockSpec((B, H // 2, W // 2, Cout), lambda n: (n, 0, 0, 0)),
        scratch_shapes=[pltpu.VMEM((B * HS, W, Cout), jnp.float32)],
        compiler_params=pltpu.CompilerParams(dimension_semantics=("parallel",)),
    )(xk, w_folded.astype(jnp.bfloat16), b.reshape(1, Cout).astype(jnp.float32))


# ---------------------------------- fused MLP kernel ----------------------------------

def mlp_kernel(x_ref, w1_ref, b1_ref, w2_ref, b2_ref, o_ref):
    h = jnp.dot(x_ref[...], w1_ref[...], preferred_element_type=jnp.float32) + b1_ref[...]
    y = (jnp.dot(h.astype(jnp.bfloat16), w2_ref[...],
                 preferred_element_type=jnp.float32) + b2_ref[...])
    o_ref[...] = y.astype(o_ref.dtype)


def mlp(x, w1, b1, w2, b2):
    N, Din = x.shape
    Dh, Do = w1.shape[1], w2.shape[1]
    Bm = N if (N <= 512 or N % 256 != 0) else 256
    return pl.pallas_call(
        mlp_kernel,
        out_shape=jax.ShapeDtypeStruct((N, Do), jnp.float32),
        grid=(N // Bm,),
        in_specs=[
            pl.BlockSpec((Bm, Din), lambda i: (i, 0)),
            pl.BlockSpec((Din, Dh), lambda i: (0, 0)),
            pl.BlockSpec((1, Dh), lambda i: (0, 0)),
            pl.BlockSpec((Dh, Do), lambda i: (0, 0)),
            pl.BlockSpec((1, Do), lambda i: (0, 0)),
        ],
        out_specs=pl.BlockSpec((Bm, Do), lambda i: (i, 0)),
        compiler_params=pltpu.CompilerParams(dimension_semantics=("parallel",)),
    )(x.astype(jnp.bfloat16), w1.astype(jnp.bfloat16),
      b1.reshape(1, Dh).astype(jnp.float32),
      w2.astype(jnp.bfloat16), b2.reshape(1, Do).astype(jnp.float32))


# ------------------------------------ full forward ------------------------------------

def damon_forward(x_nchw, p):
    x = jnp.transpose(x_nchw, (0, 2, 3, 1)).astype(jnp.bfloat16)        # NCHW -> NHWC bf16
    N = x.shape[0]
    K = 5

    # Layer 1: full im2col (contraction 75, lane-dense input instead of Cin=3 on lanes).
    x1 = _im2col_full(x, K)                                             # (N, 32, 32, 75)
    y1 = conv_matmul_pool(x1, p["w1"].reshape(1, K * K * 3, 32), p["b1"])   # (N,16,16,32)

    # Layers 2/3: kx folded into channels (contraction 160), ky accumulated in-kernel.
    x2 = _fold_kx(y1, K)                                                # (N, 20, 16, 160)
    y2 = conv_matmul_pool(x2, p["w2"].reshape(K, K * 32, 32), p["b2"])  # (N, 8, 8, 32)

    x3 = _fold_kx(y2, K)                                                # (N, 12, 8, 160)
    y3 = conv_matmul_pool(x3, p["w3"].reshape(K, K * 32, 64), p["b3"])  # (N, 4, 4, 64)

    # Plain NHWC flatten; PyTorch's NCHW flatten order is absorbed into fc1's rows.
    feats = y3.reshape(N, 4 * 4 * 64)                                   # (N, 1024) bf16
    fw1_p = p["fw1"][_nchw_flatten_perm(4, 4, 64), :]
    return mlp(feats, fw1_p, p["fb1"], p["fw2"], p["fb2"])              # (N, 10) f32


# --------------------------- deterministic parameter init -----------------------------

def init_params(key):
    ks = jax.random.split(key, 10)

    def conv_w(k, K, cin, cout):
        return jax.random.normal(k, (K, K, cin, cout), jnp.float32) / jnp.sqrt(K * K * cin)

    def lin_w(k, din, dout):
        return jax.random.normal(k, (din, dout), jnp.float32) / jnp.sqrt(din)

    return dict(
        w1=conv_w(ks[0], 5, 3, 32),  b1=0.01 * jax.random.normal(ks[1], (32,), jnp.float32),
        w2=conv_w(ks[2], 5, 32, 32), b2=0.01 * jax.random.normal(ks[3], (32,), jnp.float32),
        w3=conv_w(ks[4], 5, 32, 64), b3=0.01 * jax.random.normal(ks[5], (64,), jnp.float32),
        fw1=lin_w(ks[6], 1024, 64),  fb1=0.01 * jax.random.normal(ks[7], (64,), jnp.float32),
        fw2=lin_w(ks[8], 64, 10),    fb2=0.01 * jax.random.normal(ks[9], (10,), jnp.float32),
    )


# --------------------------------- pure-JAX reference ----------------------------------

def damon_reference(x_nchw, p):
    x = jnp.transpose(x_nchw, (0, 2, 3, 1)).astype(jnp.float32)

    def conv_pool(x, w, b):
        y = lax.conv_general_dilated(x, w, (1, 1), "SAME",
                                     dimension_numbers=("NHWC", "HWIO", "NHWC")) + b
        return lax.reduce_window(y, -jnp.inf, lax.max, (1, 2, 2, 1), (1, 2, 2, 1), "VALID")

    x = conv_pool(x, p["w1"], p["b1"])
    x = conv_pool(x, p["w2"], p["b2"])
    x = conv_pool(x, p["w3"], p["b3"])
    N = x.shape[0]
    x = jnp.transpose(x, (0, 3, 1, 2)).reshape(N, -1)   # PyTorch NCHW flatten
    x = x @ p["fw1"] + p["fb1"]
    return x @ p["fw2"] + p["fb2"]


if __name__ == "__main__":
    key = jax.random.PRNGKey(0)
    pkey, xkey = jax.random.split(key)
    params = init_params(pkey)
    # Linear(1024, 64) implies 32x32 spatial input (CIFAR-like): (N, 3, 32, 32) NCHW.
    x = jax.random.normal(xkey, (2, 3, 32, 32), jnp.float32)

    out = jax.jit(damon_forward)(x, params)
    out = jax.block_until_ready(out)

    ref = damon_reference(x, params)
    assert out.shape == (2, 10), out.shape
    assert bool(jnp.all(jnp.isfinite(out)))
    # bf16 MXU operands vs f32 reference: loose-but-meaningful tolerance.
    assert bool(jnp.allclose(out, ref, atol=1e-1, rtol=1e-1)), (out, ref)
    print("KERNEL_OK")
</pallas_src>

<mosaic_0001>
module attributes {stable_mosaic.version = 11 : i64} {
  func.func @conv_pool_kernel(%arg0: i32, %arg1: memref<1x32x32x75xbf16, #tpu.memory_space<vmem>>, %arg2: memref<1x75x32xbf16, #tpu.memory_space<vmem>>, %arg3: memref<1x32xf32, #tpu.memory_space<vmem>>, %arg4: memref<1x16x16x32xbf16, #tpu.memory_space<vmem>>, %arg5: memref<8x32x32xf32, #tpu.memory_space<vmem>>) attributes {dimension_semantics = [#tpu.dimension_semantics<parallel>], iteration_bounds = array<i64: 2>, scalar_prefetch = 0 : i64, scratch_operands = 1 : i64, tpu.core_type = #tpu.core_type<tc>, window_params = [{transform_indices = @transform_0, window_bounds = array<i64: 1, 32, 32, 75>}, {pipeline_mode = #tpu.pipeline_mode<synchronous>, transform_indices = @transform_1, window_bounds = array<i64: 1, 75, 32>}, {pipeline_mode = #tpu.pipeline_mode<synchronous>, transform_indices = @transform_2, window_bounds = array<i64: 1, 32>}, {transform_indices = @transform_3, window_bounds = array<i64: 1, 16, 16, 32>}]} {
    %cst = arith.constant 0.000000e+00 : f32
    %0 = vector.broadcast %cst : f32 to vector<256x32xf32>
    %c0 = arith.constant 0 : index
    %c0_0 = arith.constant 0 : index
    %c0_1 = arith.constant 0 : index
    %c0_2 = arith.constant 0 : index
    %1 = vector.load %arg1[%c0, %c0_0, %c0_1, %c0_2] : memref<1x32x32x75xbf16, #tpu.memory_space<vmem>>, vector<1x8x32x75xbf16>
    %2 = vector.shape_cast %1 : vector<1x8x32x75xbf16> to vector<256x75xbf16>
    %c0_3 = arith.constant 0 : index
    %c0_4 = arith.constant 0 : index
    %c0_5 = arith.constant 0 : index
    %3 = vector.load %arg2[%c0_3, %c0_4, %c0_5] : memref<1x75x32xbf16, #tpu.memory_space<vmem>>, vector<1x75x32xbf16>
    %4 = vector.shape_cast %3 : vector<1x75x32xbf16> to vector<75x32xbf16>
    %cst_6 = arith.constant dense<0.000000e+00> : vector<256x32xf32>
    %5 = tpu.matmul %2, %4, %cst_6 {dimension_numbers = #tpu.dot_dimension_numbers<[1], [0], [0], [1], [0, 0, 1, 1], [], []>} : vector<256x75xbf16>, vector<75x32xbf16>, vector<256x32xf32> -> vector<256x32xf32>
    %6 = arith.addf %0, %5 : vector<256x32xf32>
    %c0_7 = arith.constant 0 : index
    %c0_8 = arith.constant 0 : index
    %7 = vector.load %arg3[%c0_7, %c0_8] : memref<1x32xf32, #tpu.memory_space<vmem>>, vector<1x32xf32>
    %8 = vector.broadcast %7 : vector<1x32xf32> to vector<256x32xf32>
    %9 = arith.addf %6, %8 : vector<256x32xf32>
    %10 = vector.shape_cast %9 : vector<256x32xf32> to vector<8x32x32xf32>
    %c0_9 = arith.constant 0 : index
    %c0_10 = arith.constant 0 : index
    %c0_11 = arith.constant 0 : index
    %11 = vector.load %arg5[%c0_9, %c0_10, %c0_11] : memref<8x32x32xf32, #tpu.memory_space<vmem>>, vector<8x32x32xf32>
    tpu.vector_store %arg5[%c0_9, %c0_10, %c0_11], %10 {strides = array<i32>} : memref<8x32x32xf32, #tpu.memory_space<vmem>>, vector<8x32x32xf32>,
    %c0_12 = arith.constant 0 : index
    %c0_13 = arith.constant 0 : index
    %c0_14 = arith.constant 0 : index
    %12 = tpu.strided_load %arg5[%c0_12, %c0_13, %c0_14] {strides = array<i32: 1, 2, 1>} : memref<8x32x32xf32, #tpu.memory_space<vmem>>, vector<8x16x32xf32>
    %c0_15 = arith.constant 0 : index
    %c1 = arith.constant 1 : index
    %c0_16 = arith.constant 0 : index
    %13 = tpu.strided_load %arg5[%c0_15, %c1, %c0_16] {strides = array<i32: 1, 2, 1>} : memref<8x32x32xf32, #tpu.memory_space<vmem>>, vector<8x16x32xf32>
    %14 = arith.maximumf %12, %13 : vector<8x16x32xf32>
    %15 = vector.shape_cast %14 : vector<8x16x32xf32> to vector<4x2x16x32xf32>
    %cst_17 = arith.constant dense<0xFF800000> : vector<4x16x32xf32>
    %16 = vector.multi_reduction <maximumf>, %15, %cst_17 [1] : vector<4x2x16x32xf32> to vector<4x16x32xf32>
    %17 = vector.shape_cast %16 : vector<4x16x32xf32> to vector<1x4x16x32xf32>
    %18 = arith.truncf %17 : vector<1x4x16x32xf32> to vector<1x4x16x32xbf16>
    %c0_18 = arith.constant 0 : index
    %c0_19 = arith.constant 0 : index
    %c0_20 = arith.constant 0 : index
    %c0_21 = arith.constant 0 : index
    %19 = vector.load %arg4[%c0_18, %c0_19, %c0_20, %c0_21] : memref<1x16x16x32xbf16, #tpu.memory_space<vmem>>, vector<1x4x16x32xbf16>
    tpu.vector_store %arg4[%c0_18, %c0_19, %c0_20, %c0_21], %18 {strides = array<i32>} : memref<1x16x16x32xbf16, #tpu.memory_space<vmem>>, vector<1x4x16x32xbf16>,
    %cst_22 = arith.constant 0.000000e+00 : f32
    %20 = vector.broadcast %cst_22 : f32 to vector<256x32xf32>
    %c0_23 = arith.constant 0 : index
    %c8 = arith.constant 8 : index
    %c0_24 = arith.constant 0 : index
    %c0_25 = arith.constant 0 : index
    %21 = vector.load %arg1[%c0_23, %c8, %c0_24, %c0_25] : memref<1x32x32x75xbf16, #tpu.memory_space<vmem>>, vector<1x8x32x75xbf16>
    %22 = vector.shape_cast %21 : vector<1x8x32x75xbf16> to vector<256x75xbf16>
    %c0_26 = arith.constant 0 : index
    %c0_27 = arith.constant 0 : index
    %c0_28 = arith.constant 0 : index
    %23 = vector.load %arg2[%c0_26, %c0_27, %c0_28] : memref<1x75x32xbf16, #tpu.memory_space<vmem>>, vector<1x75x32xbf16>
    %24 = vector.shape_cast %23 : vector<1x75x32xbf16> to vector<75x32xbf16>
    %cst_29 = arith.constant dense<0.000000e+00> : vector<256x32xf32>
    %25 = tpu.matmul %22, %24, %cst_29 {dimension_numbers = #tpu.dot_dimension_numbers<[1], [0], [0], [1], [0, 0, 1, 1], [], []>} : vector<256x75xbf16>, vector<75x32xbf16>, vector<256x32xf32> -> vector<256x32xf32>
    %26 = arith.addf %20, %25 : vector<256x32xf32>
    %c0_30 = arith.constant 0 : index
    %c0_31 = arith.constant 0 : index
    %27 = vector.load %arg3[%c0_30, %c0_31] : memref<1x32xf32, #tpu.memory_space<vmem>>, vector<1x32xf32>
    %28 = vector.broadcast %27 : vector<1x32xf32> to vector<256x32xf32>
    %29 = arith.addf %26, %28 : vector<256x32xf32>
    %30 = vector.shape_cast %29 : vector<256x32xf32> to vector<8x32x32xf32>
    %c0_32 = arith.constant 0 : index
    %c0_33 = arith.constant 0 : index
    %c0_34 = arith.constant 0 : index
    %31 = vector.load %arg5[%c0_32, %c0_33, %c0_34] : memref<8x32x32xf32, #tpu.memory_space<vmem>>, vector<8x32x32xf32>
    tpu.vector_store %arg5[%c0_32, %c0_33, %c0_34], %30 {strides = array<i32>} : memref<8x32x32xf32, #tpu.memory_space<vmem>>, vector<8x32x32xf32>,
    %c0_35 = arith.constant 0 : index
    %c0_36 = arith.constant 0 : index
    %c0_37 = arith.constant 0 : index
    %32 = tpu.strided_load %arg5[%c0_35, %c0_36, %c0_37] {strides = array<i32: 1, 2, 1>} : memref<8x32x32xf32, #tpu.memory_space<vmem>>, vector<8x16x32xf32>
    %c0_38 = arith.constant 0 : index
    %c1_39 = arith.constant 1 : index
    %c0_40 = arith.constant 0 : index
    %33 = tpu.strided_load %arg5[%c0_38, %c1_39, %c0_40] {strides = array<i32: 1, 2, 1>} : memref<8x32x32xf32, #tpu.memory_space<vmem>>, vector<8x16x32xf32>
    %34 = arith.maximumf %32, %33 : vector<8x16x32xf32>
    %35 = vector.shape_cast %34 : vector<8x16x32xf32> to vector<4x2x16x32xf32>
    %cst_41 = arith.constant dense<0xFF800000> : vector<4x16x32xf32>
    %36 = vector.multi_reduction <maximumf>, %35, %cst_41 [1] : vector<4x2x16x32xf32> to vector<4x16x32xf32>
    %37 = vector.shape_cast %36 : vector<4x16x32xf32> to vector<1x4x16x32xf32>
    %38 = arith.truncf %37 : vector<1x4x16x32xf32> to vector<1x4x16x32xbf16>
    %c0_42 = arith.constant 0 : index
    %c4 = arith.constant 4 : index
    %c0_43 = arith.constant 0 : index
    %c0_44 = arith.constant 0 : index
    %39 = vector.load %arg4[%c0_42, %c4, %c0_43, %c0_44] : memref<1x16x16x32xbf16, #tpu.memory_space<vmem>>, vector<1x4x16x32xbf16>
    tpu.vector_store %arg4[%c0_42, %c4, %c0_43, %c0_44], %38 {strides = array<i32>} : memref<1x16x16x32xbf16, #tpu.memory_space<vmem>>, vector<1x4x16x32xbf16>,
    %cst_45 = arith.constant 0.000000e+00 : f32
    %40 = vector.broadcast %cst_45 : f32 to vector<256x32xf32>
    %c0_46 = arith.constant 0 : index
    %c16 = arith.constant 16 : index
    %c0_47 = arith.constant 0 : index
    %c0_48 = arith.constant 0 : index
    %41 = vector.load %arg1[%c0_46, %c16, %c0_47, %c0_48] : memref<1x32x32x75xbf16, #tpu.memory_space<vmem>>, vector<1x8x32x75xbf16>
    %42 = vector.shape_cast %41 : vector<1x8x32x75xbf16> to vector<256x75xbf16>
    %c0_49 = arith.constant 0 : index
    %c0_50 = arith.constant 0 : index
    %c0_51 = arith.constant 0 : index
    %43 = vector.load %arg2[%c0_49, %c0_50, %c0_51] : memref<1x75x32xbf16, #tpu.memory_space<vmem>>, vector<1x75x32xbf16>
    %44 = vector.shape_cast %43 : vector<1x75x32xbf16> to vector<75x32xbf16>
    %cst_52 = arith.constant dense<0.000000e+00> : vector<256x32xf32>
    %45 = tpu.matmul %42, %44, %cst_52 {dimension_numbers = #tpu.dot_dimension_numbers<[1], [0], [0], [1], [0, 0, 1, 1], [], []>} : vector<256x75xbf16>, vector<75x32xbf16>, vector<256x32xf32> -> vector<256x32xf32>
    %46 = arith.addf %40, %45 : vector<256x32xf32>
    %c0_53 = arith.constant 0 : index
    %c0_54 = arith.constant 0 : index
    %47 = vector.load %arg3[%c0_53, %c0_54] : memref<1x32xf32, #tpu.memory_space<vmem>>, vector<1x32xf32>
    %48 = vector.broadcast %47 : vector<1x32xf32> to vector<256x32xf32>
    %49 = arith.addf %46, %48 : vector<256x32xf32>
    %50 = vector.shape_cast %49 : vector<256x32xf32> to vector<8x32x32xf32>
    %c0_55 = arith.constant 0 : index
    %c0_56 = arith.constant 0 : index
    %c0_57 = arith.constant 0 : index
    %51 = vector.load %arg5[%c0_55, %c0_56, %c0_57] : memref<8x32x32xf32, #tpu.memory_space<vmem>>, vector<8x32x32xf32>
    tpu.vector_store %arg5[%c0_55, %c0_56, %c0_57], %50 {strides = array<i32>} : memref<8x32x32xf32, #tpu.memory_space<vmem>>, vector<8x32x32xf32>,
    %c0_58 = arith.constant 0 : index
    %c0_59 = arith.constant 0 : index
    %c0_60 = arith.constant 0 : index
    %52 = tpu.strided_load %arg5[%c0_58, %c0_59, %c0_60] {strides = array<i32: 1, 2, 1>} : memref<8x32x32xf32, #tpu.memory_space<vmem>>, vector<8x16x32xf32>
    %c0_61 = arith.constant 0 : index
    %c1_62 = arith.constant 1 : index
    %c0_63 = arith.constant 0 : index
    %53 = tpu.strided_load %arg5[%c0_61, %c1_62, %c0_63] {strides = array<i32: 1, 2, 1>} : memref<8x32x32xf32, #tpu.memory_space<vmem>>, vector<8x16x32xf32>
    %54 = arith.maximumf %52, %53 : vector<8x16x32xf32>
    %55 = vector.shape_cast %54 : vector<8x16x32xf32> to vector<4x2x16x32xf32>
    %cst_64 = arith.constant dense<0xFF800000> : vector<4x16x32xf32>
    %56 = vector.multi_reduction <maximumf>, %55, %cst_64 [1] : vector<4x2x16x32xf32> to vector<4x16x32xf32>
    %57 = vector.shape_cast %56 : vector<4x16x32xf32> to vector<1x4x16x32xf32>
    %58 = arith.truncf %57 : vector<1x4x16x32xf32> to vector<1x4x16x32xbf16>
    %c0_65 = arith.constant 0 : index
    %c8_66 = arith.constant 8 : index
    %c0_67 = arith.constant 0 : index
    %c0_68 = arith.constant 0 : index
    %59 = vector.load %arg4[%c0_65, %c8_66, %c0_67, %c0_68] : memref<1x16x16x32xbf16, #tpu.memory_space<vmem>>, vector<1x4x16x32xbf16>
    tpu.vector_store %arg4[%c0_65, %c8_66, %c0_67, %c0_68], %58 {strides = array<i32>} : memref<1x16x16x32xbf16, #tpu.memory_space<vmem>>, vector<1x4x16x32xbf16>,
    %cst_69 = arith.constant 0.000000e+00 : f32
    %60 = vector.broadcast %cst_69 : f32 to vector<256x32xf32>
    %c0_70 = arith.constant 0 : index
    %c24 = arith.constant 24 : index
    %c0_71 = arith.constant 0 : index
    %c0_72 = arith.constant 0 : index
    %61 = vector.load %arg1[%c0_70, %c24, %c0_71, %c0_72] : memref<1x32x32x75xbf16, #tpu.memory_space<vmem>>, vector<1x8x32x75xbf16>
    %62 = vector.shape_cast %61 : vector<1x8x32x75xbf16> to vector<256x75xbf16>
    %c0_73 = arith.constant 0 : index
    %c0_74 = arith.constant 0 : index
    %c0_75 = arith.constant 0 : index
    %63 = vector.load %arg2[%c0_73, %c0_74, %c0_75] : memref<1x75x32xbf16, #tpu.memory_space<vmem>>, vector<1x75x32xbf16>
    %64 = vector.shape_cast %63 : vector<1x75x32xbf16> to vector<75x32xbf16>
    %cst_76 = arith.constant dense<0.000000e+00> : vector<256x32xf32>
    %65 = tpu.matmul %62, %64, %cst_76 {dimension_numbers = #tpu.dot_dimension_numbers<[1], [0], [0], [1], [0, 0, 1, 1], [], []>} : vector<256x75xbf16>, vector<75x32xbf16>, vector<256x32xf32> -> vector<256x32xf32>
    %66 = arith.addf %60, %65 : vector<256x32xf32>
    %c0_77 = arith.constant 0 : index
    %c0_78 = arith.constant 0 : index
    %67 = vector.load %arg3[%c0_77, %c0_78] : memref<1x32xf32, #tpu.memory_space<vmem>>, vector<1x32xf32>
    %68 = vector.broadcast %67 : vector<1x32xf32> to vector<256x32xf32>
    %69 = arith.addf %66, %68 : vector<256x32xf32>
    %70 = vector.shape_cast %69 : vector<256x32xf32> to vector<8x32x32xf32>
    %c0_79 = arith.constant 0 : index
    %c0_80 = arith.constant 0 : index
    %c0_81 = arith.constant 0 : index
    %71 = vector.load %arg5[%c0_79, %c0_80, %c0_81] : memref<8x32x32xf32, #tpu.memory_space<vmem>>, vector<8x32x32xf32>
    tpu.vector_store %arg5[%c0_79, %c0_80, %c0_81], %70 {strides = array<i32>} : memref<8x32x32xf32, #tpu.memory_space<vmem>>, vector<8x32x32xf32>,
    %c0_82 = arith.constant 0 : index
    %c0_83 = arith.constant 0 : index
    %c0_84 = arith.constant 0 : index
    %72 = tpu.strided_load %arg5[%c0_82, %c0_83, %c0_84] {strides = array<i32: 1, 2, 1>} : memref<8x32x32xf32, #tpu.memory_space<vmem>>, vector<8x16x32xf32>
    %c0_85 = arith.constant 0 : index
    %c1_86 = arith.constant 1 : index
    %c0_87 = arith.constant 0 : index
    %73 = tpu.strided_load %arg5[%c0_85, %c1_86, %c0_87] {strides = array<i32: 1, 2, 1>} : memref<8x32x32xf32, #tpu.memory_space<vmem>>, vector<8x16x32xf32>
    %74 = arith.maximumf %72, %73 : vector<8x16x32xf32>
    %75 = vector.shape_cast %74 : vector<8x16x32xf32> to vector<4x2x16x32xf32>
    %cst_88 = arith.constant dense<0xFF800000> : vector<4x16x32xf32>
    %76 = vector.multi_reduction <maximumf>, %75, %cst_88 [1] : vector<4x2x16x32xf32> to vector<4x16x32xf32>
    %77 = vector.shape_cast %76 : vector<4x16x32xf32> to vector<1x4x16x32xf32>
    %78 = arith.truncf %77 : vector<1x4x16x32xf32> to vector<1x4x16x32xbf16>
    %c0_89 = arith.constant 0 : index
    %c12 = arith.constant 12 : index
    %c0_90 = arith.constant 0 : index
    %c0_91 = arith.constant 0 : index
    %79 = vector.load %arg4[%c0_89, %c12, %c0_90, %c0_91] : memref<1x16x16x32xbf16, #tpu.memory_space<vmem>>, vector<1x4x16x32xbf16>
    tpu.vector_store %arg4[%c0_89, %c12, %c0_90, %c0_91], %78 {strides = array<i32>} : memref<1x16x16x32xbf16, #tpu.memory_space<vmem>>, vector<1x4x16x32xbf16>,
    return
  }
  func.func @transform_0(%arg0: i32) -> (i32, i32, i32, i32) {
    %c0_i32 = arith.constant 0 : i32
    %c0_i32_0 = arith.constant 0 : i32
    %c0_i32_1 = arith.constant 0 : i32
    %c0_i32_2 = arith.constant 0 : i32
    return %arg0, %c0_i32, %c0_i32_0, %c0_i32_1 : i32, i32, i32, i32
  }
  func.func @transform_1(%arg0: i32) -> (i32, i32, i32) {
    %c0_i32 = arith.constant 0 : i32
    %c0_i32_0 = arith.constant 0 : i32
    %c0_i32_1 = arith.constant 0 : i32
    %c0_i32_2 = arith.constant 0 : i32
    return %c0_i32, %c0_i32_0, %c0_i32_1 : i32, i32, i32
  }
  func.func @transform_2(%arg0: i32) -> (i32, i32) {
    %c0_i32 = arith.constant 0 : i32
    %c0_i32_0 = arith.constant 0 : i32
    %c0_i32_1 = arith.constant 0 : i32
    return %c0_i32, %c0_i32_0 : i32, i32
  }
  func.func @transform_3(%arg0: i32) -> (i32, i32, i32, i32) {
    %c0_i32 = arith.constant 0 : i32
    %c0_i32_0 = arith.constant 0 : i32
    %c0_i32_1 = arith.constant 0 : i32
    %c0_i32_2 = arith.constant 0 : i32
    return %arg0, %c0_i32, %c0_i32_0, %c0_i32_1 : i32, i32, i32, i32
  }
}

module attributes {stable_mosaic.version = 11 : i64} {
  func.func @conv_pool_kernel(%arg0: i32, %arg1: memref<1x20x16x160xbf16, #tpu.memory_space<vmem>>, %arg2: memref<5x160x32xbf16, #tpu.memory_space<vmem>>, %arg3: memref<1x32xf32, #tpu.memory_space<vmem>>, %arg4: memref<1x8x8x32xbf16, #tpu.memory_space<vmem>>, %arg5: memref<16x16x32xf32, #tpu.memory_space<vmem>>) attributes {dimension_semantics = [#tpu.dimension_semantics<parallel>], iteration_bounds = array<i64: 2>, scalar_prefetch = 0 : i64, scratch_operands = 1 : i64, tpu.core_type = #tpu.core_type<tc>, window_params = [{transform_indices = @transform_0, window_bounds = array<i64: 1, 20, 16, 160>}, {pipeline_mode = #tpu.pipeline_mode<synchronous>, transform_indices = @transform_1, window_bounds = array<i64: 5, 160, 32>}, {pipeline_mode = #tpu.pipeline_mode<synchronous>, transform_indices = @transform_2, window_bounds = array<i64: 1, 32>}, {transform_indices = @transform_3, window_bounds = array<i64: 1, 8, 8, 32>}]} {
    %cst = arith.constant 0.000000e+00 : f32
    %0 = vector.broadcast %cst : f32 to vector<256x32xf32>
    %c0 = arith.constant 0 : index
    %c0_0 = arith.constant 0 : index
    %c0_1 = arith.constant 0 : index
    %c0_2 = arith.constant 0 : index
    %1 = vector.load %arg1[%c0, %c0_0, %c0_1, %c0_2] : memref<1x20x16x160xbf16, #tpu.memory_space<vmem>>, vector<1x16x16x160xbf16>
    %2 = vector.shape_cast %1 : vector<1x16x16x160xbf16> to vector<256x160xbf16>
    %c0_3 = arith.constant 0 : index
    %c0_4 = arith.constant 0 : index
    %c0_5 = arith.constant 0 : index
    %3 = vector.load %arg2[%c0_3, %c0_4, %c0_5] : memref<5x160x32xbf16, #tpu.memory_space<vmem>>, vector<1x160x32xbf16>
    %4 = vector.shape_cast %3 : vector<1x160x32xbf16> to vector<160x32xbf16>
    %cst_6 = arith.constant dense<0.000000e+00> : vector<256x32xf32>
    %5 = tpu.matmul %2, %4, %cst_6 {dimension_numbers = #tpu.dot_dimension_numbers<[1], [0], [0], [1], [0, 0, 1, 1], [], []>} : vector<256x160xbf16>, vector<160x32xbf16>, vector<256x32xf32> -> vector<256x32xf32>
    %6 = arith.addf %0, %5 : vector<256x32xf32>
    %c0_7 = arith.constant 0 : index
    %c1 = arith.constant 1 : index
    %c0_8 = arith.constant 0 : index
    %c0_9 = arith.constant 0 : index
    %7 = vector.load %arg1[%c0_7, %c1, %c0_8, %c0_9] : memref<1x20x16x160xbf16, #tpu.memory_space<vmem>>, vector<1x16x16x160xbf16>
    %8 = vector.shape_cast %7 : vector<1x16x16x160xbf16> to vector<256x160xbf16>
    %c1_10 = arith.constant 1 : index
    %c0_11 = arith.constant 0 : index
    %c0_12 = arith.constant 0 : index
    %9 = vector.load %arg2[%c1_10, %c0_11, %c0_12] : memref<5x160x32xbf16, #tpu.memory_space<vmem>>, vector<1x160x32xbf16>
    %10 = vector.shape_cast %9 : vector<1x160x32xbf16> to vector<160x32xbf16>
    %cst_13 = arith.constant dense<0.000000e+00> : vector<256x32xf32>
    %11 = tpu.matmul %8, %10, %cst_13 {dimension_numbers = #tpu.dot_dimension_numbers<[1], [0], [0], [1], [0, 0, 1, 1], [], []>} : vector<256x160xbf16>, vector<160x32xbf16>, vector<256x32xf32> -> vector<256x32xf32>
    %12 = arith.addf %6, %11 : vector<256x32xf32>
    %c0_14 = arith.constant 0 : index
    %c2 = arith.constant 2 : index
    %c0_15 = arith.constant 0 : index
    %c0_16 = arith.constant 0 : index
    %13 = vector.load %arg1[%c0_14, %c2, %c0_15, %c0_16] : memref<1x20x16x160xbf16, #tpu.memory_space<vmem>>, vector<1x16x16x160xbf16>
    %14 = vector.shape_cast %13 : vector<1x16x16x160xbf16> to vector<256x160xbf16>
    %c2_17 = arith.constant 2 : index
    %c0_18 = arith.constant 0 : index
    %c0_19 = arith.constant 0 : index
    %15 = vector.load %arg2[%c2_17, %c0_18, %c0_19] : memref<5x160x32xbf16, #tpu.memory_space<vmem>>, vector<1x160x32xbf16>
    %16 = vector.shape_cast %15 : vector<1x160x32xbf16> to vector<160x32xbf16>
    %cst_20 = arith.constant dense<0.000000e+00> : vector<256x32xf32>
    %17 = tpu.matmul %14, %16, %cst_20 {dimension_numbers = #tpu.dot_dimension_numbers<[1], [0], [0], [1], [0, 0, 1, 1], [], []>} : vector<256x160xbf16>, vector<160x32xbf16>, vector<256x32xf32> -> vector<256x32xf32>
    %18 = arith.addf %12, %17 : vector<256x32xf32>
    %c0_21 = arith.constant 0 : index
    %c3 = arith.constant 3 : index
    %c0_22 = arith.constant 0 : index
    %c0_23 = arith.constant 0 : index
    %19 = vector.load %arg1[%c0_21, %c3, %c0_22, %c0_23] : memref<1x20x16x160xbf16, #tpu.memory_space<vmem>>, vector<1x16x16x160xbf16>
    %20 = vector.shape_cast %19 : vector<1x16x16x160xbf16> to vector<256x160xbf16>
    %c3_24 = arith.constant 3 : index
    %c0_25 = arith.constant 0 : index
    %c0_26 = arith.constant 0 : index
    %21 = vector.load %arg2[%c3_24, %c0_25, %c0_26] : memref<5x160x32xbf16, #tpu.memory_space<vmem>>, vector<1x160x32xbf16>
    %22 = vector.shape_cast %21 : vector<1x160x32xbf16> to vector<160x32xbf16>
    %cst_27 = arith.constant dense<0.000000e+00> : vector<256x32xf32>
    %23 = tpu.matmul %20, %22, %cst_27 {dimension_numbers = #tpu.dot_dimension_numbers<[1], [0], [0], [1], [0, 0, 1, 1], [], []>} : vector<256x160xbf16>, vector<160x32xbf16>, vector<256x32xf32> -> vector<256x32xf32>
    %24 = arith.addf %18, %23 : vector<256x32xf32>
    %c0_28 = arith.constant 0 : index
    %c4 = arith.constant 4 : index
    %c0_29 = arith.constant 0 : index
    %c0_30 = arith.constant 0 : index
    %25 = vector.load %arg1[%c0_28, %c4, %c0_29, %c0_30] : memref<1x20x16x160xbf16, #tpu.memory_space<vmem>>, vector<1x16x16x160xbf16>
    %26 = vector.shape_cast %25 : vector<1x16x16x160xbf16> to vector<256x160xbf16>
    %c4_31 = arith.constant 4 : index
    %c0_32 = arith.constant 0 : index
    %c0_33 = arith.constant 0 : index
    %27 = vector.load %arg2[%c4_31, %c0_32, %c0_33] : memref<5x160x32xbf16, #tpu.memory_space<vmem>>, vector<1x160x32xbf16>
    %28 = vector.shape_cast %27 : vector<1x160x32xbf16> to vector<160x32xbf16>
    %cst_34 = arith.constant dense<0.000000e+00> : vector<256x32xf32>
    %29 = tpu.matmul %26, %28, %cst_34 {dimension_numbers = #tpu.dot_dimension_numbers<[1], [0], [0], [1], [0, 0, 1, 1], [], []>} : vector<256x160xbf16>, vector<160x32xbf16>, vector<256x32xf32> -> vector<256x32xf32>
    %30 = arith.addf %24, %29 : vector<256x32xf32>
    %c0_35 = arith.constant 0 : index
    %c0_36 = arith.constant 0 : index
    %31 = vector.load %arg3[%c0_35, %c0_36] : memref<1x32xf32, #tpu.memory_space<vmem>>, vector<1x32xf32>
    %32 = vector.broadcast %31 : vector<1x32xf32> to vector<256x32xf32>
    %33 = arith.addf %30, %32 : vector<256x32xf32>
    %34 = vector.shape_cast %33 : vector<256x32xf32> to vector<16x16x32xf32>
    %c0_37 = arith.constant 0 : index
    %c0_38 = arith.constant 0 : index
    %c0_39 = arith.constant 0 : index
    %35 = vector.load %arg5[%c0_37, %c0_38, %c0_39] : memref<16x16x32xf32, #tpu.memory_space<vmem>>, vector<16x16x32xf32>
    tpu.vector_store %arg5[%c0_37, %c0_38, %c0_39], %34 {strides = array<i32>} : memref<16x16x32xf32, #tpu.memory_space<vmem>>, vector<16x16x32xf32>,
    %c0_40 = arith.constant 0 : index
    %c0_41 = arith.constant 0 : index
    %c0_42 = arith.constant 0 : index
    %36 = tpu.strided_load %arg5[%c0_40, %c0_41, %c0_42] {strides = array<i32: 1, 2, 1>} : memref<16x16x32xf32, #tpu.memory_space<vmem>>, vector<16x8x32xf32>
    %c0_43 = arith.constant 0 : index
    %c1_44 = arith.constant 1 : index
    %c0_45 = arith.constant 0 : index
    %37 = tpu.strided_load %arg5[%c0_43, %c1_44, %c0_45] {strides = array<i32: 1, 2, 1>} : memref<16x16x32xf32, #tpu.memory_space<vmem>>, vector<16x8x32xf32>
    %38 = arith.maximumf %36, %37 : vector<16x8x32xf32>
    %39 = vector.shape_cast %38 : vector<16x8x32xf32> to vector<8x2x8x32xf32>
    %cst_46 = arith.constant dense<0xFF800000> : vector<8x8x32xf32>
    %40 = vector.multi_reduction <maximumf>, %39, %cst_46 [1] : vector<8x2x8x32xf32> to vector<8x8x32xf32>
    %41 = vector.shape_cast %40 : vector<8x8x32xf32> to vector<1x8x8x32xf32>
    %42 = arith.truncf %41 : vector<1x8x8x32xf32> to vector<1x8x8x32xbf16>
    %c0_47 = arith.constant 0 : index
    %c0_48 = arith.constant 0 : index
    %c0_49 = arith.constant 0 : index
    %c0_50 = arith.constant 0 : index
    %43 = vector.load %arg4[%c0_47, %c0_48, %c0_49, %c0_50] : memref<1x8x8x32xbf16, #tpu.memory_space<vmem>>, vector<1x8x8x32xbf16>
    tpu.vector_store %arg4[%c0_47, %c0_48, %c0_49, %c0_50], %42 {strides = array<i32>} : memref<1x8x8x32xbf16, #tpu.memory_space<vmem>>, vector<1x8x8x32xbf16>,
    return
  }
  func.func @transform_0(%arg0: i32) -> (i32, i32, i32, i32) {
    %c0_i32 = arith.constant 0 : i32
    %c0_i32_0 = arith.constant 0 : i32
    %c0_i32_1 = arith.constant 0 : i32
    %c0_i32_2 = arith.constant 0 : i32
    return %arg0, %c0_i32, %c0_i32_0, %c0_i32_1 : i32, i32, i32, i32
  }
  func.func @transform_1(%arg0: i32) -> (i32, i32, i32) {
    %c0_i32 = arith.constant 0 : i32
    %c0_i32_0 = arith.constant 0 : i32
    %c0_i32_1 = arith.constant 0 : i32
    %c0_i32_2 = arith.constant 0 : i32
    return %c0_i32, %c0_i32_0, %c0_i32_1 : i32, i32, i32
  }
  func.func @transform_2(%arg0: i32) -> (i32, i32) {
    %c0_i32 = arith.constant 0 : i32
    %c0_i32_0 = arith.constant 0 : i32
    %c0_i32_1 = arith.constant 0 : i32
    return %c0_i32, %c0_i32_0 : i32, i32
  }
  func.func @transform_3(%arg0: i32) -> (i32, i32, i32, i32) {
    %c0_i32 = arith.constant 0 : i32
    %c0_i32_0 = arith.constant 0 : i32
    %c0_i32_1 = arith.constant 0 : i32
    %c0_i32_2 = arith.constant 0 : i32
    return %arg0, %c0_i32, %c0_i32_0, %c0_i32_1 : i32, i32, i32, i32
  }
}

module attributes {stable_mosaic.version = 11 : i64} {
  func.func @conv_pool_kernel(%arg0: i32, %arg1: memref<1x12x8x160xbf16, #tpu.memory_space<vmem>>, %arg2: memref<5x160x64xbf16, #tpu.memory_space<vmem>>, %arg3: memref<1x64xf32, #tpu.memory_space<vmem>>, %arg4: memref<1x4x4x64xbf16, #tpu.memory_space<vmem>>, %arg5: memref<8x8x64xf32, #tpu.memory_space<vmem>>) attributes {dimension_semantics = [#tpu.dimension_semantics<parallel>], iteration_bounds = array<i64: 2>, scalar_prefetch = 0 : i64, scratch_operands = 1 : i64, tpu.core_type = #tpu.core_type<tc>, window_params = [{transform_indices = @transform_0, window_bounds = array<i64: 1, 12, 8, 160>}, {pipeline_mode = #tpu.pipeline_mode<synchronous>, transform_indices = @transform_1, window_bounds = array<i64: 5, 160, 64>}, {pipeline_mode = #tpu.pipeline_mode<synchronous>, transform_indices = @transform_2, window_bounds = array<i64: 1, 64>}, {transform_indices = @transform_3, window_bounds = array<i64: 1, 4, 4, 64>}]} {
    %cst = arith.constant 0.000000e+00 : f32
    %0 = vector.broadcast %cst : f32 to vector<64x64xf32>
    %c0 = arith.constant 0 : index
    %c0_0 = arith.constant 0 : index
    %c0_1 = arith.constant 0 : index
    %c0_2 = arith.constant 0 : index
    %1 = vector.load %arg1[%c0, %c0_0, %c0_1, %c0_2] : memref<1x12x8x160xbf16, #tpu.memory_space<vmem>>, vector<1x8x8x160xbf16>
    %2 = vector.shape_cast %1 : vector<1x8x8x160xbf16> to vector<64x160xbf16>
    %c0_3 = arith.constant 0 : index
    %c0_4 = arith.constant 0 : index
    %c0_5 = arith.constant 0 : index
    %3 = vector.load %arg2[%c0_3, %c0_4, %c0_5] : memref<5x160x64xbf16, #tpu.memory_space<vmem>>, vector<1x160x64xbf16>
    %4 = vector.shape_cast %3 : vector<1x160x64xbf16> to vector<160x64xbf16>
    %cst_6 = arith.constant dense<0.000000e+00> : vector<64x64xf32>
    %5 = tpu.matmul %2, %4, %cst_6 {dimension_numbers = #tpu.dot_dimension_numbers<[1], [0], [0], [1], [0, 0, 1, 1], [], []>} : vector<64x160xbf16>, vector<160x64xbf16>, vector<64x64xf32> -> vector<64x64xf32>
    %6 = arith.addf %0, %5 : vector<64x64xf32>
    %c0_7 = arith.constant 0 : index
    %c1 = arith.constant 1 : index
    %c0_8 = arith.constant 0 : index
    %c0_9 = arith.constant 0 : index
    %7 = vector.load %arg1[%c0_7, %c1, %c0_8, %c0_9] : memref<1x12x8x160xbf16, #tpu.memory_space<vmem>>, vector<1x8x8x160xbf16>
    %8 = vector.shape_cast %7 : vector<1x8x8x160xbf16> to vector<64x160xbf16>
    %c1_10 = arith.constant 1 : index
    %c0_11 = arith.constant 0 : index
    %c0_12 = arith.constant 0 : index
    %9 = vector.load %arg2[%c1_10, %c0_11, %c0_12] : memref<5x160x64xbf16, #tpu.memory_space<vmem>>, vector<1x160x64xbf16>
    %10 = vector.shape_cast %9 : vector<1x160x64xbf16> to vector<160x64xbf16>
    %cst_13 = arith.constant dense<0.000000e+00> : vector<64x64xf32>
    %11 = tpu.matmul %8, %10, %cst_13 {dimension_numbers = #tpu.dot_dimension_numbers<[1], [0], [0], [1], [0, 0, 1, 1], [], []>} : vector<64x160xbf16>, vector<160x64xbf16>, vector<64x64xf32> -> vector<64x64xf32>
    %12 = arith.addf %6, %11 : vector<64x64xf32>
    %c0_14 = arith.constant 0 : index
    %c2 = arith.constant 2 : index
    %c0_15 = arith.constant 0 : index
    %c0_16 = arith.constant 0 : index
    %13 = vector.load %arg1[%c0_14, %c2, %c0_15, %c0_16] : memref<1x12x8x160xbf16, #tpu.memory_space<vmem>>, vector<1x8x8x160xbf16>
    %14 = vector.shape_cast %13 : vector<1x8x8x160xbf16> to vector<64x160xbf16>
    %c2_17 = arith.constant 2 : index
    %c0_18 = arith.constant 0 : index
    %c0_19 = arith.constant 0 : index
    %15 = vector.load %arg2[%c2_17, %c0_18, %c0_19] : memref<5x160x64xbf16, #tpu.memory_space<vmem>>, vector<1x160x64xbf16>
    %16 = vector.shape_cast %15 : vector<1x160x64xbf16> to vector<160x64xbf16>
    %cst_20 = arith.constant dense<0.000000e+00> : vector<64x64xf32>
    %17 = tpu.matmul %14, %16, %cst_20 {dimension_numbers = #tpu.dot_dimension_numbers<[1], [0], [0], [1], [0, 0, 1, 1], [], []>} : vector<64x160xbf16>, vector<160x64xbf16>, vector<64x64xf32> -> vector<64x64xf32>
    %18 = arith.addf %12, %17 : vector<64x64xf32>
    %c0_21 = arith.constant 0 : index
    %c3 = arith.constant 3 : index
    %c0_22 = arith.constant 0 : index
    %c0_23 = arith.constant 0 : index
    %19 = vector.load %arg1[%c0_21, %c3, %c0_22, %c0_23] : memref<1x12x8x160xbf16, #tpu.memory_space<vmem>>, vector<1x8x8x160xbf16>
    %20 = vector.shape_cast %19 : vector<1x8x8x160xbf16> to vector<64x160xbf16>
    %c3_24 = arith.constant 3 : index
    %c0_25 = arith.constant 0 : index
    %c0_26 = arith.constant 0 : index
    %21 = vector.load %arg2[%c3_24, %c0_25, %c0_26] : memref<5x160x64xbf16, #tpu.memory_space<vmem>>, vector<1x160x64xbf16>
    %22 = vector.shape_cast %21 : vector<1x160x64xbf16> to vector<160x64xbf16>
    %cst_27 = arith.constant dense<0.000000e+00> : vector<64x64xf32>
    %23 = tpu.matmul %20, %22, %cst_27 {dimension_numbers = #tpu.dot_dimension_numbers<[1], [0], [0], [1], [0, 0, 1, 1], [], []>} : vector<64x160xbf16>, vector<160x64xbf16>, vector<64x64xf32> -> vector<64x64xf32>
    %24 = arith.addf %18, %23 : vector<64x64xf32>
    %c0_28 = arith.constant 0 : index
    %c4 = arith.constant 4 : index
    %c0_29 = arith.constant 0 : index
    %c0_30 = arith.constant 0 : index
    %25 = vector.load %arg1[%c0_28, %c4, %c0_29, %c0_30] : memref<1x12x8x160xbf16, #tpu.memory_space<vmem>>, vector<1x8x8x160xbf16>
    %26 = vector.shape_cast %25 : vector<1x8x8x160xbf16> to vector<64x160xbf16>
    %c4_31 = arith.constant 4 : index
    %c0_32 = arith.constant 0 : index
    %c0_33 = arith.constant 0 : index
    %27 = vector.load %arg2[%c4_31, %c0_32, %c0_33] : memref<5x160x64xbf16, #tpu.memory_space<vmem>>, vector<1x160x64xbf16>
    %28 = vector.shape_cast %27 : vector<1x160x64xbf16> to vector<160x64xbf16>
    %cst_34 = arith.constant dense<0.000000e+00> : vector<64x64xf32>
    %29 = tpu.matmul %26, %28, %cst_34 {dimension_numbers = #tpu.dot_dimension_numbers<[1], [0], [0], [1], [0, 0, 1, 1], [], []>} : vector<64x160xbf16>, vector<160x64xbf16>, vector<64x64xf32> -> vector<64x64xf32>
    %30 = arith.addf %24, %29 : vector<64x64xf32>
    %c0_35 = arith.constant 0 : index
    %c0_36 = arith.constant 0 : index
    %31 = vector.load %arg3[%c0_35, %c0_36] : memref<1x64xf32, #tpu.memory_space<vmem>>, vector<1x64xf32>
    %32 = vector.broadcast %31 : vector<1x64xf32> to vector<64x64xf32>
    %33 = arith.addf %30, %32 : vector<64x64xf32>
    %34 = vector.shape_cast %33 : vector<64x64xf32> to vector<8x8x64xf32>
    %c0_37 = arith.constant 0 : index
    %c0_38 = arith.constant 0 : index
    %c0_39 = arith.constant 0 : index
    %35 = vector.load %arg5[%c0_37, %c0_38, %c0_39] : memref<8x8x64xf32, #tpu.memory_space<vmem>>, vector<8x8x64xf32>
    tpu.vector_store %arg5[%c0_37, %c0_38, %c0_39], %34 {strides = array<i32>} : memref<8x8x64xf32, #tpu.memory_space<vmem>>, vector<8x8x64xf32>,
    %c0_40 = arith.constant 0 : index
    %c0_41 = arith.constant 0 : index
    %c0_42 = arith.constant 0 : index
    %36 = tpu.strided_load %arg5[%c0_40, %c0_41, %c0_42] {strides = array<i32: 1, 2, 1>} : memref<8x8x64xf32, #tpu.memory_space<vmem>>, vector<8x4x64xf32>
    %c0_43 = arith.constant 0 : index
    %c1_44 = arith.constant 1 : index
    %c0_45 = arith.constant 0 : index
    %37 = tpu.strided_load %arg5[%c0_43, %c1_44, %c0_45] {strides = array<i32: 1, 2, 1>} : memref<8x8x64xf32, #tpu.memory_space<vmem>>, vector<8x4x64xf32>
    %38 = arith.maximumf %36, %37 : vector<8x4x64xf32>
    %39 = vector.shape_cast %38 : vector<8x4x64xf32> to vector<4x2x4x64xf32>
    %cst_46 = arith.constant dense<0xFF800000> : vector<4x4x64xf32>
    %40 = vector.multi_reduction <maximumf>, %39, %cst_46 [1] : vector<4x2x4x64xf32> to vector<4x4x64xf32>
    %41 = vector.shape_cast %40 : vector<4x4x64xf32> to vector<1x4x4x64xf32>
    %42 = arith.truncf %41 : vector<1x4x4x64xf32> to vector<1x4x4x64xbf16>
    %c0_47 = arith.constant 0 : index
    %c0_48 = arith.constant 0 : index
    %c0_49 = arith.constant 0 : index
    %c0_50 = arith.constant 0 : index
    %43 = vector.load %arg4[%c0_47, %c0_48, %c0_49, %c0_50] : memref<1x4x4x64xbf16, #tpu.memory_space<vmem>>, vector<1x4x4x64xbf16>
    tpu.vector_store %arg4[%c0_47, %c0_48, %c0_49, %c0_50], %42 {strides = array<i32>} : memref<1x4x4x64xbf16, #tpu.memory_space<vmem>>, vector<1x4x4x64xbf16>,
    return
  }
  func.func @transform_0(%arg0: i32) -> (i32, i32, i32, i32) {
    %c0_i32 = arith.constant 0 : i32
    %c0_i32_0 = arith.constant 0 : i32
    %c0_i32_1 = arith.constant 0 : i32
    %c0_i32_2 = arith.constant 0 : i32
    return %arg0, %c0_i32, %c0_i32_0, %c0_i32_1 : i32, i32, i32, i32
  }
  func.func @transform_1(%arg0: i32) -> (i32, i32, i32) {
    %c0_i32 = arith.constant 0 : i32
    %c0_i32_0 = arith.constant 0 : i32
    %c0_i32_1 = arith.constant 0 : i32
    %c0_i32_2 = arith.constant 0 : i32
    return %c0_i32, %c0_i32_0, %c0_i32_1 : i32, i32, i32
  }
  func.func @transform_2(%arg0: i32) -> (i32, i32) {
    %c0_i32 = arith.constant 0 : i32
    %c0_i32_0 = arith.constant 0 : i32
    %c0_i32_1 = arith.constant 0 : i32
    return %c0_i32, %c0_i32_0 : i32, i32
  }
  func.func @transform_3(%arg0: i32) -> (i32, i32, i32, i32) {
    %c0_i32 = arith.constant 0 : i32
    %c0_i32_0 = arith.constant 0 : i32
    %c0_i32_1 = arith.constant 0 : i32
    %c0_i32_2 = arith.constant 0 : i32
    return %arg0, %c0_i32, %c0_i32_0, %c0_i32_1 : i32, i32, i32, i32
  }
}

module attributes {stable_mosaic.version = 11 : i64} {
  func.func @mlp_kernel(%arg0: i32, %arg1: memref<2x1024xbf16, #tpu.memory_space<vmem>>, %arg2: memref<1024x64xbf16, #tpu.memory_space<vmem>>, %arg3: memref<1x64xf32, #tpu.memory_space<vmem>>, %arg4: memref<64x10xbf16, #tpu.memory_space<vmem>>, %arg5: memref<1x10xf32, #tpu.memory_space<vmem>>, %arg6: memref<2x10xf32, #tpu.memory_space<vmem>>) attributes {dimension_semantics = [#tpu.dimension_semantics<parallel>], iteration_bounds = array<i64: 1>, scalar_prefetch = 0 : i64, scratch_operands = 0 : i64, tpu.core_type = #tpu.core_type<tc>, window_params = [{transform_indices = @transform_0, window_bounds = array<i64: 2, 1024>}, {pipeline_mode = #tpu.pipeline_mode<synchronous>, transform_indices = @transform_1, window_bounds = array<i64: 1024, 64>}, {pipeline_mode = #tpu.pipeline_mode<synchronous>, transform_indices = @transform_2, window_bounds = array<i64: 1, 64>}, {pipeline_mode = #tpu.pipeline_mode<synchronous>, transform_indices = @transform_3, window_bounds = array<i64: 64, 10>}, {pipeline_mode = #tpu.pipeline_mode<synchronous>, transform_indices = @transform_4, window_bounds = array<i64: 1, 10>}, {transform_indices = @transform_5, window_bounds = array<i64: 2, 10>}]} {
    %c0 = arith.constant 0 : index
    %c0_0 = arith.constant 0 : index
    %0 = vector.load %arg1[%c0, %c0_0] : memref<2x1024xbf16, #tpu.memory_space<vmem>>, vector<2x1024xbf16>
    %c0_1 = arith.constant 0 : index
    %c0_2 = arith.constant 0 : index
    %1 = vector.load %arg2[%c0_1, %c0_2] : memref<1024x64xbf16, #tpu.memory_space<vmem>>, vector<1024x64xbf16>
    %cst = arith.constant dense<0.000000e+00> : vector<2x64xf32>
    %2 = tpu.matmul %0, %1, %cst {dimension_numbers = #tpu.dot_dimension_numbers<[1], [0], [0], [1], [0, 0, 1, 1], [], []>} : vector<2x1024xbf16>, vector<1024x64xbf16>, vector<2x64xf32> -> vector<2x64xf32>
    %c0_3 = arith.constant 0 : index
    %c0_4 = arith.constant 0 : index
    %3 = vector.load %arg3[%c0_3, %c0_4] : memref<1x64xf32, #tpu.memory_space<vmem>>, vector<1x64xf32>
    %4 = vector.broadcast %3 : vector<1x64xf32> to vector<2x64xf32>
    %5 = arith.addf %2, %4 : vector<2x64xf32>
    %6 = arith.truncf %5 : vector<2x64xf32> to vector<2x64xbf16>
    %c0_5 = arith.constant 0 : index
    %c0_6 = arith.constant 0 : index
    %7 = vector.load %arg4[%c0_5, %c0_6] : memref<64x10xbf16, #tpu.memory_space<vmem>>, vector<64x10xbf16>
    %cst_7 = arith.constant dense<0.000000e+00> : vector<2x10xf32>
    %8 = tpu.matmul %6, %7, %cst_7 {dimension_numbers = #tpu.dot_dimension_numbers<[1], [0], [0], [1], [0, 0, 1, 1], [], []>} : vector<2x64xbf16>, vector<64x10xbf16>, vector<2x10xf32> -> vector<2x10xf32>
    %c0_8 = arith.constant 0 : index
    %c0_9 = arith.constant 0 : index
    %9 = vector.load %arg5[%c0_8, %c0_9] : memref<1x10xf32, #tpu.memory_space<vmem>>, vector<1x10xf32>
    %10 = vector.broadcast %9 : vector<1x10xf32> to vector<2x10xf32>
    %11 = arith.addf %8, %10 : vector<2x10xf32>
    %c0_10 = arith.constant 0 : index
    %c0_11 = arith.constant 0 : index
    %12 = vector.load %arg6[%c0_10, %c0_11] : memref<2x10xf32, #tpu.memory_space<vmem>>, vector<2x10xf32>
    tpu.vector_store %arg6[%c0_10, %c0_11], %11 {strides = array<i32>} : memref<2x10xf32, #tpu.memory_space<vmem>>, vector<2x10xf32>,
    return
  }
  func.func @transform_0(%arg0: i32) -> (i32, i32) {
    %c0_i32 = arith.constant 0 : i32
    %c0_i32_0 = arith.constant 0 : i32
    return %arg0, %c0_i32 : i32, i32
  }
  func.func @transform_1(%arg0: i32) -> (i32, i32) {
    %c0_i32 = arith.constant 0 : i32
    %c0_i32_0 = arith.constant 0 : i32
    %c0_i32_1 = arith.constant 0 : i32
    return %c0_i32, %c0_i32_0 : i32, i32
  }
  func.func @transform_2(%arg0: i32) -> (i32, i32) {
    %c0_i32 = arith.constant 0 : i32
    %c0_i32_0 = arith.constant 0 : i32
    %c0_i32_1 = arith.constant 0 : i32
    return %c0_i32, %c0_i32_0 : i32, i32
  }
  func.func @transform_3(%arg0: i32) -> (i32, i32) {
    %c0_i32 = arith.constant 0 : i32
    %c0_i32_0 = arith.constant 0 : i32
    %c0_i32_1 = arith.constant 0 : i32
    return %c0_i32, %c0_i32_0 : i32, i32
  }
  func.func @transform_4(%arg0: i32) -> (i32, i32) {
    %c0_i32 = arith.constant 0 : i32
    %c0_i32_0 = arith.constant 0 : i32
    %c0_i32_1 = arith.constant 0 : i32
    return %c0_i32, %c0_i32_0 : i32, i32
  }
  func.func @transform_5(%arg0: i32) -> (i32, i32) {
    %c0_i32 = arith.constant 0 : i32
    %c0_i32_0 = arith.constant 0 : i32
    return %arg0, %c0_i32 : i32, i32
  }
}

</mosaic_0001>

<llo_original>
// kernel: damon_forward.4
$region0: #{damon_forward.4}
  #allocation0 [shape = 'u32[]', space=smem, size = 0x4, offset = 0x4, fixed_abs, tag = 'smem constant byte address 0x4 - core index']
  #allocation1 [shape = 'u32[72,128]{1,0:T(1,128)}', space=vmem, size = 0x9000, scoped, tag = 'internal scratch']
  #allocation2 [shape = 'f32[8,32,32]{2,1,0:T(8,128)}', space=vmem, size = 0x20000, scoped, tag = 'scratch operand']
  %s0 = inlined_call_operand.vmem [shape: bf16[2,32,32,75], index: 0, kind: input, shape index: {}]
  %s1 = inlined_call_operand.vmem [shape: bf16[1,75,32], index: 1, kind: input, shape index: {}]
  %s2 = inlined_call_operand.vmem [shape: f32[1,32], index: 2, kind: input, shape index: {}]
  %s3 = inlined_call_operand.vmem [shape: bf16[2,16,16,32], index: 3, kind: output, shape index: {}]
  %s4 = sld [smem:[#allocation0]]
  $region45: #{damon_forward.4} parent=0
    _
  %s6 = ssub.s32 1, %s4
  %s7 = scalar_select 0, %s6, %s4
  loop: start=0, step=1, limit=4
  $region2: #{damon_forward.4} parent=0 // loop_pre_header
    _
  $region3: #{damon_forward.4} parent=0 // loop_header
    %s9 = sphi 0, %s13
    %p10 = scmp.ge.s32.totalorder %s9, 4
    %s19 = sphi 0, %s21
    %s22 = sphi 0, %s19
    %s23 = sphi 0, %s22
    %s39 = sphi 0, %s23
    %s43 = sphi 0, %s43
    %s45 = sphi 0, %s43
    %s46 = sphi 0, %s45
    %s60 = sphi 0, %s46
    %s64 = sphi 0, %s64
    %s66 = sphi 0, %s64
    %s67 = sphi 0, %s66
    %s81 = sphi 0, %s67
    %s87 = sphi 0, %s89
    %s90 = sphi 0, %s87
    %s91 = sphi 0, %s90
    %s107 = sphi 0, %s91
  $region4: #{damon_forward.4} parent=0 // loop_header_branch
    %12 = sbr.rel (%p10) target = $region8
  $region5: #{damon_forward.4} parent=0 // loop_body
    %s14 = ssub.s32 %s9, 1
    %s15 = ssub.s32 %s9, 2
    %s16 = sadd.s32 %s9, 1
    %s17 = ssub.s32 %s9, %s16
    %p18 = scmp.eq.s32.totalorder %s17, 0
    %s20 = sadd.s32 %s19, 1
    %s21 = scalar_select %p18, %s19, %s20
    %p24 = pneg %p18
    %p25 = scmp.eq.s32.totalorder %s9, 1
    %p26 = por %p24, %p25
    %p27 = scmp.ne.s32.totalorder %s19, %s22
    %p28 = scmp.eq.s32.totalorder %s9, 0
    %p29 = por %p27, %p28
    %p30 = scmp.ne.s32.totalorder %s19, %s22
    %p31 = scmp.eq.s32.totalorder %s14, 1
    %p32 = por %p30, %p31
    %p33 = scmp.ne.s32.totalorder %s22, %s23
    %p34 = scmp.eq.s32.totalorder %s14, 0
    %p35 = por %p33, %p34
    %p36 = scmp.ne.s32.totalorder %s22, %s23
    %p37 = scmp.eq.s32.totalorder %s15, 1
    %p38 = por %p36, %p37
    %p40 = scmp.ne.s32.totalorder %s23, %s39
    %p41 = scmp.eq.s32.totalorder %s15, 0
    %p42 = por %p40, %p41
    %s44 = sadd.s32 %s43, 1
    %p47 = scmp.eq.s32.totalorder %s9, 1
    %p48 = scmp.ne.s32.totalorder %s43, %s45
    %p49 = scmp.eq.s32.totalorder %s9, 0
    %p50 = por %p48, %p49
    %p51 = scmp.ne.s32.totalorder %s43, %s45
    %p52 = scmp.eq.s32.totalorder %s14, 1
    %p53 = por %p51, %p52
    %p54 = scmp.ne.s32.totalorder %s45, %s46
    %p55 = scmp.eq.s32.totalorder %s14, 0
    %p56 = por %p54, %p55
    %p57 = scmp.ne.s32.totalorder %s45, %s46
    %p58 = scmp.eq.s32.totalorder %s15, 1
    %p59 = por %p57, %p58
    %p61 = scmp.ne.s32.totalorder %s46, %s60
    %p62 = scmp.eq.s32.totalorder %s15, 0
    %p63 = por %p61, %p62
    %s65 = sadd.s32 %s64, 1
    %p68 = scmp.eq.s32.totalorder %s9, 1
    %p69 = scmp.ne.s32.totalorder %s64, %s66
    %p70 = scmp.eq.s32.totalorder %s9, 0
    %p71 = por %p69, %p70
    %p72 = scmp.ne.s32.totalorder %s64, %s66
    %p73 = scmp.eq.s32.totalorder %s14, 1
    %p74 = por %p72, %p73
    %p75 = scmp.ne.s32.totalorder %s66, %s67
    %p76 = scmp.eq.s32.totalorder %s14, 0
    %p77 = por %p75, %p76
    %p78 = scmp.ne.s32.totalorder %s66, %s67
    %p79 = scmp.eq.s32.totalorder %s15, 1
    %p80 = por %p78, %p79
    %p82 = scmp.ne.s32.totalorder %s67, %s81
    %p83 = scmp.eq.s32.totalorder %s15, 0
    %p84 = por %p82, %p83
    %s85 = ssub.s32 %s9, %s16
    %p86 = scmp.eq.s32.totalorder %s85, 0
    %s88 = sadd.s32 %s87, 1
    %s89 = scalar_select %p86, %s87, %s88
    %p92 = pneg %p86
    %p93 = scmp.eq.s32.totalorder %s9, 1
    %p94 = por %p92, %p93
    %p95 = scmp.ne.s32.totalorder %s87, %s90
    %p96 = scmp.eq.s32.totalorder %s9, 0
    %p97 = por %p95, %p96
    %p98 = scmp.ne.s32.totalorder %s87, %s90
    %p99 = scmp.eq.s32.totalorder %s14, 1
    %p100 = por %p98, %p99
    %p101 = scmp.ne.s32.totalorder %s90, %s91
    %p102 = scmp.eq.s32.totalorder %s14, 0
    %p103 = por %p101, %p102
    %p104 = scmp.ne.s32.totalorder %s90, %s91
    %p105 = scmp.eq.s32.totalorder %s15, 1
    %p106 = por %p104, %p105
    %p108 = scmp.ne.s32.totalorder %s91, %s107
    %p109 = scmp.eq.s32.totalorder %s15, 0
    %p110 = por %p108, %p109
    %p111 = scmp.le.s32.totalorder 1, %s9
    %p112 = scmp.lt.s32.totalorder %s9, 3
    %p113 = pnand %p111, %p112
    %p114 = pneg %p113
    // Predicated region
    $region9: #{damon_forward.4} parent=5 // pred_check
      _
    $region10: #{damon_forward.4} parent=5 // pred_check_branch
      %116 = sbr.rel (%p113) target = $region12
    $region11: #{damon_forward.4} parent=5 // pred_region
      %s117 = ssub.s32 %s9, 1
      // Predicated region
      $region13: #{damon_forward.4} parent=11 // pred_check
        %p118 = pneg %p56
      $region14: #{damon_forward.4} parent=11 // pred_check_branch
        %120 = sbr.rel (%p118) target = $region16
      $region15: #{damon_forward.4} parent=11 // pred_region
        _
      $region16: #{damon_forward.4} parent=11 // pred_fallthru
        _
      // Predicated region
      $region17: #{damon_forward.4} parent=11 // pred_check
        %p121 = pneg %p77
      $region18: #{damon_forward.4} parent=11 // pred_check_branch
        %123 = sbr.rel (%p121) target = $region20
      $region19: #{damon_forward.4} parent=11 // pred_region
        _
      $region20: #{damon_forward.4} parent=11 // pred_fallthru
        _
    $region12: #{damon_forward.4} parent=5 // pred_fallthru
      _
    %p124 = scmp.lt.s32.totalorder %s9, 2
    // Predicated region
    $region21: #{damon_forward.4} parent=5 // pred_check
      %p125 = pneg %p124
    $region22: #{damon_forward.4} parent=5 // pred_check_branch
      %127 = sbr.rel (%p125) target = $region24
    $region23: #{damon_forward.4} parent=5 // pred_region
      // Predicated region
      $region25: #{damon_forward.4} parent=23 // pred_check
        %p128 = pneg %p29
      $region26: #{damon_forward.4} parent=23 // pred_check_branch
        %130 = sbr.rel (%p128) target = $region28
      $region27: #{damon_forward.4} parent=23 // pred_region
        %p131 = scmp.lt.s32.totalorder %s9, 1
        %s132 = scalar_select %p131, %s9, 1
        %s133 = smul.addr %s132, 128
        %s134 = smul.addr %s133, 4
        %s135 = scalar_lea.vmem %s0, %s134
      $region28: #{damon_forward.4} parent=23 // pred_fallthru
        _
    $region24: #{damon_forward.4} parent=5 // pred_fallthru
      _
    %p136 = scmp.le.s32.totalorder 1, %s9
    %p137 = scmp.lt.s32.totalorder %s9, 3
    %p138 = pnand %p136, %p137
    %p139 = pneg %p138
    // Predicated region
    $region29: #{damon_forward.4} parent=5 // pred_check
      _
    $region30: #{damon_forward.4} parent=5 // pred_check_branch
      %141 = sbr.rel (%p138) target = $region32
    $region31: #{damon_forward.4} parent=5 // pred_region
      %s142 = ssub.s32 %s9, 1
      %p143 = scmp.lt.s32.totalorder %s14, 1
      %s144 = scalar_select %p143, %s14, 1
      %s145 = smul.addr %s144, 128
      %s146 = smul.addr %s145, 4
      %s147 = scalar_lea.vmem %s0, %s146
      %p148 = pneg %p35
      %p149 = pneg %p32
      %p150 = pneg %p56
      %p151 = pneg %p53
      %p152 = pneg %p77
      %p153 = pneg %p74
      %p154 = pneg %p103
      %p155 = pneg %p100
      %p156 = scmp.lt.s32.totalorder %s14, 1
      %s157 = scalar_select %p156, %s14, 1
      %s158 = smul.addr %s157, 32
      %s159 = smul.addr %s158, 4
      %s160 = scalar_lea.vmem %s3, %s159
      %p161 = scmp.lt.s32.totalorder %s14, 1
      %s162 = scalar_select %p161, %s14, 1
      %s163 = smul.addr %s162, 128
      %s164 = smul.addr %s163, 4
      %s165 = scalar_lea.vmem %s0, %s164
      %p166 = scmp.lt.s32.totalorder %s14, 1
      %s167 = scalar_select %p166, %s14, 1
      %s168 = smul.addr %s167, 32
      %s169 = smul.addr %s168, 4
      %s170 = scalar_lea.vmem %s3, %s169
      %v172 = vld [vmem:[%s165] sm:$0xf]
      %v173 = vld [vmem:[%s165 + $0x4] sm:$0xf]
      %v174 = vld [vmem:[%s165 + $0x8] sm:$0xf]
      %v175 = vld [vmem:[%s165 + $0xc] sm:$0xf]
      %v176 = vld [vmem:[%s165 + $0x10] sm:$0xf]
      %v177 = vld [vmem:[%s165 + $0x14] sm:$0xf]
      %v178 = vld [vmem:[%s165 + $0x18] sm:$0xf]
      %v179 = vld [vmem:[%s165 + $0x1c] sm:$0xf]
      %v180 = vld [vmem:[%s165 + $0x20] sm:$0xf]
      %v181 = vld [vmem:[%s165 + $0x24] sm:$0xf]
      %v182 = vld [vmem:[%s165 + $0x28] sm:$0xf]
      %v183 = vld [vmem:[%s165 + $0x2c] sm:$0xf]
      %v184 = vld [vmem:[%s165 + $0x30] sm:$0xf]
      %v185 = vld [vmem:[%s165 + $0x34] sm:$0xf]
      %v186 = vld [vmem:[%s165 + $0x38] sm:$0xf]
      %v187 = vld [vmem:[%s165 + $0x3c] sm:$0xf]
      %v188 = vld [vmem:[%s165 + $0x40] sm:$0xf]
      %v189 = vld [vmem:[%s165 + $0x44] sm:$0xf]
      %v190 = vld [vmem:[%s165 + $0x48] sm:$0xf]
      %v191 = vld [vmem:[%s165 + $0x4c] sm:$0xf]
      %v192 = vld [vmem:[%s165 + $0x50] sm:$0xf]
      %v193 = vld [vmem:[%s165 + $0x54] sm:$0xf]
      %v194 = vld [vmem:[%s165 + $0x58] sm:$0xf]
      %v195 = vld [vmem:[%s165 + $0x5c] sm:$0xf]
      %v196 = vld [vmem:[%s165 + $0x60] sm:$0xf]
      %v197 = vld [vmem:[%s165 + $0x64] sm:$0xf]
      %v198 = vld [vmem:[%s165 + $0x68] sm:$0xf]
      %v199 = vld [vmem:[%s165 + $0x6c] sm:$0xf]
      %v200 = vld [vmem:[%s165 + $0x70] sm:$0xf]
      %v201 = vld [vmem:[%s165 + $0x74] sm:$0xf]
      %v202 = vld [vmem:[%s165 + $0x78] sm:$0xf]
      %v203 = vld [vmem:[%s165 + $0x7c] sm:$0xf]
      %v204 = vld [vmem:[%s1] sm:$0xf]
      %v205 = vld [vmem:[%s1 + $0x4] sm:$0xf]
      %v206 = vld [vmem:[%s1 + $0x8] sm:$0xf]
      %v207 = vld [vmem:[%s1 + $0xc] sm:$0xf]
      %v208 = vld [vmem:[%s1 + $0x10] sm:$0xf]
      %v209 = vld [vmem:[%s1 + $0x14] sm:$0xf]
      %v210 = vld [vmem:[%s1 + $0x18] sm:$0xf]
      %v211 = vld [vmem:[%s1 + $0x1c] sm:$0xf]
      %v212 = vld [vmem:[%s1 + $0x20] sm:$0xf]
      %v213 = vld [vmem:[%s1 + $0x24] sm:$0x3]
      %v214 = vld [vmem:[%s2] sm:$0x1]
      %v216 = vperm.slane %v214, 0
      %v250 = vunpack.c.l.b16 %v172
      %v251 = vunpack.c.l.b16 %v173
      %v252 = vunpack.c.l.b16 %v174
      %v253 = vunpack.c.l.b16 %v175
      %v254 = vunpack.c.l.b16 %v176
      %v255 = vunpack.c.l.b16 %v177
      %v256 = vunpack.c.l.b16 %v178
      %v257 = vunpack.c.l.b16 %v179
      %v258 = vunpack.c.l.b16 %v180
      %v259 = vunpack.c.l.b16 %v181
      %v260 = vunpack.c.l.b16 %v182
      %v261 = vunpack.c.l.b16 %v183
      %v262 = vunpack.c.l.b16 %v184
      %v263 = vunpack.c.l.b16 %v185
      %v264 = vunpack.c.l.b16 %v186
      %v265 = vunpack.c.l.b16 %v187
      %v266 = vunpack.c.l.b16 %v188
      %v267 = vunpack.c.l.b16 %v189
      %v268 = vunpack.c.l.b16 %v190
      %v269 = vunpack.c.l.b16 %v191
      %v270 = vunpack.c.l.b16 %v192
      %v271 = vunpack.c.l.b16 %v193
      %v272 = vunpack.c.l.b16 %v194
      %v273 = vunpack.c.l.b16 %v195
      %v274 = vunpack.c.l.b16 %v196
      %v275 = vunpack.c.l.b16 %v197
      %v276 = vunpack.c.l.b16 %v198
      %v277 = vunpack.c.l.b16 %v199
      %v278 = vunpack.c.l.b16 %v200
      %v279 = vunpack.c.l.b16 %v201
      %v280 = vunpack.c.l.b16 %v202
      %v281 = vunpack.c.l.b16 %v203
      %v282 = vpack.c.b16 %v251, %v250
      %v283 = vpack.c.b16 %v253, %v252
      %v284 = vpack.c.b16 %v255, %v254
      %v285 = vpack.c.b16 %v257, %v256
      %v286 = vpack.c.b16 %v259, %v258
      %v287 = vpack.c.b16 %v261, %v260
      %v288 = vpack.c.b16 %v263, %v262
      %v289 = vpack.c.b16 %v265, %v264
      %v290 = vpack.c.b16 %v267, %v266
      %v291 = vpack.c.b16 %v269, %v268
      %v292 = vpack.c.b16 %v271, %v270
      %v293 = vpack.c.b16 %v273, %v272
      %v294 = vpack.c.b16 %v275, %v274
      %v295 = vpack.c.b16 %v277, %v276
      %v296 = vpack.c.b16 %v279, %v278
      %v297 = vpack.c.b16 %v281, %v280
      %v308 = vunpack.c.l.b16 %v204
      %v309 = vunpack.c.l.b16 %v205
      %v310 = vunpack.c.l.b16 %v206
      %v311 = vunpack.c.l.b16 %v207
      %v312 = vunpack.c.l.b16 %v208
      %v313 = vunpack.c.l.b16 %v209
      %v314 = vunpack.c.l.b16 %v210
      %v315 = vunpack.c.l.b16 %v211
      %v316 = vunpack.c.l.b16 %v212
      %v317 = vunpack.c.l.b16 %v213
      %v318 = vpack.c.b16 %v309, %v308
      %v319 = vpack.c.b16 %v311, %v310
      %v320 = vpack.c.b16 %v313, %v312
      %v321 = vpack.c.b16 %v315, %v314
      %v322 = vpack.c.b16 %v317, %v316
      %vm327 = vcmask 613376
      %v329 = vsel %vm327, %v282, 0
      %v332 = vsel %vm327, %v283, 0
      %v335 = vsel %vm327, %v284, 0
      %v338 = vsel %vm327, %v285, 0
      %v341 = vsel %vm327, %v286, 0
      %v344 = vsel %vm327, %v287, 0
      %v347 = vsel %vm327, %v288, 0
      %v350 = vsel %vm327, %v289, 0
      %v353 = vsel %vm327, %v290, 0
      %v356 = vsel %vm327, %v291, 0
      %v359 = vsel %vm327, %v292, 0
      %v362 = vsel %vm327, %v293, 0
      %v365 = vsel %vm327, %v294, 0
      %v368 = vsel %vm327, %v295, 0
      %v371 = vsel %vm327, %v296, 0
      %v374 = vsel %vm327, %v297, 0
      %vm376 = vcmask 1044480
      %vm377 = vcmask 1045504
      %v378 = vsel %vm376, 4294967295, 65535
      %v379 = vsel %vm377, %v378, 0
      %v381 = vand.u32 %v322, %v379
      %383 = vmatpush.bf16.msra.mxu0 0
      %384 = vmatpush.bf16.msra.mxu0 0
      %385 = vmatpush.bf16.msra.mxu0 0
      %386 = vmatpush.bf16.msra.mxu0 %v381
      %387 = vmatpush.bf16.msra.mxu0 %v321
      %388 = vmatpush.bf16.msra.mxu0 %v320
      %389 = vmatpush.bf16.msra.mxu0 %v319
      %390 = vmatpush.bf16.msra.mxu0 %v318
      %391 = vmatmul.bf16.gmra.mxu0 %v329
      %v392 = vpop.f32.mrf.mxu0
      %v393 = vadd.f32 %v216, %v392
      %v394 = vpop.f32.mrf.mxu0
      %v395 = vadd.f32 %v216, %v394
      %396 = vmatmul.bf16.gmra.mxu0 %v332
      %v397 = vpop.f32.mrf.mxu0
      %v398 = vadd.f32 %v216, %v397
      %v399 = vpop.f32.mrf.mxu0
      %v400 = vadd.f32 %v216, %v399
      %401 = vmatmul.bf16.gmra.mxu0 %v335
      %v402 = vpop.f32.mrf.mxu0
      %v403 = vadd.f32 %v216, %v402
      %v404 = vpop.f32.mrf.mxu0
      %v405 = vadd.f32 %v216, %v404
      %406 = vmatmul.bf16.gmra.mxu0 %v338
      %v407 = vpop.f32.mrf.mxu0
      %v408 = vadd.f32 %v216, %v407
      %v409 = vpop.f32.mrf.mxu0
      %v410 = vadd.f32 %v216, %v409
      %411 = vmatmul.bf16.gmra.mxu0 %v341
      %v412 = vpop.f32.mrf.mxu0
      %v413 = vadd.f32 %v216, %v412
      %v414 = vpop.f32.mrf.mxu0
      %v415 = vadd.f32 %v216, %v414
      %416 = vmatmul.bf16.gmra.mxu0 %v344
      %v417 = vpop.f32.mrf.mxu0
      %v418 = vadd.f32 %v216, %v417
      %v419 = vpop.f32.mrf.mxu0
      %v420 = vadd.f32 %v216, %v419
      %421 = vmatmul.bf16.gmra.mxu0 %v347
      %v422 = vpop.f32.mrf.mxu0
      %v423 = vadd.f32 %v216, %v422
      %v424 = vpop.f32.mrf.mxu0
      %v425 = vadd.f32 %v216, %v424
      %426 = vmatmul.bf16.gmra.mxu0 %v350
      %v427 = vpop.f32.mrf.mxu0
      %v428 = vadd.f32 %v216, %v427
      %v429 = vpop.f32.mrf.mxu0
      %v430 = vadd.f32 %v216, %v429
      %431 = vmatmul.bf16.gmra.mxu0 %v353
      %v432 = vpop.f32.mrf.mxu0
      %v433 = vadd.f32 %v216, %v432
      %v434 = vpop.f32.mrf.mxu0
      %v435 = vadd.f32 %v216, %v434
      %436 = vmatmul.bf16.gmra.mxu0 %v356
      %v437 = vpop.f32.mrf.mxu0
      %v438 = vadd.f32 %v216, %v437
      %v439 = vpop.f32.mrf.mxu0
      %v440 = vadd.f32 %v216, %v439
      %441 = vmatmul.bf16.gmra.mxu0 %v359
      %v442 = vpop.f32.mrf.mxu0
      %v443 = vadd.f32 %v216, %v442
      %v444 = vpop.f32.mrf.mxu0
      %v445 = vadd.f32 %v216, %v444
      %446 = vmatmul.bf16.gmra.mxu0 %v362
      %v447 = vpop.f32.mrf.mxu0
      %v448 = vadd.f32 %v216, %v447
      %v449 = vpop.f32.mrf.mxu0
      %v450 = vadd.f32 %v216, %v449
      %451 = vmatmul.bf16.gmra.mxu0 %v365
      %v452 = vpop.f32.mrf.mxu0
      %v453 = vadd.f32 %v216, %v452
      %v454 = vpop.f32.mrf.mxu0
      %v455 = vadd.f32 %v216, %v454
      %456 = vmatmul.bf16.gmra.mxu0 %v368
      %v457 = vpop.f32.mrf.mxu0
      %v458 = vadd.f32 %v216, %v457
      %v459 = vpop.f32.mrf.mxu0
      %v460 = vadd.f32 %v216, %v459
      %461 = vmatmul.bf16.gmra.mxu0 %v371
      %v462 = vpop.f32.mrf.mxu0
      %v463 = vadd.f32 %v216, %v462
      %v464 = vpop.f32.mrf.mxu0
      %v465 = vadd.f32 %v216, %v464
      %466 = vmatmul.bf16.gmra.mxu0 %v374
      %v467 = vpop.f32.mrf.mxu0
      %v468 = vadd.f32 %v216, %v467
      %v469 = vpop.f32.mrf.mxu0
      %v470 = vadd.f32 %v216, %v469
      %471 = vdwg.mxu0
      %vm472 = vcmask 261120
      %473 = vst.msk [vmem:[#allocation2] sm:$0xff] %vm472, %v393
      %474 = vst.msk [vmem:[#allocation2 + $0x8] sm:$0xff] %vm472, %v395
      %475 = vst.msk [vmem:[#allocation2 + $0x10] sm:$0xff] %vm472, %v398
      %476 = vst.msk [vmem:[#allocation2 + $0x18] sm:$0xff] %vm472, %v400
      %477 = vst.msk [vmem:[#allocation2 + $0x20] sm:$0xff] %vm472, %v403
      %478 = vst.msk [vmem:[#allocation2 + $0x28] sm:$0xff] %vm472, %v405
      %479 = vst.msk [vmem:[#allocation2 + $0x30] sm:$0xff] %vm472, %v408
      %480 = vst.msk [vmem:[#allocation2 + $0x38] sm:$0xff] %vm472, %v410
      %481 = vst.msk [vmem:[#allocation2 + $0x40] sm:$0xff] %vm472, %v413
      %482 = vst.msk [vmem:[#allocation2 + $0x48] sm:$0xff] %vm472, %v415
      %483 = vst.msk [vmem:[#allocation2 + $0x50] sm:$0xff] %vm472, %v418
      %484 = vst.msk [vmem:[#allocation2 + $0x58] sm:$0xff] %vm472, %v420
      %485 = vst.msk [vmem:[#allocation2 + $0x60] sm:$0xff] %vm472, %v423
      %486 = vst.msk [vmem:[#allocation2 + $0x68] sm:$0xff] %vm472, %v425
      %487 = vst.msk [vmem:[#allocation2 + $0x70] sm:$0xff] %vm472, %v428
      %488 = vst.msk [vmem:[#allocation2 + $0x78] sm:$0xff] %vm472, %v430
      %489 = vst.msk [vmem:[#allocation2 + $0x80] sm:$0xff] %vm472, %v433
      %490 = vst.msk [vmem:[#allocation2 + $0x88] sm:$0xff] %vm472, %v435
      %491 = vst.msk [vmem:[#allocation2 + $0x90] sm:$0xff] %vm472, %v438
      %492 = vst.msk [vmem:[#allocation2 + $0x98] sm:$0xff] %vm472, %v440
      %493 = vst.msk [vmem:[#allocation2 + $0xa0] sm:$0xff] %vm472, %v443
      %494 = vst.msk [vmem:[#allocation2 + $0xa8] sm:$0xff] %vm472, %v445
      %495 = vst.msk [vmem:[#allocation2 + $0xb0] sm:$0xff] %vm472, %v448
      %496 = vst.msk [vmem:[#allocation2 + $0xb8] sm:$0xff] %vm472, %v450
      %497 = vst.msk [vmem:[#allocation2 + $0xc0] sm:$0xff] %vm472, %v453
      %498 = vst.msk [vmem:[#allocation2 + $0xc8] sm:$0xff] %vm472, %v455
      %499 = vst.msk [vmem:[#allocation2 + $0xd0] sm:$0xff] %vm472, %v458
      %500 = vst.msk [vmem:[#allocation2 + $0xd8] sm:$0xff] %vm472, %v460
      %501 = vst.msk [vmem:[#allocation2 + $0xe0] sm:$0xff] %vm472, %v463
      %502 = vst.msk [vmem:[#allocation2 + $0xe8] sm:$0xff] %vm472, %v465
      %503 = vst.msk [vmem:[#allocation2 + $0xf0] sm:$0xff] %vm472, %v468
      %504 = vst.msk [vmem:[#allocation2 + $0xf8] sm:$0xff] %vm472, %v470
      %v505 = vld [vmem:[#allocation2] ss:$2 sm:$0xff]
      %s506 = scalar_lea.vmem [#allocation2], 16
      %v507 = vld [vmem:[%s506] ss:$2 sm:$0xff]
      %s508 = scalar_lea.vmem [#allocation2], 32
      %v509 = vld [vmem:[%s508] ss:$2 sm:$0xff]
      %s510 = scalar_lea.vmem [#allocation2], 48
      %v511 = vld [vmem:[%s510] ss:$2 sm:$0xff]
      %s512 = scalar_lea.vmem [#allocation2], 64
      %v513 = vld [vmem:[%s512] ss:$2 sm:$0xff]
      %s514 = scalar_lea.vmem [#allocation2], 80
      %v515 = vld [vmem:[%s514] ss:$2 sm:$0xff]
      %s516 = scalar_lea.vmem [#allocation2], 96
      %v517 = vld [vmem:[%s516] ss:$2 sm:$0xff]
      %s518 = scalar_lea.vmem [#allocation2], 112
      %v519 = vld [vmem:[%s518] ss:$2 sm:$0xff]
      %s520 = scalar_lea.vmem [#allocation2], 128
      %v521 = vld [vmem:[%s520] ss:$2 sm:$0xff]
      %s522 = scalar_lea.vmem [#allocation2], 144
      %v523 = vld [vmem:[%s522] ss:$2 sm:$0xff]
      %s524 = scalar_lea.vmem [#allocation2], 160
      %v525 = vld [vmem:[%s524] ss:$2 sm:$0xff]
      %s526 = scalar_lea.vmem [#allocation2], 176
      %v527 = vld [vmem:[%s526] ss:$2 sm:$0xff]
      %s528 = scalar_lea.vmem [#allocation2], 192
      %v529 = vld [vmem:[%s528] ss:$2 sm:$0xff]
      %s530 = scalar_lea.vmem [#allocation2], 208
      %v531 = vld [vmem:[%s530] ss:$2 sm:$0xff]
      %s532 = scalar_lea.vmem [#allocation2], 224
      %v533 = vld [vmem:[%s532] ss:$2 sm:$0xff]
      %s534 = scalar_lea.vmem [#allocation2], 240
      %v535 = vld [vmem:[%s534] ss:$2 sm:$0xff]
      %s536 = scalar_lea.vmem [#allocation2], 1
      %v537 = vld [vmem:[%s536] ss:$2 sm:$0xff]
      %s538 = scalar_lea.vmem [#allocation2], 17
      %v539 = vld [vmem:[%s538] ss:$2 sm:$0xff]
      %s540 = scalar_lea.vmem [#allocation2], 33
      %v541 = vld [vmem:[%s540] ss:$2 sm:$0xff]
      %s542 = scalar_lea.vmem [#allocation2], 49
      %v543 = vld [vmem:[%s542] ss:$2 sm:$0xff]
      %s544 = scalar_lea.vmem [#allocation2], 65
      %v545 = vld [vmem:[%s544] ss:$2 sm:$0xff]
      %s546 = scalar_lea.vmem [#allocation2], 81
      %v547 = vld [vmem:[%s546] ss:$2 sm:$0xff]
      %s548 = scalar_lea.vmem [#allocation2], 97
      %v549 = vld [vmem:[%s548] ss:$2 sm:$0xff]
      %s550 = scalar_lea.vmem [#allocation2], 113
      %v551 = vld [vmem:[%s550] ss:$2 sm:$0xff]
      %s552 = scalar_lea.vmem [#allocation2], 129
      %v553 = vld [vmem:[%s552] ss:$2 sm:$0xff]
      %s554 = scalar_lea.vmem [#allocation2], 145
      %v555 = vld [vmem:[%s554] ss:$2 sm:$0xff]
      %s556 = scalar_lea.vmem [#allocation2], 161
      %v557 = vld [vmem:[%s556] ss:$2 sm:$0xff]
      %s558 = scalar_lea.vmem [#allocation2], 177
      %v559 = vld [vmem:[%s558] ss:$2 sm:$0xff]
      %s560 = scalar_lea.vmem [#allocation2], 193
      %v561 = vld [vmem:[%s560] ss:$2 sm:$0xff]
      %s562 = scalar_lea.vmem [#allocation2], 209
      %v563 = vld [vmem:[%s562] ss:$2 sm:$0xff]
      %s564 = scalar_lea.vmem [#allocation2], 225
      %v565 = vld [vmem:[%s564] ss:$2 sm:$0xff]
      %s566 = scalar_lea.vmem [#allocation2], 241
      %v567 = vld [vmem:[%s566] ss:$2 sm:$0xff]
      %v568 = vmax.f32 %v505, %v537
      %v569 = vmax.f32 %v507, %v539
      %v570 = vmax.f32 %v509, %v541
      %v571 = vmax.f32 %v511, %v543
      %v572 = vmax.f32 %v513, %v545
      %v573 = vmax.f32 %v515, %v547
      %v574 = vmax.f32 %v517, %v549
      %v575 = vmax.f32 %v519, %v551
      %v576 = vmax.f32 %v521, %v553
      %v577 = vmax.f32 %v523, %v555
      %v578 = vmax.f32 %v525, %v557
      %v579 = vmax.f32 %v527, %v559
      %v580 = vmax.f32 %v529, %v561
      %v581 = vmax.f32 %v531, %v563
      %v582 = vmax.f32 %v533, %v565
      %v583 = vmax.f32 %v535, %v567
      %v584 = vsel %vm472, %v568, -inf
      %v585 = vsel %vm472, %v570, -inf
      %v586 = vmax.f32 %v584, %v585
      %v587 = vsel %vm472, %v569, -inf
      %v588 = vsel %vm472, %v571, -inf
      %v589 = vmax.f32 %v587, %v588
      %v590 = vsel %vm472, %v572, -inf
      %v591 = vsel %vm472, %v574, -inf
      %v592 = vmax.f32 %v590, %v591
      %v593 = vsel %vm472, %v573, -inf
      %v594 = vsel %vm472, %v575, -inf
      %v595 = vmax.f32 %v593, %v594
      %v596 = vsel %vm472, %v576, -inf
      %v597 = vsel %vm472, %v578, -inf
      %v598 = vmax.f32 %v596, %v597
      %v599 = vsel %vm472, %v577, -inf
      %v600 = vsel %vm472, %v579, -inf
      %v601 = vmax.f32 %v599, %v600
      %v602 = vsel %vm472, %v580, -inf
      %v603 = vsel %vm472, %v582, -inf
      %v604 = vmax.f32 %v602, %v603
      %v605 = vsel %vm472, %v581, -inf
      %v606 = vsel %vm472, %v583, -inf
      %v607 = vmax.f32 %v605, %v606
      %v608 = vpack.c.bf16 %v586, %v586
      %v609 = vpack.c.bf16 %v589, %v589
      %v610 = vpack.c.bf16 %v592, %v592
      %v611 = vpack.c.bf16 %v595, %v595
      %v612 = vpack.c.bf16 %v598, %v598
      %v613 = vpack.c.bf16 %v601, %v601
      %v614 = vpack.c.bf16 %v604, %v604
      %v615 = vpack.c.bf16 %v607, %v607
      %vm616 = vcmask 257024
      %617 = vst.msk [vmem:[%s170] sm:$0xf] %vm616, %v608
      %618 = vst.msk [vmem:[%s170 + $0x4] sm:$0xf] %vm616, %v609
      %619 = vst.msk [vmem:[%s170 + $0x8] sm:$0xf] %vm616, %v610
      %620 = vst.msk [vmem:[%s170 + $0xc] sm:$0xf] %vm616, %v611
      %621 = vst.msk [vmem:[%s170 + $0x10] sm:$0xf] %vm616, %v612
      %622 = vst.msk [vmem:[%s170 + $0x14] sm:$0xf] %vm616, %v613
      %623 = vst.msk [vmem:[%s170 + $0x18] sm:$0xf] %vm616, %v614
      %624 = vst.msk [vmem:[%s170 + $0x1c] sm:$0xf] %vm616, %v615
      %s625 = scalar_lea.vmem %s165, 128
      %v626 = vld [vmem:[%s625] sm:$0xf]
      %v627 = vld [vmem:[%s625 + $0x4] sm:$0xf]
      %v628 = vld [vmem:[%s625 + $0x8] sm:$0xf]
      %v629 = vld [vmem:[%s625 + $0xc] sm:$0xf]
      %v630 = vld [vmem:[%s625 + $0x10] sm:$0xf]
      %v631 = vld [vmem:[%s625 + $0x14] sm:$0xf]
      %v632 = vld [vmem:[%s625 + $0x18] sm:$0xf]
      %v633 = vld [vmem:[%s625 + $0x1c] sm:$0xf]
      %v634 = vld [vmem:[%s625 + $0x20] sm:$0xf]
      %v635 = vld [vmem:[%s625 + $0x24] sm:$0xf]
      %v636 = vld [vmem:[%s625 + $0x28] sm:$0xf]
      %v637 = vld [vmem:[%s625 + $0x2c] sm:$0xf]
      %v638 = vld [vmem:[%s625 + $0x30] sm:$0xf]
      %v639 = vld [vmem:[%s625 + $0x34] sm:$0xf]
      %v640 = vld [vmem:[%s625 + $0x38] sm:$0xf]
      %v641 = vld [vmem:[%s625 + $0x3c] sm:$0xf]
      %v642 = vld [vmem:[%s625 + $0x40] sm:$0xf]
      %v643 = vld [vmem:[%s625 + $0x44] sm:$0xf]
      %v644 = vld [vmem:[%s625 + $0x48] sm:$0xf]
      %v645 = vld [vmem:[%s625 + $0x4c] sm:$0xf]
      %v646 = vld [vmem:[%s625 + $0x50] sm:$0xf]
      %v647 = vld [vmem:[%s625 + $0x54] sm:$0xf]
      %v648 = vld [vmem:[%s625 + $0x58] sm:$0xf]
      %v649 = vld [vmem:[%s625 + $0x5c] sm:$0xf]
      %v650 = vld [vmem:[%s625 + $0x60] sm:$0xf]
      %v651 = vld [vmem:[%s625 + $0x64] sm:$0xf]
      %v652 = vld [vmem:[%s625 + $0x68] sm:$0xf]
      %v653 = vld [vmem:[%s625 + $0x6c] sm:$0xf]
      %v654 = vld [vmem:[%s625 + $0x70] sm:$0xf]
      %v655 = vld [vmem:[%s625 + $0x74] sm:$0xf]
      %v656 = vld [vmem:[%s625 + $0x78] sm:$0xf]
      %v657 = vld [vmem:[%s625 + $0x7c] sm:$0xf]
      %v658 = vld [vmem:[%s1] sm:$0xf]
      %v659 = vld [vmem:[%s1 + $0x4] sm:$0xf]
      %v660 = vld [vmem:[%s1 + $0x8] sm:$0xf]
      %v661 = vld [vmem:[%s1 + $0xc] sm:$0xf]
      %v662 = vld [vmem:[%s1 + $0x10] sm:$0xf]
      %v663 = vld [vmem:[%s1 + $0x14] sm:$0xf]
      %v664 = vld [vmem:[%s1 + $0x18] sm:$0xf]
      %v665 = vld [vmem:[%s1 + $0x1c] sm:$0xf]
      %v666 = vld [vmem:[%s1 + $0x20] sm:$0xf]
      %v667 = vld [vmem:[%s1 + $0x24] sm:$0x3]
      %v668 = vld [vmem:[%s2] sm:$0x1]
      %v670 = vperm.slane %v668, 0
      %v704 = vunpack.c.l.b16 %v626
      %v705 = vunpack.c.l.b16 %v627
      %v706 = vunpack.c.l.b16 %v628
      %v707 = vunpack.c.l.b16 %v629
      %v708 = vunpack.c.l.b16 %v630
      %v709 = vunpack.c.l.b16 %v631
      %v710 = vunpack.c.l.b16 %v632
      %v711 = vunpack.c.l.b16 %v633
      %v712 = vunpack.c.l.b16 %v634
      %v713 = vunpack.c.l.b16 %v635
      %v714 = vunpack.c.l.b16 %v636
      %v715 = vunpack.c.l.b16 %v637
      %v716 = vunpack.c.l.b16 %v638
      %v717 = vunpack.c.l.b16 %v639
      %v718 = vunpack.c.l.b16 %v640
      %v719 = vunpack.c.l.b16 %v641
      %v720 = vunpack.c.l.b16 %v642
      %v721 = vunpack.c.l.b16 %v643
      %v722 = vunpack.c.l.b16 %v644
      %v723 = vunpack.c.l.b16 %v645
      %v724 = vunpack.c.l.b16 %v646
      %v725 = vunpack.c.l.b16 %v647
      %v726 = vunpack.c.l.b16 %v648
      %v727 = vunpack.c.l.b16 %v649
      %v728 = vunpack.c.l.b16 %v650
      %v729 = vunpack.c.l.b16 %v651
      %v730 = vunpack.c.l.b16 %v652
      %v731 = vunpack.c.l.b16 %v653
      %v732 = vunpack.c.l.b16 %v654
      %v733 = vunpack.c.l.b16 %v655
      %v734 = vunpack.c.l.b16 %v656
      %v735 = vunpack.c.l.b16 %v657
      %v736 = vpack.c.b16 %v705, %v704
      %v737 = vpack.c.b16 %v707, %v706
      %v738 = vpack.c.b16 %v709, %v708
      %v739 = vpack.c.b16 %v711, %v710
      %v740 = vpack.c.b16 %v713, %v712
      %v741 = vpack.c.b16 %v715, %v714
      %v742 = vpack.c.b16 %v717, %v716
      %v743 = vpack.c.b16 %v719, %v718
      %v744 = vpack.c.b16 %v721, %v720
      %v745 = vpack.c.b16 %v723, %v722
      %v746 = vpack.c.b16 %v725, %v724
      %v747 = vpack.c.b16 %v727, %v726
      %v748 = vpack.c.b16 %v729, %v728
      %v749 = vpack.c.b16 %v731, %v730
      %v750 = vpack.c.b16 %v733, %v732
      %v751 = vpack.c.b16 %v735, %v734
      %v762 = vunpack.c.l.b16 %v658
      %v763 = vunpack.c.l.b16 %v659
      %v764 = vunpack.c.l.b16 %v660
      %v765 = vunpack.c.l.b16 %v661
      %v766 = vunpack.c.l.b16 %v662
      %v767 = vunpack.c.l.b16 %v663
      %v768 = vunpack.c.l.b16 %v664
      %v769 = vunpack.c.l.b16 %v665
      %v770 = vunpack.c.l.b16 %v666
      %v771 = vunpack.c.l.b16 %v667
      %v772 = vpack.c.b16 %v763, %v762
      %v773 = vpack.c.b16 %v765, %v764
      %v774 = vpack.c.b16 %v767, %v766
      %v775 = vpack.c.b16 %v769, %v768
      %v776 = vpack.c.b16 %v771, %v770
      %v782 = vsel %vm327, %v736, 0
      %v785 = vsel %vm327, %v737, 0
      %v788 = vsel %vm327, %v738, 0
      %v791 = vsel %vm327, %v739, 0
      %v794 = vsel %vm327, %v740, 0
      %v797 = vsel %vm327, %v741, 0
      %v800 = vsel %vm327, %v742, 0
      %v803 = vsel %vm327, %v743, 0
      %v806 = vsel %vm327, %v744, 0
      %v809 = vsel %vm327, %v745, 0
      %v812 = vsel %vm327, %v746, 0
      %v815 = vsel %vm327, %v747, 0
      %v818 = vsel %vm327, %v748, 0
      %v821 = vsel %vm327, %v749, 0
      %v824 = vsel %vm327, %v750, 0
      %v827 = vsel %vm327, %v751, 0
      %v830 = vand.u32 %v776, %v379
      %832 = vmatpush.bf16.msra.mxu0 0
      %833 = vmatpush.bf16.msra.mxu0 0
      %834 = vmatpush.bf16.msra.mxu0 0
      %835 = vmatpush.bf16.msra.mxu0 %v830
      %836 = vmatpush.bf16.msra.mxu0 %v775
      %837 = vmatpush.bf16.msra.mxu0 %v774
      %838 = vmatpush.bf16.msra.mxu0 %v773
      %839 = vmatpush.bf16.msra.mxu0 %v772
      %840 = vmatmul.bf16.gmra.mxu0 %v782
      %v841 = vpop.f32.mrf.mxu0
      %v842 = vadd.f32 %v670, %v841
      %v843 = vpop.f32.mrf.mxu0
      %v844 = vadd.f32 %v670, %v843
      %845 = vmatmul.bf16.gmra.mxu0 %v785
      %v846 = vpop.f32.mrf.mxu0
      %v847 = vadd.f32 %v670, %v846
      %v848 = vpop.f32.mrf.mxu0
      %v849 = vadd.f32 %v670, %v848
      %850 = vmatmul.bf16.gmra.mxu0 %v788
      %v851 = vpop.f32.mrf.mxu0
      %v852 = vadd.f32 %v670, %v851
      %v853 = vpop.f32.mrf.mxu0
      %v854 = vadd.f32 %v670, %v853
      %855 = vmatmul.bf16.gmra.mxu0 %v791
      %v856 = vpop.f32.mrf.mxu0
      %v857 = vadd.f32 %v670, %v856
      %v858 = vpop.f32.mrf.mxu0
      %v859 = vadd.f32 %v670, %v858
      %860 = vmatmul.bf16.gmra.mxu0 %v794
      %v861 = vpop.f32.mrf.mxu0
      %v862 = vadd.f32 %v670, %v861
      %v863 = vpop.f32.mrf.mxu0
      %v864 = vadd.f32 %v670, %v863
      %865 = vmatmul.bf16.gmra.mxu0 %v797
      %v866 = vpop.f32.mrf.mxu0
      %v867 = vadd.f32 %v670, %v866
      %v868 = vpop.f32.mrf.mxu0
      %v869 = vadd.f32 %v670, %v868
      %870 = vmatmul.bf16.gmra.mxu0 %v800
      %v871 = vpop.f32.mrf.mxu0
      %v872 = vadd.f32 %v670, %v871
      %v873 = vpop.f32.mrf.mxu0
      %v874 = vadd.f32 %v670, %v873
      %875 = vmatmul.bf16.gmra.mxu0 %v803
      %v876 = vpop.f32.mrf.mxu0
      %v877 = vadd.f32 %v670, %v876
      %v878 = vpop.f32.mrf.mxu0
      %v879 = vadd.f32 %v670, %v878
      %880 = vmatmul.bf16.gmra.mxu0 %v806
      %v881 = vpop.f32.mrf.mxu0
      %v882 = vadd.f32 %v670, %v881
      %v883 = vpop.f32.mrf.mxu0
      %v884 = vadd.f32 %v670, %v883
      %885 = vmatmul.bf16.gmra.mxu0 %v809
      %v886 = vpop.f32.mrf.mxu0
      %v887 = vadd.f32 %v670, %v886
      %v888 = vpop.f32.mrf.mxu0
      %v889 = vadd.f32 %v670, %v888
      %890 = vmatmul.bf16.gmra.mxu0 %v812
      %v891 = vpop.f32.mrf.mxu0
      %v892 = vadd.f32 %v670, %v891
      %v893 = vpop.f32.mrf.mxu0
      %v894 = vadd.f32 %v670, %v893
      %895 = vmatmul.bf16.gmra.mxu0 %v815
      %v896 = vpop.f32.mrf.mxu0
      %v897 = vadd.f32 %v670, %v896
      %v898 = vpop.f32.mrf.mxu0
      %v899 = vadd.f32 %v670, %v898
      %900 = vmatmul.bf16.gmra.mxu0 %v818
      %v901 = vpop.f32.mrf.mxu0
      %v902 = vadd.f32 %v670, %v901
      %v903 = vpop.f32.mrf.mxu0
      %v904 = vadd.f32 %v670, %v903
      %905 = vmatmul.bf16.gmra.mxu0 %v821
      %v906 = vpop.f32.mrf.mxu0
      %v907 = vadd.f32 %v670, %v906
      %v908 = vpop.f32.mrf.mxu0
      %v909 = vadd.f32 %v670, %v908
      %910 = vmatmul.bf16.gmra.mxu0 %v824
      %v911 = vpop.f32.mrf.mxu0
      %v912 = vadd.f32 %v670, %v911
      %v913 = vpop.f32.mrf.mxu0
      %v914 = vadd.f32 %v670, %v913
      %915 = vmatmul.bf16.gmra.mxu0 %v827
      %v916 = vpop.f32.mrf.mxu0
      %v917 = vadd.f32 %v670, %v916
      %v918 = vpop.f32.mrf.mxu0
      %v919 = vadd.f32 %v670, %v918
      %920 = vdwg.mxu0
      %921 = vst.msk [vmem:[#allocation2] sm:$0xff] %vm472, %v842
      %922 = vst.msk [vmem:[#allocation2 + $0x8] sm:$0xff] %vm472, %v844
      %923 = vst.msk [vmem:[#allocation2 + $0x10] sm:$0xff] %vm472, %v847
      %924 = vst.msk [vmem:[#allocation2 + $0x18] sm:$0xff] %vm472, %v849
      %925 = vst.msk [vmem:[#allocation2 + $0x20] sm:$0xff] %vm472, %v852
      %926 = vst.msk [vmem:[#allocation2 + $0x28] sm:$0xff] %vm472, %v854
      %927 = vst.msk [vmem:[#allocation2 + $0x30] sm:$0xff] %vm472, %v857
      %928 = vst.msk [vmem:[#allocation2 + $0x38] sm:$0xff] %vm472, %v859
      %929 = vst.msk [vmem:[#allocation2 + $0x40] sm:$0xff] %vm472, %v862
      %930 = vst.msk [vmem:[#allocation2 + $0x48] sm:$0xff] %vm472, %v864
      %931 = vst.msk [vmem:[#allocation2 + $0x50] sm:$0xff] %vm472, %v867
      %932 = vst.msk [vmem:[#allocation2 + $0x58] sm:$0xff] %vm472, %v869
      %933 = vst.msk [vmem:[#allocation2 + $0x60] sm:$0xff] %vm472, %v872
      %934 = vst.msk [vmem:[#allocation2 + $0x68] sm:$0xff] %vm472, %v874
      %935 = vst.msk [vmem:[#allocation2 + $0x70] sm:$0xff] %vm472, %v877
      %936 = vst.msk [vmem:[#allocation2 + $0x78] sm:$0xff] %vm472, %v879
      %937 = vst.msk [vmem:[#allocation2 + $0x80] sm:$0xff] %vm472, %v882
      %938 = vst.msk [vmem:[#allocation2 + $0x88] sm:$0xff] %vm472, %v884
      %939 = vst.msk [vmem:[#allocation2 + $0x90] sm:$0xff] %vm472, %v887
      %940 = vst.msk [vmem:[#allocation2 + $0x98] sm:$0xff] %vm472, %v889
      %941 = vst.msk [vmem:[#allocation2 + $0xa0] sm:$0xff] %vm472, %v892
      %942 = vst.msk [vmem:[#allocation2 + $0xa8] sm:$0xff] %vm472, %v894
      %943 = vst.msk [vmem:[#allocation2 + $0xb0] sm:$0xff] %vm472, %v897
      %944 = vst.msk [vmem:[#allocation2 + $0xb8] sm:$0xff] %vm472, %v899
      %945 = vst.msk [vmem:[#allocation2 + $0xc0] sm:$0xff] %vm472, %v902
      %946 = vst.msk [vmem:[#allocation2 + $0xc8] sm:$0xff] %vm472, %v904
      %947 = vst.msk [vmem:[#allocation2 + $0xd0] sm:$0xff] %vm472, %v907
      %948 = vst.msk [vmem:[#allocation2 + $0xd8] sm:$0xff] %vm472, %v909
      %949 = vst.msk [vmem:[#allocation2 + $0xe0] sm:$0xff] %vm472, %v912
      %950 = vst.msk [vmem:[#allocation2 + $0xe8] sm:$0xff] %vm472, %v914
      %951 = vst.msk [vmem:[#allocation2 + $0xf0] sm:$0xff] %vm472, %v917
      %952 = vst.msk [vmem:[#allocation2 + $0xf8] sm:$0xff] %vm472, %v919
      %v953 = vld [vmem:[#allocation2] ss:$2 sm:$0xff]
      %v954 = vld [vmem:[%s506] ss:$2 sm:$0xff]
      %v955 = vld [vmem:[%s508] ss:$2 sm:$0xff]
      %v956 = vld [vmem:[%s510] ss:$2 sm:$0xff]
      %v957 = vld [vmem:[%s512] ss:$2 sm:$0xff]
      %v958 = vld [vmem:[%s514] ss:$2 sm:$0xff]
      %v959 = vld [vmem:[%s516] ss:$2 sm:$0xff]
      %v960 = vld [vmem:[%s518] ss:$2 sm:$0xff]
      %v961 = vld [vmem:[%s520] ss:$2 sm:$0xff]
      %v962 = vld [vmem:[%s522] ss:$2 sm:$0xff]
      %v963 = vld [vmem:[%s524] ss:$2 sm:$0xff]
      %v964 = vld [vmem:[%s526] ss:$2 sm:$0xff]
      %v965 = vld [vmem:[%s528] ss:$2 sm:$0xff]
      %v966 = vld [vmem:[%s530] ss:$2 sm:$0xff]
      %v967 = vld [vmem:[%s532] ss:$2 sm:$0xff]
      %v968 = vld [vmem:[%s534] ss:$2 sm:$0xff]
      %v969 = vld [vmem:[%s536] ss:$2 sm:$0xff]
      %v970 = vld [vmem:[%s538] ss:$2 sm:$0xff]
      %v971 = vld [vmem:[%s540] ss:$2 sm:$0xff]
      %v972 = vld [vmem:[%s542] ss:$2 sm:$0xff]
      %v973 = vld [vmem:[%s544] ss:$2 sm:$0xff]
      %v974 = vld [vmem:[%s546] ss:$2 sm:$0xff]
      %v975 = vld [vmem:[%s548] ss:$2 sm:$0xff]
      %v976 = vld [vmem:[%s550] ss:$2 sm:$0xff]
      %v977 = vld [vmem:[%s552] ss:$2 sm:$0xff]
      %v978 = vld [vmem:[%s554] ss:$2 sm:$0xff]
      %v979 = vld [vmem:[%s556] ss:$2 sm:$0xff]
      %v980 = vld [vmem:[%s558] ss:$2 sm:$0xff]
      %v981 = vld [vmem:[%s560] ss:$2 sm:$0xff]
      %v982 = vld [vmem:[%s562] ss:$2 sm:$0xff]
      %v983 = vld [vmem:[%s564] ss:$2 sm:$0xff]
      %v984 = vld [vmem:[%s566] ss:$2 sm:$0xff]
      %v985 = vmax.f32 %v953, %v969
      %v986 = vmax.f32 %v954, %v970
      %v987 = vmax.f32 %v955, %v971
      %v988 = vmax.f32 %v956, %v972
      %v989 = vmax.f32 %v957, %v973
      %v990 = vmax.f32 %v958, %v974
      %v991 = vmax.f32 %v959, %v975
      %v992 = vmax.f32 %v960, %v976
      %v993 = vmax.f32 %v961, %v977
      %v994 = vmax.f32 %v962, %v978
      %v995 = vmax.f32 %v963, %v979
      %v996 = vmax.f32 %v964, %v980
      %v997 = vmax.f32 %v965, %v981
      %v998 = vmax.f32 %v966, %v982
      %v999 = vmax.f32 %v967, %v983
      %v1000 = vmax.f32 %v968, %v984
      %v1001 = vsel %vm472, %v985, -inf
      %v1002 = vsel %vm472, %v987, -inf
      %v1003 = vmax.f32 %v1001, %v1002
      %v1004 = vsel %vm472, %v986, -inf
      %v1005 = vsel %vm472, %v988, -inf
      %v1006 = vmax.f32 %v1004, %v1005
      %v1007 = vsel %vm472, %v989, -inf
      %v1008 = vsel %vm472, %v991, -inf
      %v1009 = vmax.f32 %v1007, %v1008
      %v1010 = vsel %vm472, %v990, -inf
      %v1011 = vsel %vm472, %v992, -inf
      %v1012 = vmax.f32 %v1010, %v1011
      %v1013 = vsel %vm472, %v993, -inf
      %v1014 = vsel %vm472, %v995, -inf
      %v1015 = vmax.f32 %v1013, %v1014
      %v1016 = vsel %vm472, %v994, -inf
      %v1017 = vsel %vm472, %v996, -inf
      %v1018 = vmax.f32 %v1016, %v1017
      %v1019 = vsel %vm472, %v997, -inf
      %v1020 = vsel %vm472, %v999, -inf
      %v1021 = vmax.f32 %v1019, %v1020
      %v1022 = vsel %vm472, %v998, -inf
      %v1023 = vsel %vm472, %v1000, -inf
      %v1024 = vmax.f32 %v1022, %v1023
      %v1025 = vpack.c.bf16 %v1003, %v1003
      %v1026 = vpack.c.bf16 %v1006, %v1006
      %v1027 = vpack.c.bf16 %v1009, %v1009
      %v1028 = vpack.c.bf16 %v1012, %v1012
      %v1029 = vpack.c.bf16 %v1015, %v1015
      %v1030 = vpack.c.bf16 %v1018, %v1018
      %v1031 = vpack.c.bf16 %v1021, %v1021
      %v1032 = vpack.c.bf16 %v1024, %v1024
      %s1033 = scalar_lea.vmem %s170, 32
      %1034 = vst.msk [vmem:[%s1033] sm:$0xf] %vm616, %v1025
      %1035 = vst.msk [vmem:[%s1033 + $0x4] sm:$0xf] %vm616, %v1026
      %1036 = vst.msk [vmem:[%s1033 + $0x8] sm:$0xf] %vm616, %v1027
      %1037 = vst.msk [vmem:[%s1033 + $0xc] sm:$0xf] %vm616, %v1028
      %1038 = vst.msk [vmem:[%s1033 + $0x10] sm:$0xf] %vm616, %v1029
      %1039 = vst.msk [vmem:[%s1033 + $0x14] sm:$0xf] %vm616, %v1030
      %1040 = vst.msk [vmem:[%s1033 + $0x18] sm:$0xf] %vm616, %v1031
      %1041 = vst.msk [vmem:[%s1033 + $0x1c] sm:$0xf] %vm616, %v1032
      %s1042 = scalar_lea.vmem %s165, 256
      %v1043 = vld [vmem:[%s1042] sm:$0xf]
      %v1044 = vld [vmem:[%s1042 + $0x4] sm:$0xf]
      %v1045 = vld [vmem:[%s1042 + $0x8] sm:$0xf]
      %v1046 = vld [vmem:[%s1042 + $0xc] sm:$0xf]
      %v1047 = vld [vmem:[%s1042 + $0x10] sm:$0xf]
      %v1048 = vld [vmem:[%s1042 + $0x14] sm:$0xf]
      %v1049 = vld [vmem:[%s1042 + $0x18] sm:$0xf]
      %v1050 = vld [vmem:[%s1042 + $0x1c] sm:$0xf]
      %v1051 = vld [vmem:[%s1042 + $0x20] sm:$0xf]
      %v1052 = vld [vmem:[%s1042 + $0x24] sm:$0xf]
      %v1053 = vld [vmem:[%s1042 + $0x28] sm:$0xf]
      %v1054 = vld [vmem:[%s1042 + $0x2c] sm:$0xf]
      %v1055 = vld [vmem:[%s1042 + $0x30] sm:$0xf]
      %v1056 = vld [vmem:[%s1042 + $0x34] sm:$0xf]
      %v1057 = vld [vmem:[%s1042 + $0x38] sm:$0xf]
      %v1058 = vld [vmem:[%s1042 + $0x3c] sm:$0xf]
      %v1059 = vld [vmem:[%s1042 + $0x40] sm:$0xf]
      %v1060 = vld [vmem:[%s1042 + $0x44] sm:$0xf]
      %v1061 = vld [vmem:[%s1042 + $0x48] sm:$0xf]
      %v1062 = vld [vmem:[%s1042 + $0x4c] sm:$0xf]
      %v1063 = vld [vmem:[%s1042 + $0x50] sm:$0xf]
      %v1064 = vld [vmem:[%s1042 + $0x54] sm:$0xf]
      %v1065 = vld [vmem:[%s1042 + $0x58] sm:$0xf]
      %v1066 = vld [vmem:[%s1042 + $0x5c] sm:$0xf]
      %v1067 = vld [vmem:[%s1042 + $0x60] sm:$0xf]
      %v1068 = vld [vmem:[%s1042 + $0x64] sm:$0xf]
      %v1069 = vld [vmem:[%s1042 + $0x68] sm:$0xf]
      %v1070 = vld [vmem:[%s1042 + $0x6c] sm:$0xf]
      %v1071 = vld [vmem:[%s1042 + $0x70] sm:$0xf]
      %v1072 = vld [vmem:[%s1042 + $0x74] sm:$0xf]
      %v1073 = vld [vmem:[%s1042 + $0x78] sm:$0xf]
      %v1074 = vld [vmem:[%s1042 + $0x7c] sm:$0xf]
      %v1075 = vld [vmem:[%s1] sm:$0xf]
      %v1076 = vld [vmem:[%s1 + $0x4] sm:$0xf]
      %v1077 = vld [vmem:[%s1 + $0x8] sm:$0xf]
      %v1078 = vld [vmem:[%s1 + $0xc] sm:$0xf]
      %v1079 = vld [vmem:[%s1 + $0x10] sm:$0xf]
      %v1080 = vld [vmem:[%s1 + $0x14] sm:$0xf]
      %v1081 = vld [vmem:[%s1 + $0x18] sm:$0xf]
      %v1082 = vld [vmem:[%s1 + $0x1c] sm:$0xf]
      %v1083 = vld [vmem:[%s1 + $0x20] sm:$0xf]
      %v1084 = vld [vmem:[%s1 + $0x24] sm:$0x3]
      %v1085 = vld [vmem:[%s2] sm:$0x1]
      %v1087 = vperm.slane %v1085, 0
      %v1121 = vunpack.c.l.b16 %v1043
      %v1122 = vunpack.c.l.b16 %v1044
      %v1123 = vunpack.c.l.b16 %v1045
      %v1124 = vunpack.c.l.b16 %v1046
      %v1125 = vunpack.c.l.b16 %v1047
      %v1126 = vunpack.c.l.b16 %v1048
      %v1127 = vunpack.c.l.b16 %v1049
      %v1128 = vunpack.c.l.b16 %v1050
      %v1129 = vunpack.c.l.b16 %v1051
      %v1130 = vunpack.c.l.b16 %v1052
      %v1131 = vunpack.c.l.b16 %v1053
      %v1132 = vunpack.c.l.b16 %v1054
      %v1133 = vunpack.c.l.b16 %v1055
      %v1134 = vunpack.c.l.b16 %v1056
      %v1135 = vunpack.c.l.b16 %v1057
      %v1136 = vunpack.c.l.b16 %v1058
      %v1137 = vunpack.c.l.b16 %v1059
      %v1138 = vunpack.c.l.b16 %v1060
      %v1139 = vunpack.c.l.b16 %v1061
      %v1140 = vunpack.c.l.b16 %v1062
      %v1141 = vunpack.c.l.b16 %v1063
      %v1142 = vunpack.c.l.b16 %v1064
      %v1143 = vunpack.c.l.b16 %v1065
      %v1144 = vunpack.c.l.b16 %v1066
      %v1145 = vunpack.c.l.b16 %v1067
      %v1146 = vunpack.c.l.b16 %v1068
      %v1147 = vunpack.c.l.b16 %v1069
      %v1148 = vunpack.c.l.b16 %v1070
      %v1149 = vunpack.c.l.b16 %v1071
      %v1150 = vunpack.c.l.b16 %v1072
      %v1151 = vunpack.c.l.b16 %v1073
      %v1152 = vunpack.c.l.b16 %v1074
      %v1153 = vpack.c.b16 %v1122, %v1121
      %v1154 = vpack.c.b16 %v1124, %v1123
      %v1155 = vpack.c.b16 %v1126, %v1125
      %v1156 = vpack.c.b16 %v1128, %v1127
      %v1157 = vpack.c.b16 %v1130, %v1129
      %v1158 = vpack.c.b16 %v1132, %v1131
      %v1159 = vpack.c.b16 %v1134, %v1133
      %v1160 = vpack.c.b16 %v1136, %v1135
      %v1161 = vpack.c.b16 %v1138, %v1137
      %v1162 = vpack.c.b16 %v1140, %v1139
      %v1163 = vpack.c.b16 %v1142, %v1141
      %v1164 = vpack.c.b16 %v1144, %v1143
      %v1165 = vpack.c.b16 %v1146, %v1145
      %v1166 = vpack.c.b16 %v1148, %v1147
      %v1167 = vpack.c.b16 %v1150, %v1149
      %v1168 = vpack.c.b16 %v1152, %v1151
      %v1179 = vunpack.c.l.b16 %v1075
      %v1180 = vunpack.c.l.b16 %v1076
      %v1181 = vunpack.c.l.b16 %v1077
      %v1182 = vunpack.c.l.b16 %v1078
      %v1183 = vunpack.c.l.b16 %v1079
      %v1184 = vunpack.c.l.b16 %v1080
      %v1185 = vunpack.c.l.b16 %v1081
      %v1186 = vunpack.c.l.b16 %v1082
      %v1187 = vunpack.c.l.b16 %v1083
      %v1188 = vunpack.c.l.b16 %v1084
      %v1189 = vpack.c.b16 %v1180, %v1179
      %v1190 = vpack.c.b16 %v1182, %v1181
      %v1191 = vpack.c.b16 %v1184, %v1183
      %v1192 = vpack.c.b16 %v1186, %v1185
      %v1193 = vpack.c.b16 %v1188, %v1187
      %v1199 = vsel %vm327, %v1153, 0
      %v1202 = vsel %vm327, %v1154, 0
      %v1205 = vsel %vm327, %v1155, 0
      %v1208 = vsel %vm327, %v1156, 0
      %v1211 = vsel %vm327, %v1157, 0
      %v1214 = vsel %vm327, %v1158, 0
      %v1217 = vsel %vm327, %v1159, 0
      %v1220 = vsel %vm327, %v1160, 0
      %v1223 = vsel %vm327, %v1161, 0
      %v1226 = vsel %vm327, %v1162, 0
      %v1229 = vsel %vm327, %v1163, 0
      %v1232 = vsel %vm327, %v1164, 0
      %v1235 = vsel %vm327, %v1165, 0
      %v1238 = vsel %vm327, %v1166, 0
      %v1241 = vsel %vm327, %v1167, 0
      %v1244 = vsel %vm327, %v1168, 0
      %v1247 = vand.u32 %v1193, %v379
      %1249 = vmatpush.bf16.msra.mxu0 0
      %1250 = vmatpush.bf16.msra.mxu0 0
      %1251 = vmatpush.bf16.msra.mxu0 0
      %1252 = vmatpush.bf16.msra.mxu0 %v1247
      %1253 = vmatpush.bf16.msra.mxu0 %v1192
      %1254 = vmatpush.bf16.msra.mxu0 %v1191
      %1255 = vmatpush.bf16.msra.mxu0 %v1190
      %1256 = vmatpush.bf16.msra.mxu0 %v1189
      %1257 = vmatmul.bf16.gmra.mxu0 %v1199
      %v1258 = vpop.f32.mrf.mxu0
      %v1259 = vadd.f32 %v1087, %v1258
      %v1260 = vpop.f32.mrf.mxu0
      %v1261 = vadd.f32 %v1087, %v1260
      %1262 = vmatmul.bf16.gmra.mxu0 %v1202
      %v1263 = vpop.f32.mrf.mxu0
      %v1264 = vadd.f32 %v1087, %v1263
      %v1265 = vpop.f32.mrf.mxu0
      %v1266 = vadd.f32 %v1087, %v1265
      %1267 = vmatmul.bf16.gmra.mxu0 %v1205
      %v1268 = vpop.f32.mrf.mxu0
      %v1269 = vadd.f32 %v1087, %v1268
      %v1270 = vpop.f32.mrf.mxu0
      %v1271 = vadd.f32 %v1087, %v1270
      %1272 = vmatmul.bf16.gmra.mxu0 %v1208
      %v1273 = vpop.f32.mrf.mxu0
      %v1274 = vadd.f32 %v1087, %v1273
      %v1275 = vpop.f32.mrf.mxu0
      %v1276 = vadd.f32 %v1087, %v1275
      %1277 = vmatmul.bf16.gmra.mxu0 %v1211
      %v1278 = vpop.f32.mrf.mxu0
      %v1279 = vadd.f32 %v1087, %v1278
      %v1280 = vpop.f32.mrf.mxu0
      %v1281 = vadd.f32 %v1087, %v1280
      %1282 = vmatmul.bf16.gmra.mxu0 %v1214
      %v1283 = vpop.f32.mrf.mxu0
      %v1284 = vadd.f32 %v1087, %v1283
      %v1285 = vpop.f32.mrf.mxu0
      %v1286 = vadd.f32 %v1087, %v1285
      %1287 = vmatmul.bf16.gmra.mxu0 %v1217
      %v1288 = vpop.f32.mrf.mxu0
      %v1289 = vadd.f32 %v1087, %v1288
      %v1290 = vpop.f32.mrf.mxu0
      %v1291 = vadd.f32 %v1087, %v1290
      %1292 = vmatmul.bf16.gmra.mxu0 %v1220
      %v1293 = vpop.f32.mrf.mxu0
      %v1294 = vadd.f32 %v1087, %v1293
      %v1295 = vpop.f32.mrf.mxu0
      %v1296 = vadd.f32 %v1087, %v1295
      %1297 = vmatmul.bf16.gmra.mxu0 %v1223
      %v1298 = vpop.f32.mrf.mxu0
      %v1299 = vadd.f32 %v1087, %v1298
      %v1300 = vpop.f32.mrf.mxu0
      %v1301 = vadd.f32 %v1087, %v1300
      %1302 = vmatmul.bf16.gmra.mxu0 %v1226
      %v1303 = vpop.f32.mrf.mxu0
      %v1304 = vadd.f32 %v1087, %v1303
      %v1305 = vpop.f32.mrf.mxu0
      %v1306 = vadd.f32 %v1087, %v1305
      %1307 = vmatmul.bf16.gmra.mxu0 %v1229
      %v1308 = vpop.f32.mrf.mxu0
      %v1309 = vadd.f32 %v1087, %v1308
      %v1310 = vpop.f32.mrf.mxu0
      %v1311 = vadd.f32 %v1087, %v1310
      %1312 = vmatmul.bf16.gmra.mxu0 %v1232
      %v1313 = vpop.f32.mrf.mxu0
      %v1314 = vadd.f32 %v1087, %v1313
      %v1315 = vpop.f32.mrf.mxu0
      %v1316 = vadd.f32 %v1087, %v1315
      %1317 = vmatmul.bf16.gmra.mxu0 %v1235
      %v1318 = vpop.f32.mrf.mxu0
      %v1319 = vadd.f32 %v1087, %v1318
      %v1320 = vpop.f32.mrf.mxu0
      %v1321 = vadd.f32 %v1087, %v1320
      %1322 = vmatmul.bf16.gmra.mxu0 %v1238
      %v1323 = vpop.f32.mrf.mxu0
      %v1324 = vadd.f32 %v1087, %v1323
      %v1325 = vpop.f32.mrf.mxu0
      %v1326 = vadd.f32 %v1087, %v1325
      %1327 = vmatmul.bf16.gmra.mxu0 %v1241
      %v1328 = vpop.f32.mrf.mxu0
      %v1329 = vadd.f32 %v1087, %v1328
      %v1330 = vpop.f32.mrf.mxu0
      %v1331 = vadd.f32 %v1087, %v1330
      %1332 = vmatmul.bf16.gmra.mxu0 %v1244
      %v1333 = vpop.f32.mrf.mxu0
      %v1334 = vadd.f32 %v1087, %v1333
      %v1335 = vpop.f32.mrf.mxu0
      %v1336 = vadd.f32 %v1087, %v1335
      %1337 = vdwg.mxu0
      %1338 = vst.msk [vmem:[#allocation2] sm:$0xff] %vm472, %v1259
      %1339 = vst.msk [vmem:[#allocation2 + $0x8] sm:$0xff] %vm472, %v1261
      %1340 = vst.msk [vmem:[#allocation2 + $0x10] sm:$0xff] %vm472, %v1264
      %1341 = vst.msk [vmem:[#allocation2 + $0x18] sm:$0xff] %vm472, %v1266
      %1342 = vst.msk [vmem:[#allocation2 + $0x20] sm:$0xff] %vm472, %v1269
      %1343 = vst.msk [vmem:[#allocation2 + $0x28] sm:$0xff] %vm472, %v1271
      %1344 = vst.msk [vmem:[#allocation2 + $0x30] sm:$0xff] %vm472, %v1274
      %1345 = vst.msk [vmem:[#allocation2 + $0x38] sm:$0xff] %vm472, %v1276
      %1346 = vst.msk [vmem:[#allocation2 + $0x40] sm:$0xff] %vm472, %v1279
      %1347 = vst.msk [vmem:[#allocation2 + $0x48] sm:$0xff] %vm472, %v1281
      %1348 = vst.msk [vmem:[#allocation2 + $0x50] sm:$0xff] %vm472, %v1284
      %1349 = vst.msk [vmem:[#allocation2 + $0x58] sm:$0xff] %vm472, %v1286
      %1350 = vst.msk [vmem:[#allocation2 + $0x60] sm:$0xff] %vm472, %v1289
      %1351 = vst.msk [vmem:[#allocation2 + $0x68] sm:$0xff] %vm472, %v1291
      %1352 = vst.msk [vmem:[#allocation2 + $0x70] sm:$0xff] %vm472, %v1294
      %1353 = vst.msk [vmem:[#allocation2 + $0x78] sm:$0xff] %vm472, %v1296
      %1354 = vst.msk [vmem:[#allocation2 + $0x80] sm:$0xff] %vm472, %v1299
      %1355 = vst.msk [vmem:[#allocation2 + $0x88] sm:$0xff] %vm472, %v1301
      %1356 = vst.msk [vmem:[#allocation2 + $0x90] sm:$0xff] %vm472, %v1304
      %1357 = vst.msk [vmem:[#allocation2 + $0x98] sm:$0xff] %vm472, %v1306
      %1358 = vst.msk [vmem:[#allocation2 + $0xa0] sm:$0xff] %vm472, %v1309
      %1359 = vst.msk [vmem:[#allocation2 + $0xa8] sm:$0xff] %vm472, %v1311
      %1360 = vst.msk [vmem:[#allocation2 + $0xb0] sm:$0xff] %vm472, %v1314
      %1361 = vst.msk [vmem:[#allocation2 + $0xb8] sm:$0xff] %vm472, %v1316
      %1362 = vst.msk [vmem:[#allocation2 + $0xc0] sm:$0xff] %vm472, %v1319
      %1363 = vst.msk [vmem:[#allocation2 + $0xc8] sm:$0xff] %vm472, %v1321
      %1364 = vst.msk [vmem:[#allocation2 + $0xd0] sm:$0xff] %vm472, %v1324
      %1365 = vst.msk [vmem:[#allocation2 + $0xd8] sm:$0xff] %vm472, %v1326
      %1366 = vst.msk [vmem:[#allocation2 + $0xe0] sm:$0xff] %vm472, %v1329
      %1367 = vst.msk [vmem:[#allocation2 + $0xe8] sm:$0xff] %vm472, %v1331
      %1368 = vst.msk [vmem:[#allocation2 + $0xf0] sm:$0xff] %vm472, %v1334
      %1369 = vst.msk [vmem:[#allocation2 + $0xf8] sm:$0xff] %vm472, %v1336
      %v1370 = vld [vmem:[#allocation2] ss:$2 sm:$0xff]
      %v1371 = vld [vmem:[%s506] ss:$2 sm:$0xff]
      %v1372 = vld [vmem:[%s508] ss:$2 sm:$0xff]
      %v1373 = vld [vmem:[%s510] ss:$2 sm:$0xff]
      %v1374 = vld [vmem:[%s512] ss:$2 sm:$0xff]
      %v1375 = vld [vmem:[%s514] ss:$2 sm:$0xff]
      %v1376 = vld [vmem:[%s516] ss:$2 sm:$0xff]
      %v1377 = vld [vmem:[%s518] ss:$2 sm:$0xff]
      %v1378 = vld [vmem:[%s520] ss:$2 sm:$0xff]
      %v1379 = vld [vmem:[%s522] ss:$2 sm:$0xff]
      %v1380 = vld [vmem:[%s524] ss:$2 sm:$0xff]
      %v1381 = vld [vmem:[%s526] ss:$2 sm:$0xff]
      %v1382 = vld [vmem:[%s528] ss:$2 sm:$0xff]
      %v1383 = vld [vmem:[%s530] ss:$2 sm:$0xff]
      %v1384 = vld [vmem:[%s532] ss:$2 sm:$0xff]
      %v1385 = vld [vmem:[%s534] ss:$2 sm:$0xff]
      %v1386 = vld [vmem:[%s536] ss:$2 sm:$0xff]
      %v1387 = vld [vmem:[%s538] ss:$2 sm:$0xff]
      %v1388 = vld [vmem:[%s540] ss:$2 sm:$0xff]
      %v1389 = vld [vmem:[%s542] ss:$2 sm:$0xff]
      %v1390 = vld [vmem:[%s544] ss:$2 sm:$0xff]
      %v1391 = vld [vmem:[%s546] ss:$2 sm:$0xff]
      %v1392 = vld [vmem:[%s548] ss:$2 sm:$0xff]
      %v1393 = vld [vmem:[%s550] ss:$2 sm:$0xff]
      %v1394 = vld [vmem:[%s552] ss:$2 sm:$0xff]
      %v1395 = vld [vmem:[%s554] ss:$2 sm:$0xff]
      %v1396 = vld [vmem:[%s556] ss:$2 sm:$0xff]
      %v1397 = vld [vmem:[%s558] ss:$2 sm:$0xff]
      %v1398 = vld [vmem:[%s560] ss:$2 sm:$0xff]
      %v1399 = vld [vmem:[%s562] ss:$2 sm:$0xff]
      %v1400 = vld [vmem:[%s564] ss:$2 sm:$0xff]
      %v1401 = vld [vmem:[%s566] ss:$2 sm:$0xff]
      %v1402 = vmax.f32 %v1370, %v1386
      %v1403 = vmax.f32 %v1371, %v1387
      %v1404 = vmax.f32 %v1372, %v1388
      %v1405 = vmax.f32 %v1373, %v1389
      %v1406 = vmax.f32 %v1374, %v1390
      %v1407 = vmax.f32 %v1375, %v1391
      %v1408 = vmax.f32 %v1376, %v1392
      %v1409 = vmax.f32 %v1377, %v1393
      %v1410 = vmax.f32 %v1378, %v1394
      %v1411 = vmax.f32 %v1379, %v1395
      %v1412 = vmax.f32 %v1380, %v1396
      %v1413 = vmax.f32 %v1381, %v1397
      %v1414 = vmax.f32 %v1382, %v1398
      %v1415 = vmax.f32 %v1383, %v1399
      %v1416 = vmax.f32 %v1384, %v1400
      %v1417 = vmax.f32 %v1385, %v1401
      %v1418 = vsel %vm472, %v1402, -inf
      %v1419 = vsel %vm472, %v1404, -inf
      %v1420 = vmax.f32 %v1418, %v1419
      %v1421 = vsel %vm472, %v1403, -inf
      %v1422 = vsel %vm472, %v1405, -inf
      %v1423 = vmax.f32 %v1421, %v1422
      %v1424 = vsel %vm472, %v1406, -inf
      %v1425 = vsel %vm472, %v1408, -inf
      %v1426 = vmax.f32 %v1424, %v1425
      %v1427 = vsel %vm472, %v1407, -inf
      %v1428 = vsel %vm472, %v1409, -inf
      %v1429 = vmax.f32 %v1427, %v1428
      %v1430 = vsel %vm472, %v1410, -inf
      %v1431 = vsel %vm472, %v1412, -inf
      %v1432 = vmax.f32 %v1430, %v1431
      %v1433 = vsel %vm472, %v1411, -inf
      %v1434 = vsel %vm472, %v1413, -inf
      %v1435 = vmax.f32 %v1433, %v1434
      %v1436 = vsel %vm472, %v1414, -inf
      %v1437 = vsel %vm472, %v1416, -inf
      %v1438 = vmax.f32 %v1436, %v1437
      %v1439 = vsel %vm472, %v1415, -inf
      %v1440 = vsel %vm472, %v1417, -inf
      %v1441 = vmax.f32 %v1439, %v1440
      %v1442 = vpack.c.bf16 %v1420, %v1420
      %v1443 = vpack.c.bf16 %v1423, %v1423
      %v1444 = vpack.c.bf16 %v1426, %v1426
      %v1445 = vpack.c.bf16 %v1429, %v1429
      %v1446 = vpack.c.bf16 %v1432, %v1432
      %v1447 = vpack.c.bf16 %v1435, %v1435
      %v1448 = vpack.c.bf16 %v1438, %v1438
      %v1449 = vpack.c.bf16 %v1441, %v1441
      %s1450 = scalar_lea.vmem %s170, 64
      %1451 = vst.msk [vmem:[%s1450] sm:$0xf] %vm616, %v1442
      %1452 = vst.msk [vmem:[%s1450 + $0x4] sm:$0xf] %vm616, %v1443
      %1453 = vst.msk [vmem:[%s1450 + $0x8] sm:$0xf] %vm616, %v1444
      %1454 = vst.msk [vmem:[%s1450 + $0xc] sm:$0xf] %vm616, %v1445
      %1455 = vst.msk [vmem:[%s1450 + $0x10] sm:$0xf] %vm616, %v1446
      %1456 = vst.msk [vmem:[%s1450 + $0x14] sm:$0xf] %vm616, %v1447
      %1457 = vst.msk [vmem:[%s1450 + $0x18] sm:$0xf] %vm616, %v1448
      %1458 = vst.msk [vmem:[%s1450 + $0x1c] sm:$0xf] %vm616, %v1449
      %s1459 = scalar_lea.vmem %s165, 384
      %v1460 = vld [vmem:[%s1459] sm:$0xf]
      %v1461 = vld [vmem:[%s1459 + $0x4] sm:$0xf]
      %v1462 = vld [vmem:[%s1459 + $0x8] sm:$0xf]
      %v1463 = vld [vmem:[%s1459 + $0xc] sm:$0xf]
      %v1464 = vld [vmem:[%s1459 + $0x10] sm:$0xf]
      %v1465 = vld [vmem:[%s1459 + $0x14] sm:$0xf]
      %v1466 = vld [vmem:[%s1459 + $0x18] sm:$0xf]
      %v1467 = vld [vmem:[%s1459 + $0x1c] sm:$0xf]
      %v1468 = vld [vmem:[%s1459 + $0x20] sm:$0xf]
      %v1469 = vld [vmem:[%s1459 + $0x24] sm:$0xf]
      %v1470 = vld [vmem:[%s1459 + $0x28] sm:$0xf]
      %v1471 = vld [vmem:[%s1459 + $0x2c] sm:$0xf]
      %v1472 = vld [vmem:[%s1459 + $0x30] sm:$0xf]
      %v1473 = vld [vmem:[%s1459 + $0x34] sm:$0xf]
      %v1474 = vld [vmem:[%s1459 + $0x38] sm:$0xf]
      %v1475 = vld [vmem:[%s1459 + $0x3c] sm:$0xf]
      %v1476 = vld [vmem:[%s1459 + $0x40] sm:$0xf]
      %v1477 = vld [vmem:[%s1459 + $0x44] sm:$0xf]
      %v1478 = vld [vmem:[%s1459 + $0x48] sm:$0xf]
      %v1479 = vld [vmem:[%s1459 + $0x4c] sm:$0xf]
      %v1480 = vld [vmem:[%s1459 + $0x50] sm:$0xf]
      %v1481 = vld [vmem:[%s1459 + $0x54] sm:$0xf]
      %v1482 = vld [vmem:[%s1459 + $0x58] sm:$0xf]
      %v1483 = vld [vmem:[%s1459 + $0x5c] sm:$0xf]
      %v1484 = vld [vmem:[%s1459 + $0x60] sm:$0xf]
      %v1485 = vld [vmem:[%s1459 + $0x64] sm:$0xf]
      %v1486 = vld [vmem:[%s1459 + $0x68] sm:$0xf]
      %v1487 = vld [vmem:[%s1459 + $0x6c] sm:$0xf]
      %v1488 = vld [vmem:[%s1459 + $0x70] sm:$0xf]
      %v1489 = vld [vmem:[%s1459 + $0x74] sm:$0xf]
      %v1490 = vld [vmem:[%s1459 + $0x78] sm:$0xf]
      %v1491 = vld [vmem:[%s1459 + $0x7c] sm:$0xf]
      %v1492 = vld [vmem:[%s1] sm:$0xf]
      %v1493 = vld [vmem:[%s1 + $0x4] sm:$0xf]
      %v1494 = vld [vmem:[%s1 + $0x8] sm:$0xf]
      %v1495 = vld [vmem:[%s1 + $0xc] sm:$0xf]
      %v1496 = vld [vmem:[%s1 + $0x10] sm:$0xf]
      %v1497 = vld [vmem:[%s1 + $0x14] sm:$0xf]
      %v1498 = vld [vmem:[%s1 + $0x18] sm:$0xf]
      %v1499 = vld [vmem:[%s1 + $0x1c] sm:$0xf]
      %v1500 = vld [vmem:[%s1 + $0x20] sm:$0xf]
      %v1501 = vld [vmem:[%s1 + $0x24] sm:$0x3]
      %v1502 = vld [vmem:[%s2] sm:$0x1]
      %v1504 = vperm.slane %v1502, 0
      %v1538 = vunpack.c.l.b16 %v1460
      %v1539 = vunpack.c.l.b16 %v1461
      %v1540 = vunpack.c.l.b16 %v1462
      %v1541 = vunpack.c.l.b16 %v1463
      %v1542 = vunpack.c.l.b16 %v1464
      %v1543 = vunpack.c.l.b16 %v1465
      %v1544 = vunpack.c.l.b16 %v1466
      %v1545 = vunpack.c.l.b16 %v1467
      %v1546 = vunpack.c.l.b16 %v1468
      %v1547 = vunpack.c.l.b16 %v1469
      %v1548 = vunpack.c.l.b16 %v1470
      %v1549 = vunpack.c.l.b16 %v1471
      %v1550 = vunpack.c.l.b16 %v1472
      %v1551 = vunpack.c.l.b16 %v1473
      %v1552 = vunpack.c.l.b16 %v1474
      %v1553 = vunpack.c.l.b16 %v1475
      %v1554 = vunpack.c.l.b16 %v1476
      %v1555 = vunpack.c.l.b16 %v1477
      %v1556 = vunpack.c.l.b16 %v1478
      %v1557 = vunpack.c.l.b16 %v1479
      %v1558 = vunpack.c.l.b16 %v1480
      %v1559 = vunpack.c.l.b16 %v1481
      %v1560 = vunpack.c.l.b16 %v1482
      %v1561 = vunpack.c.l.b16 %v1483
      %v1562 = vunpack.c.l.b16 %v1484
      %v1563 = vunpack.c.l.b16 %v1485
      %v1564 = vunpack.c.l.b16 %v1486
      %v1565 = vunpack.c.l.b16 %v1487
      %v1566 = vunpack.c.l.b16 %v1488
      %v1567 = vunpack.c.l.b16 %v1489
      %v1568 = vunpack.c.l.b16 %v1490
      %v1569 = vunpack.c.l.b16 %v1491
      %v1570 = vpack.c.b16 %v1539, %v1538
      %v1571 = vpack.c.b16 %v1541, %v1540
      %v1572 = vpack.c.b16 %v1543, %v1542
      %v1573 = vpack.c.b16 %v1545, %v1544
      %v1574 = vpack.c.b16 %v1547, %v1546
      %v1575 = vpack.c.b16 %v1549, %v1548
      %v1576 = vpack.c.b16 %v1551, %v1550
      %v1577 = vpack.c.b16 %v1553, %v1552
      %v1578 = vpack.c.b16 %v1555, %v1554
      %v1579 = vpack.c.b16 %v1557, %v1556
      %v1580 = vpack.c.b16 %v1559, %v1558
      %v1581 = vpack.c.b16 %v1561, %v1560
      %v1582 = vpack.c.b16 %v1563, %v1562
      %v1583 = vpack.c.b16 %v1565, %v1564
      %v1584 = vpack.c.b16 %v1567, %v1566
      %v1585 = vpack.c.b16 %v1569, %v1568
      %v1596 = vunpack.c.l.b16 %v1492
      %v1597 = vunpack.c.l.b16 %v1493
      %v1598 = vunpack.c.l.b16 %v1494
      %v1599 = vunpack.c.l.b16 %v1495
      %v1600 = vunpack.c.l.b16 %v1496
      %v1601 = vunpack.c.l.b16 %v1497
      %v1602 = vunpack.c.l.b16 %v1498
      %v1603 = vunpack.c.l.b16 %v1499
      %v1604 = vunpack.c.l.b16 %v1500
      %v1605 = vunpack.c.l.b16 %v1501
      %v1606 = vpack.c.b16 %v1597, %v1596
      %v1607 = vpack.c.b16 %v1599, %v1598
      %v1608 = vpack.c.b16 %v1601, %v1600
      %v1609 = vpack.c.b16 %v1603, %v1602
      %v1610 = vpack.c.b16 %v1605, %v1604
      %v1616 = vsel %vm327, %v1570, 0
      %v1619 = vsel %vm327, %v1571, 0
      %v1622 = vsel %vm327, %v1572, 0
      %v1625 = vsel %vm327, %v1573, 0
      %v1628 = vsel %vm327, %v1574, 0
      %v1631 = vsel %vm327, %v1575, 0
      %v1634 = vsel %vm327, %v1576, 0
      %v1637 = vsel %vm327, %v1577, 0
      %v1640 = vsel %vm327, %v1578, 0
      %v1643 = vsel %vm327, %v1579, 0
      %v1646 = vsel %vm327, %v1580, 0
      %v1649 = vsel %vm327, %v1581, 0
      %v1652 = vsel %vm327, %v1582, 0
      %v1655 = vsel %vm327, %v1583, 0
      %v1658 = vsel %vm327, %v1584, 0
      %v1661 = vsel %vm327, %v1585, 0
      %v1664 = vand.u32 %v1610, %v379
      %1666 = vmatpush.bf16.msra.mxu0 0
      %1667 = vmatpush.bf16.msra.mxu0 0
      %1668 = vmatpush.bf16.msra.mxu0 0
      %1669 = vmatpush.bf16.msra.mxu0 %v1664
      %1670 = vmatpush.bf16.msra.mxu0 %v1609
      %1671 = vmatpush.bf16.msra.mxu0 %v1608
      %1672 = vmatpush.bf16.msra.mxu0 %v1607
      %1673 = vmatpush.bf16.msra.mxu0 %v1606
      %1674 = vmatmul.bf16.gmra.mxu0 %v1616
      %v1675 = vpop.f32.mrf.mxu0
      %v1676 = vadd.f32 %v1504, %v1675
      %v1677 = vpop.f32.mrf.mxu0
      %v1678 = vadd.f32 %v1504, %v1677
      %1679 = vmatmul.bf16.gmra.mxu0 %v1619
      %v1680 = vpop.f32.mrf.mxu0
      %v1681 = vadd.f32 %v1504, %v1680
      %v1682 = vpop.f32.mrf.mxu0
      %v1683 = vadd.f32 %v1504, %v1682
      %1684 = vmatmul.bf16.gmra.mxu0 %v1622
      %v1685 = vpop.f32.mrf.mxu0
      %v1686 = vadd.f32 %v1504, %v1685
      %v1687 = vpop.f32.mrf.mxu0
      %v1688 = vadd.f32 %v1504, %v1687
      %1689 = vmatmul.bf16.gmra.mxu0 %v1625
      %v1690 = vpop.f32.mrf.mxu0
      %v1691 = vadd.f32 %v1504, %v1690
      %v1692 = vpop.f32.mrf.mxu0
      %v1693 = vadd.f32 %v1504, %v1692
      %1694 = vmatmul.bf16.gmra.mxu0 %v1628
      %v1695 = vpop.f32.mrf.mxu0
      %v1696 = vadd.f32 %v1504, %v1695
      %v1697 = vpop.f32.mrf.mxu0
      %v1698 = vadd.f32 %v1504, %v1697
      %1699 = vmatmul.bf16.gmra.mxu0 %v1631
      %v1700 = vpop.f32.mrf.mxu0
      %v1701 = vadd.f32 %v1504, %v1700
      %v1702 = vpop.f32.mrf.mxu0
      %v1703 = vadd.f32 %v1504, %v1702
      %1704 = vmatmul.bf16.gmra.mxu0 %v1634
      %v1705 = vpop.f32.mrf.mxu0
      %v1706 = vadd.f32 %v1504, %v1705
      %v1707 = vpop.f32.mrf.mxu0
      %v1708 = vadd.f32 %v1504, %v1707
      %1709 = vmatmul.bf16.gmra.mxu0 %v1637
      %v1710 = vpop.f32.mrf.mxu0
      %v1711 = vadd.f32 %v1504, %v1710
      %v1712 = vpop.f32.mrf.mxu0
      %v1713 = vadd.f32 %v1504, %v1712
      %1714 = vmatmul.bf16.gmra.mxu0 %v1640
      %v1715 = vpop.f32.mrf.mxu0
      %v1716 = vadd.f32 %v1504, %v1715
      %v1717 = vpop.f32.mrf.mxu0
      %v1718 = vadd.f32 %v1504, %v1717
      %1719 = vmatmul.bf16.gmra.mxu0 %v1643
      %v1720 = vpop.f32.mrf.mxu0
      %v1721 = vadd.f32 %v1504, %v1720
      %v1722 = vpop.f32.mrf.mxu0
      %v1723 = vadd.f32 %v1504, %v1722
      %1724 = vmatmul.bf16.gmra.mxu0 %v1646
      %v1725 = vpop.f32.mrf.mxu0
      %v1726 = vadd.f32 %v1504, %v1725
      %v1727 = vpop.f32.mrf.mxu0
      %v1728 = vadd.f32 %v1504, %v1727
      %1729 = vmatmul.bf16.gmra.mxu0 %v1649
      %v1730 = vpop.f32.mrf.mxu0
      %v1731 = vadd.f32 %v1504, %v1730
      %v1732 = vpop.f32.mrf.mxu0
      %v1733 = vadd.f32 %v1504, %v1732
      %1734 = vmatmul.bf16.gmra.mxu0 %v1652
      %v1735 = vpop.f32.mrf.mxu0
      %v1736 = vadd.f32 %v1504, %v1735
      %v1737 = vpop.f32.mrf.mxu0
      %v1738 = vadd.f32 %v1504, %v1737
      %1739 = vmatmul.bf16.gmra.mxu0 %v1655
      %v1740 = vpop.f32.mrf.mxu0
      %v1741 = vadd.f32 %v1504, %v1740
      %v1742 = vpop.f32.mrf.mxu0
      %v1743 = vadd.f32 %v1504, %v1742
      %1744 = vmatmul.bf16.gmra.mxu0 %v1658
      %v1745 = vpop.f32.mrf.mxu0
      %v1746 = vadd.f32 %v1504, %v1745
      %v1747 = vpop.f32.mrf.mxu0
      %v1748 = vadd.f32 %v1504, %v1747
      %1749 = vmatmul.bf16.gmra.mxu0 %v1661
      %v1750 = vpop.f32.mrf.mxu0
      %v1751 = vadd.f32 %v1504, %v1750
      %v1752 = vpop.f32.mrf.mxu0
      %v1753 = vadd.f32 %v1504, %v1752
      %1754 = vdwg.mxu0
      %1755 = vst.msk [vmem:[#allocation2] sm:$0xff] %vm472, %v1676
      %1756 = vst.msk [vmem:[#allocation2 + $0x8] sm:$0xff] %vm472, %v1678
      %1757 = vst.msk [vmem:[#allocation2 + $0x10] sm:$0xff] %vm472, %v1681
      %1758 = vst.msk [vmem:[#allocation2 + $0x18] sm:$0xff] %vm472, %v1683
      %1759 = vst.msk [vmem:[#allocation2 + $0x20] sm:$0xff] %vm472, %v1686
      %1760 = vst.msk [vmem:[#allocation2 + $0x28] sm:$0xff] %vm472, %v1688
      %1761 = vst.msk [vmem:[#allocation2 + $0x30] sm:$0xff] %vm472, %v1691
      %1762 = vst.msk [vmem:[#allocation2 + $0x38] sm:$0xff] %vm472, %v1693
      %1763 = vst.msk [vmem:[#allocation2 + $0x40] sm:$0xff] %vm472, %v1696
      %1764 = vst.msk [vmem:[#allocation2 + $0x48] sm:$0xff] %vm472, %v1698
      %1765 = vst.msk [vmem:[#allocation2 + $0x50] sm:$0xff] %vm472, %v1701
      %1766 = vst.msk [vmem:[#allocation2 + $0x58] sm:$0xff] %vm472, %v1703
      %1767 = vst.msk [vmem:[#allocation2 + $0x60] sm:$0xff] %vm472, %v1706
      %1768 = vst.msk [vmem:[#allocation2 + $0x68] sm:$0xff] %vm472, %v1708
      %1769 = vst.msk [vmem:[#allocation2 + $0x70] sm:$0xff] %vm472, %v1711
      %1770 = vst.msk [vmem:[#allocation2 + $0x78] sm:$0xff] %vm472, %v1713
      %1771 = vst.msk [vmem:[#allocation2 + $0x80] sm:$0xff] %vm472, %v1716
      %1772 = vst.msk [vmem:[#allocation2 + $0x88] sm:$0xff] %vm472, %v1718
      %1773 = vst.msk [vmem:[#allocation2 + $0x90] sm:$0xff] %vm472, %v1721
      %1774 = vst.msk [vmem:[#allocation2 + $0x98] sm:$0xff] %vm472, %v1723
      %1775 = vst.msk [vmem:[#allocation2 + $0xa0] sm:$0xff] %vm472, %v1726
      %1776 = vst.msk [vmem:[#allocation2 + $0xa8] sm:$0xff] %vm472, %v1728
      %1777 = vst.msk [vmem:[#allocation2 + $0xb0] sm:$0xff] %vm472, %v1731
      %1778 = vst.msk [vmem:[#allocation2 + $0xb8] sm:$0xff] %vm472, %v1733
      %1779 = vst.msk [vmem:[#allocation2 + $0xc0] sm:$0xff] %vm472, %v1736
      %1780 = vst.msk [vmem:[#allocation2 + $0xc8] sm:$0xff] %vm472, %v1738
      %1781 = vst.msk [vmem:[#allocation2 + $0xd0] sm:$0xff] %vm472, %v1741
      %1782 = vst.msk [vmem:[#allocation2 + $0xd8] sm:$0xff] %vm472, %v1743
      %1783 = vst.msk [vmem:[#allocation2 + $0xe0] sm:$0xff] %vm472, %v1746
      %1784 = vst.msk [vmem:[#allocation2 + $0xe8] sm:$0xff] %vm472, %v1748
      %1785 = vst.msk [vmem:[#allocation2 + $0xf0] sm:$0xff] %vm472, %v1751
      %1786 = vst.msk [vmem:[#allocation2 + $0xf8] sm:$0xff] %vm472, %v1753
      %v1787 = vld [vmem:[#allocation2] ss:$2 sm:$0xff]
      %v1788 = vld [vmem:[%s506] ss:$2 sm:$0xff]
      %v1789 = vld [vmem:[%s508] ss:$2 sm:$0xff]
      %v1790 = vld [vmem:[%s510] ss:$2 sm:$0xff]
      %v1791 = vld [vmem:[%s512] ss:$2 sm:$0xff]
      %v1792 = vld [vmem:[%s514] ss:$2 sm:$0xff]
      %v1793 = vld [vmem:[%s516] ss:$2 sm:$0xff]
      %v1794 = vld [vmem:[%s518] ss:$2 sm:$0xff]
      %v1795 = vld [vmem:[%s520] ss:$2 sm:$0xff]
      %v1796 = vld [vmem:[%s522] ss:$2 sm:$0xff]
      %v1797 = vld [vmem:[%s524] ss:$2 sm:$0xff]
      %v1798 = vld [vmem:[%s526] ss:$2 sm:$0xff]
      %v1799 = vld [vmem:[%s528] ss:$2 sm:$0xff]
      %v1800 = vld [vmem:[%s530] ss:$2 sm:$0xff]
      %v1801 = vld [vmem:[%s532] ss:$2 sm:$0xff]
      %v1802 = vld [vmem:[%s534] ss:$2 sm:$0xff]
      %v1803 = vld [vmem:[%s536] ss:$2 sm:$0xff]
      %v1804 = vld [vmem:[%s538] ss:$2 sm:$0xff]
      %v1805 = vld [vmem:[%s540] ss:$2 sm:$0xff]
      %v1806 = vld [vmem:[%s542] ss:$2 sm:$0xff]
      %v1807 = vld [vmem:[%s544] ss:$2 sm:$0xff]
      %v1808 = vld [vmem:[%s546] ss:$2 sm:$0xff]
      %v1809 = vld [vmem:[%s548] ss:$2 sm:$0xff]
      %v1810 = vld [vmem:[%s550] ss:$2 sm:$0xff]
      %v1811 = vld [vmem:[%s552] ss:$2 sm:$0xff]
      %v1812 = vld [vmem:[%s554] ss:$2 sm:$0xff]
      %v1813 = vld [vmem:[%s556] ss:$2 sm:$0xff]
      %v1814 = vld [vmem:[%s558] ss:$2 sm:$0xff]
      %v1815 = vld [vmem:[%s560] ss:$2 sm:$0xff]
      %v1816 = vld [vmem:[%s562] ss:$2 sm:$0xff]
      %v1817 = vld [vmem:[%s564] ss:$2 sm:$0xff]
      %v1818 = vld [vmem:[%s566] ss:$2 sm:$0xff]
      %v1819 = vmax.f32 %v1787, %v1803
      %v1820 = vmax.f32 %v1788, %v1804
      %v1821 = vmax.f32 %v1789, %v1805
      %v1822 = vmax.f32 %v1790, %v1806
      %v1823 = vmax.f32 %v1791, %v1807
      %v1824 = vmax.f32 %v1792, %v1808
      %v1825 = vmax.f32 %v1793, %v1809
      %v1826 = vmax.f32 %v1794, %v1810
      %v1827 = vmax.f32 %v1795, %v1811
      %v1828 = vmax.f32 %v1796, %v1812
      %v1829 = vmax.f32 %v1797, %v1813
      %v1830 = vmax.f32 %v1798, %v1814
      %v1831 = vmax.f32 %v1799, %v1815
      %v1832 = vmax.f32 %v1800, %v1816
      %v1833 = vmax.f32 %v1801, %v1817
      %v1834 = vmax.f32 %v1802, %v1818
      %v1835 = vsel %vm472, %v1819, -inf
      %v1836 = vsel %vm472, %v1821, -inf
      %v1837 = vmax.f32 %v1835, %v1836
      %v1838 = vsel %vm472, %v1820, -inf
      %v1839 = vsel %vm472, %v1822, -inf
      %v1840 = vmax.f32 %v1838, %v1839
      %v1841 = vsel %vm472, %v1823, -inf
      %v1842 = vsel %vm472, %v1825, -inf
      %v1843 = vmax.f32 %v1841, %v1842
      %v1844 = vsel %vm472, %v1824, -inf
      %v1845 = vsel %vm472, %v1826, -inf
      %v1846 = vmax.f32 %v1844, %v1845
      %v1847 = vsel %vm472, %v1827, -inf
      %v1848 = vsel %vm472, %v1829, -inf
      %v1849 = vmax.f32 %v1847, %v1848
      %v1850 = vsel %vm472, %v1828, -inf
      %v1851 = vsel %vm472, %v1830, -inf
      %v1852 = vmax.f32 %v1850, %v1851
      %v1853 = vsel %vm472, %v1831, -inf
      %v1854 = vsel %vm472, %v1833, -inf
      %v1855 = vmax.f32 %v1853, %v1854
      %v1856 = vsel %vm472, %v1832, -inf
      %v1857 = vsel %vm472, %v1834, -inf
      %v1858 = vmax.f32 %v1856, %v1857
      %v1859 = vpack.c.bf16 %v1837, %v1837
      %v1860 = vpack.c.bf16 %v1840, %v1840
      %v1861 = vpack.c.bf16 %v1843, %v1843
      %v1862 = vpack.c.bf16 %v1846, %v1846
      %v1863 = vpack.c.bf16 %v1849, %v1849
      %v1864 = vpack.c.bf16 %v1852, %v1852
      %v1865 = vpack.c.bf16 %v1855, %v1855
      %v1866 = vpack.c.bf16 %v1858, %v1858
      %s1867 = scalar_lea.vmem %s170, 96
      %1868 = vst.msk [vmem:[%s1867] sm:$0xf] %vm616, %v1859
      %1869 = vst.msk [vmem:[%s1867 + $0x4] sm:$0xf] %vm616, %v1860
      %1870 = vst.msk [vmem:[%s1867 + $0x8] sm:$0xf] %vm616, %v1861
      %1871 = vst.msk [vmem:[%s1867 + $0xc] sm:$0xf] %vm616, %v1862
      %1872 = vst.msk [vmem:[%s1867 + $0x10] sm:$0xf] %vm616, %v1863
      %1873 = vst.msk [vmem:[%s1867 + $0x14] sm:$0xf] %vm616, %v1864
      %1874 = vst.msk [vmem:[%s1867 + $0x18] sm:$0xf] %vm616, %v1865
      %1875 = vst.msk [vmem:[%s1867 + $0x1c] sm:$0xf] %vm616, %v1866
      %p1876 = scmp.lt.s32.totalorder %s14, 1
      %s1877 = scalar_select %p1876, %s14, 1
      %s1878 = smul.addr %s1877, 32
      %s1879 = smul.addr %s1878, 4
      %s1880 = scalar_lea.vmem %s3, %s1879
      // Predicated region
      $region33: #{damon_forward.4} parent=31 // pred_check
        %p1881 = pneg %p100
      $region34: #{damon_forward.4} parent=31 // pred_check_branch
        %1883 = sbr.rel (%p1881) target = $region36
      $region35: #{damon_forward.4} parent=31 // pred_region
        _
      $region36: #{damon_forward.4} parent=31 // pred_fallthru
        _
    $region32: #{damon_forward.4} parent=5 // pred_fallthru
      _
    %p1884 = scmp.le.s32.totalorder 2, %s9
    // Predicated region
    $region37: #{damon_forward.4} parent=5 // pred_check
      %p1885 = pneg %p1884
    $region38: #{damon_forward.4} parent=5 // pred_check_branch
      %1887 = sbr.rel (%p1885) target = $region40
    $region39: #{damon_forward.4} parent=5 // pred_region
      %s1888 = ssub.s32 %s9, 2
      // Predicated region
      $region41: #{damon_forward.4} parent=39 // pred_check
        %p1889 = pneg %p106
      $region42: #{damon_forward.4} parent=39 // pred_check_branch
        %1891 = sbr.rel (%p1889) target = $region44
      $region43: #{damon_forward.4} parent=39 // pred_region
        %p1892 = scmp.lt.s32.totalorder %s15, 1
        %s1893 = scalar_select %p1892, %s15, 1
        %s1894 = smul.addr %s1893, 32
        %s1895 = smul.addr %s1894, 4
        %s1896 = scalar_lea.vmem %s3, %s1895
      $region44: #{damon_forward.4} parent=39 // pred_fallthru
        _
    $region40: #{damon_forward.4} parent=5 // pred_fallthru
      _
  $region6: #{damon_forward.4} parent=0 // loop_footer
    %s13 = sadd.s32 1, %s9
  $region7: #{damon_forward.4} parent=0 // loop_footer_branch
    %8 = sbr.rel target = $region3
  $region8: #{damon_forward.4} parent=0 // loop_exit
    _

// kernel: damon_forward.5
$region0: #{damon_forward.5}
  #allocation0 [shape = 'u32[]', space=smem, size = 0x4, offset = 0x4, fixed_abs, tag = 'smem constant byte address 0x4 - core index']
  #allocation1 [shape = 'u32[72,128]{1,0:T(1,128)}', space=vmem, size = 0x9000, scoped, tag = 'internal scratch']
  #allocation2 [shape = 'f32[16,16,32]{2,1,0:T(8,128)}', space=vmem, size = 0x20000, scoped, tag = 'scratch operand']
  %s0 = inlined_call_operand.vmem [shape: bf16[2,20,16,160], index: 0, kind: input, shape index: {}]
  %s1 = inlined_call_operand.vmem [shape: bf16[5,160,32], index: 1, kind: input, shape index: {}]
  %s2 = inlined_call_operand.vmem [shape: f32[1,32], index: 2, kind: input, shape index: {}]
  %s3 = inlined_call_operand.vmem [shape: bf16[2,8,8,32], index: 3, kind: output, shape index: {}]
  %s4 = sld [smem:[#allocation0]]
  $region45: #{damon_forward.5} parent=0
    _
  %s6 = ssub.s32 1, %s4
  %s7 = scalar_select 0, %s6, %s4
  loop: start=0, step=1, limit=4
  $region2: #{damon_forward.5} parent=0 // loop_pre_header
    _
  $region3: #{damon_forward.5} parent=0 // loop_header
    %s9 = sphi 0, %s13
    %p10 = scmp.ge.s32.totalorder %s9, 4
    %s19 = sphi 0, %s21
    %s22 = sphi 0, %s19
    %s23 = sphi 0, %s22
    %s39 = sphi 0, %s23
    %s43 = sphi 0, %s43
    %s45 = sphi 0, %s43
    %s46 = sphi 0, %s45
    %s60 = sphi 0, %s46
    %s64 = sphi 0, %s64
    %s66 = sphi 0, %s64
    %s67 = sphi 0, %s66
    %s81 = sphi 0, %s67
    %s87 = sphi 0, %s89
    %s90 = sphi 0, %s87
    %s91 = sphi 0, %s90
    %s107 = sphi 0, %s91
  $region4: #{damon_forward.5} parent=0 // loop_header_branch
    %12 = sbr.rel (%p10) target = $region8
  $region5: #{damon_forward.5} parent=0 // loop_body
    %s14 = ssub.s32 %s9, 1
    %s15 = ssub.s32 %s9, 2
    %s16 = sadd.s32 %s9, 1
    %s17 = ssub.s32 %s9, %s16
    %p18 = scmp.eq.s32.totalorder %s17, 0
    %s20 = sadd.s32 %s19, 1
    %s21 = scalar_select %p18, %s19, %s20
    %p24 = pneg %p18
    %p25 = scmp.eq.s32.totalorder %s9, 1
    %p26 = por %p24, %p25
    %p27 = scmp.ne.s32.totalorder %s19, %s22
    %p28 = scmp.eq.s32.totalorder %s9, 0
    %p29 = por %p27, %p28
    %p30 = scmp.ne.s32.totalorder %s19, %s22
    %p31 = scmp.eq.s32.totalorder %s14, 1
    %p32 = por %p30, %p31
    %p33 = scmp.ne.s32.totalorder %s22, %s23
    %p34 = scmp.eq.s32.totalorder %s14, 0
    %p35 = por %p33, %p34
    %p36 = scmp.ne.s32.totalorder %s22, %s23
    %p37 = scmp.eq.s32.totalorder %s15, 1
    %p38 = por %p36, %p37
    %p40 = scmp.ne.s32.totalorder %s23, %s39
    %p41 = scmp.eq.s32.totalorder %s15, 0
    %p42 = por %p40, %p41
    %s44 = sadd.s32 %s43, 1
    %p47 = scmp.eq.s32.totalorder %s9, 1
    %p48 = scmp.ne.s32.totalorder %s43, %s45
    %p49 = scmp.eq.s32.totalorder %s9, 0
    %p50 = por %p48, %p49
    %p51 = scmp.ne.s32.totalorder %s43, %s45
    %p52 = scmp.eq.s32.totalorder %s14, 1
    %p53 = por %p51, %p52
    %p54 = scmp.ne.s32.totalorder %s45, %s46
    %p55 = scmp.eq.s32.totalorder %s14, 0
    %p56 = por %p54, %p55
    %p57 = scmp.ne.s32.totalorder %s45, %s46
    %p58 = scmp.eq.s32.totalorder %s15, 1
    %p59 = por %p57, %p58
    %p61 = scmp.ne.s32.totalorder %s46, %s60
    %p62 = scmp.eq.s32.totalorder %s15, 0
    %p63 = por %p61, %p62
    %s65 = sadd.s32 %s64, 1
    %p68 = scmp.eq.s32.totalorder %s9, 1
    %p69 = scmp.ne.s32.totalorder %s64, %s66
    %p70 = scmp.eq.s32.totalorder %s9, 0
    %p71 = por %p69, %p70
    %p72 = scmp.ne.s32.totalorder %s64, %s66
    %p73 = scmp.eq.s32.totalorder %s14, 1
    %p74 = por %p72, %p73
    %p75 = scmp.ne.s32.totalorder %s66, %s67
    %p76 = scmp.eq.s32.totalorder %s14, 0
    %p77 = por %p75, %p76
    %p78 = scmp.ne.s32.totalorder %s66, %s67
    %p79 = scmp.eq.s32.totalorder %s15, 1
    %p80 = por %p78, %p79
    %p82 = scmp.ne.s32.totalorder %s67, %s81
    %p83 = scmp.eq.s32.totalorder %s15, 0
    %p84 = por %p82, %p83
    %s85 = ssub.s32 %s9, %s16
    %p86 = scmp.eq.s32.totalorder %s85, 0
    %s88 = sadd.s32 %s87, 1
    %s89 = scalar_select %p86, %s87, %s88
    %p92 = pneg %p86
    %p93 = scmp.eq.s32.totalorder %s9, 1
    %p94 = por %p92, %p93
    %p95 = scmp.ne.s32.totalorder %s87, %s90
    %p96 = scmp.eq.s32.totalorder %s9, 0
    %p97 = por %p95, %p96
    %p98 = scmp.ne.s32.totalorder %s87, %s90
    %p99 = scmp.eq.s32.totalorder %s14, 1
    %p100 = por %p98, %p99
    %p101 = scmp.ne.s32.totalorder %s90, %s91
    %p102 = scmp.eq.s32.totalorder %s14, 0
    %p103 = por %p101, %p102
    %p104 = scmp.ne.s32.totalorder %s90, %s91
    %p105 = scmp.eq.s32.totalorder %s15, 1
    %p106 = por %p104, %p105
    %p108 = scmp.ne.s32.totalorder %s91, %s107
    %p109 = scmp.eq.s32.totalorder %s15, 0
    %p110 = por %p108, %p109
    %p111 = scmp.le.s32.totalorder 1, %s9
    %p112 = scmp.lt.s32.totalorder %s9, 3
    %p113 = pnand %p111, %p112
    %p114 = pneg %p113
    // Predicated region
    $region9: #{damon_forward.5} parent=5 // pred_check
      _
    $region10: #{damon_forward.5} parent=5 // pred_check_branch
      %116 = sbr.rel (%p113) target = $region12
    $region11: #{damon_forward.5} parent=5 // pred_region
      %s117 = ssub.s32 %s9, 1
      // Predicated region
      $region13: #{damon_forward.5} parent=11 // pred_check
        %p118 = pneg %p56
      $region14: #{damon_forward.5} parent=11 // pred_check_branch
        %120 = sbr.rel (%p118) target = $region16
      $region15: #{damon_forward.5} parent=11 // pred_region
        _
      $region16: #{damon_forward.5} parent=11 // pred_fallthru
        _
      // Predicated region
      $region17: #{damon_forward.5} parent=11 // pred_check
        %p121 = pneg %p77
      $region18: #{damon_forward.5} parent=11 // pred_check_branch
        %123 = sbr.rel (%p121) target = $region20
      $region19: #{damon_forward.5} parent=11 // pred_region
        _
      $region20: #{damon_forward.5} parent=11 // pred_fallthru
        _
    $region12: #{damon_forward.5} parent=5 // pred_fallthru
      _
    %p124 = scmp.lt.s32.totalorder %s9, 2
    // Predicated region
    $region21: #{damon_forward.5} parent=5 // pred_check
      %p125 = pneg %p124
    $region22: #{damon_forward.5} parent=5 // pred_check_branch
      %127 = sbr.rel (%p125) target = $region24
    $region23: #{damon_forward.5} parent=5 // pred_region
      // Predicated region
      $region25: #{damon_forward.5} parent=23 // pred_check
        %p128 = pneg %p29
      $region26: #{damon_forward.5} parent=23 // pred_check_branch
        %130 = sbr.rel (%p128) target = $region28
      $region27: #{damon_forward.5} parent=23 // pred_region
        %p131 = scmp.lt.s32.totalorder %s9, 1
        %s132 = scalar_select %p131, %s9, 1
        %s133 = smul.addr %s132, 80
        %s134 = smul.addr %s133, 4
        %s135 = scalar_lea.vmem %s0, %s134
      $region28: #{damon_forward.5} parent=23 // pred_fallthru
        _
    $region24: #{damon_forward.5} parent=5 // pred_fallthru
      _
    %p136 = scmp.le.s32.totalorder 1, %s9
    %p137 = scmp.lt.s32.totalorder %s9, 3
    %p138 = pnand %p136, %p137
    %p139 = pneg %p138
    // Predicated region
    $region29: #{damon_forward.5} parent=5 // pred_check
      _
    $region30: #{damon_forward.5} parent=5 // pred_check_branch
      %141 = sbr.rel (%p138) target = $region32
    $region31: #{damon_forward.5} parent=5 // pred_region
      %s142 = ssub.s32 %s9, 1
      %p143 = scmp.lt.s32.totalorder %s14, 1
      %s144 = scalar_select %p143, %s14, 1
      %s145 = smul.addr %s144, 80
      %s146 = smul.addr %s145, 4
      %s147 = scalar_lea.vmem %s0, %s146
      %p148 = pneg %p35
      %p149 = pneg %p32
      %p150 = pneg %p56
      %p151 = pneg %p53
      %p152 = pneg %p77
      %p153 = pneg %p74
      %p154 = pneg %p103
      %p155 = pneg %p100
      %p156 = scmp.lt.s32.totalorder %s14, 1
      %s157 = scalar_select %p156, %s14, 1
      %s158 = smul.addr %s157, 8
      %s159 = smul.addr %s158, 4
      %s160 = scalar_lea.vmem %s3, %s159
      %p161 = scmp.lt.s32.totalorder %s14, 1
      %s162 = scalar_select %p161, %s14, 1
      %s163 = smul.addr %s162, 80
      %s164 = smul.addr %s163, 4
      %s165 = scalar_lea.vmem %s0, %s164
      %p166 = scmp.lt.s32.totalorder %s14, 1
      %s167 = scalar_select %p166, %s14, 1
      %s168 = smul.addr %s167, 8
      %s169 = smul.addr %s168, 4
      %s170 = scalar_lea.vmem %s3, %s169
      %v172 = vld [vmem:[%s165] sm:$0xff]
      %v173 = vld [vmem:[%s165 + $0x8] sm:$0xff]
      %v174 = vld [vmem:[%s165 + $0x10] sm:$0xff]
      %v175 = vld [vmem:[%s165 + $0x18] sm:$0xff]
      %v176 = vld [vmem:[%s165 + $0x20] sm:$0xff]
      %v177 = vld [vmem:[%s165 + $0x28] sm:$0xff]
      %v178 = vld [vmem:[%s165 + $0x30] sm:$0xff]
      %v179 = vld [vmem:[%s165 + $0x38] sm:$0xff]
      %v180 = vld [vmem:[%s165 + $0x40] sm:$0xff]
      %v181 = vld [vmem:[%s165 + $0x48] sm:$0xff]
      %v182 = vld [vmem:[%s165 + $0x50] sm:$0xff]
      %v183 = vld [vmem:[%s165 + $0x58] sm:$0xff]
      %v184 = vld [vmem:[%s165 + $0x60] sm:$0xff]
      %v185 = vld [vmem:[%s165 + $0x68] sm:$0xff]
      %v186 = vld [vmem:[%s165 + $0x70] sm:$0xff]
      %v187 = vld [vmem:[%s165 + $0x78] sm:$0xff]
      %v188 = vld [vmem:[%s165 + $0x80] sm:$0xff]
      %v189 = vld [vmem:[%s165 + $0x88] sm:$0xff]
      %v190 = vld [vmem:[%s165 + $0x90] sm:$0xff]
      %v191 = vld [vmem:[%s165 + $0x98] sm:$0xff]
      %v192 = vld [vmem:[%s165 + $0xa0] sm:$0xff]
      %v193 = vld [vmem:[%s165 + $0xa8] sm:$0xff]
      %v194 = vld [vmem:[%s165 + $0xb0] sm:$0xff]
      %v195 = vld [vmem:[%s165 + $0xb8] sm:$0xff]
      %v196 = vld [vmem:[%s165 + $0xc0] sm:$0xff]
      %v197 = vld [vmem:[%s165 + $0xc8] sm:$0xff]
      %v198 = vld [vmem:[%s165 + $0xd0] sm:$0xff]
      %v199 = vld [vmem:[%s165 + $0xd8] sm:$0xff]
      %v200 = vld [vmem:[%s165 + $0xe0] sm:$0xff]
      %v201 = vld [vmem:[%s165 + $0xe8] sm:$0xff]
      %v202 = vld [vmem:[%s165 + $0xf0] sm:$0xff]
      %v203 = vld [vmem:[%s165 + $0xf8] sm:$0xff]
      %v204 = vld [vmem:[%s1] sm:$0xf]
      %v205 = vld [vmem:[%s1 + $0x4] sm:$0xf]
      %v206 = vld [vmem:[%s1 + $0x8] sm:$0xf]
      %v207 = vld [vmem:[%s1 + $0xc] sm:$0xf]
      %v208 = vld [vmem:[%s1 + $0x10] sm:$0xf]
      %v209 = vld [vmem:[%s1 + $0x14] sm:$0xf]
      %v210 = vld [vmem:[%s1 + $0x18] sm:$0xf]
      %v211 = vld [vmem:[%s1 + $0x1c] sm:$0xf]
      %v212 = vld [vmem:[%s1 + $0x20] sm:$0xf]
      %v213 = vld [vmem:[%s1 + $0x24] sm:$0xf]
      %v214 = vld [vmem:[%s1 + $0x28] sm:$0xf]
      %v215 = vld [vmem:[%s1 + $0x2c] sm:$0xf]
      %v216 = vld [vmem:[%s1 + $0x30] sm:$0xf]
      %v217 = vld [vmem:[%s1 + $0x34] sm:$0xf]
      %v218 = vld [vmem:[%s1 + $0x38] sm:$0xf]
      %v219 = vld [vmem:[%s1 + $0x3c] sm:$0xf]
      %v220 = vld [vmem:[%s1 + $0x40] sm:$0xf]
      %v221 = vld [vmem:[%s1 + $0x44] sm:$0xf]
      %v222 = vld [vmem:[%s1 + $0x48] sm:$0xf]
      %v223 = vld [vmem:[%s1 + $0x4c] sm:$0xf]
      %s224 = scalar_lea.vmem %s165, 16
      %v225 = vld [vmem:[%s224] sm:$0xff]
      %v226 = vld [vmem:[%s224 + $0x8] sm:$0xff]
      %v227 = vld [vmem:[%s224 + $0x10] sm:$0xff]
      %v228 = vld [vmem:[%s224 + $0x18] sm:$0xff]
      %v229 = vld [vmem:[%s224 + $0x20] sm:$0xff]
      %v230 = vld [vmem:[%s224 + $0x28] sm:$0xff]
      %v231 = vld [vmem:[%s224 + $0x30] sm:$0xff]
      %v232 = vld [vmem:[%s224 + $0x38] sm:$0xff]
      %v233 = vld [vmem:[%s224 + $0x40] sm:$0xff]
      %v234 = vld [vmem:[%s224 + $0x48] sm:$0xff]
      %v235 = vld [vmem:[%s224 + $0x50] sm:$0xff]
      %v236 = vld [vmem:[%s224 + $0x58] sm:$0xff]
      %v237 = vld [vmem:[%s224 + $0x60] sm:$0xff]
      %v238 = vld [vmem:[%s224 + $0x68] sm:$0xff]
      %v239 = vld [vmem:[%s224 + $0x70] sm:$0xff]
      %v240 = vld [vmem:[%s224 + $0x78] sm:$0xff]
      %v241 = vld [vmem:[%s224 + $0x80] sm:$0xff]
      %v242 = vld [vmem:[%s224 + $0x88] sm:$0xff]
      %v243 = vld [vmem:[%s224 + $0x90] sm:$0xff]
      %v244 = vld [vmem:[%s224 + $0x98] sm:$0xff]
      %v245 = vld [vmem:[%s224 + $0xa0] sm:$0xff]
      %v246 = vld [vmem:[%s224 + $0xa8] sm:$0xff]
      %v247 = vld [vmem:[%s224 + $0xb0] sm:$0xff]
      %v248 = vld [vmem:[%s224 + $0xb8] sm:$0xff]
      %v249 = vld [vmem:[%s224 + $0xc0] sm:$0xff]
      %v250 = vld [vmem:[%s224 + $0xc8] sm:$0xff]
      %v251 = vld [vmem:[%s224 + $0xd0] sm:$0xff]
      %v252 = vld [vmem:[%s224 + $0xd8] sm:$0xff]
      %v253 = vld [vmem:[%s224 + $0xe0] sm:$0xff]
      %v254 = vld [vmem:[%s224 + $0xe8] sm:$0xff]
      %v255 = vld [vmem:[%s224 + $0xf0] sm:$0xff]
      %v256 = vld [vmem:[%s224 + $0xf8] sm:$0xff]
      %s257 = scalar_lea.vmem %s1, 80
      %v258 = vld [vmem:[%s257] sm:$0xf]
      %v259 = vld [vmem:[%s257 + $0x4] sm:$0xf]
      %v260 = vld [vmem:[%s257 + $0x8] sm:$0xf]
      %v261 = vld [vmem:[%s257 + $0xc] sm:$0xf]
      %v262 = vld [vmem:[%s257 + $0x10] sm:$0xf]
      %v263 = vld [vmem:[%s257 + $0x14] sm:$0xf]
      %v264 = vld [vmem:[%s257 + $0x18] sm:$0xf]
      %v265 = vld [vmem:[%s257 + $0x1c] sm:$0xf]
      %v266 = vld [vmem:[%s257 + $0x20] sm:$0xf]
      %v267 = vld [vmem:[%s257 + $0x24] sm:$0xf]
      %v268 = vld [vmem:[%s257 + $0x28] sm:$0xf]
      %v269 = vld [vmem:[%s257 + $0x2c] sm:$0xf]
      %v270 = vld [vmem:[%s257 + $0x30] sm:$0xf]
      %v271 = vld [vmem:[%s257 + $0x34] sm:$0xf]
      %v272 = vld [vmem:[%s257 + $0x38] sm:$0xf]
      %v273 = vld [vmem:[%s257 + $0x3c] sm:$0xf]
      %v274 = vld [vmem:[%s257 + $0x40] sm:$0xf]
      %v275 = vld [vmem:[%s257 + $0x44] sm:$0xf]
      %v276 = vld [vmem:[%s257 + $0x48] sm:$0xf]
      %v277 = vld [vmem:[%s257 + $0x4c] sm:$0xf]
      %v310 = vunpack.c.l.b16 %v225
      %v311 = vunpack.c.h.b16 %v225
      %v312 = vunpack.c.l.b16 %v226
      %v313 = vunpack.c.h.b16 %v226
      %v314 = vunpack.c.l.b16 %v227
      %v315 = vunpack.c.h.b16 %v227
      %v316 = vunpack.c.l.b16 %v228
      %v317 = vunpack.c.h.b16 %v228
      %v318 = vunpack.c.l.b16 %v229
      %v319 = vunpack.c.h.b16 %v229
      %v320 = vunpack.c.l.b16 %v230
      %v321 = vunpack.c.h.b16 %v230
      %v322 = vunpack.c.l.b16 %v231
      %v323 = vunpack.c.h.b16 %v231
      %v324 = vunpack.c.l.b16 %v232
      %v325 = vunpack.c.h.b16 %v232
      %v326 = vunpack.c.l.b16 %v233
      %v327 = vunpack.c.h.b16 %v233
      %v328 = vunpack.c.l.b16 %v234
      %v329 = vunpack.c.h.b16 %v234
      %v330 = vunpack.c.l.b16 %v235
      %v331 = vunpack.c.h.b16 %v235
      %v332 = vunpack.c.l.b16 %v236
      %v333 = vunpack.c.h.b16 %v236
      %v334 = vunpack.c.l.b16 %v237
      %v335 = vunpack.c.h.b16 %v237
      %v336 = vunpack.c.l.b16 %v238
      %v337 = vunpack.c.h.b16 %v238
      %v338 = vunpack.c.l.b16 %v239
      %v339 = vunpack.c.h.b16 %v239
      %v340 = vunpack.c.l.b16 %v240
      %v341 = vunpack.c.h.b16 %v240
      %v342 = vunpack.c.l.b16 %v241
      %v343 = vunpack.c.h.b16 %v241
      %v344 = vunpack.c.l.b16 %v242
      %v345 = vunpack.c.h.b16 %v242
      %v346 = vunpack.c.l.b16 %v243
      %v347 = vunpack.c.h.b16 %v243
      %v348 = vunpack.c.l.b16 %v244
      %v349 = vunpack.c.h.b16 %v244
      %v350 = vunpack.c.l.b16 %v245
      %v351 = vunpack.c.h.b16 %v245
      %v352 = vunpack.c.l.b16 %v246
      %v353 = vunpack.c.h.b16 %v246
      %v354 = vunpack.c.l.b16 %v247
      %v355 = vunpack.c.h.b16 %v247
      %v356 = vunpack.c.l.b16 %v248
      %v357 = vunpack.c.h.b16 %v248
      %v358 = vunpack.c.l.b16 %v249
      %v359 = vunpack.c.h.b16 %v249
      %v360 = vunpack.c.l.b16 %v250
      %v361 = vunpack.c.h.b16 %v250
      %v362 = vunpack.c.l.b16 %v251
      %v363 = vunpack.c.h.b16 %v251
      %v364 = vunpack.c.l.b16 %v252
      %v365 = vunpack.c.h.b16 %v252
      %v366 = vunpack.c.l.b16 %v253
      %v367 = vunpack.c.h.b16 %v253
      %v368 = vunpack.c.l.b16 %v254
      %v369 = vunpack.c.h.b16 %v254
      %v370 = vunpack.c.l.b16 %v255
      %v371 = vunpack.c.h.b16 %v255
      %v372 = vunpack.c.l.b16 %v256
      %v373 = vunpack.c.h.b16 %v256
      %v374 = vpack.c.b16 %v312, %v310
      %v375 = vpack.c.b16 %v313, %v311
      %v376 = vpack.c.b16 %v316, %v314
      %v377 = vpack.c.b16 %v317, %v315
      %v378 = vpack.c.b16 %v320, %v318
      %v379 = vpack.c.b16 %v321, %v319
      %v380 = vpack.c.b16 %v324, %v322
      %v381 = vpack.c.b16 %v325, %v323
      %v382 = vpack.c.b16 %v328, %v326
      %v383 = vpack.c.b16 %v329, %v327
      %v384 = vpack.c.b16 %v332, %v330
      %v385 = vpack.c.b16 %v333, %v331
      %v386 = vpack.c.b16 %v336, %v334
      %v387 = vpack.c.b16 %v337, %v335
      %v388 = vpack.c.b16 %v340, %v338
      %v389 = vpack.c.b16 %v341, %v339
      %v390 = vpack.c.b16 %v344, %v342
      %v391 = vpack.c.b16 %v345, %v343
      %v392 = vpack.c.b16 %v348, %v346
      %v393 = vpack.c.b16 %v349, %v347
      %v394 = vpack.c.b16 %v352, %v350
      %v395 = vpack.c.b16 %v353, %v351
      %v396 = vpack.c.b16 %v356, %v354
      %v397 = vpack.c.b16 %v357, %v355
      %v398 = vpack.c.b16 %v360, %v358
      %v399 = vpack.c.b16 %v361, %v359
      %v400 = vpack.c.b16 %v364, %v362
      %v401 = vpack.c.b16 %v365, %v363
      %v402 = vpack.c.b16 %v368, %v366
      %v403 = vpack.c.b16 %v369, %v367
      %v404 = vpack.c.b16 %v372, %v370
      %v405 = vpack.c.b16 %v373, %v371
      %v442 = vunpack.c.l.b16 %v258
      %v443 = vunpack.c.l.b16 %v259
      %v444 = vunpack.c.l.b16 %v260
      %v445 = vunpack.c.l.b16 %v261
      %v446 = vunpack.c.l.b16 %v262
      %v447 = vunpack.c.l.b16 %v263
      %v448 = vunpack.c.l.b16 %v264
      %v449 = vunpack.c.l.b16 %v265
      %v450 = vunpack.c.l.b16 %v266
      %v451 = vunpack.c.l.b16 %v267
      %v452 = vunpack.c.l.b16 %v268
      %v453 = vunpack.c.l.b16 %v269
      %v454 = vunpack.c.l.b16 %v270
      %v455 = vunpack.c.l.b16 %v271
      %v456 = vunpack.c.l.b16 %v272
      %v457 = vunpack.c.l.b16 %v273
      %v458 = vunpack.c.l.b16 %v274
      %v459 = vunpack.c.l.b16 %v275
      %v460 = vunpack.c.l.b16 %v276
      %v461 = vunpack.c.l.b16 %v277
      %v462 = vpack.c.b16 %v443, %v442
      %v463 = vpack.c.b16 %v445, %v444
      %v464 = vpack.c.b16 %v447, %v446
      %v465 = vpack.c.b16 %v449, %v448
      %v466 = vpack.c.b16 %v451, %v450
      %v467 = vpack.c.b16 %v453, %v452
      %v468 = vpack.c.b16 %v455, %v454
      %v469 = vpack.c.b16 %v457, %v456
      %v470 = vpack.c.b16 %v459, %v458
      %v471 = vpack.c.b16 %v461, %v460
      %vm482 = vcmask 261120
      %v484 = vsel %vm482, %v375, 0
      %v487 = vsel %vm482, %v377, 0
      %v490 = vsel %vm482, %v379, 0
      %v493 = vsel %vm482, %v381, 0
      %v496 = vsel %vm482, %v383, 0
      %v499 = vsel %vm482, %v385, 0
      %v502 = vsel %vm482, %v387, 0
      %v505 = vsel %vm482, %v389, 0
      %v508 = vsel %vm482, %v391, 0
      %v511 = vsel %vm482, %v393, 0
      %v514 = vsel %vm482, %v395, 0
      %v517 = vsel %vm482, %v397, 0
      %v520 = vsel %vm482, %v399, 0
      %v523 = vsel %vm482, %v401, 0
      %v526 = vsel %vm482, %v403, 0
      %v529 = vsel %vm482, %v405, 0
      %531 = vmatpush.bf16.msra.mxu0 %v469
      %532 = vmatpush.bf16.msra.mxu0 %v468
      %533 = vmatpush.bf16.msra.mxu0 %v467
      %534 = vmatpush.bf16.msra.mxu0 %v466
      %535 = vmatpush.bf16.msra.mxu0 %v465
      %536 = vmatpush.bf16.msra.mxu0 %v464
      %537 = vmatpush.bf16.msra.mxu0 %v463
      %538 = vmatpush.bf16.msra.mxu0 %v462
      %539 = vmatmul.bf16.gmra.mxu0 %v374
      %v540 = vpop.f32.mrf.mxu0
      %v541 = vadd.f32 0.0, %v540
      %v542 = vpop.f32.mrf.mxu0
      %v543 = vadd.f32 0.0, %v542
      %544 = vmatmul.bf16.gmra.mxu0 %v376
      %v545 = vpop.f32.mrf.mxu0
      %v546 = vadd.f32 0.0, %v545
      %v547 = vpop.f32.mrf.mxu0
      %v548 = vadd.f32 0.0, %v547
      %549 = vmatmul.bf16.gmra.mxu0 %v378
      %v550 = vpop.f32.mrf.mxu0
      %v551 = vadd.f32 0.0, %v550
      %v552 = vpop.f32.mrf.mxu0
      %v553 = vadd.f32 0.0, %v552
      %554 = vmatmul.bf16.gmra.mxu0 %v380
      %v555 = vpop.f32.mrf.mxu0
      %v556 = vadd.f32 0.0, %v555
      %v557 = vpop.f32.mrf.mxu0
      %v558 = vadd.f32 0.0, %v557
      %559 = vmatmul.bf16.gmra.mxu0 %v382
      %v560 = vpop.f32.mrf.mxu0
      %v561 = vadd.f32 0.0, %v560
      %v562 = vpop.f32.mrf.mxu0
      %v563 = vadd.f32 0.0, %v562
      %564 = vmatmul.bf16.gmra.mxu0 %v384
      %v565 = vpop.f32.mrf.mxu0
      %v566 = vadd.f32 0.0, %v565
      %v567 = vpop.f32.mrf.mxu0
      %v568 = vadd.f32 0.0, %v567
      %569 = vmatmul.bf16.gmra.mxu0 %v386
      %v570 = vpop.f32.mrf.mxu0
      %v571 = vadd.f32 0.0, %v570
      %v572 = vpop.f32.mrf.mxu0
      %v573 = vadd.f32 0.0, %v572
      %574 = vmatmul.bf16.gmra.mxu0 %v388
      %v575 = vpop.f32.mrf.mxu0
      %v576 = vadd.f32 0.0, %v575
      %v577 = vpop.f32.mrf.mxu0
      %v578 = vadd.f32 0.0, %v577
      %579 = vmatmul.bf16.gmra.mxu0 %v390
      %v580 = vpop.f32.mrf.mxu0
      %v581 = vadd.f32 0.0, %v580
      %v582 = vpop.f32.mrf.mxu0
      %v583 = vadd.f32 0.0, %v582
      %584 = vmatmul.bf16.gmra.mxu0 %v392
      %v585 = vpop.f32.mrf.mxu0
      %v586 = vadd.f32 0.0, %v585
      %v587 = vpop.f32.mrf.mxu0
      %v588 = vadd.f32 0.0, %v587
      %589 = vmatmul.bf16.gmra.mxu0 %v394
      %v590 = vpop.f32.mrf.mxu0
      %v591 = vadd.f32 0.0, %v590
      %v592 = vpop.f32.mrf.mxu0
      %v593 = vadd.f32 0.0, %v592
      %594 = vmatmul.bf16.gmra.mxu0 %v396
      %v595 = vpop.f32.mrf.mxu0
      %v596 = vadd.f32 0.0, %v595
      %v597 = vpop.f32.mrf.mxu0
      %v598 = vadd.f32 0.0, %v597
      %599 = vmatmul.bf16.gmra.mxu0 %v398
      %v600 = vpop.f32.mrf.mxu0
      %v601 = vadd.f32 0.0, %v600
      %v602 = vpop.f32.mrf.mxu0
      %v603 = vadd.f32 0.0, %v602
      %604 = vmatmul.bf16.gmra.mxu0 %v400
      %v605 = vpop.f32.mrf.mxu0
      %v606 = vadd.f32 0.0, %v605
      %v607 = vpop.f32.mrf.mxu0
      %v608 = vadd.f32 0.0, %v607
      %609 = vmatmul.bf16.gmra.mxu0 %v402
      %v610 = vpop.f32.mrf.mxu0
      %v611 = vadd.f32 0.0, %v610
      %v612 = vpop.f32.mrf.mxu0
      %v613 = vadd.f32 0.0, %v612
      %614 = vmatmul.bf16.gmra.mxu0 %v404
      %v615 = vpop.f32.mrf.mxu0
      %v616 = vadd.f32 0.0, %v615
      %v617 = vpop.f32.mrf.mxu0
      %v618 = vadd.f32 0.0, %v617
      %619 = vdwg.mxu0
      %620 = vmatpush.bf16.msra.mxu0 0
      %621 = vmatpush.bf16.msra.mxu0 0
      %622 = vmatpush.bf16.msra.mxu0 0
      %623 = vmatpush.bf16.msra.mxu0 0
      %624 = vmatpush.bf16.msra.mxu0 0
      %625 = vmatpush.bf16.msra.mxu0 0
      %626 = vmatpush.bf16.msra.mxu0 %v471
      %627 = vmatpush.bf16.msra.mxu0 %v470
      %628 = vmatmul.bf16.gmra.mxu0 %v484
      %v629 = vpop.f32.mrf.mxu0
      %v630 = vadd.f32 %v541, %v629
      %v631 = vpop.f32.mrf.mxu0
      %v632 = vadd.f32 %v543, %v631
      %633 = vmatmul.bf16.gmra.mxu0 %v487
      %v634 = vpop.f32.mrf.mxu0
      %v635 = vadd.f32 %v546, %v634
      %v636 = vpop.f32.mrf.mxu0
      %v637 = vadd.f32 %v548, %v636
      %638 = vmatmul.bf16.gmra.mxu0 %v490
      %v639 = vpop.f32.mrf.mxu0
      %v640 = vadd.f32 %v551, %v639
      %v641 = vpop.f32.mrf.mxu0
      %v642 = vadd.f32 %v553, %v641
      %643 = vmatmul.bf16.gmra.mxu0 %v493
      %v644 = vpop.f32.mrf.mxu0
      %v645 = vadd.f32 %v556, %v644
      %v646 = vpop.f32.mrf.mxu0
      %v647 = vadd.f32 %v558, %v646
      %648 = vmatmul.bf16.gmra.mxu0 %v496
      %v649 = vpop.f32.mrf.mxu0
      %v650 = vadd.f32 %v561, %v649
      %v651 = vpop.f32.mrf.mxu0
      %v652 = vadd.f32 %v563, %v651
      %653 = vmatmul.bf16.gmra.mxu0 %v499
      %v654 = vpop.f32.mrf.mxu0
      %v655 = vadd.f32 %v566, %v654
      %v656 = vpop.f32.mrf.mxu0
      %v657 = vadd.f32 %v568, %v656
      %658 = vmatmul.bf16.gmra.mxu0 %v502
      %v659 = vpop.f32.mrf.mxu0
      %v660 = vadd.f32 %v571, %v659
      %v661 = vpop.f32.mrf.mxu0
      %v662 = vadd.f32 %v573, %v661
      %663 = vmatmul.bf16.gmra.mxu0 %v505
      %v664 = vpop.f32.mrf.mxu0
      %v665 = vadd.f32 %v576, %v664
      %v666 = vpop.f32.mrf.mxu0
      %v667 = vadd.f32 %v578, %v666
      %668 = vmatmul.bf16.gmra.mxu0 %v508
      %v669 = vpop.f32.mrf.mxu0
      %v670 = vadd.f32 %v581, %v669
      %v671 = vpop.f32.mrf.mxu0
      %v672 = vadd.f32 %v583, %v671
      %673 = vmatmul.bf16.gmra.mxu0 %v511
      %v674 = vpop.f32.mrf.mxu0
      %v675 = vadd.f32 %v586, %v674
      %v676 = vpop.f32.mrf.mxu0
      %v677 = vadd.f32 %v588, %v676
      %678 = vmatmul.bf16.gmra.mxu0 %v514
      %v679 = vpop.f32.mrf.mxu0
      %v680 = vadd.f32 %v591, %v679
      %v681 = vpop.f32.mrf.mxu0
      %v682 = vadd.f32 %v593, %v681
      %683 = vmatmul.bf16.gmra.mxu0 %v517
      %v684 = vpop.f32.mrf.mxu0
      %v685 = vadd.f32 %v596, %v684
      %v686 = vpop.f32.mrf.mxu0
      %v687 = vadd.f32 %v598, %v686
      %688 = vmatmul.bf16.gmra.mxu0 %v520
      %v689 = vpop.f32.mrf.mxu0
      %v690 = vadd.f32 %v601, %v689
      %v691 = vpop.f32.mrf.mxu0
      %v692 = vadd.f32 %v603, %v691
      %693 = vmatmul.bf16.gmra.mxu0 %v523
      %v694 = vpop.f32.mrf.mxu0
      %v695 = vadd.f32 %v606, %v694
      %v696 = vpop.f32.mrf.mxu0
      %v697 = vadd.f32 %v608, %v696
      %698 = vmatmul.bf16.gmra.mxu0 %v526
      %v699 = vpop.f32.mrf.mxu0
      %v700 = vadd.f32 %v611, %v699
      %v701 = vpop.f32.mrf.mxu0
      %v702 = vadd.f32 %v613, %v701
      %703 = vmatmul.bf16.gmra.mxu0 %v529
      %v704 = vpop.f32.mrf.mxu0
      %v705 = vadd.f32 %v616, %v704
      %v706 = vpop.f32.mrf.mxu0
      %v707 = vadd.f32 %v618, %v706
      %708 = vdwg.mxu0
      %v741 = vunpack.c.l.b16 %v172
      %v742 = vunpack.c.h.b16 %v172
      %v743 = vunpack.c.l.b16 %v173
      %v744 = vunpack.c.h.b16 %v173
      %v745 = vunpack.c.l.b16 %v174
      %v746 = vunpack.c.h.b16 %v174
      %v747 = vunpack.c.l.b16 %v175
      %v748 = vunpack.c.h.b16 %v175
      %v749 = vunpack.c.l.b16 %v176
      %v750 = vunpack.c.h.b16 %v176
      %v751 = vunpack.c.l.b16 %v177
      %v752 = vunpack.c.h.b16 %v177
      %v753 = vunpack.c.l.b16 %v178
      %v754 = vunpack.c.h.b16 %v178
      %v755 = vunpack.c.l.b16 %v179
      %v756 = vunpack.c.h.b16 %v179
      %v757 = vunpack.c.l.b16 %v180
      %v758 = vunpack.c.h.b16 %v180
      %v759 = vunpack.c.l.b16 %v181
      %v760 = vunpack.c.h.b16 %v181
      %v761 = vunpack.c.l.b16 %v182
      %v762 = vunpack.c.h.b16 %v182
      %v763 = vunpack.c.l.b16 %v183
      %v764 = vunpack.c.h.b16 %v183
      %v765 = vunpack.c.l.b16 %v184
      %v766 = vunpack.c.h.b16 %v184
      %v767 = vunpack.c.l.b16 %v185
      %v768 = vunpack.c.h.b16 %v185
      %v769 = vunpack.c.l.b16 %v186
      %v770 = vunpack.c.h.b16 %v186
      %v771 = vunpack.c.l.b16 %v187
      %v772 = vunpack.c.h.b16 %v187
      %v773 = vunpack.c.l.b16 %v188
      %v774 = vunpack.c.h.b16 %v188
      %v775 = vunpack.c.l.b16 %v189
      %v776 = vunpack.c.h.b16 %v189
      %v777 = vunpack.c.l.b16 %v190
      %v778 = vunpack.c.h.b16 %v190
      %v779 = vunpack.c.l.b16 %v191
      %v780 = vunpack.c.h.b16 %v191
      %v781 = vunpack.c.l.b16 %v192
      %v782 = vunpack.c.h.b16 %v192
      %v783 = vunpack.c.l.b16 %v193
      %v784 = vunpack.c.h.b16 %v193
      %v785 = vunpack.c.l.b16 %v194
      %v786 = vunpack.c.h.b16 %v194
      %v787 = vunpack.c.l.b16 %v195
      %v788 = vunpack.c.h.b16 %v195
      %v789 = vunpack.c.l.b16 %v196
      %v790 = vunpack.c.h.b16 %v196
      %v791 = vunpack.c.l.b16 %v197
      %v792 = vunpack.c.h.b16 %v197
      %v793 = vunpack.c.l.b16 %v198
      %v794 = vunpack.c.h.b16 %v198
      %v795 = vunpack.c.l.b16 %v199
      %v796 = vunpack.c.h.b16 %v199
      %v797 = vunpack.c.l.b16 %v200
      %v798 = vunpack.c.h.b16 %v200
      %v799 = vunpack.c.l.b16 %v201
      %v800 = vunpack.c.h.b16 %v201
      %v801 = vunpack.c.l.b16 %v202
      %v802 = vunpack.c.h.b16 %v202
      %v803 = vunpack.c.l.b16 %v203
      %v804 = vunpack.c.h.b16 %v203
      %v805 = vpack.c.b16 %v743, %v741
      %v806 = vpack.c.b16 %v744, %v742
      %v807 = vpack.c.b16 %v747, %v745
      %v808 = vpack.c.b16 %v748, %v746
      %v809 = vpack.c.b16 %v751, %v749
      %v810 = vpack.c.b16 %v752, %v750
      %v811 = vpack.c.b16 %v755, %v753
      %v812 = vpack.c.b16 %v756, %v754
      %v813 = vpack.c.b16 %v759, %v757
      %v814 = vpack.c.b16 %v760, %v758
      %v815 = vpack.c.b16 %v763, %v761
      %v816 = vpack.c.b16 %v764, %v762
      %v817 = vpack.c.b16 %v767, %v765
      %v818 = vpack.c.b16 %v768, %v766
      %v819 = vpack.c.b16 %v771, %v769
      %v820 = vpack.c.b16 %v772, %v770
      %v821 = vpack.c.b16 %v775, %v773
      %v822 = vpack.c.b16 %v776, %v774
      %v823 = vpack.c.b16 %v779, %v777
      %v824 = vpack.c.b16 %v780, %v778
      %v825 = vpack.c.b16 %v783, %v781
      %v826 = vpack.c.b16 %v784, %v782
      %v827 = vpack.c.b16 %v787, %v785
      %v828 = vpack.c.b16 %v788, %v786
      %v829 = vpack.c.b16 %v791, %v789
      %v830 = vpack.c.b16 %v792, %v790
      %v831 = vpack.c.b16 %v795, %v793
      %v832 = vpack.c.b16 %v796, %v794
      %v833 = vpack.c.b16 %v799, %v797
      %v834 = vpack.c.b16 %v800, %v798
      %v835 = vpack.c.b16 %v803, %v801
      %v836 = vpack.c.b16 %v804, %v802
      %v873 = vunpack.c.l.b16 %v204
      %v874 = vunpack.c.l.b16 %v205
      %v875 = vunpack.c.l.b16 %v206
      %v876 = vunpack.c.l.b16 %v207
      %v877 = vunpack.c.l.b16 %v208
      %v878 = vunpack.c.l.b16 %v209
      %v879 = vunpack.c.l.b16 %v210
      %v880 = vunpack.c.l.b16 %v211
      %v881 = vunpack.c.l.b16 %v212
      %v882 = vunpack.c.l.b16 %v213
      %v883 = vunpack.c.l.b16 %v214
      %v884 = vunpack.c.l.b16 %v215
      %v885 = vunpack.c.l.b16 %v216
      %v886 = vunpack.c.l.b16 %v217
      %v887 = vunpack.c.l.b16 %v218
      %v888 = vunpack.c.l.b16 %v219
      %v889 = vunpack.c.l.b16 %v220
      %v890 = vunpack.c.l.b16 %v221
      %v891 = vunpack.c.l.b16 %v222
      %v892 = vunpack.c.l.b16 %v223
      %v893 = vpack.c.b16 %v874, %v873
      %v894 = vpack.c.b16 %v876, %v875
      %v895 = vpack.c.b16 %v878, %v877
      %v896 = vpack.c.b16 %v880, %v879
      %v897 = vpack.c.b16 %v882, %v881
      %v898 = vpack.c.b16 %v884, %v883
      %v899 = vpack.c.b16 %v886, %v885
      %v900 = vpack.c.b16 %v888, %v887
      %v901 = vpack.c.b16 %v890, %v889
      %v902 = vpack.c.b16 %v892, %v891
      %v914 = vsel %vm482, %v806, 0
      %v917 = vsel %vm482, %v808, 0
      %v920 = vsel %vm482, %v810, 0
      %v923 = vsel %vm482, %v812, 0
      %v926 = vsel %vm482, %v814, 0
      %v929 = vsel %vm482, %v816, 0
      %v932 = vsel %vm482, %v818, 0
      %v935 = vsel %vm482, %v820, 0
      %v938 = vsel %vm482, %v822, 0
      %v941 = vsel %vm482, %v824, 0
      %v944 = vsel %vm482, %v826, 0
      %v947 = vsel %vm482, %v828, 0
      %v950 = vsel %vm482, %v830, 0
      %v953 = vsel %vm482, %v832, 0
      %v956 = vsel %vm482, %v834, 0
      %v959 = vsel %vm482, %v836, 0
      %961 = vmatpush.bf16.msra.mxu0 %v900
      %962 = vmatpush.bf16.msra.mxu0 %v899
      %963 = vmatpush.bf16.msra.mxu0 %v898
      %964 = vmatpush.bf16.msra.mxu0 %v897
      %965 = vmatpush.bf16.msra.mxu0 %v896
      %966 = vmatpush.bf16.msra.mxu0 %v895
      %967 = vmatpush.bf16.msra.mxu0 %v894
      %968 = vmatpush.bf16.msra.mxu0 %v893
      %969 = vmatmul.bf16.gmra.mxu0 %v805
      %v970 = vpop.f32.mrf.mxu0
      %v971 = vadd.f32 %v630, %v970
      %v972 = vpop.f32.mrf.mxu0
      %v973 = vadd.f32 %v632, %v972
      %974 = vmatmul.bf16.gmra.mxu0 %v807
      %v975 = vpop.f32.mrf.mxu0
      %v976 = vadd.f32 %v635, %v975
      %v977 = vpop.f32.mrf.mxu0
      %v978 = vadd.f32 %v637, %v977
      %979 = vmatmul.bf16.gmra.mxu0 %v809
      %v980 = vpop.f32.mrf.mxu0
      %v981 = vadd.f32 %v640, %v980
      %v982 = vpop.f32.mrf.mxu0
      %v983 = vadd.f32 %v642, %v982
      %984 = vmatmul.bf16.gmra.mxu0 %v811
      %v985 = vpop.f32.mrf.mxu0
      %v986 = vadd.f32 %v645, %v985
      %v987 = vpop.f32.mrf.mxu0
      %v988 = vadd.f32 %v647, %v987
      %989 = vmatmul.bf16.gmra.mxu0 %v813
      %v990 = vpop.f32.mrf.mxu0
      %v991 = vadd.f32 %v650, %v990
      %v992 = vpop.f32.mrf.mxu0
      %v993 = vadd.f32 %v652, %v992
      %994 = vmatmul.bf16.gmra.mxu0 %v815
      %v995 = vpop.f32.mrf.mxu0
      %v996 = vadd.f32 %v655, %v995
      %v997 = vpop.f32.mrf.mxu0
      %v998 = vadd.f32 %v657, %v997
      %999 = vmatmul.bf16.gmra.mxu0 %v817
      %v1000 = vpop.f32.mrf.mxu0
      %v1001 = vadd.f32 %v660, %v1000
      %v1002 = vpop.f32.mrf.mxu0
      %v1003 = vadd.f32 %v662, %v1002
      %1004 = vmatmul.bf16.gmra.mxu0 %v819
      %v1005 = vpop.f32.mrf.mxu0
      %v1006 = vadd.f32 %v665, %v1005
      %v1007 = vpop.f32.mrf.mxu0
      %v1008 = vadd.f32 %v667, %v1007
      %1009 = vmatmul.bf16.gmra.mxu0 %v821
      %v1010 = vpop.f32.mrf.mxu0
      %v1011 = vadd.f32 %v670, %v1010
      %v1012 = vpop.f32.mrf.mxu0
      %v1013 = vadd.f32 %v672, %v1012
      %1014 = vmatmul.bf16.gmra.mxu0 %v823
      %v1015 = vpop.f32.mrf.mxu0
      %v1016 = vadd.f32 %v675, %v1015
      %v1017 = vpop.f32.mrf.mxu0
      %v1018 = vadd.f32 %v677, %v1017
      %1019 = vmatmul.bf16.gmra.mxu0 %v825
      %v1020 = vpop.f32.mrf.mxu0
      %v1021 = vadd.f32 %v680, %v1020
      %v1022 = vpop.f32.mrf.mxu0
      %v1023 = vadd.f32 %v682, %v1022
      %1024 = vmatmul.bf16.gmra.mxu0 %v827
      %v1025 = vpop.f32.mrf.mxu0
      %v1026 = vadd.f32 %v685, %v1025
      %v1027 = vpop.f32.mrf.mxu0
      %v1028 = vadd.f32 %v687, %v1027
      %1029 = vmatmul.bf16.gmra.mxu0 %v829
      %v1030 = vpop.f32.mrf.mxu0
      %v1031 = vadd.f32 %v690, %v1030
      %v1032 = vpop.f32.mrf.mxu0
      %v1033 = vadd.f32 %v692, %v1032
      %1034 = vmatmul.bf16.gmra.mxu0 %v831
      %v1035 = vpop.f32.mrf.mxu0
      %v1036 = vadd.f32 %v695, %v1035
      %v1037 = vpop.f32.mrf.mxu0
      %v1038 = vadd.f32 %v697, %v1037
      %1039 = vmatmul.bf16.gmra.mxu0 %v833
      %v1040 = vpop.f32.mrf.mxu0
      %v1041 = vadd.f32 %v700, %v1040
      %v1042 = vpop.f32.mrf.mxu0
      %v1043 = vadd.f32 %v702, %v1042
      %1044 = vmatmul.bf16.gmra.mxu0 %v835
      %v1045 = vpop.f32.mrf.mxu0
      %v1046 = vadd.f32 %v705, %v1045
      %v1047 = vpop.f32.mrf.mxu0
      %v1048 = vadd.f32 %v707, %v1047
      %1049 = vdwg.mxu0
      %1050 = vmatpush.bf16.msra.mxu0 0
      %1051 = vmatpush.bf16.msra.mxu0 0
      %1052 = vmatpush.bf16.msra.mxu0 0
      %1053 = vmatpush.bf16.msra.mxu0 0
      %1054 = vmatpush.bf16.msra.mxu0 0
      %1055 = vmatpush.bf16.msra.mxu0 0
      %1056 = vmatpush.bf16.msra.mxu0 %v902
      %1057 = vmatpush.bf16.msra.mxu0 %v901
      %1058 = vmatmul.bf16.gmra.mxu0 %v914
      %v1059 = vpop.f32.mrf.mxu0
      %v1060 = vadd.f32 %v971, %v1059
      %v1061 = vpop.f32.mrf.mxu0
      %v1062 = vadd.f32 %v973, %v1061
      %1063 = vmatmul.bf16.gmra.mxu0 %v917
      %v1064 = vpop.f32.mrf.mxu0
      %v1065 = vadd.f32 %v976, %v1064
      %v1066 = vpop.f32.mrf.mxu0
      %v1067 = vadd.f32 %v978, %v1066
      %1068 = vmatmul.bf16.gmra.mxu0 %v920
      %v1069 = vpop.f32.mrf.mxu0
      %v1070 = vadd.f32 %v981, %v1069
      %v1071 = vpop.f32.mrf.mxu0
      %v1072 = vadd.f32 %v983, %v1071
      %1073 = vmatmul.bf16.gmra.mxu0 %v923
      %v1074 = vpop.f32.mrf.mxu0
      %v1075 = vadd.f32 %v986, %v1074
      %v1076 = vpop.f32.mrf.mxu0
      %v1077 = vadd.f32 %v988, %v1076
      %1078 = vmatmul.bf16.gmra.mxu0 %v926
      %v1079 = vpop.f32.mrf.mxu0
      %v1080 = vadd.f32 %v991, %v1079
      %v1081 = vpop.f32.mrf.mxu0
      %v1082 = vadd.f32 %v993, %v1081
      %1083 = vmatmul.bf16.gmra.mxu0 %v929
      %v1084 = vpop.f32.mrf.mxu0
      %v1085 = vadd.f32 %v996, %v1084
      %v1086 = vpop.f32.mrf.mxu0
      %v1087 = vadd.f32 %v998, %v1086
      %1088 = vmatmul.bf16.gmra.mxu0 %v932
      %v1089 = vpop.f32.mrf.mxu0
      %v1090 = vadd.f32 %v1001, %v1089
      %v1091 = vpop.f32.mrf.mxu0
      %v1092 = vadd.f32 %v1003, %v1091
      %1093 = vmatmul.bf16.gmra.mxu0 %v935
      %v1094 = vpop.f32.mrf.mxu0
      %v1095 = vadd.f32 %v1006, %v1094
      %v1096 = vpop.f32.mrf.mxu0
      %v1097 = vadd.f32 %v1008, %v1096
      %1098 = vmatmul.bf16.gmra.mxu0 %v938
      %v1099 = vpop.f32.mrf.mxu0
      %v1100 = vadd.f32 %v1011, %v1099
      %v1101 = vpop.f32.mrf.mxu0
      %v1102 = vadd.f32 %v1013, %v1101
      %1103 = vmatmul.bf16.gmra.mxu0 %v941
      %v1104 = vpop.f32.mrf.mxu0
      %v1105 = vadd.f32 %v1016, %v1104
      %v1106 = vpop.f32.mrf.mxu0
      %v1107 = vadd.f32 %v1018, %v1106
      %1108 = vmatmul.bf16.gmra.mxu0 %v944
      %v1109 = vpop.f32.mrf.mxu0
      %v1110 = vadd.f32 %v1021, %v1109
      %v1111 = vpop.f32.mrf.mxu0
      %v1112 = vadd.f32 %v1023, %v1111
      %1113 = vmatmul.bf16.gmra.mxu0 %v947
      %v1114 = vpop.f32.mrf.mxu0
      %v1115 = vadd.f32 %v1026, %v1114
      %v1116 = vpop.f32.mrf.mxu0
      %v1117 = vadd.f32 %v1028, %v1116
      %1118 = vmatmul.bf16.gmra.mxu0 %v950
      %v1119 = vpop.f32.mrf.mxu0
      %v1120 = vadd.f32 %v1031, %v1119
      %v1121 = vpop.f32.mrf.mxu0
      %v1122 = vadd.f32 %v1033, %v1121
      %1123 = vmatmul.bf16.gmra.mxu0 %v953
      %v1124 = vpop.f32.mrf.mxu0
      %v1125 = vadd.f32 %v1036, %v1124
      %v1126 = vpop.f32.mrf.mxu0
      %v1127 = vadd.f32 %v1038, %v1126
      %1128 = vmatmul.bf16.gmra.mxu0 %v956
      %v1129 = vpop.f32.mrf.mxu0
      %v1130 = vadd.f32 %v1041, %v1129
      %v1131 = vpop.f32.mrf.mxu0
      %v1132 = vadd.f32 %v1043, %v1131
      %1133 = vmatmul.bf16.gmra.mxu0 %v959
      %v1134 = vpop.f32.mrf.mxu0
      %v1135 = vadd.f32 %v1046, %v1134
      %v1136 = vpop.f32.mrf.mxu0
      %v1137 = vadd.f32 %v1048, %v1136
      %1138 = vdwg.mxu0
      %s1139 = scalar_lea.vmem %s165, 32
      %v1140 = vld [vmem:[%s1139] sm:$0xff]
      %v1141 = vld [vmem:[%s1139 + $0x8] sm:$0xff]
      %v1142 = vld [vmem:[%s1139 + $0x10] sm:$0xff]
      %v1143 = vld [vmem:[%s1139 + $0x18] sm:$0xff]
      %v1144 = vld [vmem:[%s1139 + $0x20] sm:$0xff]
      %v1145 = vld [vmem:[%s1139 + $0x28] sm:$0xff]
      %v1146 = vld [vmem:[%s1139 + $0x30] sm:$0xff]
      %v1147 = vld [vmem:[%s1139 + $0x38] sm:$0xff]
      %v1148 = vld [vmem:[%s1139 + $0x40] sm:$0xff]
      %v1149 = vld [vmem:[%s1139 + $0x48] sm:$0xff]
      %v1150 = vld [vmem:[%s1139 + $0x50] sm:$0xff]
      %v1151 = vld [vmem:[%s1139 + $0x58] sm:$0xff]
      %v1152 = vld [vmem:[%s1139 + $0x60] sm:$0xff]
      %v1153 = vld [vmem:[%s1139 + $0x68] sm:$0xff]
      %v1154 = vld [vmem:[%s1139 + $0x70] sm:$0xff]
      %v1155 = vld [vmem:[%s1139 + $0x78] sm:$0xff]
      %v1156 = vld [vmem:[%s1139 + $0x80] sm:$0xff]
      %v1157 = vld [vmem:[%s1139 + $0x88] sm:$0xff]
      %v1158 = vld [vmem:[%s1139 + $0x90] sm:$0xff]
      %v1159 = vld [vmem:[%s1139 + $0x98] sm:$0xff]
      %v1160 = vld [vmem:[%s1139 + $0xa0] sm:$0xff]
      %v1161 = vld [vmem:[%s1139 + $0xa8] sm:$0xff]
      %v1162 = vld [vmem:[%s1139 + $0xb0] sm:$0xff]
      %v1163 = vld [vmem:[%s1139 + $0xb8] sm:$0xff]
      %v1164 = vld [vmem:[%s1139 + $0xc0] sm:$0xff]
      %v1165 = vld [vmem:[%s1139 + $0xc8] sm:$0xff]
      %v1166 = vld [vmem:[%s1139 + $0xd0] sm:$0xff]
      %v1167 = vld [vmem:[%s1139 + $0xd8] sm:$0xff]
      %v1168 = vld [vmem:[%s1139 + $0xe0] sm:$0xff]
      %v1169 = vld [vmem:[%s1139 + $0xe8] sm:$0xff]
      %v1170 = vld [vmem:[%s1139 + $0xf0] sm:$0xff]
      %v1171 = vld [vmem:[%s1139 + $0xf8] sm:$0xff]
      %s1172 = scalar_lea.vmem %s1, 160
      %v1173 = vld [vmem:[%s1172] sm:$0xf]
      %v1174 = vld [vmem:[%s1172 + $0x4] sm:$0xf]
      %v1175 = vld [vmem:[%s1172 + $0x8] sm:$0xf]
      %v1176 = vld [vmem:[%s1172 + $0xc] sm:$0xf]
      %v1177 = vld [vmem:[%s1172 + $0x10] sm:$0xf]
      %v1178 = vld [vmem:[%s1172 + $0x14] sm:$0xf]
      %v1179 = vld [vmem:[%s1172 + $0x18] sm:$0xf]
      %v1180 = vld [vmem:[%s1172 + $0x1c] sm:$0xf]
      %v1181 = vld [vmem:[%s1172 + $0x20] sm:$0xf]
      %v1182 = vld [vmem:[%s1172 + $0x24] sm:$0xf]
      %v1183 = vld [vmem:[%s1172 + $0x28] sm:$0xf]
      %v1184 = vld [vmem:[%s1172 + $0x2c] sm:$0xf]
      %v1185 = vld [vmem:[%s1172 + $0x30] sm:$0xf]
      %v1186 = vld [vmem:[%s1172 + $0x34] sm:$0xf]
      %v1187 = vld [vmem:[%s1172 + $0x38] sm:$0xf]
      %v1188 = vld [vmem:[%s1172 + $0x3c] sm:$0xf]
      %v1189 = vld [vmem:[%s1172 + $0x40] sm:$0xf]
      %v1190 = vld [vmem:[%s1172 + $0x44] sm:$0xf]
      %v1191 = vld [vmem:[%s1172 + $0x48] sm:$0xf]
      %v1192 = vld [vmem:[%s1172 + $0x4c] sm:$0xf]
      %v1225 = vunpack.c.l.b16 %v1140
      %v1226 = vunpack.c.h.b16 %v1140
      %v1227 = vunpack.c.l.b16 %v1141
      %v1228 = vunpack.c.h.b16 %v1141
      %v1229 = vunpack.c.l.b16 %v1142
      %v1230 = vunpack.c.h.b16 %v1142
      %v1231 = vunpack.c.l.b16 %v1143
      %v1232 = vunpack.c.h.b16 %v1143
      %v1233 = vunpack.c.l.b16 %v1144
      %v1234 = vunpack.c.h.b16 %v1144
      %v1235 = vunpack.c.l.b16 %v1145
      %v1236 = vunpack.c.h.b16 %v1145
      %v1237 = vunpack.c.l.b16 %v1146
      %v1238 = vunpack.c.h.b16 %v1146
      %v1239 = vunpack.c.l.b16 %v1147
      %v1240 = vunpack.c.h.b16 %v1147
      %v1241 = vunpack.c.l.b16 %v1148
      %v1242 = vunpack.c.h.b16 %v1148
      %v1243 = vunpack.c.l.b16 %v1149
      %v1244 = vunpack.c.h.b16 %v1149
      %v1245 = vunpack.c.l.b16 %v1150
      %v1246 = vunpack.c.h.b16 %v1150
      %v1247 = vunpack.c.l.b16 %v1151
      %v1248 = vunpack.c.h.b16 %v1151
      %v1249 = vunpack.c.l.b16 %v1152
      %v1250 = vunpack.c.h.b16 %v1152
      %v1251 = vunpack.c.l.b16 %v1153
      %v1252 = vunpack.c.h.b16 %v1153
      %v1253 = vunpack.c.l.b16 %v1154
      %v1254 = vunpack.c.h.b16 %v1154
      %v1255 = vunpack.c.l.b16 %v1155
      %v1256 = vunpack.c.h.b16 %v1155
      %v1257 = vunpack.c.l.b16 %v1156
      %v1258 = vunpack.c.h.b16 %v1156
      %v1259 = vunpack.c.l.b16 %v1157
      %v1260 = vunpack.c.h.b16 %v1157
      %v1261 = vunpack.c.l.b16 %v1158
      %v1262 = vunpack.c.h.b16 %v1158
      %v1263 = vunpack.c.l.b16 %v1159
      %v1264 = vunpack.c.h.b16 %v1159
      %v1265 = vunpack.c.l.b16 %v1160
      %v1266 = vunpack.c.h.b16 %v1160
      %v1267 = vunpack.c.l.b16 %v1161
      %v1268 = vunpack.c.h.b16 %v1161
      %v1269 = vunpack.c.l.b16 %v1162
      %v1270 = vunpack.c.h.b16 %v1162
      %v1271 = vunpack.c.l.b16 %v1163
      %v1272 = vunpack.c.h.b16 %v1163
      %v1273 = vunpack.c.l.b16 %v1164
      %v1274 = vunpack.c.h.b16 %v1164
      %v1275 = vunpack.c.l.b16 %v1165
      %v1276 = vunpack.c.h.b16 %v1165
      %v1277 = vunpack.c.l.b16 %v1166
      %v1278 = vunpack.c.h.b16 %v1166
      %v1279 = vunpack.c.l.b16 %v1167
      %v1280 = vunpack.c.h.b16 %v1167
      %v1281 = vunpack.c.l.b16 %v1168
      %v1282 = vunpack.c.h.b16 %v1168
      %v1283 = vunpack.c.l.b16 %v1169
      %v1284 = vunpack.c.h.b16 %v1169
      %v1285 = vunpack.c.l.b16 %v1170
      %v1286 = vunpack.c.h.b16 %v1170
      %v1287 = vunpack.c.l.b16 %v1171
      %v1288 = vunpack.c.h.b16 %v1171
      %v1289 = vpack.c.b16 %v1227, %v1225
      %v1290 = vpack.c.b16 %v1228, %v1226
      %v1291 = vpack.c.b16 %v1231, %v1229
      %v1292 = vpack.c.b16 %v1232, %v1230
      %v1293 = vpack.c.b16 %v1235, %v1233
      %v1294 = vpack.c.b16 %v1236, %v1234
      %v1295 = vpack.c.b16 %v1239, %v1237
      %v1296 = vpack.c.b16 %v1240, %v1238
      %v1297 = vpack.c.b16 %v1243, %v1241
      %v1298 = vpack.c.b16 %v1244, %v1242
      %v1299 = vpack.c.b16 %v1247, %v1245
      %v1300 = vpack.c.b16 %v1248, %v1246
      %v1301 = vpack.c.b16 %v1251, %v1249
      %v1302 = vpack.c.b16 %v1252, %v1250
      %v1303 = vpack.c.b16 %v1255, %v1253
      %v1304 = vpack.c.b16 %v1256, %v1254
      %v1305 = vpack.c.b16 %v1259, %v1257
      %v1306 = vpack.c.b16 %v1260, %v1258
      %v1307 = vpack.c.b16 %v1263, %v1261
      %v1308 = vpack.c.b16 %v1264, %v1262
      %v1309 = vpack.c.b16 %v1267, %v1265
      %v1310 = vpack.c.b16 %v1268, %v1266
      %v1311 = vpack.c.b16 %v1271, %v1269
      %v1312 = vpack.c.b16 %v1272, %v1270
      %v1313 = vpack.c.b16 %v1275, %v1273
      %v1314 = vpack.c.b16 %v1276, %v1274
      %v1315 = vpack.c.b16 %v1279, %v1277
      %v1316 = vpack.c.b16 %v1280, %v1278
      %v1317 = vpack.c.b16 %v1283, %v1281
      %v1318 = vpack.c.b16 %v1284, %v1282
      %v1319 = vpack.c.b16 %v1287, %v1285
      %v1320 = vpack.c.b16 %v1288, %v1286
      %v1357 = vunpack.c.l.b16 %v1173
      %v1358 = vunpack.c.l.b16 %v1174
      %v1359 = vunpack.c.l.b16 %v1175
      %v1360 = vunpack.c.l.b16 %v1176
      %v1361 = vunpack.c.l.b16 %v1177
      %v1362 = vunpack.c.l.b16 %v1178
      %v1363 = vunpack.c.l.b16 %v1179
      %v1364 = vunpack.c.l.b16 %v1180
      %v1365 = vunpack.c.l.b16 %v1181
      %v1366 = vunpack.c.l.b16 %v1182
      %v1367 = vunpack.c.l.b16 %v1183
      %v1368 = vunpack.c.l.b16 %v1184
      %v1369 = vunpack.c.l.b16 %v1185
      %v1370 = vunpack.c.l.b16 %v1186
      %v1371 = vunpack.c.l.b16 %v1187
      %v1372 = vunpack.c.l.b16 %v1188
      %v1373 = vunpack.c.l.b16 %v1189
      %v1374 = vunpack.c.l.b16 %v1190
      %v1375 = vunpack.c.l.b16 %v1191
      %v1376 = vunpack.c.l.b16 %v1192
      %v1377 = vpack.c.b16 %v1358, %v1357
      %v1378 = vpack.c.b16 %v1360, %v1359
      %v1379 = vpack.c.b16 %v1362, %v1361
      %v1380 = vpack.c.b16 %v1364, %v1363
      %v1381 = vpack.c.b16 %v1366, %v1365
      %v1382 = vpack.c.b16 %v1368, %v1367
      %v1383 = vpack.c.b16 %v1370, %v1369
      %v1384 = vpack.c.b16 %v1372, %v1371
      %v1385 = vpack.c.b16 %v1374, %v1373
      %v1386 = vpack.c.b16 %v1376, %v1375
      %v1398 = vsel %vm482, %v1290, 0
      %v1401 = vsel %vm482, %v1292, 0
      %v1404 = vsel %vm482, %v1294, 0
      %v1407 = vsel %vm482, %v1296, 0
      %v1410 = vsel %vm482, %v1298, 0
      %v1413 = vsel %vm482, %v1300, 0
      %v1416 = vsel %vm482, %v1302, 0
      %v1419 = vsel %vm482, %v1304, 0
      %v1422 = vsel %vm482, %v1306, 0
      %v1425 = vsel %vm482, %v1308, 0
      %v1428 = vsel %vm482, %v1310, 0
      %v1431 = vsel %vm482, %v1312, 0
      %v1434 = vsel %vm482, %v1314, 0
      %v1437 = vsel %vm482, %v1316, 0
      %v1440 = vsel %vm482, %v1318, 0
      %v1443 = vsel %vm482, %v1320, 0
      %1445 = vmatpush.bf16.msra.mxu0 %v1384
      %1446 = vmatpush.bf16.msra.mxu0 %v1383
      %1447 = vmatpush.bf16.msra.mxu0 %v1382
      %1448 = vmatpush.bf16.msra.mxu0 %v1381
      %1449 = vmatpush.bf16.msra.mxu0 %v1380
      %1450 = vmatpush.bf16.msra.mxu0 %v1379
      %1451 = vmatpush.bf16.msra.mxu0 %v1378
      %1452 = vmatpush.bf16.msra.mxu0 %v1377
      %1453 = vmatmul.bf16.gmra.mxu0 %v1289
      %v1454 = vpop.f32.mrf.mxu0
      %v1455 = vadd.f32 0.0, %v1454
      %v1456 = vpop.f32.mrf.mxu0
      %v1457 = vadd.f32 0.0, %v1456
      %1458 = vmatmul.bf16.gmra.mxu0 %v1291
      %v1459 = vpop.f32.mrf.mxu0
      %v1460 = vadd.f32 0.0, %v1459
      %v1461 = vpop.f32.mrf.mxu0
      %v1462 = vadd.f32 0.0, %v1461
      %1463 = vmatmul.bf16.gmra.mxu0 %v1293
      %v1464 = vpop.f32.mrf.mxu0
      %v1465 = vadd.f32 0.0, %v1464
      %v1466 = vpop.f32.mrf.mxu0
      %v1467 = vadd.f32 0.0, %v1466
      %1468 = vmatmul.bf16.gmra.mxu0 %v1295
      %v1469 = vpop.f32.mrf.mxu0
      %v1470 = vadd.f32 0.0, %v1469
      %v1471 = vpop.f32.mrf.mxu0
      %v1472 = vadd.f32 0.0, %v1471
      %1473 = vmatmul.bf16.gmra.mxu0 %v1297
      %v1474 = vpop.f32.mrf.mxu0
      %v1475 = vadd.f32 0.0, %v1474
      %v1476 = vpop.f32.mrf.mxu0
      %v1477 = vadd.f32 0.0, %v1476
      %1478 = vmatmul.bf16.gmra.mxu0 %v1299
      %v1479 = vpop.f32.mrf.mxu0
      %v1480 = vadd.f32 0.0, %v1479
      %v1481 = vpop.f32.mrf.mxu0
      %v1482 = vadd.f32 0.0, %v1481
      %1483 = vmatmul.bf16.gmra.mxu0 %v1301
      %v1484 = vpop.f32.mrf.mxu0
      %v1485 = vadd.f32 0.0, %v1484
      %v1486 = vpop.f32.mrf.mxu0
      %v1487 = vadd.f32 0.0, %v1486
      %1488 = vmatmul.bf16.gmra.mxu0 %v1303
      %v1489 = vpop.f32.mrf.mxu0
      %v1490 = vadd.f32 0.0, %v1489
      %v1491 = vpop.f32.mrf.mxu0
      %v1492 = vadd.f32 0.0, %v1491
      %1493 = vmatmul.bf16.gmra.mxu0 %v1305
      %v1494 = vpop.f32.mrf.mxu0
      %v1495 = vadd.f32 0.0, %v1494
      %v1496 = vpop.f32.mrf.mxu0
      %v1497 = vadd.f32 0.0, %v1496
      %1498 = vmatmul.bf16.gmra.mxu0 %v1307
      %v1499 = vpop.f32.mrf.mxu0
      %v1500 = vadd.f32 0.0, %v1499
      %v1501 = vpop.f32.mrf.mxu0
      %v1502 = vadd.f32 0.0, %v1501
      %1503 = vmatmul.bf16.gmra.mxu0 %v1309
      %v1504 = vpop.f32.mrf.mxu0
      %v1505 = vadd.f32 0.0, %v1504
      %v1506 = vpop.f32.mrf.mxu0
      %v1507 = vadd.f32 0.0, %v1506
      %1508 = vmatmul.bf16.gmra.mxu0 %v1311
      %v1509 = vpop.f32.mrf.mxu0
      %v1510 = vadd.f32 0.0, %v1509
      %v1511 = vpop.f32.mrf.mxu0
      %v1512 = vadd.f32 0.0, %v1511
      %1513 = vmatmul.bf16.gmra.mxu0 %v1313
      %v1514 = vpop.f32.mrf.mxu0
      %v1515 = vadd.f32 0.0, %v1514
      %v1516 = vpop.f32.mrf.mxu0
      %v1517 = vadd.f32 0.0, %v1516
      %1518 = vmatmul.bf16.gmra.mxu0 %v1315
      %v1519 = vpop.f32.mrf.mxu0
      %v1520 = vadd.f32 0.0, %v1519
      %v1521 = vpop.f32.mrf.mxu0
      %v1522 = vadd.f32 0.0, %v1521
      %1523 = vmatmul.bf16.gmra.mxu0 %v1317
      %v1524 = vpop.f32.mrf.mxu0
      %v1525 = vadd.f32 0.0, %v1524
      %v1526 = vpop.f32.mrf.mxu0
      %v1527 = vadd.f32 0.0, %v1526
      %1528 = vmatmul.bf16.gmra.mxu0 %v1319
      %v1529 = vpop.f32.mrf.mxu0
      %v1530 = vadd.f32 0.0, %v1529
      %v1531 = vpop.f32.mrf.mxu0
      %v1532 = vadd.f32 0.0, %v1531
      %1533 = vdwg.mxu0
      %1534 = vmatpush.bf16.msra.mxu0 0
      %1535 = vmatpush.bf16.msra.mxu0 0
      %1536 = vmatpush.bf16.msra.mxu0 0
      %1537 = vmatpush.bf16.msra.mxu0 0
      %1538 = vmatpush.bf16.msra.mxu0 0
      %1539 = vmatpush.bf16.msra.mxu0 0
      %1540 = vmatpush.bf16.msra.mxu0 %v1386
      %1541 = vmatpush.bf16.msra.mxu0 %v1385
      %1542 = vmatmul.bf16.gmra.mxu0 %v1398
      %v1543 = vpop.f32.mrf.mxu0
      %v1544 = vadd.f32 %v1455, %v1543
      %v1545 = vpop.f32.mrf.mxu0
      %v1546 = vadd.f32 %v1457, %v1545
      %1547 = vmatmul.bf16.gmra.mxu0 %v1401
      %v1548 = vpop.f32.mrf.mxu0
      %v1549 = vadd.f32 %v1460, %v1548
      %v1550 = vpop.f32.mrf.mxu0
      %v1551 = vadd.f32 %v1462, %v1550
      %1552 = vmatmul.bf16.gmra.mxu0 %v1404
      %v1553 = vpop.f32.mrf.mxu0
      %v1554 = vadd.f32 %v1465, %v1553
      %v1555 = vpop.f32.mrf.mxu0
      %v1556 = vadd.f32 %v1467, %v1555
      %1557 = vmatmul.bf16.gmra.mxu0 %v1407
      %v1558 = vpop.f32.mrf.mxu0
      %v1559 = vadd.f32 %v1470, %v1558
      %v1560 = vpop.f32.mrf.mxu0
      %v1561 = vadd.f32 %v1472, %v1560
      %1562 = vmatmul.bf16.gmra.mxu0 %v1410
      %v1563 = vpop.f32.mrf.mxu0
      %v1564 = vadd.f32 %v1475, %v1563
      %v1565 = vpop.f32.mrf.mxu0
      %v1566 = vadd.f32 %v1477, %v1565
      %1567 = vmatmul.bf16.gmra.mxu0 %v1413
      %v1568 = vpop.f32.mrf.mxu0
      %v1569 = vadd.f32 %v1480, %v1568
      %v1570 = vpop.f32.mrf.mxu0
      %v1571 = vadd.f32 %v1482, %v1570
      %1572 = vmatmul.bf16.gmra.mxu0 %v1416
      %v1573 = vpop.f32.mrf.mxu0
      %v1574 = vadd.f32 %v1485, %v1573
      %v1575 = vpop.f32.mrf.mxu0
      %v1576 = vadd.f32 %v1487, %v1575
      %1577 = vmatmul.bf16.gmra.mxu0 %v1419
      %v1578 = vpop.f32.mrf.mxu0
      %v1579 = vadd.f32 %v1490, %v1578
      %v1580 = vpop.f32.mrf.mxu0
      %v1581 = vadd.f32 %v1492, %v1580
      %1582 = vmatmul.bf16.gmra.mxu0 %v1422
      %v1583 = vpop.f32.mrf.mxu0
      %v1584 = vadd.f32 %v1495, %v1583
      %v1585 = vpop.f32.mrf.mxu0
      %v1586 = vadd.f32 %v1497, %v1585
      %1587 = vmatmul.bf16.gmra.mxu0 %v1425
      %v1588 = vpop.f32.mrf.mxu0
      %v1589 = vadd.f32 %v1500, %v1588
      %v1590 = vpop.f32.mrf.mxu0
      %v1591 = vadd.f32 %v1502, %v1590
      %1592 = vmatmul.bf16.gmra.mxu0 %v1428
      %v1593 = vpop.f32.mrf.mxu0
      %v1594 = vadd.f32 %v1505, %v1593
      %v1595 = vpop.f32.mrf.mxu0
      %v1596 = vadd.f32 %v1507, %v1595
      %1597 = vmatmul.bf16.gmra.mxu0 %v1431
      %v1598 = vpop.f32.mrf.mxu0
      %v1599 = vadd.f32 %v1510, %v1598
      %v1600 = vpop.f32.mrf.mxu0
      %v1601 = vadd.f32 %v1512, %v1600
      %1602 = vmatmul.bf16.gmra.mxu0 %v1434
      %v1603 = vpop.f32.mrf.mxu0
      %v1604 = vadd.f32 %v1515, %v1603
      %v1605 = vpop.f32.mrf.mxu0
      %v1606 = vadd.f32 %v1517, %v1605
      %1607 = vmatmul.bf16.gmra.mxu0 %v1437
      %v1608 = vpop.f32.mrf.mxu0
      %v1609 = vadd.f32 %v1520, %v1608
      %v1610 = vpop.f32.mrf.mxu0
      %v1611 = vadd.f32 %v1522, %v1610
      %1612 = vmatmul.bf16.gmra.mxu0 %v1440
      %v1613 = vpop.f32.mrf.mxu0
      %v1614 = vadd.f32 %v1525, %v1613
      %v1615 = vpop.f32.mrf.mxu0
      %v1616 = vadd.f32 %v1527, %v1615
      %1617 = vmatmul.bf16.gmra.mxu0 %v1443
      %v1618 = vpop.f32.mrf.mxu0
      %v1619 = vadd.f32 %v1530, %v1618
      %v1620 = vpop.f32.mrf.mxu0
      %v1621 = vadd.f32 %v1532, %v1620
      %1622 = vdwg.mxu0
      %v1623 = vadd.f32 %v1060, %v1544
      %v1624 = vadd.f32 %v1062, %v1546
      %v1625 = vadd.f32 %v1065, %v1549
      %v1626 = vadd.f32 %v1067, %v1551
      %v1627 = vadd.f32 %v1070, %v1554
      %v1628 = vadd.f32 %v1072, %v1556
      %v1629 = vadd.f32 %v1075, %v1559
      %v1630 = vadd.f32 %v1077, %v1561
      %v1631 = vadd.f32 %v1080, %v1564
      %v1632 = vadd.f32 %v1082, %v1566
      %v1633 = vadd.f32 %v1085, %v1569
      %v1634 = vadd.f32 %v1087, %v1571
      %v1635 = vadd.f32 %v1090, %v1574
      %v1636 = vadd.f32 %v1092, %v1576
      %v1637 = vadd.f32 %v1095, %v1579
      %v1638 = vadd.f32 %v1097, %v1581
      %v1639 = vadd.f32 %v1100, %v1584
      %v1640 = vadd.f32 %v1102, %v1586
      %v1641 = vadd.f32 %v1105, %v1589
      %v1642 = vadd.f32 %v1107, %v1591
      %v1643 = vadd.f32 %v1110, %v1594
      %v1644 = vadd.f32 %v1112, %v1596
      %v1645 = vadd.f32 %v1115, %v1599
      %v1646 = vadd.f32 %v1117, %v1601
      %v1647 = vadd.f32 %v1120, %v1604
      %v1648 = vadd.f32 %v1122, %v1606
      %v1649 = vadd.f32 %v1125, %v1609
      %v1650 = vadd.f32 %v1127, %v1611
      %v1651 = vadd.f32 %v1130, %v1614
      %v1652 = vadd.f32 %v1132, %v1616
      %v1653 = vadd.f32 %v1135, %v1619
      %v1654 = vadd.f32 %v1137, %v1621
      %s1655 = scalar_lea.vmem %s165, 48
      %v1656 = vld [vmem:[%s1655] sm:$0xff]
      %v1657 = vld [vmem:[%s1655 + $0x8] sm:$0xff]
      %v1658 = vld [vmem:[%s1655 + $0x10] sm:$0xff]
      %v1659 = vld [vmem:[%s1655 + $0x18] sm:$0xff]
      %v1660 = vld [vmem:[%s1655 + $0x20] sm:$0xff]
      %v1661 = vld [vmem:[%s1655 + $0x28] sm:$0xff]
      %v1662 = vld [vmem:[%s1655 + $0x30] sm:$0xff]
      %v1663 = vld [vmem:[%s1655 + $0x38] sm:$0xff]
      %v1664 = vld [vmem:[%s1655 + $0x40] sm:$0xff]
      %v1665 = vld [vmem:[%s1655 + $0x48] sm:$0xff]
      %v1666 = vld [vmem:[%s1655 + $0x50] sm:$0xff]
      %v1667 = vld [vmem:[%s1655 + $0x58] sm:$0xff]
      %v1668 = vld [vmem:[%s1655 + $0x60] sm:$0xff]
      %v1669 = vld [vmem:[%s1655 + $0x68] sm:$0xff]
      %v1670 = vld [vmem:[%s1655 + $0x70] sm:$0xff]
      %v1671 = vld [vmem:[%s1655 + $0x78] sm:$0xff]
      %v1672 = vld [vmem:[%s1655 + $0x80] sm:$0xff]
      %v1673 = vld [vmem:[%s1655 + $0x88] sm:$0xff]
      %v1674 = vld [vmem:[%s1655 + $0x90] sm:$0xff]
      %v1675 = vld [vmem:[%s1655 + $0x98] sm:$0xff]
      %v1676 = vld [vmem:[%s1655 + $0xa0] sm:$0xff]
      %v1677 = vld [vmem:[%s1655 + $0xa8] sm:$0xff]
      %v1678 = vld [vmem:[%s1655 + $0xb0] sm:$0xff]
      %v1679 = vld [vmem:[%s1655 + $0xb8] sm:$0xff]
      %v1680 = vld [vmem:[%s1655 + $0xc0] sm:$0xff]
      %v1681 = vld [vmem:[%s1655 + $0xc8] sm:$0xff]
      %v1682 = vld [vmem:[%s1655 + $0xd0] sm:$0xff]
      %v1683 = vld [vmem:[%s1655 + $0xd8] sm:$0xff]
      %v1684 = vld [vmem:[%s1655 + $0xe0] sm:$0xff]
      %v1685 = vld [vmem:[%s1655 + $0xe8] sm:$0xff]
      %v1686 = vld [vmem:[%s1655 + $0xf0] sm:$0xff]
      %v1687 = vld [vmem:[%s1655 + $0xf8] sm:$0xff]
      %s1688 = scalar_lea.vmem %s1, 240
      %v1689 = vld [vmem:[%s1688] sm:$0xf]
      %v1690 = vld [vmem:[%s1688 + $0x4] sm:$0xf]
      %v1691 = vld [vmem:[%s1688 + $0x8] sm:$0xf]
      %v1692 = vld [vmem:[%s1688 + $0xc] sm:$0xf]
      %v1693 = vld [vmem:[%s1688 + $0x10] sm:$0xf]
      %v1694 = vld [vmem:[%s1688 + $0x14] sm:$0xf]
      %v1695 = vld [vmem:[%s1688 + $0x18] sm:$0xf]
      %v1696 = vld [vmem:[%s1688 + $0x1c] sm:$0xf]
      %v1697 = vld [vmem:[%s1688 + $0x20] sm:$0xf]
      %v1698 = vld [vmem:[%s1688 + $0x24] sm:$0xf]
      %v1699 = vld [vmem:[%s1688 + $0x28] sm:$0xf]
      %v1700 = vld [vmem:[%s1688 + $0x2c] sm:$0xf]
      %v1701 = vld [vmem:[%s1688 + $0x30] sm:$0xf]
      %v1702 = vld [vmem:[%s1688 + $0x34] sm:$0xf]
      %v1703 = vld [vmem:[%s1688 + $0x38] sm:$0xf]
      %v1704 = vld [vmem:[%s1688 + $0x3c] sm:$0xf]
      %v1705 = vld [vmem:[%s1688 + $0x40] sm:$0xf]
      %v1706 = vld [vmem:[%s1688 + $0x44] sm:$0xf]
      %v1707 = vld [vmem:[%s1688 + $0x48] sm:$0xf]
      %v1708 = vld [vmem:[%s1688 + $0x4c] sm:$0xf]
      %v1741 = vunpack.c.l.b16 %v1656
      %v1742 = vunpack.c.h.b16 %v1656
      %v1743 = vunpack.c.l.b16 %v1657
      %v1744 = vunpack.c.h.b16 %v1657
      %v1745 = vunpack.c.l.b16 %v1658
      %v1746 = vunpack.c.h.b16 %v1658
      %v1747 = vunpack.c.l.b16 %v1659
      %v1748 = vunpack.c.h.b16 %v1659
      %v1749 = vunpack.c.l.b16 %v1660
      %v1750 = vunpack.c.h.b16 %v1660
      %v1751 = vunpack.c.l.b16 %v1661
      %v1752 = vunpack.c.h.b16 %v1661
      %v1753 = vunpack.c.l.b16 %v1662
      %v1754 = vunpack.c.h.b16 %v1662
      %v1755 = vunpack.c.l.b16 %v1663
      %v1756 = vunpack.c.h.b16 %v1663
      %v1757 = vunpack.c.l.b16 %v1664
      %v1758 = vunpack.c.h.b16 %v1664
      %v1759 = vunpack.c.l.b16 %v1665
      %v1760 = vunpack.c.h.b16 %v1665
      %v1761 = vunpack.c.l.b16 %v1666
      %v1762 = vunpack.c.h.b16 %v1666
      %v1763 = vunpack.c.l.b16 %v1667
      %v1764 = vunpack.c.h.b16 %v1667
      %v1765 = vunpack.c.l.b16 %v1668
      %v1766 = vunpack.c.h.b16 %v1668
      %v1767 = vunpack.c.l.b16 %v1669
      %v1768 = vunpack.c.h.b16 %v1669
      %v1769 = vunpack.c.l.b16 %v1670
      %v1770 = vunpack.c.h.b16 %v1670
      %v1771 = vunpack.c.l.b16 %v1671
      %v1772 = vunpack.c.h.b16 %v1671
      %v1773 = vunpack.c.l.b16 %v1672
      %v1774 = vunpack.c.h.b16 %v1672
      %v1775 = vunpack.c.l.b16 %v1673
      %v1776 = vunpack.c.h.b16 %v1673
      %v1777 = vunpack.c.l.b16 %v1674
      %v1778 = vunpack.c.h.b16 %v1674
      %v1779 = vunpack.c.l.b16 %v1675
      %v1780 = vunpack.c.h.b16 %v1675
      %v1781 = vunpack.c.l.b16 %v1676
      %v1782 = vunpack.c.h.b16 %v1676
      %v1783 = vunpack.c.l.b16 %v1677
      %v1784 = vunpack.c.h.b16 %v1677
      %v1785 = vunpack.c.l.b16 %v1678
      %v1786 = vunpack.c.h.b16 %v1678
      %v1787 = vunpack.c.l.b16 %v1679
      %v1788 = vunpack.c.h.b16 %v1679
      %v1789 = vunpack.c.l.b16 %v1680
      %v1790 = vunpack.c.h.b16 %v1680
      %v1791 = vunpack.c.l.b16 %v1681
      %v1792 = vunpack.c.h.b16 %v1681
      %v1793 = vunpack.c.l.b16 %v1682
      %v1794 = vunpack.c.h.b16 %v1682
      %v1795 = vunpack.c.l.b16 %v1683
      %v1796 = vunpack.c.h.b16 %v1683
      %v1797 = vunpack.c.l.b16 %v1684
      %v1798 = vunpack.c.h.b16 %v1684
      %v1799 = vunpack.c.l.b16 %v1685
      %v1800 = vunpack.c.h.b16 %v1685
      %v1801 = vunpack.c.l.b16 %v1686
      %v1802 = vunpack.c.h.b16 %v1686
      %v1803 = vunpack.c.l.b16 %v1687
      %v1804 = vunpack.c.h.b16 %v1687
      %v1805 = vpack.c.b16 %v1743, %v1741
      %v1806 = vpack.c.b16 %v1744, %v1742
      %v1807 = vpack.c.b16 %v1747, %v1745
      %v1808 = vpack.c.b16 %v1748, %v1746
      %v1809 = vpack.c.b16 %v1751, %v1749
      %v1810 = vpack.c.b16 %v1752, %v1750
      %v1811 = vpack.c.b16 %v1755, %v1753
      %v1812 = vpack.c.b16 %v1756, %v1754
      %v1813 = vpack.c.b16 %v1759, %v1757
      %v1814 = vpack.c.b16 %v1760, %v1758
      %v1815 = vpack.c.b16 %v1763, %v1761
      %v1816 = vpack.c.b16 %v1764, %v1762
      %v1817 = vpack.c.b16 %v1767, %v1765
      %v1818 = vpack.c.b16 %v1768, %v1766
      %v1819 = vpack.c.b16 %v1771, %v1769
      %v1820 = vpack.c.b16 %v1772, %v1770
      %v1821 = vpack.c.b16 %v1775, %v1773
      %v1822 = vpack.c.b16 %v1776, %v1774
      %v1823 = vpack.c.b16 %v1779, %v1777
      %v1824 = vpack.c.b16 %v1780, %v1778
      %v1825 = vpack.c.b16 %v1783, %v1781
      %v1826 = vpack.c.b16 %v1784, %v1782
      %v1827 = vpack.c.b16 %v1787, %v1785
      %v1828 = vpack.c.b16 %v1788, %v1786
      %v1829 = vpack.c.b16 %v1791, %v1789
      %v1830 = vpack.c.b16 %v1792, %v1790
      %v1831 = vpack.c.b16 %v1795, %v1793
      %v1832 = vpack.c.b16 %v1796, %v1794
      %v1833 = vpack.c.b16 %v1799, %v1797
      %v1834 = vpack.c.b16 %v1800, %v1798
      %v1835 = vpack.c.b16 %v1803, %v1801
      %v1836 = vpack.c.b16 %v1804, %v1802
      %v1873 = vunpack.c.l.b16 %v1689
      %v1874 = vunpack.c.l.b16 %v1690
      %v1875 = vunpack.c.l.b16 %v1691
      %v1876 = vunpack.c.l.b16 %v1692
      %v1877 = vunpack.c.l.b16 %v1693
      %v1878 = vunpack.c.l.b16 %v1694
      %v1879 = vunpack.c.l.b16 %v1695
      %v1880 = vunpack.c.l.b16 %v1696
      %v1881 = vunpack.c.l.b16 %v1697
      %v1882 = vunpack.c.l.b16 %v1698
      %v1883 = vunpack.c.l.b16 %v1699
      %v1884 = vunpack.c.l.b16 %v1700
      %v1885 = vunpack.c.l.b16 %v1701
      %v1886 = vunpack.c.l.b16 %v1702
      %v1887 = vunpack.c.l.b16 %v1703
      %v1888 = vunpack.c.l.b16 %v1704
      %v1889 = vunpack.c.l.b16 %v1705
      %v1890 = vunpack.c.l.b16 %v1706
      %v1891 = vunpack.c.l.b16 %v1707
      %v1892 = vunpack.c.l.b16 %v1708
      %v1893 = vpack.c.b16 %v1874, %v1873
      %v1894 = vpack.c.b16 %v1876, %v1875
      %v1895 = vpack.c.b16 %v1878, %v1877
      %v1896 = vpack.c.b16 %v1880, %v1879
      %v1897 = vpack.c.b16 %v1882, %v1881
      %v1898 = vpack.c.b16 %v1884, %v1883
      %v1899 = vpack.c.b16 %v1886, %v1885
      %v1900 = vpack.c.b16 %v1888, %v1887
      %v1901 = vpack.c.b16 %v1890, %v1889
      %v1902 = vpack.c.b16 %v1892, %v1891
      %v1914 = vsel %vm482, %v1806, 0
      %v1917 = vsel %vm482, %v1808, 0
      %v1920 = vsel %vm482, %v1810, 0
      %v1923 = vsel %vm482, %v1812, 0
      %v1926 = vsel %vm482, %v1814, 0
      %v1929 = vsel %vm482, %v1816, 0
      %v1932 = vsel %vm482, %v1818, 0
      %v1935 = vsel %vm482, %v1820, 0
      %v1938 = vsel %vm482, %v1822, 0
      %v1941 = vsel %vm482, %v1824, 0
      %v1944 = vsel %vm482, %v1826, 0
      %v1947 = vsel %vm482, %v1828, 0
      %v1950 = vsel %vm482, %v1830, 0
      %v1953 = vsel %vm482, %v1832, 0
      %v1956 = vsel %vm482, %v1834, 0
      %v1959 = vsel %vm482, %v1836, 0
      %1961 = vmatpush.bf16.msra.mxu0 %v1900
      %1962 = vmatpush.bf16.msra.mxu0 %v1899
      %1963 = vmatpush.bf16.msra.mxu0 %v1898
      %1964 = vmatpush.bf16.msra.mxu0 %v1897
      %1965 = vmatpush.bf16.msra.mxu0 %v1896
      %1966 = vmatpush.bf16.msra.mxu0 %v1895
      %1967 = vmatpush.bf16.msra.mxu0 %v1894
      %1968 = vmatpush.bf16.msra.mxu0 %v1893
      %1969 = vmatmul.bf16.gmra.mxu0 %v1805
      %v1970 = vpop.f32.mrf.mxu0
      %v1971 = vadd.f32 0.0, %v1970
      %v1972 = vpop.f32.mrf.mxu0
      %v1973 = vadd.f32 0.0, %v1972
      %1974 = vmatmul.bf16.gmra.mxu0 %v1807
      %v1975 = vpop.f32.mrf.mxu0
      %v1976 = vadd.f32 0.0, %v1975
      %v1977 = vpop.f32.mrf.mxu0
      %v1978 = vadd.f32 0.0, %v1977
      %1979 = vmatmul.bf16.gmra.mxu0 %v1809
      %v1980 = vpop.f32.mrf.mxu0
      %v1981 = vadd.f32 0.0, %v1980
      %v1982 = vpop.f32.mrf.mxu0
      %v1983 = vadd.f32 0.0, %v1982
      %1984 = vmatmul.bf16.gmra.mxu0 %v1811
      %v1985 = vpop.f32.mrf.mxu0
      %v1986 = vadd.f32 0.0, %v1985
      %v1987 = vpop.f32.mrf.mxu0
      %v1988 = vadd.f32 0.0, %v1987
      %1989 = vmatmul.bf16.gmra.mxu0 %v1813
      %v1990 = vpop.f32.mrf.mxu0
      %v1991 = vadd.f32 0.0, %v1990
      %v1992 = vpop.f32.mrf.mxu0
      %v1993 = vadd.f32 0.0, %v1992
      %1994 = vmatmul.bf16.gmra.mxu0 %v1815
      %v1995 = vpop.f32.mrf.mxu0
      %v1996 = vadd.f32 0.0, %v1995
      %v1997 = vpop.f32.mrf.mxu0
      %v1998 = vadd.f32 0.0, %v1997
      %1999 = vmatmul.bf16.gmra.mxu0 %v1817
      %v2000 = vpop.f32.mrf.mxu0
      %v2001 = vadd.f32 0.0, %v2000
      %v2002 = vpop.f32.mrf.mxu0
      %v2003 = vadd.f32 0.0, %v2002
      %2004 = vmatmul.bf16.gmra.mxu0 %v1819
      %v2005 = vpop.f32.mrf.mxu0
      %v2006 = vadd.f32 0.0, %v2005
      %v2007 = vpop.f32.mrf.mxu0
      %v2008 = vadd.f32 0.0, %v2007
      %2009 = vmatmul.bf16.gmra.mxu0 %v1821
      %v2010 = vpop.f32.mrf.mxu0
      %v2011 = vadd.f32 0.0, %v2010
      %v2012 = vpop.f32.mrf.mxu0
      %v2013 = vadd.f32 0.0, %v2012
      %2014 = vmatmul.bf16.gmra.mxu0 %v1823
      %v2015 = vpop.f32.mrf.mxu0
      %v2016 = vadd.f32 0.0, %v2015
      %v2017 = vpop.f32.mrf.mxu0
      %v2018 = vadd.f32 0.0, %v2017
      %2019 = vmatmul.bf16.gmra.mxu0 %v1825
      %v2020 = vpop.f32.mrf.mxu0
      %v2021 = vadd.f32 0.0, %v2020
      %v2022 = vpop.f32.mrf.mxu0
      %v2023 = vadd.f32 0.0, %v2022
      %2024 = vmatmul.bf16.gmra.mxu0 %v1827
      %v2025 = vpop.f32.mrf.mxu0
      %v2026 = vadd.f32 0.0, %v2025
      %v2027 = vpop.f32.mrf.mxu0
      %v2028 = vadd.f32 0.0, %v2027
      %2029 = vmatmul.bf16.gmra.mxu0 %v1829
      %v2030 = vpop.f32.mrf.mxu0
      %v2031 = vadd.f32 0.0, %v2030
      %v2032 = vpop.f32.mrf.mxu0
      %v2033 = vadd.f32 0.0, %v2032
      %2034 = vmatmul.bf16.gmra.mxu0 %v1831
      %v2035 = vpop.f32.mrf.mxu0
      %v2036 = vadd.f32 0.0, %v2035
      %v2037 = vpop.f32.mrf.mxu0
      %v2038 = vadd.f32 0.0, %v2037
      %2039 = vmatmul.bf16.gmra.mxu0 %v1833
      %v2040 = vpop.f32.mrf.mxu0
      %v2041 = vadd.f32 0.0, %v2040
      %v2042 = vpop.f32.mrf.mxu0
      %v2043 = vadd.f32 0.0, %v2042
      %2044 = vmatmul.bf16.gmra.mxu0 %v1835
      %v2045 = vpop.f32.mrf.mxu0
      %v2046 = vadd.f32 0.0, %v2045
      %v2047 = vpop.f32.mrf.mxu0
      %v2048 = vadd.f32 0.0, %v2047
      %2049 = vdwg.mxu0
      %2050 = vmatpush.bf16.msra.mxu0 0
      %2051 = vmatpush.bf16.msra.mxu0 0
      %2052 = vmatpush.bf16.msra.mxu0 0
      %2053 = vmatpush.bf16.msra.mxu0 0
      %2054 = vmatpush.bf16.msra.mxu0 0
      %2055 = vmatpush.bf16.msra.mxu0 0
      %2056 = vmatpush.bf16.msra.mxu0 %v1902
      %2057 = vmatpush.bf16.msra.mxu0 %v1901
      %2058 = vmatmul.bf16.gmra.mxu0 %v1914
      %v2059 = vpop.f32.mrf.mxu0
      %v2060 = vadd.f32 %v1971, %v2059
      %v2061 = vpop.f32.mrf.mxu0
      %v2062 = vadd.f32 %v1973, %v2061
      %2063 = vmatmul.bf16.gmra.mxu0 %v1917
      %v2064 = vpop.f32.mrf.mxu0
      %v2065 = vadd.f32 %v1976, %v2064
      %v2066 = vpop.f32.mrf.mxu0
      %v2067 = vadd.f32 %v1978, %v2066
      %2068 = vmatmul.bf16.gmra.mxu0 %v1920
      %v2069 = vpop.f32.mrf.mxu0
      %v2070 = vadd.f32 %v1981, %v2069
      %v2071 = vpop.f32.mrf.mxu0
      %v2072 = vadd.f32 %v1983, %v2071
      %2073 = vmatmul.bf16.gmra.mxu0 %v1923
      %v2074 = vpop.f32.mrf.mxu0
      %v2075 = vadd.f32 %v1986, %v2074
      %v2076 = vpop.f32.mrf.mxu0
      %v2077 = vadd.f32 %v1988, %v2076
      %2078 = vmatmul.bf16.gmra.mxu0 %v1926
      %v2079 = vpop.f32.mrf.mxu0
      %v2080 = vadd.f32 %v1991, %v2079
      %v2081 = vpop.f32.mrf.mxu0
      %v2082 = vadd.f32 %v1993, %v2081
      %2083 = vmatmul.bf16.gmra.mxu0 %v1929
      %v2084 = vpop.f32.mrf.mxu0
      %v2085 = vadd.f32 %v1996, %v2084
      %v2086 = vpop.f32.mrf.mxu0
      %v2087 = vadd.f32 %v1998, %v2086
      %2088 = vmatmul.bf16.gmra.mxu0 %v1932
      %v2089 = vpop.f32.mrf.mxu0
      %v2090 = vadd.f32 %v2001, %v2089
      %v2091 = vpop.f32.mrf.mxu0
      %v2092 = vadd.f32 %v2003, %v2091
      %2093 = vmatmul.bf16.gmra.mxu0 %v1935
      %v2094 = vpop.f32.mrf.mxu0
      %v2095 = vadd.f32 %v2006, %v2094
      %v2096 = vpop.f32.mrf.mxu0
      %v2097 = vadd.f32 %v2008, %v2096
      %2098 = vmatmul.bf16.gmra.mxu0 %v1938
      %v2099 = vpop.f32.mrf.mxu0
      %v2100 = vadd.f32 %v2011, %v2099
      %v2101 = vpop.f32.mrf.mxu0
      %v2102 = vadd.f32 %v2013, %v2101
      %2103 = vmatmul.bf16.gmra.mxu0 %v1941
      %v2104 = vpop.f32.mrf.mxu0
      %v2105 = vadd.f32 %v2016, %v2104
      %v2106 = vpop.f32.mrf.mxu0
      %v2107 = vadd.f32 %v2018, %v2106
      %2108 = vmatmul.bf16.gmra.mxu0 %v1944
      %v2109 = vpop.f32.mrf.mxu0
      %v2110 = vadd.f32 %v2021, %v2109
      %v2111 = vpop.f32.mrf.mxu0
      %v2112 = vadd.f32 %v2023, %v2111
      %2113 = vmatmul.bf16.gmra.mxu0 %v1947
      %v2114 = vpop.f32.mrf.mxu0
      %v2115 = vadd.f32 %v2026, %v2114
      %v2116 = vpop.f32.mrf.mxu0
      %v2117 = vadd.f32 %v2028, %v2116
      %2118 = vmatmul.bf16.gmra.mxu0 %v1950
      %v2119 = vpop.f32.mrf.mxu0
      %v2120 = vadd.f32 %v2031, %v2119
      %v2121 = vpop.f32.mrf.mxu0
      %v2122 = vadd.f32 %v2033, %v2121
      %2123 = vmatmul.bf16.gmra.mxu0 %v1953
      %v2124 = vpop.f32.mrf.mxu0
      %v2125 = vadd.f32 %v2036, %v2124
      %v2126 = vpop.f32.mrf.mxu0
      %v2127 = vadd.f32 %v2038, %v2126
      %2128 = vmatmul.bf16.gmra.mxu0 %v1956
      %v2129 = vpop.f32.mrf.mxu0
      %v2130 = vadd.f32 %v2041, %v2129
      %v2131 = vpop.f32.mrf.mxu0
      %v2132 = vadd.f32 %v2043, %v2131
      %2133 = vmatmul.bf16.gmra.mxu0 %v1959
      %v2134 = vpop.f32.mrf.mxu0
      %v2135 = vadd.f32 %v2046, %v2134
      %v2136 = vpop.f32.mrf.mxu0
      %v2137 = vadd.f32 %v2048, %v2136
      %2138 = vdwg.mxu0
      %v2139 = vadd.f32 %v1623, %v2060
      %v2140 = vadd.f32 %v1624, %v2062
      %v2141 = vadd.f32 %v1625, %v2065
      %v2142 = vadd.f32 %v1626, %v2067
      %v2143 = vadd.f32 %v1627, %v2070
      %v2144 = vadd.f32 %v1628, %v2072
      %v2145 = vadd.f32 %v1629, %v2075
      %v2146 = vadd.f32 %v1630, %v2077
      %v2147 = vadd.f32 %v1631, %v2080
      %v2148 = vadd.f32 %v1632, %v2082
      %v2149 = vadd.f32 %v1633, %v2085
      %v2150 = vadd.f32 %v1634, %v2087
      %v2151 = vadd.f32 %v1635, %v2090
      %v2152 = vadd.f32 %v1636, %v2092
      %v2153 = vadd.f32 %v1637, %v2095
      %v2154 = vadd.f32 %v1638, %v2097
      %v2155 = vadd.f32 %v1639, %v2100
      %v2156 = vadd.f32 %v1640, %v2102
      %v2157 = vadd.f32 %v1641, %v2105
      %v2158 = vadd.f32 %v1642, %v2107
      %v2159 = vadd.f32 %v1643, %v2110
      %v2160 = vadd.f32 %v1644, %v2112
      %v2161 = vadd.f32 %v1645, %v2115
      %v2162 = vadd.f32 %v1646, %v2117
      %v2163 = vadd.f32 %v1647, %v2120
      %v2164 = vadd.f32 %v1648, %v2122
      %v2165 = vadd.f32 %v1649, %v2125
      %v2166 = vadd.f32 %v1650, %v2127
      %v2167 = vadd.f32 %v1651, %v2130
      %v2168 = vadd.f32 %v1652, %v2132
      %v2169 = vadd.f32 %v1653, %v2135
      %v2170 = vadd.f32 %v1654, %v2137
      %s2171 = scalar_lea.vmem %s165, 64
      %v2172 = vld [vmem:[%s2171] sm:$0xff]
      %v2173 = vld [vmem:[%s2171 + $0x8] sm:$0xff]
      %v2174 = vld [vmem:[%s2171 + $0x10] sm:$0xff]
      %v2175 = vld [vmem:[%s2171 + $0x18] sm:$0xff]
      %v2176 = vld [vmem:[%s2171 + $0x20] sm:$0xff]
      %v2177 = vld [vmem:[%s2171 + $0x28] sm:$0xff]
      %v2178 = vld [vmem:[%s2171 + $0x30] sm:$0xff]
      %v2179 = vld [vmem:[%s2171 + $0x38] sm:$0xff]
      %v2180 = vld [vmem:[%s2171 + $0x40] sm:$0xff]
      %v2181 = vld [vmem:[%s2171 + $0x48] sm:$0xff]
      %v2182 = vld [vmem:[%s2171 + $0x50] sm:$0xff]
      %v2183 = vld [vmem:[%s2171 + $0x58] sm:$0xff]
      %v2184 = vld [vmem:[%s2171 + $0x60] sm:$0xff]
      %v2185 = vld [vmem:[%s2171 + $0x68] sm:$0xff]
      %v2186 = vld [vmem:[%s2171 + $0x70] sm:$0xff]
      %v2187 = vld [vmem:[%s2171 + $0x78] sm:$0xff]
      %v2188 = vld [vmem:[%s2171 + $0x80] sm:$0xff]
      %v2189 = vld [vmem:[%s2171 + $0x88] sm:$0xff]
      %v2190 = vld [vmem:[%s2171 + $0x90] sm:$0xff]
      %v2191 = vld [vmem:[%s2171 + $0x98] sm:$0xff]
      %v2192 = vld [vmem:[%s2171 + $0xa0] sm:$0xff]
      %v2193 = vld [vmem:[%s2171 + $0xa8] sm:$0xff]
      %v2194 = vld [vmem:[%s2171 + $0xb0] sm:$0xff]
      %v2195 = vld [vmem:[%s2171 + $0xb8] sm:$0xff]
      %v2196 = vld [vmem:[%s2171 + $0xc0] sm:$0xff]
      %v2197 = vld [vmem:[%s2171 + $0xc8] sm:$0xff]
      %v2198 = vld [vmem:[%s2171 + $0xd0] sm:$0xff]
      %v2199 = vld [vmem:[%s2171 + $0xd8] sm:$0xff]
      %v2200 = vld [vmem:[%s2171 + $0xe0] sm:$0xff]
      %v2201 = vld [vmem:[%s2171 + $0xe8] sm:$0xff]
      %v2202 = vld [vmem:[%s2171 + $0xf0] sm:$0xff]
      %v2203 = vld [vmem:[%s2171 + $0xf8] sm:$0xff]
      %s2204 = scalar_lea.vmem %s1, 320
      %v2205 = vld [vmem:[%s2204] sm:$0xf]
      %v2206 = vld [vmem:[%s2204 + $0x4] sm:$0xf]
      %v2207 = vld [vmem:[%s2204 + $0x8] sm:$0xf]
      %v2208 = vld [vmem:[%s2204 + $0xc] sm:$0xf]
      %v2209 = vld [vmem:[%s2204 + $0x10] sm:$0xf]
      %v2210 = vld [vmem:[%s2204 + $0x14] sm:$0xf]
      %v2211 = vld [vmem:[%s2204 + $0x18] sm:$0xf]
      %v2212 = vld [vmem:[%s2204 + $0x1c] sm:$0xf]
      %v2213 = vld [vmem:[%s2204 + $0x20] sm:$0xf]
      %v2214 = vld [vmem:[%s2204 + $0x24] sm:$0xf]
      %v2215 = vld [vmem:[%s2204 + $0x28] sm:$0xf]
      %v2216 = vld [vmem:[%s2204 + $0x2c] sm:$0xf]
      %v2217 = vld [vmem:[%s2204 + $0x30] sm:$0xf]
      %v2218 = vld [vmem:[%s2204 + $0x34] sm:$0xf]
      %v2219 = vld [vmem:[%s2204 + $0x38] sm:$0xf]
      %v2220 = vld [vmem:[%s2204 + $0x3c] sm:$0xf]
      %v2221 = vld [vmem:[%s2204 + $0x40] sm:$0xf]
      %v2222 = vld [vmem:[%s2204 + $0x44] sm:$0xf]
      %v2223 = vld [vmem:[%s2204 + $0x48] sm:$0xf]
      %v2224 = vld [vmem:[%s2204 + $0x4c] sm:$0xf]
      %v2257 = vunpack.c.l.b16 %v2172
      %v2258 = vunpack.c.h.b16 %v2172
      %v2259 = vunpack.c.l.b16 %v2173
      %v2260 = vunpack.c.h.b16 %v2173
      %v2261 = vunpack.c.l.b16 %v2174
      %v2262 = vunpack.c.h.b16 %v2174
      %v2263 = vunpack.c.l.b16 %v2175
      %v2264 = vunpack.c.h.b16 %v2175
      %v2265 = vunpack.c.l.b16 %v2176
      %v2266 = vunpack.c.h.b16 %v2176
      %v2267 = vunpack.c.l.b16 %v2177
      %v2268 = vunpack.c.h.b16 %v2177
      %v2269 = vunpack.c.l.b16 %v2178
      %v2270 = vunpack.c.h.b16 %v2178
      %v2271 = vunpack.c.l.b16 %v2179
      %v2272 = vunpack.c.h.b16 %v2179
      %v2273 = vunpack.c.l.b16 %v2180
      %v2274 = vunpack.c.h.b16 %v2180
      %v2275 = vunpack.c.l.b16 %v2181
      %v2276 = vunpack.c.h.b16 %v2181
      %v2277 = vunpack.c.l.b16 %v2182
      %v2278 = vunpack.c.h.b16 %v2182
      %v2279 = vunpack.c.l.b16 %v2183
      %v2280 = vunpack.c.h.b16 %v2183
      %v2281 = vunpack.c.l.b16 %v2184
      %v2282 = vunpack.c.h.b16 %v2184
      %v2283 = vunpack.c.l.b16 %v2185
      %v2284 = vunpack.c.h.b16 %v2185
      %v2285 = vunpack.c.l.b16 %v2186
      %v2286 = vunpack.c.h.b16 %v2186
      %v2287 = vunpack.c.l.b16 %v2187
      %v2288 = vunpack.c.h.b16 %v2187
      %v2289 = vunpack.c.l.b16 %v2188
      %v2290 = vunpack.c.h.b16 %v2188
      %v2291 = vunpack.c.l.b16 %v2189
      %v2292 = vunpack.c.h.b16 %v2189
      %v2293 = vunpack.c.l.b16 %v2190
      %v2294 = vunpack.c.h.b16 %v2190
      %v2295 = vunpack.c.l.b16 %v2191
      %v2296 = vunpack.c.h.b16 %v2191
      %v2297 = vunpack.c.l.b16 %v2192
      %v2298 = vunpack.c.h.b16 %v2192
      %v2299 = vunpack.c.l.b16 %v2193
      %v2300 = vunpack.c.h.b16 %v2193
      %v2301 = vunpack.c.l.b16 %v2194
      %v2302 = vunpack.c.h.b16 %v2194
      %v2303 = vunpack.c.l.b16 %v2195
      %v2304 = vunpack.c.h.b16 %v2195
      %v2305 = vunpack.c.l.b16 %v2196
      %v2306 = vunpack.c.h.b16 %v2196
      %v2307 = vunpack.c.l.b16 %v2197
      %v2308 = vunpack.c.h.b16 %v2197
      %v2309 = vunpack.c.l.b16 %v2198
      %v2310 = vunpack.c.h.b16 %v2198
      %v2311 = vunpack.c.l.b16 %v2199
      %v2312 = vunpack.c.h.b16 %v2199
      %v2313 = vunpack.c.l.b16 %v2200
      %v2314 = vunpack.c.h.b16 %v2200
      %v2315 = vunpack.c.l.b16 %v2201
      %v2316 = vunpack.c.h.b16 %v2201
      %v2317 = vunpack.c.l.b16 %v2202
      %v2318 = vunpack.c.h.b16 %v2202
      %v2319 = vunpack.c.l.b16 %v2203
      %v2320 = vunpack.c.h.b16 %v2203
      %v2321 = vpack.c.b16 %v2259, %v2257
      %v2322 = vpack.c.b16 %v2260, %v2258
      %v2323 = vpack.c.b16 %v2263, %v2261
      %v2324 = vpack.c.b16 %v2264, %v2262
      %v2325 = vpack.c.b16 %v2267, %v2265
      %v2326 = vpack.c.b16 %v2268, %v2266
      %v2327 = vpack.c.b16 %v2271, %v2269
      %v2328 = vpack.c.b16 %v2272, %v2270
      %v2329 = vpack.c.b16 %v2275, %v2273
      %v2330 = vpack.c.b16 %v2276, %v2274
      %v2331 = vpack.c.b16 %v2279, %v2277
      %v2332 = vpack.c.b16 %v2280, %v2278
      %v2333 = vpack.c.b16 %v2283, %v2281
      %v2334 = vpack.c.b16 %v2284, %v2282
      %v2335 = vpack.c.b16 %v2287, %v2285
      %v2336 = vpack.c.b16 %v2288, %v2286
      %v2337 = vpack.c.b16 %v2291, %v2289
      %v2338 = vpack.c.b16 %v2292, %v2290
      %v2339 = vpack.c.b16 %v2295, %v2293
      %v2340 = vpack.c.b16 %v2296, %v2294
      %v2341 = vpack.c.b16 %v2299, %v2297
      %v2342 = vpack.c.b16 %v2300, %v2298
      %v2343 = vpack.c.b16 %v2303, %v2301
      %v2344 = vpack.c.b16 %v2304, %v2302
      %v2345 = vpack.c.b16 %v2307, %v2305
      %v2346 = vpack.c.b16 %v2308, %v2306
      %v2347 = vpack.c.b16 %v2311, %v2309
      %v2348 = vpack.c.b16 %v2312, %v2310
      %v2349 = vpack.c.b16 %v2315, %v2313
      %v2350 = vpack.c.b16 %v2316, %v2314
      %v2351 = vpack.c.b16 %v2319, %v2317
      %v2352 = vpack.c.b16 %v2320, %v2318
      %v2389 = vunpack.c.l.b16 %v2205
      %v2390 = vunpack.c.l.b16 %v2206
      %v2391 = vunpack.c.l.b16 %v2207
      %v2392 = vunpack.c.l.b16 %v2208
      %v2393 = vunpack.c.l.b16 %v2209
      %v2394 = vunpack.c.l.b16 %v2210
      %v2395 = vunpack.c.l.b16 %v2211
      %v2396 = vunpack.c.l.b16 %v2212
      %v2397 = vunpack.c.l.b16 %v2213
      %v2398 = vunpack.c.l.b16 %v2214
      %v2399 = vunpack.c.l.b16 %v2215
      %v2400 = vunpack.c.l.b16 %v2216
      %v2401 = vunpack.c.l.b16 %v2217
      %v2402 = vunpack.c.l.b16 %v2218
      %v2403 = vunpack.c.l.b16 %v2219
      %v2404 = vunpack.c.l.b16 %v2220
      %v2405 = vunpack.c.l.b16 %v2221
      %v2406 = vunpack.c.l.b16 %v2222
      %v2407 = vunpack.c.l.b16 %v2223
      %v2408 = vunpack.c.l.b16 %v2224
      %v2409 = vpack.c.b16 %v2390, %v2389
      %v2410 = vpack.c.b16 %v2392, %v2391
      %v2411 = vpack.c.b16 %v2394, %v2393
      %v2412 = vpack.c.b16 %v2396, %v2395
      %v2413 = vpack.c.b16 %v2398, %v2397
      %v2414 = vpack.c.b16 %v2400, %v2399
      %v2415 = vpack.c.b16 %v2402, %v2401
      %v2416 = vpack.c.b16 %v2404, %v2403
      %v2417 = vpack.c.b16 %v2406, %v2405
      %v2418 = vpack.c.b16 %v2408, %v2407
      %v2430 = vsel %vm482, %v2322, 0
      %v2433 = vsel %vm482, %v2324, 0
      %v2436 = vsel %vm482, %v2326, 0
      %v2439 = vsel %vm482, %v2328, 0
      %v2442 = vsel %vm482, %v2330, 0
      %v2445 = vsel %vm482, %v2332, 0
      %v2448 = vsel %vm482, %v2334, 0
      %v2451 = vsel %vm482, %v2336, 0
      %v2454 = vsel %vm482, %v2338, 0
      %v2457 = vsel %vm482, %v2340, 0
      %v2460 = vsel %vm482, %v2342, 0
      %v2463 = vsel %vm482, %v2344, 0
      %v2466 = vsel %vm482, %v2346, 0
      %v2469 = vsel %vm482, %v2348, 0
      %v2472 = vsel %vm482, %v2350, 0
      %v2475 = vsel %vm482, %v2352, 0
      %2477 = vmatpush.bf16.msra.mxu0 %v2416
      %2478 = vmatpush.bf16.msra.mxu0 %v2415
      %2479 = vmatpush.bf16.msra.mxu0 %v2414
      %2480 = vmatpush.bf16.msra.mxu0 %v2413
      %2481 = vmatpush.bf16.msra.mxu0 %v2412
      %2482 = vmatpush.bf16.msra.mxu0 %v2411
      %2483 = vmatpush.bf16.msra.mxu0 %v2410
      %2484 = vmatpush.bf16.msra.mxu0 %v2409
      %2485 = vmatmul.bf16.gmra.mxu0 %v2321
      %v2486 = vpop.f32.mrf.mxu0
      %v2487 = vadd.f32 0.0, %v2486
      %v2488 = vpop.f32.mrf.mxu0
      %v2489 = vadd.f32 0.0, %v2488
      %2490 = vmatmul.bf16.gmra.mxu0 %v2323
      %v2491 = vpop.f32.mrf.mxu0
      %v2492 = vadd.f32 0.0, %v2491
      %v2493 = vpop.f32.mrf.mxu0
      %v2494 = vadd.f32 0.0, %v2493
      %2495 = vmatmul.bf16.gmra.mxu0 %v2325
      %v2496 = vpop.f32.mrf.mxu0
      %v2497 = vadd.f32 0.0, %v2496
      %v2498 = vpop.f32.mrf.mxu0
      %v2499 = vadd.f32 0.0, %v2498
      %2500 = vmatmul.bf16.gmra.mxu0 %v2327
      %v2501 = vpop.f32.mrf.mxu0
      %v2502 = vadd.f32 0.0, %v2501
      %v2503 = vpop.f32.mrf.mxu0
      %v2504 = vadd.f32 0.0, %v2503
      %2505 = vmatmul.bf16.gmra.mxu0 %v2329
      %v2506 = vpop.f32.mrf.mxu0
      %v2507 = vadd.f32 0.0, %v2506
      %v2508 = vpop.f32.mrf.mxu0
      %v2509 = vadd.f32 0.0, %v2508
      %2510 = vmatmul.bf16.gmra.mxu0 %v2331
      %v2511 = vpop.f32.mrf.mxu0
      %v2512 = vadd.f32 0.0, %v2511
      %v2513 = vpop.f32.mrf.mxu0
      %v2514 = vadd.f32 0.0, %v2513
      %2515 = vmatmul.bf16.gmra.mxu0 %v2333
      %v2516 = vpop.f32.mrf.mxu0
      %v2517 = vadd.f32 0.0, %v2516
      %v2518 = vpop.f32.mrf.mxu0
      %v2519 = vadd.f32 0.0, %v2518
      %2520 = vmatmul.bf16.gmra.mxu0 %v2335
      %v2521 = vpop.f32.mrf.mxu0
      %v2522 = vadd.f32 0.0, %v2521
      %v2523 = vpop.f32.mrf.mxu0
      %v2524 = vadd.f32 0.0, %v2523
      %2525 = vmatmul.bf16.gmra.mxu0 %v2337
      %v2526 = vpop.f32.mrf.mxu0
      %v2527 = vadd.f32 0.0, %v2526
      %v2528 = vpop.f32.mrf.mxu0
      %v2529 = vadd.f32 0.0, %v2528
      %2530 = vmatmul.bf16.gmra.mxu0 %v2339
      %v2531 = vpop.f32.mrf.mxu0
      %v2532 = vadd.f32 0.0, %v2531
      %v2533 = vpop.f32.mrf.mxu0
      %v2534 = vadd.f32 0.0, %v2533
      %2535 = vmatmul.bf16.gmra.mxu0 %v2341
      %v2536 = vpop.f32.mrf.mxu0
      %v2537 = vadd.f32 0.0, %v2536
      %v2538 = vpop.f32.mrf.mxu0
      %v2539 = vadd.f32 0.0, %v2538
      %2540 = vmatmul.bf16.gmra.mxu0 %v2343
      %v2541 = vpop.f32.mrf.mxu0
      %v2542 = vadd.f32 0.0, %v2541
      %v2543 = vpop.f32.mrf.mxu0
      %v2544 = vadd.f32 0.0, %v2543
      %2545 = vmatmul.bf16.gmra.mxu0 %v2345
      %v2546 = vpop.f32.mrf.mxu0
      %v2547 = vadd.f32 0.0, %v2546
      %v2548 = vpop.f32.mrf.mxu0
      %v2549 = vadd.f32 0.0, %v2548
      %2550 = vmatmul.bf16.gmra.mxu0 %v2347
      %v2551 = vpop.f32.mrf.mxu0
      %v2552 = vadd.f32 0.0, %v2551
      %v2553 = vpop.f32.mrf.mxu0
      %v2554 = vadd.f32 0.0, %v2553
      %2555 = vmatmul.bf16.gmra.mxu0 %v2349
      %v2556 = vpop.f32.mrf.mxu0
      %v2557 = vadd.f32 0.0, %v2556
      %v2558 = vpop.f32.mrf.mxu0
      %v2559 = vadd.f32 0.0, %v2558
      %2560 = vmatmul.bf16.gmra.mxu0 %v2351
      %v2561 = vpop.f32.mrf.mxu0
      %v2562 = vadd.f32 0.0, %v2561
      %v2563 = vpop.f32.mrf.mxu0
      %v2564 = vadd.f32 0.0, %v2563
      %2565 = vdwg.mxu0
      %2566 = vmatpush.bf16.msra.mxu0 0
      %2567 = vmatpush.bf16.msra.mxu0 0
      %2568 = vmatpush.bf16.msra.mxu0 0
      %2569 = vmatpush.bf16.msra.mxu0 0
      %2570 = vmatpush.bf16.msra.mxu0 0
      %2571 = vmatpush.bf16.msra.mxu0 0
      %2572 = vmatpush.bf16.msra.mxu0 %v2418
      %2573 = vmatpush.bf16.msra.mxu0 %v2417
      %2574 = vmatmul.bf16.gmra.mxu0 %v2430
      %v2575 = vpop.f32.mrf.mxu0
      %v2576 = vadd.f32 %v2487, %v2575
      %v2577 = vpop.f32.mrf.mxu0
      %v2578 = vadd.f32 %v2489, %v2577
      %2579 = vmatmul.bf16.gmra.mxu0 %v2433
      %v2580 = vpop.f32.mrf.mxu0
      %v2581 = vadd.f32 %v2492, %v2580
      %v2582 = vpop.f32.mrf.mxu0
      %v2583 = vadd.f32 %v2494, %v2582
      %2584 = vmatmul.bf16.gmra.mxu0 %v2436
      %v2585 = vpop.f32.mrf.mxu0
      %v2586 = vadd.f32 %v2497, %v2585
      %v2587 = vpop.f32.mrf.mxu0
      %v2588 = vadd.f32 %v2499, %v2587
      %2589 = vmatmul.bf16.gmra.mxu0 %v2439
      %v2590 = vpop.f32.mrf.mxu0
      %v2591 = vadd.f32 %v2502, %v2590
      %v2592 = vpop.f32.mrf.mxu0
      %v2593 = vadd.f32 %v2504, %v2592
      %2594 = vmatmul.bf16.gmra.mxu0 %v2442
      %v2595 = vpop.f32.mrf.mxu0
      %v2596 = vadd.f32 %v2507, %v2595
      %v2597 = vpop.f32.mrf.mxu0
      %v2598 = vadd.f32 %v2509, %v2597
      %2599 = vmatmul.bf16.gmra.mxu0 %v2445
      %v2600 = vpop.f32.mrf.mxu0
      %v2601 = vadd.f32 %v2512, %v2600
      %v2602 = vpop.f32.mrf.mxu0
      %v2603 = vadd.f32 %v2514, %v2602
      %2604 = vmatmul.bf16.gmra.mxu0 %v2448
      %v2605 = vpop.f32.mrf.mxu0
      %v2606 = vadd.f32 %v2517, %v2605
      %v2607 = vpop.f32.mrf.mxu0
      %v2608 = vadd.f32 %v2519, %v2607
      %2609 = vmatmul.bf16.gmra.mxu0 %v2451
      %v2610 = vpop.f32.mrf.mxu0
      %v2611 = vadd.f32 %v2522, %v2610
      %v2612 = vpop.f32.mrf.mxu0
      %v2613 = vadd.f32 %v2524, %v2612
      %2614 = vmatmul.bf16.gmra.mxu0 %v2454
      %v2615 = vpop.f32.mrf.mxu0
      %v2616 = vadd.f32 %v2527, %v2615
      %v2617 = vpop.f32.mrf.mxu0
      %v2618 = vadd.f32 %v2529, %v2617
      %2619 = vmatmul.bf16.gmra.mxu0 %v2457
      %v2620 = vpop.f32.mrf.mxu0
      %v2621 = vadd.f32 %v2532, %v2620
      %v2622 = vpop.f32.mrf.mxu0
      %v2623 = vadd.f32 %v2534, %v2622
      %2624 = vmatmul.bf16.gmra.mxu0 %v2460
      %v2625 = vpop.f32.mrf.mxu0
      %v2626 = vadd.f32 %v2537, %v2625
      %v2627 = vpop.f32.mrf.mxu0
      %v2628 = vadd.f32 %v2539, %v2627
      %2629 = vmatmul.bf16.gmra.mxu0 %v2463
      %v2630 = vpop.f32.mrf.mxu0
      %v2631 = vadd.f32 %v2542, %v2630
      %v2632 = vpop.f32.mrf.mxu0
      %v2633 = vadd.f32 %v2544, %v2632
      %2634 = vmatmul.bf16.gmra.mxu0 %v2466
      %v2635 = vpop.f32.mrf.mxu0
      %v2636 = vadd.f32 %v2547, %v2635
      %v2637 = vpop.f32.mrf.mxu0
      %v2638 = vadd.f32 %v2549, %v2637
      %2639 = vmatmul.bf16.gmra.mxu0 %v2469
      %v2640 = vpop.f32.mrf.mxu0
      %v2641 = vadd.f32 %v2552, %v2640
      %v2642 = vpop.f32.mrf.mxu0
      %v2643 = vadd.f32 %v2554, %v2642
      %2644 = vmatmul.bf16.gmra.mxu0 %v2472
      %v2645 = vpop.f32.mrf.mxu0
      %v2646 = vadd.f32 %v2557, %v2645
      %v2647 = vpop.f32.mrf.mxu0
      %v2648 = vadd.f32 %v2559, %v2647
      %2649 = vmatmul.bf16.gmra.mxu0 %v2475
      %v2650 = vpop.f32.mrf.mxu0
      %v2651 = vadd.f32 %v2562, %v2650
      %v2652 = vpop.f32.mrf.mxu0
      %v2653 = vadd.f32 %v2564, %v2652
      %2654 = vdwg.mxu0
      %v2655 = vadd.f32 %v2139, %v2576
      %v2656 = vadd.f32 %v2140, %v2578
      %v2657 = vadd.f32 %v2141, %v2581
      %v2658 = vadd.f32 %v2142, %v2583
      %v2659 = vadd.f32 %v2143, %v2586
      %v2660 = vadd.f32 %v2144, %v2588
      %v2661 = vadd.f32 %v2145, %v2591
      %v2662 = vadd.f32 %v2146, %v2593
      %v2663 = vadd.f32 %v2147, %v2596
      %v2664 = vadd.f32 %v2148, %v2598
      %v2665 = vadd.f32 %v2149, %v2601
      %v2666 = vadd.f32 %v2150, %v2603
      %v2667 = vadd.f32 %v2151, %v2606
      %v2668 = vadd.f32 %v2152, %v2608
      %v2669 = vadd.f32 %v2153, %v2611
      %v2670 = vadd.f32 %v2154, %v2613
      %v2671 = vadd.f32 %v2155, %v2616
      %v2672 = vadd.f32 %v2156, %v2618
      %v2673 = vadd.f32 %v2157, %v2621
      %v2674 = vadd.f32 %v2158, %v2623
      %v2675 = vadd.f32 %v2159, %v2626
      %v2676 = vadd.f32 %v2160, %v2628
      %v2677 = vadd.f32 %v2161, %v2631
      %v2678 = vadd.f32 %v2162, %v2633
      %v2679 = vadd.f32 %v2163, %v2636
      %v2680 = vadd.f32 %v2164, %v2638
      %v2681 = vadd.f32 %v2165, %v2641
      %v2682 = vadd.f32 %v2166, %v2643
      %v2683 = vadd.f32 %v2167, %v2646
      %v2684 = vadd.f32 %v2168, %v2648
      %v2685 = vadd.f32 %v2169, %v2651
      %v2686 = vadd.f32 %v2170, %v2653
      %v2687 = vld [vmem:[%s2] sm:$0x1]
      %v2689 = vperm.slane %v2687, 0
      %v2691 = vadd.f32 %v2655, %v2689
      %v2692 = vadd.f32 %v2656, %v2689
      %v2693 = vadd.f32 %v2657, %v2689
      %v2694 = vadd.f32 %v2658, %v2689
      %v2695 = vadd.f32 %v2659, %v2689
      %v2696 = vadd.f32 %v2660, %v2689
      %v2697 = vadd.f32 %v2661, %v2689
      %v2698 = vadd.f32 %v2662, %v2689
      %v2699 = vadd.f32 %v2663, %v2689
      %v2700 = vadd.f32 %v2664, %v2689
      %v2701 = vadd.f32 %v2665, %v2689
      %v2702 = vadd.f32 %v2666, %v2689
      %v2703 = vadd.f32 %v2667, %v2689
      %v2704 = vadd.f32 %v2668, %v2689
      %v2705 = vadd.f32 %v2669, %v2689
      %v2706 = vadd.f32 %v2670, %v2689
      %v2707 = vadd.f32 %v2671, %v2689
      %v2708 = vadd.f32 %v2672, %v2689
      %v2709 = vadd.f32 %v2673, %v2689
      %v2710 = vadd.f32 %v2674, %v2689
      %v2711 = vadd.f32 %v2675, %v2689
      %v2712 = vadd.f32 %v2676, %v2689
      %v2713 = vadd.f32 %v2677, %v2689
      %v2714 = vadd.f32 %v2678, %v2689
      %v2715 = vadd.f32 %v2679, %v2689
      %v2716 = vadd.f32 %v2680, %v2689
      %v2717 = vadd.f32 %v2681, %v2689
      %v2718 = vadd.f32 %v2682, %v2689
      %v2719 = vadd.f32 %v2683, %v2689
      %v2720 = vadd.f32 %v2684, %v2689
      %v2721 = vadd.f32 %v2685, %v2689
      %v2722 = vadd.f32 %v2686, %v2689
      %2723 = vst.msk [vmem:[#allocation2] sm:$0xff] %vm482, %v2691
      %2724 = vst.msk [vmem:[#allocation2 + $0x8] sm:$0xff] %vm482, %v2692
      %2725 = vst.msk [vmem:[#allocation2 + $0x10] sm:$0xff] %vm482, %v2693
      %2726 = vst.msk [vmem:[#allocation2 + $0x18] sm:$0xff] %vm482, %v2694
      %2727 = vst.msk [vmem:[#allocation2 + $0x20] sm:$0xff] %vm482, %v2695
      %2728 = vst.msk [vmem:[#allocation2 + $0x28] sm:$0xff] %vm482, %v2696
      %2729 = vst.msk [vmem:[#allocation2 + $0x30] sm:$0xff] %vm482, %v2697
      %2730 = vst.msk [vmem:[#allocation2 + $0x38] sm:$0xff] %vm482, %v2698
      %2731 = vst.msk [vmem:[#allocation2 + $0x40] sm:$0xff] %vm482, %v2699
      %2732 = vst.msk [vmem:[#allocation2 + $0x48] sm:$0xff] %vm482, %v2700
      %2733 = vst.msk [vmem:[#allocation2 + $0x50] sm:$0xff] %vm482, %v2701
      %2734 = vst.msk [vmem:[#allocation2 + $0x58] sm:$0xff] %vm482, %v2702
      %2735 = vst.msk [vmem:[#allocation2 + $0x60] sm:$0xff] %vm482, %v2703
      %2736 = vst.msk [vmem:[#allocation2 + $0x68] sm:$0xff] %vm482, %v2704
      %2737 = vst.msk [vmem:[#allocation2 + $0x70] sm:$0xff] %vm482, %v2705
      %2738 = vst.msk [vmem:[#allocation2 + $0x78] sm:$0xff] %vm482, %v2706
      %2739 = vst.msk [vmem:[#allocation2 + $0x80] sm:$0xff] %vm482, %v2707
      %2740 = vst.msk [vmem:[#allocation2 + $0x88] sm:$0xff] %vm482, %v2708
      %2741 = vst.msk [vmem:[#allocation2 + $0x90] sm:$0xff] %vm482, %v2709
      %2742 = vst.msk [vmem:[#allocation2 + $0x98] sm:$0xff] %vm482, %v2710
      %2743 = vst.msk [vmem:[#allocation2 + $0xa0] sm:$0xff] %vm482, %v2711
      %2744 = vst.msk [vmem:[#allocation2 + $0xa8] sm:$0xff] %vm482, %v2712
      %2745 = vst.msk [vmem:[#allocation2 + $0xb0] sm:$0xff] %vm482, %v2713
      %2746 = vst.msk [vmem:[#allocation2 + $0xb8] sm:$0xff] %vm482, %v2714
      %2747 = vst.msk [vmem:[#allocation2 + $0xc0] sm:$0xff] %vm482, %v2715
      %2748 = vst.msk [vmem:[#allocation2 + $0xc8] sm:$0xff] %vm482, %v2716
      %2749 = vst.msk [vmem:[#allocation2 + $0xd0] sm:$0xff] %vm482, %v2717
      %2750 = vst.msk [vmem:[#allocation2 + $0xd8] sm:$0xff] %vm482, %v2718
      %2751 = vst.msk [vmem:[#allocation2 + $0xe0] sm:$0xff] %vm482, %v2719
      %2752 = vst.msk [vmem:[#allocation2 + $0xe8] sm:$0xff] %vm482, %v2720
      %2753 = vst.msk [vmem:[#allocation2 + $0xf0] sm:$0xff] %vm482, %v2721
      %2754 = vst.msk [vmem:[#allocation2 + $0xf8] sm:$0xff] %vm482, %v2722
      %v2755 = vld [vmem:[#allocation2] ss:$2 sm:$0xff]
      %s2756 = scalar_lea.vmem [#allocation2], 16
      %v2757 = vld [vmem:[%s2756] ss:$2 sm:$0xff]
      %s2758 = scalar_lea.vmem [#allocation2], 32
      %v2759 = vld [vmem:[%s2758] ss:$2 sm:$0xff]
      %s2760 = scalar_lea.vmem [#allocation2], 48
      %v2761 = vld [vmem:[%s2760] ss:$2 sm:$0xff]
      %s2762 = scalar_lea.vmem [#allocation2], 64
      %v2763 = vld [vmem:[%s2762] ss:$2 sm:$0xff]
      %s2764 = scalar_lea.vmem [#allocation2], 80
      %v2765 = vld [vmem:[%s2764] ss:$2 sm:$0xff]
      %s2766 = scalar_lea.vmem [#allocation2], 96
      %v2767 = vld [vmem:[%s2766] ss:$2 sm:$0xff]
      %s2768 = scalar_lea.vmem [#allocation2], 112
      %v2769 = vld [vmem:[%s2768] ss:$2 sm:$0xff]
      %s2770 = scalar_lea.vmem [#allocation2], 128
      %v2771 = vld [vmem:[%s2770] ss:$2 sm:$0xff]
      %s2772 = scalar_lea.vmem [#allocation2], 144
      %v2773 = vld [vmem:[%s2772] ss:$2 sm:$0xff]
      %s2774 = scalar_lea.vmem [#allocation2], 160
      %v2775 = vld [vmem:[%s2774] ss:$2 sm:$0xff]
      %s2776 = scalar_lea.vmem [#allocation2], 176
      %v2777 = vld [vmem:[%s2776] ss:$2 sm:$0xff]
      %s2778 = scalar_lea.vmem [#allocation2], 192
      %v2779 = vld [vmem:[%s2778] ss:$2 sm:$0xff]
      %s2780 = scalar_lea.vmem [#allocation2], 208
      %v2781 = vld [vmem:[%s2780] ss:$2 sm:$0xff]
      %s2782 = scalar_lea.vmem [#allocation2], 224
      %v2783 = vld [vmem:[%s2782] ss:$2 sm:$0xff]
      %s2784 = scalar_lea.vmem [#allocation2], 240
      %v2785 = vld [vmem:[%s2784] ss:$2 sm:$0xff]
      %s2786 = scalar_lea.vmem [#allocation2], 1
      %v2787 = vld [vmem:[%s2786] ss:$2 sm:$0xff]
      %s2788 = scalar_lea.vmem [#allocation2], 17
      %v2789 = vld [vmem:[%s2788] ss:$2 sm:$0xff]
      %s2790 = scalar_lea.vmem [#allocation2], 33
      %v2791 = vld [vmem:[%s2790] ss:$2 sm:$0xff]
      %s2792 = scalar_lea.vmem [#allocation2], 49
      %v2793 = vld [vmem:[%s2792] ss:$2 sm:$0xff]
      %s2794 = scalar_lea.vmem [#allocation2], 65
      %v2795 = vld [vmem:[%s2794] ss:$2 sm:$0xff]
      %s2796 = scalar_lea.vmem [#allocation2], 81
      %v2797 = vld [vmem:[%s2796] ss:$2 sm:$0xff]
      %s2798 = scalar_lea.vmem [#allocation2], 97
      %v2799 = vld [vmem:[%s2798] ss:$2 sm:$0xff]
      %s2800 = scalar_lea.vmem [#allocation2], 113
      %v2801 = vld [vmem:[%s2800] ss:$2 sm:$0xff]
      %s2802 = scalar_lea.vmem [#allocation2], 129
      %v2803 = vld [vmem:[%s2802] ss:$2 sm:$0xff]
      %s2804 = scalar_lea.vmem [#allocation2], 145
      %v2805 = vld [vmem:[%s2804] ss:$2 sm:$0xff]
      %s2806 = scalar_lea.vmem [#allocation2], 161
      %v2807 = vld [vmem:[%s2806] ss:$2 sm:$0xff]
      %s2808 = scalar_lea.vmem [#allocation2], 177
      %v2809 = vld [vmem:[%s2808] ss:$2 sm:$0xff]
      %s2810 = scalar_lea.vmem [#allocation2], 193
      %v2811 = vld [vmem:[%s2810] ss:$2 sm:$0xff]
      %s2812 = scalar_lea.vmem [#allocation2], 209
      %v2813 = vld [vmem:[%s2812] ss:$2 sm:$0xff]
      %s2814 = scalar_lea.vmem [#allocation2], 225
      %v2815 = vld [vmem:[%s2814] ss:$2 sm:$0xff]
      %s2816 = scalar_lea.vmem [#allocation2], 241
      %v2817 = vld [vmem:[%s2816] ss:$2 sm:$0xff]
      %v2818 = vmax.f32 %v2755, %v2787
      %v2819 = vmax.f32 %v2757, %v2789
      %v2820 = vmax.f32 %v2759, %v2791
      %v2821 = vmax.f32 %v2761, %v2793
      %v2822 = vmax.f32 %v2763, %v2795
      %v2823 = vmax.f32 %v2765, %v2797
      %v2824 = vmax.f32 %v2767, %v2799
      %v2825 = vmax.f32 %v2769, %v2801
      %v2826 = vmax.f32 %v2771, %v2803
      %v2827 = vmax.f32 %v2773, %v2805
      %v2828 = vmax.f32 %v2775, %v2807
      %v2829 = vmax.f32 %v2777, %v2809
      %v2830 = vmax.f32 %v2779, %v2811
      %v2831 = vmax.f32 %v2781, %v2813
      %v2832 = vmax.f32 %v2783, %v2815
      %v2833 = vmax.f32 %v2785, %v2817
      %v2834 = vsel %vm482, %v2818, -inf
      %v2835 = vsel %vm482, %v2819, -inf
      %v2836 = vmax.f32 %v2834, %v2835
      %v2837 = vsel %vm482, %v2820, -inf
      %v2838 = vsel %vm482, %v2821, -inf
      %v2839 = vmax.f32 %v2837, %v2838
      %v2840 = vsel %vm482, %v2822, -inf
      %v2841 = vsel %vm482, %v2823, -inf
      %v2842 = vmax.f32 %v2840, %v2841
      %v2843 = vsel %vm482, %v2824, -inf
      %v2844 = vsel %vm482, %v2825, -inf
      %v2845 = vmax.f32 %v2843, %v2844
      %v2846 = vsel %vm482, %v2826, -inf
      %v2847 = vsel %vm482, %v2827, -inf
      %v2848 = vmax.f32 %v2846, %v2847
      %v2849 = vsel %vm482, %v2828, -inf
      %v2850 = vsel %vm482, %v2829, -inf
      %v2851 = vmax.f32 %v2849, %v2850
      %v2852 = vsel %vm482, %v2830, -inf
      %v2853 = vsel %vm482, %v2831, -inf
      %v2854 = vmax.f32 %v2852, %v2853
      %v2855 = vsel %vm482, %v2832, -inf
      %v2856 = vsel %vm482, %v2833, -inf
      %v2857 = vmax.f32 %v2855, %v2856
      %v2858 = vpack.c.bf16 %v2836, %v2836
      %v2859 = vpack.c.bf16 %v2839, %v2839
      %v2860 = vpack.c.bf16 %v2842, %v2842
      %v2861 = vpack.c.bf16 %v2845, %v2845
      %v2862 = vpack.c.bf16 %v2848, %v2848
      %v2863 = vpack.c.bf16 %v2851, %v2851
      %v2864 = vpack.c.bf16 %v2854, %v2854
      %v2865 = vpack.c.bf16 %v2857, %v2857
      %vm2866 = vcmask 257024
      %2867 = vst.msk [vmem:[%s170] sm:$0xf] %vm2866, %v2858
      %2868 = vst.msk [vmem:[%s170 + $0x4] sm:$0xf] %vm2866, %v2859
      %2869 = vst.msk [vmem:[%s170 + $0x8] sm:$0xf] %vm2866, %v2860
      %2870 = vst.msk [vmem:[%s170 + $0xc] sm:$0xf] %vm2866, %v2861
      %2871 = vst.msk [vmem:[%s170 + $0x10] sm:$0xf] %vm2866, %v2862
      %2872 = vst.msk [vmem:[%s170 + $0x14] sm:$0xf] %vm2866, %v2863
      %2873 = vst.msk [vmem:[%s170 + $0x18] sm:$0xf] %vm2866, %v2864
      %2874 = vst.msk [vmem:[%s170 + $0x1c] sm:$0xf] %vm2866, %v2865
      %p2875 = scmp.lt.s32.totalorder %s14, 1
      %s2876 = scalar_select %p2875, %s14, 1
      %s2877 = smul.addr %s2876, 8
      %s2878 = smul.addr %s2877, 4
      %s2879 = scalar_lea.vmem %s3, %s2878
      // Predicated region
      $region33: #{damon_forward.5} parent=31 // pred_check
        %p2880 = pneg %p100
      $region34: #{damon_forward.5} parent=31 // pred_check_branch
        %2882 = sbr.rel (%p2880) target = $region36
      $region35: #{damon_forward.5} parent=31 // pred_region
        _
      $region36: #{damon_forward.5} parent=31 // pred_fallthru
        _
    $region32: #{damon_forward.5} parent=5 // pred_fallthru
      _
    %p2883 = scmp.le.s32.totalorder 2, %s9
    // Predicated region
    $region37: #{damon_forward.5} parent=5 // pred_check
      %p2884 = pneg %p2883
    $region38: #{damon_forward.5} parent=5 // pred_check_branch
      %2886 = sbr.rel (%p2884) target = $region40
    $region39: #{damon_forward.5} parent=5 // pred_region
      %s2887 = ssub.s32 %s9, 2
      // Predicated region
      $region41: #{damon_forward.5} parent=39 // pred_check
        %p2888 = pneg %p106
      $region42: #{damon_forward.5} parent=39 // pred_check_branch
        %2890 = sbr.rel (%p2888) target = $region44
      $region43: #{damon_forward.5} parent=39 // pred_region
        %p2891 = scmp.lt.s32.totalorder %s15, 1
        %s2892 = scalar_select %p2891, %s15, 1
        %s2893 = smul.addr %s2892, 8
        %s2894 = smul.addr %s2893, 4
        %s2895 = scalar_lea.vmem %s3, %s2894
      $region44: #{damon_forward.5} parent=39 // pred_fallthru
        _
    $region40: #{damon_forward.5} parent=5 // pred_fallthru
      _
  $region6: #{damon_forward.5} parent=0 // loop_footer
    %s13 = sadd.s32 1, %s9
  $region7: #{damon_forward.5} parent=0 // loop_footer_branch
    %8 = sbr.rel target = $region3
  $region8: #{damon_forward.5} parent=0 // loop_exit
    _

// kernel: damon_forward.6
$region0: #{damon_forward.6}
  #allocation0 [shape = 'u32[]', space=smem, size = 0x4, offset = 0x4, fixed_abs, tag = 'smem constant byte address 0x4 - core index']
  #allocation1 [shape = 'u32[72,128]{1,0:T(1,128)}', space=vmem, size = 0x9000, scoped, tag = 'internal scratch']
  #allocation2 [shape = 'f32[8,8,64]{2,1,0:T(8,128)}', space=vmem, size = 0x8000, scoped, tag = 'scratch operand']
  %s0 = inlined_call_operand.vmem [shape: bf16[2,12,8,160], index: 0, kind: input, shape index: {}]
  %s1 = inlined_call_operand.vmem [shape: bf16[5,160,64], index: 1, kind: input, shape index: {}]
  %s2 = inlined_call_operand.vmem [shape: f32[1,64], index: 2, kind: input, shape index: {}]
  %s3 = inlined_call_operand.vmem [shape: bf16[2,4,4,64], index: 3, kind: output, shape index: {}]
  %s4 = sld [smem:[#allocation0]]
  $region45: #{damon_forward.6} parent=0
    _
  %s6 = ssub.s32 1, %s4
  %s7 = scalar_select 0, %s6, %s4
  loop: start=0, step=1, limit=4
  $region2: #{damon_forward.6} parent=0 // loop_pre_header
    _
  $region3: #{damon_forward.6} parent=0 // loop_header
    %s9 = sphi 0, %s13
    %p10 = scmp.ge.s32.totalorder %s9, 4
    %s19 = sphi 0, %s21
    %s22 = sphi 0, %s19
    %s23 = sphi 0, %s22
    %s39 = sphi 0, %s23
    %s43 = sphi 0, %s43
    %s45 = sphi 0, %s43
    %s46 = sphi 0, %s45
    %s60 = sphi 0, %s46
    %s64 = sphi 0, %s64
    %s66 = sphi 0, %s64
    %s67 = sphi 0, %s66
    %s81 = sphi 0, %s67
    %s87 = sphi 0, %s89
    %s90 = sphi 0, %s87
    %s91 = sphi 0, %s90
    %s107 = sphi 0, %s91
  $region4: #{damon_forward.6} parent=0 // loop_header_branch
    %12 = sbr.rel (%p10) target = $region8
  $region5: #{damon_forward.6} parent=0 // loop_body
    %s14 = ssub.s32 %s9, 1
    %s15 = ssub.s32 %s9, 2
    %s16 = sadd.s32 %s9, 1
    %s17 = ssub.s32 %s9, %s16
    %p18 = scmp.eq.s32.totalorder %s17, 0
    %s20 = sadd.s32 %s19, 1
    %s21 = scalar_select %p18, %s19, %s20
    %p24 = pneg %p18
    %p25 = scmp.eq.s32.totalorder %s9, 1
    %p26 = por %p24, %p25
    %p27 = scmp.ne.s32.totalorder %s19, %s22
    %p28 = scmp.eq.s32.totalorder %s9, 0
    %p29 = por %p27, %p28
    %p30 = scmp.ne.s32.totalorder %s19, %s22
    %p31 = scmp.eq.s32.totalorder %s14, 1
    %p32 = por %p30, %p31
    %p33 = scmp.ne.s32.totalorder %s22, %s23
    %p34 = scmp.eq.s32.totalorder %s14, 0
    %p35 = por %p33, %p34
    %p36 = scmp.ne.s32.totalorder %s22, %s23
    %p37 = scmp.eq.s32.totalorder %s15, 1
    %p38 = por %p36, %p37
    %p40 = scmp.ne.s32.totalorder %s23, %s39
    %p41 = scmp.eq.s32.totalorder %s15, 0
    %p42 = por %p40, %p41
    %s44 = sadd.s32 %s43, 1
    %p47 = scmp.eq.s32.totalorder %s9, 1
    %p48 = scmp.ne.s32.totalorder %s43, %s45
    %p49 = scmp.eq.s32.totalorder %s9, 0
    %p50 = por %p48, %p49
    %p51 = scmp.ne.s32.totalorder %s43, %s45
    %p52 = scmp.eq.s32.totalorder %s14, 1
    %p53 = por %p51, %p52
    %p54 = scmp.ne.s32.totalorder %s45, %s46
    %p55 = scmp.eq.s32.totalorder %s14, 0
    %p56 = por %p54, %p55
    %p57 = scmp.ne.s32.totalorder %s45, %s46
    %p58 = scmp.eq.s32.totalorder %s15, 1
    %p59 = por %p57, %p58
    %p61 = scmp.ne.s32.totalorder %s46, %s60
    %p62 = scmp.eq.s32.totalorder %s15, 0
    %p63 = por %p61, %p62
    %s65 = sadd.s32 %s64, 1
    %p68 = scmp.eq.s32.totalorder %s9, 1
    %p69 = scmp.ne.s32.totalorder %s64, %s66
    %p70 = scmp.eq.s32.totalorder %s9, 0
    %p71 = por %p69, %p70
    %p72 = scmp.ne.s32.totalorder %s64, %s66
    %p73 = scmp.eq.s32.totalorder %s14, 1
    %p74 = por %p72, %p73
    %p75 = scmp.ne.s32.totalorder %s66, %s67
    %p76 = scmp.eq.s32.totalorder %s14, 0
    %p77 = por %p75, %p76
    %p78 = scmp.ne.s32.totalorder %s66, %s67
    %p79 = scmp.eq.s32.totalorder %s15, 1
    %p80 = por %p78, %p79
    %p82 = scmp.ne.s32.totalorder %s67, %s81
    %p83 = scmp.eq.s32.totalorder %s15, 0
    %p84 = por %p82, %p83
    %s85 = ssub.s32 %s9, %s16
    %p86 = scmp.eq.s32.totalorder %s85, 0
    %s88 = sadd.s32 %s87, 1
    %s89 = scalar_select %p86, %s87, %s88
    %p92 = pneg %p86
    %p93 = scmp.eq.s32.totalorder %s9, 1
    %p94 = por %p92, %p93
    %p95 = scmp.ne.s32.totalorder %s87, %s90
    %p96 = scmp.eq.s32.totalorder %s9, 0
    %p97 = por %p95, %p96
    %p98 = scmp.ne.s32.totalorder %s87, %s90
    %p99 = scmp.eq.s32.totalorder %s14, 1
    %p100 = por %p98, %p99
    %p101 = scmp.ne.s32.totalorder %s90, %s91
    %p102 = scmp.eq.s32.totalorder %s14, 0
    %p103 = por %p101, %p102
    %p104 = scmp.ne.s32.totalorder %s90, %s91
    %p105 = scmp.eq.s32.totalorder %s15, 1
    %p106 = por %p104, %p105
    %p108 = scmp.ne.s32.totalorder %s91, %s107
    %p109 = scmp.eq.s32.totalorder %s15, 0
    %p110 = por %p108, %p109
    %p111 = scmp.le.s32.totalorder 1, %s9
    %p112 = scmp.lt.s32.totalorder %s9, 3
    %p113 = pnand %p111, %p112
    %p114 = pneg %p113
    // Predicated region
    $region9: #{damon_forward.6} parent=5 // pred_check
      _
    $region10: #{damon_forward.6} parent=5 // pred_check_branch
      %116 = sbr.rel (%p113) target = $region12
    $region11: #{damon_forward.6} parent=5 // pred_region
      %s117 = ssub.s32 %s9, 1
      // Predicated region
      $region13: #{damon_forward.6} parent=11 // pred_check
        %p118 = pneg %p56
      $region14: #{damon_forward.6} parent=11 // pred_check_branch
        %120 = sbr.rel (%p118) target = $region16
      $region15: #{damon_forward.6} parent=11 // pred_region
        _
      $region16: #{damon_forward.6} parent=11 // pred_fallthru
        _
      // Predicated region
      $region17: #{damon_forward.6} parent=11 // pred_check
        %p121 = pneg %p77
      $region18: #{damon_forward.6} parent=11 // pred_check_branch
        %123 = sbr.rel (%p121) target = $region20
      $region19: #{damon_forward.6} parent=11 // pred_region
        _
      $region20: #{damon_forward.6} parent=11 // pred_fallthru
        _
    $region12: #{damon_forward.6} parent=5 // pred_fallthru
      _
    %p124 = scmp.lt.s32.totalorder %s9, 2
    // Predicated region
    $region21: #{damon_forward.6} parent=5 // pred_check
      %p125 = pneg %p124
    $region22: #{damon_forward.6} parent=5 // pred_check_branch
      %127 = sbr.rel (%p125) target = $region24
    $region23: #{damon_forward.6} parent=5 // pred_region
      // Predicated region
      $region25: #{damon_forward.6} parent=23 // pred_check
        %p128 = pneg %p29
      $region26: #{damon_forward.6} parent=23 // pred_check_branch
        %130 = sbr.rel (%p128) target = $region28
      $region27: #{damon_forward.6} parent=23 // pred_region
        %p131 = scmp.lt.s32.totalorder %s9, 1
        %s132 = scalar_select %p131, %s9, 1
        %s133 = smul.addr %s132, 24
        %s134 = smul.addr %s133, 4
        %s135 = scalar_lea.vmem %s0, %s134
      $region28: #{damon_forward.6} parent=23 // pred_fallthru
        _
    $region24: #{damon_forward.6} parent=5 // pred_fallthru
      _
    %p136 = scmp.le.s32.totalorder 1, %s9
    %p137 = scmp.lt.s32.totalorder %s9, 3
    %p138 = pnand %p136, %p137
    %p139 = pneg %p138
    // Predicated region
    $region29: #{damon_forward.6} parent=5 // pred_check
      _
    $region30: #{damon_forward.6} parent=5 // pred_check_branch
      %141 = sbr.rel (%p138) target = $region32
    $region31: #{damon_forward.6} parent=5 // pred_region
      %s142 = ssub.s32 %s9, 1
      %p143 = scmp.lt.s32.totalorder %s14, 1
      %s144 = scalar_select %p143, %s14, 1
      %s145 = smul.addr %s144, 24
      %s146 = smul.addr %s145, 4
      %s147 = scalar_lea.vmem %s0, %s146
      %p148 = pneg %p35
      %p149 = pneg %p32
      %p150 = pneg %p56
      %p151 = pneg %p53
      %p152 = pneg %p77
      %p153 = pneg %p74
      %p154 = pneg %p103
      %p155 = pneg %p100
      %p156 = scmp.lt.s32.totalorder %s14, 1
      %s157 = scalar_select %p156, %s14, 1
      %s158 = smul.addr %s157, 4
      %s159 = smul.addr %s158, 2
      %s160 = scalar_lea.vmem %s3, %s159
      %p161 = scmp.lt.s32.totalorder %s14, 1
      %s162 = scalar_select %p161, %s14, 1
      %s163 = smul.addr %s162, 24
      %s164 = smul.addr %s163, 4
      %s165 = scalar_lea.vmem %s0, %s164
      %p166 = scmp.lt.s32.totalorder %s14, 1
      %s167 = scalar_select %p166, %s14, 1
      %s168 = smul.addr %s167, 4
      %s169 = smul.addr %s168, 2
      %s170 = scalar_lea.vmem %s3, %s169
      %v172 = vld [vmem:[%s165] sm:$0xff]
      %v173 = vld [vmem:[%s165 + $0x8] sm:$0xff]
      %v174 = vld [vmem:[%s165 + $0x10] sm:$0xff]
      %v175 = vld [vmem:[%s165 + $0x18] sm:$0xff]
      %v176 = vld [vmem:[%s165 + $0x20] sm:$0xff]
      %v177 = vld [vmem:[%s165 + $0x28] sm:$0xff]
      %v178 = vld [vmem:[%s165 + $0x30] sm:$0xff]
      %v179 = vld [vmem:[%s165 + $0x38] sm:$0xff]
      %v180 = vld [vmem:[%s1] sm:$0xf]
      %v181 = vld [vmem:[%s1 + $0x4] sm:$0xf]
      %v182 = vld [vmem:[%s1 + $0x8] sm:$0xf]
      %v183 = vld [vmem:[%s1 + $0xc] sm:$0xf]
      %v184 = vld [vmem:[%s1 + $0x10] sm:$0xf]
      %v185 = vld [vmem:[%s1 + $0x14] sm:$0xf]
      %v186 = vld [vmem:[%s1 + $0x18] sm:$0xf]
      %v187 = vld [vmem:[%s1 + $0x1c] sm:$0xf]
      %v188 = vld [vmem:[%s1 + $0x20] sm:$0xf]
      %v189 = vld [vmem:[%s1 + $0x24] sm:$0xf]
      %v190 = vld [vmem:[%s1 + $0x28] sm:$0xf]
      %v191 = vld [vmem:[%s1 + $0x2c] sm:$0xf]
      %v192 = vld [vmem:[%s1 + $0x30] sm:$0xf]
      %v193 = vld [vmem:[%s1 + $0x34] sm:$0xf]
      %v194 = vld [vmem:[%s1 + $0x38] sm:$0xf]
      %v195 = vld [vmem:[%s1 + $0x3c] sm:$0xf]
      %v196 = vld [vmem:[%s1 + $0x40] sm:$0xf]
      %v197 = vld [vmem:[%s1 + $0x44] sm:$0xf]
      %v198 = vld [vmem:[%s1 + $0x48] sm:$0xf]
      %v199 = vld [vmem:[%s1 + $0x4c] sm:$0xf]
      %s200 = scalar_lea.vmem %s165, 8
      %v201 = vld [vmem:[%s200] sm:$0xff]
      %v202 = vld [vmem:[%s200 + $0x8] sm:$0xff]
      %v203 = vld [vmem:[%s200 + $0x10] sm:$0xff]
      %v204 = vld [vmem:[%s200 + $0x18] sm:$0xff]
      %v205 = vld [vmem:[%s200 + $0x20] sm:$0xff]
      %v206 = vld [vmem:[%s200 + $0x28] sm:$0xff]
      %v207 = vld [vmem:[%s200 + $0x30] sm:$0xff]
      %v208 = vld [vmem:[%s200 + $0x38] sm:$0xff]
      %s209 = scalar_lea.vmem %s1, 80
      %v210 = vld [vmem:[%s209] sm:$0xf]
      %v211 = vld [vmem:[%s209 + $0x4] sm:$0xf]
      %v212 = vld [vmem:[%s209 + $0x8] sm:$0xf]
      %v213 = vld [vmem:[%s209 + $0xc] sm:$0xf]
      %v214 = vld [vmem:[%s209 + $0x10] sm:$0xf]
      %v215 = vld [vmem:[%s209 + $0x14] sm:$0xf]
      %v216 = vld [vmem:[%s209 + $0x18] sm:$0xf]
      %v217 = vld [vmem:[%s209 + $0x1c] sm:$0xf]
      %v218 = vld [vmem:[%s209 + $0x20] sm:$0xf]
      %v219 = vld [vmem:[%s209 + $0x24] sm:$0xf]
      %v220 = vld [vmem:[%s209 + $0x28] sm:$0xf]
      %v221 = vld [vmem:[%s209 + $0x2c] sm:$0xf]
      %v222 = vld [vmem:[%s209 + $0x30] sm:$0xf]
      %v223 = vld [vmem:[%s209 + $0x34] sm:$0xf]
      %v224 = vld [vmem:[%s209 + $0x38] sm:$0xf]
      %v225 = vld [vmem:[%s209 + $0x3c] sm:$0xf]
      %v226 = vld [vmem:[%s209 + $0x40] sm:$0xf]
      %v227 = vld [vmem:[%s209 + $0x44] sm:$0xf]
      %v228 = vld [vmem:[%s209 + $0x48] sm:$0xf]
      %v229 = vld [vmem:[%s209 + $0x4c] sm:$0xf]
      %v238 = vunpack.c.l.b16 %v201
      %v239 = vunpack.c.h.b16 %v201
      %v240 = vunpack.c.l.b16 %v202
      %v241 = vunpack.c.h.b16 %v202
      %v242 = vunpack.c.l.b16 %v203
      %v243 = vunpack.c.h.b16 %v203
      %v244 = vunpack.c.l.b16 %v204
      %v245 = vunpack.c.h.b16 %v204
      %v246 = vunpack.c.l.b16 %v205
      %v247 = vunpack.c.h.b16 %v205
      %v248 = vunpack.c.l.b16 %v206
      %v249 = vunpack.c.h.b16 %v206
      %v250 = vunpack.c.l.b16 %v207
      %v251 = vunpack.c.h.b16 %v207
      %v252 = vunpack.c.l.b16 %v208
      %v253 = vunpack.c.h.b16 %v208
      %v254 = vpack.c.b16 %v240, %v238
      %v255 = vpack.c.b16 %v241, %v239
      %v256 = vpack.c.b16 %v244, %v242
      %v257 = vpack.c.b16 %v245, %v243
      %v258 = vpack.c.b16 %v248, %v246
      %v259 = vpack.c.b16 %v249, %v247
      %v260 = vpack.c.b16 %v252, %v250
      %v261 = vpack.c.b16 %v253, %v251
      %v286 = vunpack.c.l.b16 %v210
      %v287 = vunpack.c.l.b16 %v211
      %v288 = vunpack.c.l.b16 %v212
      %v289 = vunpack.c.l.b16 %v213
      %v290 = vunpack.c.l.b16 %v214
      %v291 = vunpack.c.l.b16 %v215
      %v292 = vunpack.c.l.b16 %v216
      %v293 = vunpack.c.l.b16 %v217
      %v294 = vunpack.c.l.b16 %v218
      %v295 = vunpack.c.l.b16 %v219
      %v296 = vunpack.c.l.b16 %v220
      %v297 = vunpack.c.l.b16 %v221
      %v298 = vunpack.c.l.b16 %v222
      %v299 = vunpack.c.l.b16 %v223
      %v300 = vunpack.c.l.b16 %v224
      %v301 = vunpack.c.l.b16 %v225
      %v302 = vunpack.c.l.b16 %v226
      %v303 = vunpack.c.l.b16 %v227
      %v304 = vunpack.c.l.b16 %v228
      %v305 = vunpack.c.l.b16 %v229
      %v306 = vpack.c.b16 %v287, %v286
      %v307 = vpack.c.b16 %v289, %v288
      %v308 = vpack.c.b16 %v291, %v290
      %v309 = vpack.c.b16 %v293, %v292
      %v310 = vpack.c.b16 %v295, %v294
      %v311 = vpack.c.b16 %v297, %v296
      %v312 = vpack.c.b16 %v299, %v298
      %v313 = vpack.c.b16 %v301, %v300
      %v314 = vpack.c.b16 %v303, %v302
      %v315 = vpack.c.b16 %v305, %v304
      %vm326 = vcmask 261120
      %v328 = vsel %vm326, %v255, 0
      %v331 = vsel %vm326, %v257, 0
      %v334 = vsel %vm326, %v259, 0
      %v337 = vsel %vm326, %v261, 0
      %339 = vmatpush.bf16.msra.mxu0 %v313
      %340 = vmatpush.bf16.msra.mxu0 %v312
      %341 = vmatpush.bf16.msra.mxu0 %v311
      %342 = vmatpush.bf16.msra.mxu0 %v310
      %343 = vmatpush.bf16.msra.mxu0 %v309
      %344 = vmatpush.bf16.msra.mxu0 %v308
      %345 = vmatpush.bf16.msra.mxu0 %v307
      %346 = vmatpush.bf16.msra.mxu0 %v306
      %347 = vmatmul.bf16.gmra.mxu0 %v254
      %v348 = vpop.f32.mrf.mxu0
      %v349 = vadd.f32 0.0, %v348
      %v350 = vpop.f32.mrf.mxu0
      %v351 = vadd.f32 0.0, %v350
      %352 = vmatmul.bf16.gmra.mxu0 %v256
      %v353 = vpop.f32.mrf.mxu0
      %v354 = vadd.f32 0.0, %v353
      %v355 = vpop.f32.mrf.mxu0
      %v356 = vadd.f32 0.0, %v355
      %357 = vmatmul.bf16.gmra.mxu0 %v258
      %v358 = vpop.f32.mrf.mxu0
      %v359 = vadd.f32 0.0, %v358
      %v360 = vpop.f32.mrf.mxu0
      %v361 = vadd.f32 0.0, %v360
      %362 = vmatmul.bf16.gmra.mxu0 %v260
      %v363 = vpop.f32.mrf.mxu0
      %v364 = vadd.f32 0.0, %v363
      %v365 = vpop.f32.mrf.mxu0
      %v366 = vadd.f32 0.0, %v365
      %367 = vdwg.mxu0
      %368 = vmatpush.bf16.msra.mxu0 0
      %369 = vmatpush.bf16.msra.mxu0 0
      %370 = vmatpush.bf16.msra.mxu0 0
      %371 = vmatpush.bf16.msra.mxu0 0
      %372 = vmatpush.bf16.msra.mxu0 0
      %373 = vmatpush.bf16.msra.mxu0 0
      %374 = vmatpush.bf16.msra.mxu0 %v315
      %375 = vmatpush.bf16.msra.mxu0 %v314
      %376 = vmatmul.bf16.gmra.mxu0 %v328
      %v377 = vpop.f32.mrf.mxu0
      %v378 = vadd.f32 %v349, %v377
      %v379 = vpop.f32.mrf.mxu0
      %v380 = vadd.f32 %v351, %v379
      %381 = vmatmul.bf16.gmra.mxu0 %v331
      %v382 = vpop.f32.mrf.mxu0
      %v383 = vadd.f32 %v354, %v382
      %v384 = vpop.f32.mrf.mxu0
      %v385 = vadd.f32 %v356, %v384
      %386 = vmatmul.bf16.gmra.mxu0 %v334
      %v387 = vpop.f32.mrf.mxu0
      %v388 = vadd.f32 %v359, %v387
      %v389 = vpop.f32.mrf.mxu0
      %v390 = vadd.f32 %v361, %v389
      %391 = vmatmul.bf16.gmra.mxu0 %v337
      %v392 = vpop.f32.mrf.mxu0
      %v393 = vadd.f32 %v364, %v392
      %v394 = vpop.f32.mrf.mxu0
      %v395 = vadd.f32 %v366, %v394
      %396 = vdwg.mxu0
      %v405 = vunpack.c.l.b16 %v172
      %v406 = vunpack.c.h.b16 %v172
      %v407 = vunpack.c.l.b16 %v173
      %v408 = vunpack.c.h.b16 %v173
      %v409 = vunpack.c.l.b16 %v174
      %v410 = vunpack.c.h.b16 %v174
      %v411 = vunpack.c.l.b16 %v175
      %v412 = vunpack.c.h.b16 %v175
      %v413 = vunpack.c.l.b16 %v176
      %v414 = vunpack.c.h.b16 %v176
      %v415 = vunpack.c.l.b16 %v177
      %v416 = vunpack.c.h.b16 %v177
      %v417 = vunpack.c.l.b16 %v178
      %v418 = vunpack.c.h.b16 %v178
      %v419 = vunpack.c.l.b16 %v179
      %v420 = vunpack.c.h.b16 %v179
      %v421 = vpack.c.b16 %v407, %v405
      %v422 = vpack.c.b16 %v408, %v406
      %v423 = vpack.c.b16 %v411, %v409
      %v424 = vpack.c.b16 %v412, %v410
      %v425 = vpack.c.b16 %v415, %v413
      %v426 = vpack.c.b16 %v416, %v414
      %v427 = vpack.c.b16 %v419, %v417
      %v428 = vpack.c.b16 %v420, %v418
      %v453 = vunpack.c.l.b16 %v180
      %v454 = vunpack.c.l.b16 %v181
      %v455 = vunpack.c.l.b16 %v182
      %v456 = vunpack.c.l.b16 %v183
      %v457 = vunpack.c.l.b16 %v184
      %v458 = vunpack.c.l.b16 %v185
      %v459 = vunpack.c.l.b16 %v186
      %v460 = vunpack.c.l.b16 %v187
      %v461 = vunpack.c.l.b16 %v188
      %v462 = vunpack.c.l.b16 %v189
      %v463 = vunpack.c.l.b16 %v190
      %v464 = vunpack.c.l.b16 %v191
      %v465 = vunpack.c.l.b16 %v192
      %v466 = vunpack.c.l.b16 %v193
      %v467 = vunpack.c.l.b16 %v194
      %v468 = vunpack.c.l.b16 %v195
      %v469 = vunpack.c.l.b16 %v196
      %v470 = vunpack.c.l.b16 %v197
      %v471 = vunpack.c.l.b16 %v198
      %v472 = vunpack.c.l.b16 %v199
      %v473 = vpack.c.b16 %v454, %v453
      %v474 = vpack.c.b16 %v456, %v455
      %v475 = vpack.c.b16 %v458, %v457
      %v476 = vpack.c.b16 %v460, %v459
      %v477 = vpack.c.b16 %v462, %v461
      %v478 = vpack.c.b16 %v464, %v463
      %v479 = vpack.c.b16 %v466, %v465
      %v480 = vpack.c.b16 %v468, %v467
      %v481 = vpack.c.b16 %v470, %v469
      %v482 = vpack.c.b16 %v472, %v471
      %v494 = vsel %vm326, %v422, 0
      %v497 = vsel %vm326, %v424, 0
      %v500 = vsel %vm326, %v426, 0
      %v503 = vsel %vm326, %v428, 0
      %505 = vmatpush.bf16.msra.mxu0 %v480
      %506 = vmatpush.bf16.msra.mxu0 %v479
      %507 = vmatpush.bf16.msra.mxu0 %v478
      %508 = vmatpush.bf16.msra.mxu0 %v477
      %509 = vmatpush.bf16.msra.mxu0 %v476
      %510 = vmatpush.bf16.msra.mxu0 %v475
      %511 = vmatpush.bf16.msra.mxu0 %v474
      %512 = vmatpush.bf16.msra.mxu0 %v473
      %513 = vmatmul.bf16.gmra.mxu0 %v421
      %v514 = vpop.f32.mrf.mxu0
      %v515 = vadd.f32 %v378, %v514
      %v516 = vpop.f32.mrf.mxu0
      %v517 = vadd.f32 %v380, %v516
      %518 = vmatmul.bf16.gmra.mxu0 %v423
      %v519 = vpop.f32.mrf.mxu0
      %v520 = vadd.f32 %v383, %v519
      %v521 = vpop.f32.mrf.mxu0
      %v522 = vadd.f32 %v385, %v521
      %523 = vmatmul.bf16.gmra.mxu0 %v425
      %v524 = vpop.f32.mrf.mxu0
      %v525 = vadd.f32 %v388, %v524
      %v526 = vpop.f32.mrf.mxu0
      %v527 = vadd.f32 %v390, %v526
      %528 = vmatmul.bf16.gmra.mxu0 %v427
      %v529 = vpop.f32.mrf.mxu0
      %v530 = vadd.f32 %v393, %v529
      %v531 = vpop.f32.mrf.mxu0
      %v532 = vadd.f32 %v395, %v531
      %533 = vdwg.mxu0
      %534 = vmatpush.bf16.msra.mxu0 0
      %535 = vmatpush.bf16.msra.mxu0 0
      %536 = vmatpush.bf16.msra.mxu0 0
      %537 = vmatpush.bf16.msra.mxu0 0
      %538 = vmatpush.bf16.msra.mxu0 0
      %539 = vmatpush.bf16.msra.mxu0 0
      %540 = vmatpush.bf16.msra.mxu0 %v482
      %541 = vmatpush.bf16.msra.mxu0 %v481
      %542 = vmatmul.bf16.gmra.mxu0 %v494
      %v543 = vpop.f32.mrf.mxu0
      %v544 = vadd.f32 %v515, %v543
      %v545 = vpop.f32.mrf.mxu0
      %v546 = vadd.f32 %v517, %v545
      %547 = vmatmul.bf16.gmra.mxu0 %v497
      %v548 = vpop.f32.mrf.mxu0
      %v549 = vadd.f32 %v520, %v548
      %v550 = vpop.f32.mrf.mxu0
      %v551 = vadd.f32 %v522, %v550
      %552 = vmatmul.bf16.gmra.mxu0 %v500
      %v553 = vpop.f32.mrf.mxu0
      %v554 = vadd.f32 %v525, %v553
      %v555 = vpop.f32.mrf.mxu0
      %v556 = vadd.f32 %v527, %v555
      %557 = vmatmul.bf16.gmra.mxu0 %v503
      %v558 = vpop.f32.mrf.mxu0
      %v559 = vadd.f32 %v530, %v558
      %v560 = vpop.f32.mrf.mxu0
      %v561 = vadd.f32 %v532, %v560
      %562 = vdwg.mxu0
      %s563 = scalar_lea.vmem %s165, 16
      %v564 = vld [vmem:[%s563] sm:$0xff]
      %v565 = vld [vmem:[%s563 + $0x8] sm:$0xff]
      %v566 = vld [vmem:[%s563 + $0x10] sm:$0xff]
      %v567 = vld [vmem:[%s563 + $0x18] sm:$0xff]
      %v568 = vld [vmem:[%s563 + $0x20] sm:$0xff]
      %v569 = vld [vmem:[%s563 + $0x28] sm:$0xff]
      %v570 = vld [vmem:[%s563 + $0x30] sm:$0xff]
      %v571 = vld [vmem:[%s563 + $0x38] sm:$0xff]
      %s572 = scalar_lea.vmem %s1, 160
      %v573 = vld [vmem:[%s572] sm:$0xf]
      %v574 = vld [vmem:[%s572 + $0x4] sm:$0xf]
      %v575 = vld [vmem:[%s572 + $0x8] sm:$0xf]
      %v576 = vld [vmem:[%s572 + $0xc] sm:$0xf]
      %v577 = vld [vmem:[%s572 + $0x10] sm:$0xf]
      %v578 = vld [vmem:[%s572 + $0x14] sm:$0xf]
      %v579 = vld [vmem:[%s572 + $0x18] sm:$0xf]
      %v580 = vld [vmem:[%s572 + $0x1c] sm:$0xf]
      %v581 = vld [vmem:[%s572 + $0x20] sm:$0xf]
      %v582 = vld [vmem:[%s572 + $0x24] sm:$0xf]
      %v583 = vld [vmem:[%s572 + $0x28] sm:$0xf]
      %v584 = vld [vmem:[%s572 + $0x2c] sm:$0xf]
      %v585 = vld [vmem:[%s572 + $0x30] sm:$0xf]
      %v586 = vld [vmem:[%s572 + $0x34] sm:$0xf]
      %v587 = vld [vmem:[%s572 + $0x38] sm:$0xf]
      %v588 = vld [vmem:[%s572 + $0x3c] sm:$0xf]
      %v589 = vld [vmem:[%s572 + $0x40] sm:$0xf]
      %v590 = vld [vmem:[%s572 + $0x44] sm:$0xf]
      %v591 = vld [vmem:[%s572 + $0x48] sm:$0xf]
      %v592 = vld [vmem:[%s572 + $0x4c] sm:$0xf]
      %v601 = vunpack.c.l.b16 %v564
      %v602 = vunpack.c.h.b16 %v564
      %v603 = vunpack.c.l.b16 %v565
      %v604 = vunpack.c.h.b16 %v565
      %v605 = vunpack.c.l.b16 %v566
      %v606 = vunpack.c.h.b16 %v566
      %v607 = vunpack.c.l.b16 %v567
      %v608 = vunpack.c.h.b16 %v567
      %v609 = vunpack.c.l.b16 %v568
      %v610 = vunpack.c.h.b16 %v568
      %v611 = vunpack.c.l.b16 %v569
      %v612 = vunpack.c.h.b16 %v569
      %v613 = vunpack.c.l.b16 %v570
      %v614 = vunpack.c.h.b16 %v570
      %v615 = vunpack.c.l.b16 %v571
      %v616 = vunpack.c.h.b16 %v571
      %v617 = vpack.c.b16 %v603, %v601
      %v618 = vpack.c.b16 %v604, %v602
      %v619 = vpack.c.b16 %v607, %v605
      %v620 = vpack.c.b16 %v608, %v606
      %v621 = vpack.c.b16 %v611, %v609
      %v622 = vpack.c.b16 %v612, %v610
      %v623 = vpack.c.b16 %v615, %v613
      %v624 = vpack.c.b16 %v616, %v614
      %v649 = vunpack.c.l.b16 %v573
      %v650 = vunpack.c.l.b16 %v574
      %v651 = vunpack.c.l.b16 %v575
      %v652 = vunpack.c.l.b16 %v576
      %v653 = vunpack.c.l.b16 %v577
      %v654 = vunpack.c.l.b16 %v578
      %v655 = vunpack.c.l.b16 %v579
      %v656 = vunpack.c.l.b16 %v580
      %v657 = vunpack.c.l.b16 %v581
      %v658 = vunpack.c.l.b16 %v582
      %v659 = vunpack.c.l.b16 %v583
      %v660 = vunpack.c.l.b16 %v584
      %v661 = vunpack.c.l.b16 %v585
      %v662 = vunpack.c.l.b16 %v586
      %v663 = vunpack.c.l.b16 %v587
      %v664 = vunpack.c.l.b16 %v588
      %v665 = vunpack.c.l.b16 %v589
      %v666 = vunpack.c.l.b16 %v590
      %v667 = vunpack.c.l.b16 %v591
      %v668 = vunpack.c.l.b16 %v592
      %v669 = vpack.c.b16 %v650, %v649
      %v670 = vpack.c.b16 %v652, %v651
      %v671 = vpack.c.b16 %v654, %v653
      %v672 = vpack.c.b16 %v656, %v655
      %v673 = vpack.c.b16 %v658, %v657
      %v674 = vpack.c.b16 %v660, %v659
      %v675 = vpack.c.b16 %v662, %v661
      %v676 = vpack.c.b16 %v664, %v663
      %v677 = vpack.c.b16 %v666, %v665
      %v678 = vpack.c.b16 %v668, %v667
      %v690 = vsel %vm326, %v618, 0
      %v693 = vsel %vm326, %v620, 0
      %v696 = vsel %vm326, %v622, 0
      %v699 = vsel %vm326, %v624, 0
      %701 = vmatpush.bf16.msra.mxu0 %v676
      %702 = vmatpush.bf16.msra.mxu0 %v675
      %703 = vmatpush.bf16.msra.mxu0 %v674
      %704 = vmatpush.bf16.msra.mxu0 %v673
      %705 = vmatpush.bf16.msra.mxu0 %v672
      %706 = vmatpush.bf16.msra.mxu0 %v671
      %707 = vmatpush.bf16.msra.mxu0 %v670
      %708 = vmatpush.bf16.msra.mxu0 %v669
      %709 = vmatmul.bf16.gmra.mxu0 %v617
      %v710 = vpop.f32.mrf.mxu0
      %v711 = vadd.f32 0.0, %v710
      %v712 = vpop.f32.mrf.mxu0
      %v713 = vadd.f32 0.0, %v712
      %714 = vmatmul.bf16.gmra.mxu0 %v619
      %v715 = vpop.f32.mrf.mxu0
      %v716 = vadd.f32 0.0, %v715
      %v717 = vpop.f32.mrf.mxu0
      %v718 = vadd.f32 0.0, %v717
      %719 = vmatmul.bf16.gmra.mxu0 %v621
      %v720 = vpop.f32.mrf.mxu0
      %v721 = vadd.f32 0.0, %v720
      %v722 = vpop.f32.mrf.mxu0
      %v723 = vadd.f32 0.0, %v722
      %724 = vmatmul.bf16.gmra.mxu0 %v623
      %v725 = vpop.f32.mrf.mxu0
      %v726 = vadd.f32 0.0, %v725
      %v727 = vpop.f32.mrf.mxu0
      %v728 = vadd.f32 0.0, %v727
      %729 = vdwg.mxu0
      %730 = vmatpush.bf16.msra.mxu0 0
      %731 = vmatpush.bf16.msra.mxu0 0
      %732 = vmatpush.bf16.msra.mxu0 0
      %733 = vmatpush.bf16.msra.mxu0 0
      %734 = vmatpush.bf16.msra.mxu0 0
      %735 = vmatpush.bf16.msra.mxu0 0
      %736 = vmatpush.bf16.msra.mxu0 %v678
      %737 = vmatpush.bf16.msra.mxu0 %v677
      %738 = vmatmul.bf16.gmra.mxu0 %v690
      %v739 = vpop.f32.mrf.mxu0
      %v740 = vadd.f32 %v711, %v739
      %v741 = vpop.f32.mrf.mxu0
      %v742 = vadd.f32 %v713, %v741
      %743 = vmatmul.bf16.gmra.mxu0 %v693
      %v744 = vpop.f32.mrf.mxu0
      %v745 = vadd.f32 %v716, %v744
      %v746 = vpop.f32.mrf.mxu0
      %v747 = vadd.f32 %v718, %v746
      %748 = vmatmul.bf16.gmra.mxu0 %v696
      %v749 = vpop.f32.mrf.mxu0
      %v750 = vadd.f32 %v721, %v749
      %v751 = vpop.f32.mrf.mxu0
      %v752 = vadd.f32 %v723, %v751
      %753 = vmatmul.bf16.gmra.mxu0 %v699
      %v754 = vpop.f32.mrf.mxu0
      %v755 = vadd.f32 %v726, %v754
      %v756 = vpop.f32.mrf.mxu0
      %v757 = vadd.f32 %v728, %v756
      %758 = vdwg.mxu0
      %v759 = vadd.f32 %v544, %v740
      %v760 = vadd.f32 %v546, %v742
      %v761 = vadd.f32 %v549, %v745
      %v762 = vadd.f32 %v551, %v747
      %v763 = vadd.f32 %v554, %v750
      %v764 = vadd.f32 %v556, %v752
      %v765 = vadd.f32 %v559, %v755
      %v766 = vadd.f32 %v561, %v757
      %s767 = scalar_lea.vmem %s165, 24
      %v768 = vld [vmem:[%s767] sm:$0xff]
      %v769 = vld [vmem:[%s767 + $0x8] sm:$0xff]
      %v770 = vld [vmem:[%s767 + $0x10] sm:$0xff]
      %v771 = vld [vmem:[%s767 + $0x18] sm:$0xff]
      %v772 = vld [vmem:[%s767 + $0x20] sm:$0xff]
      %v773 = vld [vmem:[%s767 + $0x28] sm:$0xff]
      %v774 = vld [vmem:[%s767 + $0x30] sm:$0xff]
      %v775 = vld [vmem:[%s767 + $0x38] sm:$0xff]
      %s776 = scalar_lea.vmem %s1, 240
      %v777 = vld [vmem:[%s776] sm:$0xf]
      %v778 = vld [vmem:[%s776 + $0x4] sm:$0xf]
      %v779 = vld [vmem:[%s776 + $0x8] sm:$0xf]
      %v780 = vld [vmem:[%s776 + $0xc] sm:$0xf]
      %v781 = vld [vmem:[%s776 + $0x10] sm:$0xf]
      %v782 = vld [vmem:[%s776 + $0x14] sm:$0xf]
      %v783 = vld [vmem:[%s776 + $0x18] sm:$0xf]
      %v784 = vld [vmem:[%s776 + $0x1c] sm:$0xf]
      %v785 = vld [vmem:[%s776 + $0x20] sm:$0xf]
      %v786 = vld [vmem:[%s776 + $0x24] sm:$0xf]
      %v787 = vld [vmem:[%s776 + $0x28] sm:$0xf]
      %v788 = vld [vmem:[%s776 + $0x2c] sm:$0xf]
      %v789 = vld [vmem:[%s776 + $0x30] sm:$0xf]
      %v790 = vld [vmem:[%s776 + $0x34] sm:$0xf]
      %v791 = vld [vmem:[%s776 + $0x38] sm:$0xf]
      %v792 = vld [vmem:[%s776 + $0x3c] sm:$0xf]
      %v793 = vld [vmem:[%s776 + $0x40] sm:$0xf]
      %v794 = vld [vmem:[%s776 + $0x44] sm:$0xf]
      %v795 = vld [vmem:[%s776 + $0x48] sm:$0xf]
      %v796 = vld [vmem:[%s776 + $0x4c] sm:$0xf]
      %v805 = vunpack.c.l.b16 %v768
      %v806 = vunpack.c.h.b16 %v768
      %v807 = vunpack.c.l.b16 %v769
      %v808 = vunpack.c.h.b16 %v769
      %v809 = vunpack.c.l.b16 %v770
      %v810 = vunpack.c.h.b16 %v770
      %v811 = vunpack.c.l.b16 %v771
      %v812 = vunpack.c.h.b16 %v771
      %v813 = vunpack.c.l.b16 %v772
      %v814 = vunpack.c.h.b16 %v772
      %v815 = vunpack.c.l.b16 %v773
      %v816 = vunpack.c.h.b16 %v773
      %v817 = vunpack.c.l.b16 %v774
      %v818 = vunpack.c.h.b16 %v774
      %v819 = vunpack.c.l.b16 %v775
      %v820 = vunpack.c.h.b16 %v775
      %v821 = vpack.c.b16 %v807, %v805
      %v822 = vpack.c.b16 %v808, %v806
      %v823 = vpack.c.b16 %v811, %v809
      %v824 = vpack.c.b16 %v812, %v810
      %v825 = vpack.c.b16 %v815, %v813
      %v826 = vpack.c.b16 %v816, %v814
      %v827 = vpack.c.b16 %v819, %v817
      %v828 = vpack.c.b16 %v820, %v818
      %v853 = vunpack.c.l.b16 %v777
      %v854 = vunpack.c.l.b16 %v778
      %v855 = vunpack.c.l.b16 %v779
      %v856 = vunpack.c.l.b16 %v780
      %v857 = vunpack.c.l.b16 %v781
      %v858 = vunpack.c.l.b16 %v782
      %v859 = vunpack.c.l.b16 %v783
      %v860 = vunpack.c.l.b16 %v784
      %v861 = vunpack.c.l.b16 %v785
      %v862 = vunpack.c.l.b16 %v786
      %v863 = vunpack.c.l.b16 %v787
      %v864 = vunpack.c.l.b16 %v788
      %v865 = vunpack.c.l.b16 %v789
      %v866 = vunpack.c.l.b16 %v790
      %v867 = vunpack.c.l.b16 %v791
      %v868 = vunpack.c.l.b16 %v792
      %v869 = vunpack.c.l.b16 %v793
      %v870 = vunpack.c.l.b16 %v794
      %v871 = vunpack.c.l.b16 %v795
      %v872 = vunpack.c.l.b16 %v796
      %v873 = vpack.c.b16 %v854, %v853
      %v874 = vpack.c.b16 %v856, %v855
      %v875 = vpack.c.b16 %v858, %v857
      %v876 = vpack.c.b16 %v860, %v859
      %v877 = vpack.c.b16 %v862, %v861
      %v878 = vpack.c.b16 %v864, %v863
      %v879 = vpack.c.b16 %v866, %v865
      %v880 = vpack.c.b16 %v868, %v867
      %v881 = vpack.c.b16 %v870, %v869
      %v882 = vpack.c.b16 %v872, %v871
      %v894 = vsel %vm326, %v822, 0
      %v897 = vsel %vm326, %v824, 0
      %v900 = vsel %vm326, %v826, 0
      %v903 = vsel %vm326, %v828, 0
      %905 = vmatpush.bf16.msra.mxu0 %v880
      %906 = vmatpush.bf16.msra.mxu0 %v879
      %907 = vmatpush.bf16.msra.mxu0 %v878
      %908 = vmatpush.bf16.msra.mxu0 %v877
      %909 = vmatpush.bf16.msra.mxu0 %v876
      %910 = vmatpush.bf16.msra.mxu0 %v875
      %911 = vmatpush.bf16.msra.mxu0 %v874
      %912 = vmatpush.bf16.msra.mxu0 %v873
      %913 = vmatmul.bf16.gmra.mxu0 %v821
      %v914 = vpop.f32.mrf.mxu0
      %v915 = vadd.f32 0.0, %v914
      %v916 = vpop.f32.mrf.mxu0
      %v917 = vadd.f32 0.0, %v916
      %918 = vmatmul.bf16.gmra.mxu0 %v823
      %v919 = vpop.f32.mrf.mxu0
      %v920 = vadd.f32 0.0, %v919
      %v921 = vpop.f32.mrf.mxu0
      %v922 = vadd.f32 0.0, %v921
      %923 = vmatmul.bf16.gmra.mxu0 %v825
      %v924 = vpop.f32.mrf.mxu0
      %v925 = vadd.f32 0.0, %v924
      %v926 = vpop.f32.mrf.mxu0
      %v927 = vadd.f32 0.0, %v926
      %928 = vmatmul.bf16.gmra.mxu0 %v827
      %v929 = vpop.f32.mrf.mxu0
      %v930 = vadd.f32 0.0, %v929
      %v931 = vpop.f32.mrf.mxu0
      %v932 = vadd.f32 0.0, %v931
      %933 = vdwg.mxu0
      %934 = vmatpush.bf16.msra.mxu0 0
      %935 = vmatpush.bf16.msra.mxu0 0
      %936 = vmatpush.bf16.msra.mxu0 0
      %937 = vmatpush.bf16.msra.mxu0 0
      %938 = vmatpush.bf16.msra.mxu0 0
      %939 = vmatpush.bf16.msra.mxu0 0
      %940 = vmatpush.bf16.msra.mxu0 %v882
      %941 = vmatpush.bf16.msra.mxu0 %v881
      %942 = vmatmul.bf16.gmra.mxu0 %v894
      %v943 = vpop.f32.mrf.mxu0
      %v944 = vadd.f32 %v915, %v943
      %v945 = vpop.f32.mrf.mxu0
      %v946 = vadd.f32 %v917, %v945
      %947 = vmatmul.bf16.gmra.mxu0 %v897
      %v948 = vpop.f32.mrf.mxu0
      %v949 = vadd.f32 %v920, %v948
      %v950 = vpop.f32.mrf.mxu0
      %v951 = vadd.f32 %v922, %v950
      %952 = vmatmul.bf16.gmra.mxu0 %v900
      %v953 = vpop.f32.mrf.mxu0
      %v954 = vadd.f32 %v925, %v953
      %v955 = vpop.f32.mrf.mxu0
      %v956 = vadd.f32 %v927, %v955
      %957 = vmatmul.bf16.gmra.mxu0 %v903
      %v958 = vpop.f32.mrf.mxu0
      %v959 = vadd.f32 %v930, %v958
      %v960 = vpop.f32.mrf.mxu0
      %v961 = vadd.f32 %v932, %v960
      %962 = vdwg.mxu0
      %v963 = vadd.f32 %v759, %v944
      %v964 = vadd.f32 %v760, %v946
      %v965 = vadd.f32 %v761, %v949
      %v966 = vadd.f32 %v762, %v951
      %v967 = vadd.f32 %v763, %v954
      %v968 = vadd.f32 %v764, %v956
      %v969 = vadd.f32 %v765, %v959
      %v970 = vadd.f32 %v766, %v961
      %s971 = scalar_lea.vmem %s165, 32
      %v972 = vld [vmem:[%s971] sm:$0xff]
      %v973 = vld [vmem:[%s971 + $0x8] sm:$0xff]
      %v974 = vld [vmem:[%s971 + $0x10] sm:$0xff]
      %v975 = vld [vmem:[%s971 + $0x18] sm:$0xff]
      %v976 = vld [vmem:[%s971 + $0x20] sm:$0xff]
      %v977 = vld [vmem:[%s971 + $0x28] sm:$0xff]
      %v978 = vld [vmem:[%s971 + $0x30] sm:$0xff]
      %v979 = vld [vmem:[%s971 + $0x38] sm:$0xff]
      %s980 = scalar_lea.vmem %s1, 320
      %v981 = vld [vmem:[%s980] sm:$0xf]
      %v982 = vld [vmem:[%s980 + $0x4] sm:$0xf]
      %v983 = vld [vmem:[%s980 + $0x8] sm:$0xf]
      %v984 = vld [vmem:[%s980 + $0xc] sm:$0xf]
      %v985 = vld [vmem:[%s980 + $0x10] sm:$0xf]
      %v986 = vld [vmem:[%s980 + $0x14] sm:$0xf]
      %v987 = vld [vmem:[%s980 + $0x18] sm:$0xf]
      %v988 = vld [vmem:[%s980 + $0x1c] sm:$0xf]
      %v989 = vld [vmem:[%s980 + $0x20] sm:$0xf]
      %v990 = vld [vmem:[%s980 + $0x24] sm:$0xf]
      %v991 = vld [vmem:[%s980 + $0x28] sm:$0xf]
      %v992 = vld [vmem:[%s980 + $0x2c] sm:$0xf]
      %v993 = vld [vmem:[%s980 + $0x30] sm:$0xf]
      %v994 = vld [vmem:[%s980 + $0x34] sm:$0xf]
      %v995 = vld [vmem:[%s980 + $0x38] sm:$0xf]
      %v996 = vld [vmem:[%s980 + $0x3c] sm:$0xf]
      %v997 = vld [vmem:[%s980 + $0x40] sm:$0xf]
      %v998 = vld [vmem:[%s980 + $0x44] sm:$0xf]
      %v999 = vld [vmem:[%s980 + $0x48] sm:$0xf]
      %v1000 = vld [vmem:[%s980 + $0x4c] sm:$0xf]
      %v1009 = vunpack.c.l.b16 %v972
      %v1010 = vunpack.c.h.b16 %v972
      %v1011 = vunpack.c.l.b16 %v973
      %v1012 = vunpack.c.h.b16 %v973
      %v1013 = vunpack.c.l.b16 %v974
      %v1014 = vunpack.c.h.b16 %v974
      %v1015 = vunpack.c.l.b16 %v975
      %v1016 = vunpack.c.h.b16 %v975
      %v1017 = vunpack.c.l.b16 %v976
      %v1018 = vunpack.c.h.b16 %v976
      %v1019 = vunpack.c.l.b16 %v977
      %v1020 = vunpack.c.h.b16 %v977
      %v1021 = vunpack.c.l.b16 %v978
      %v1022 = vunpack.c.h.b16 %v978
      %v1023 = vunpack.c.l.b16 %v979
      %v1024 = vunpack.c.h.b16 %v979
      %v1025 = vpack.c.b16 %v1011, %v1009
      %v1026 = vpack.c.b16 %v1012, %v1010
      %v1027 = vpack.c.b16 %v1015, %v1013
      %v1028 = vpack.c.b16 %v1016, %v1014
      %v1029 = vpack.c.b16 %v1019, %v1017
      %v1030 = vpack.c.b16 %v1020, %v1018
      %v1031 = vpack.c.b16 %v1023, %v1021
      %v1032 = vpack.c.b16 %v1024, %v1022
      %v1057 = vunpack.c.l.b16 %v981
      %v1058 = vunpack.c.l.b16 %v982
      %v1059 = vunpack.c.l.b16 %v983
      %v1060 = vunpack.c.l.b16 %v984
      %v1061 = vunpack.c.l.b16 %v985
      %v1062 = vunpack.c.l.b16 %v986
      %v1063 = vunpack.c.l.b16 %v987
      %v1064 = vunpack.c.l.b16 %v988
      %v1065 = vunpack.c.l.b16 %v989
      %v1066 = vunpack.c.l.b16 %v990
      %v1067 = vunpack.c.l.b16 %v991
      %v1068 = vunpack.c.l.b16 %v992
      %v1069 = vunpack.c.l.b16 %v993
      %v1070 = vunpack.c.l.b16 %v994
      %v1071 = vunpack.c.l.b16 %v995
      %v1072 = vunpack.c.l.b16 %v996
      %v1073 = vunpack.c.l.b16 %v997
      %v1074 = vunpack.c.l.b16 %v998
      %v1075 = vunpack.c.l.b16 %v999
      %v1076 = vunpack.c.l.b16 %v1000
      %v1077 = vpack.c.b16 %v1058, %v1057
      %v1078 = vpack.c.b16 %v1060, %v1059
      %v1079 = vpack.c.b16 %v1062, %v1061
      %v1080 = vpack.c.b16 %v1064, %v1063
      %v1081 = vpack.c.b16 %v1066, %v1065
      %v1082 = vpack.c.b16 %v1068, %v1067
      %v1083 = vpack.c.b16 %v1070, %v1069
      %v1084 = vpack.c.b16 %v1072, %v1071
      %v1085 = vpack.c.b16 %v1074, %v1073
      %v1086 = vpack.c.b16 %v1076, %v1075
      %v1098 = vsel %vm326, %v1026, 0
      %v1101 = vsel %vm326, %v1028, 0
      %v1104 = vsel %vm326, %v1030, 0
      %v1107 = vsel %vm326, %v1032, 0
      %1109 = vmatpush.bf16.msra.mxu0 %v1084
      %1110 = vmatpush.bf16.msra.mxu0 %v1083
      %1111 = vmatpush.bf16.msra.mxu0 %v1082
      %1112 = vmatpush.bf16.msra.mxu0 %v1081
      %1113 = vmatpush.bf16.msra.mxu0 %v1080
      %1114 = vmatpush.bf16.msra.mxu0 %v1079
      %1115 = vmatpush.bf16.msra.mxu0 %v1078
      %1116 = vmatpush.bf16.msra.mxu0 %v1077
      %1117 = vmatmul.bf16.gmra.mxu0 %v1025
      %v1118 = vpop.f32.mrf.mxu0
      %v1119 = vadd.f32 0.0, %v1118
      %v1120 = vpop.f32.mrf.mxu0
      %v1121 = vadd.f32 0.0, %v1120
      %1122 = vmatmul.bf16.gmra.mxu0 %v1027
      %v1123 = vpop.f32.mrf.mxu0
      %v1124 = vadd.f32 0.0, %v1123
      %v1125 = vpop.f32.mrf.mxu0
      %v1126 = vadd.f32 0.0, %v1125
      %1127 = vmatmul.bf16.gmra.mxu0 %v1029
      %v1128 = vpop.f32.mrf.mxu0
      %v1129 = vadd.f32 0.0, %v1128
      %v1130 = vpop.f32.mrf.mxu0
      %v1131 = vadd.f32 0.0, %v1130
      %1132 = vmatmul.bf16.gmra.mxu0 %v1031
      %v1133 = vpop.f32.mrf.mxu0
      %v1134 = vadd.f32 0.0, %v1133
      %v1135 = vpop.f32.mrf.mxu0
      %v1136 = vadd.f32 0.0, %v1135
      %1137 = vdwg.mxu0
      %1138 = vmatpush.bf16.msra.mxu0 0
      %1139 = vmatpush.bf16.msra.mxu0 0
      %1140 = vmatpush.bf16.msra.mxu0 0
      %1141 = vmatpush.bf16.msra.mxu0 0
      %1142 = vmatpush.bf16.msra.mxu0 0
      %1143 = vmatpush.bf16.msra.mxu0 0
      %1144 = vmatpush.bf16.msra.mxu0 %v1086
      %1145 = vmatpush.bf16.msra.mxu0 %v1085
      %1146 = vmatmul.bf16.gmra.mxu0 %v1098
      %v1147 = vpop.f32.mrf.mxu0
      %v1148 = vadd.f32 %v1119, %v1147
      %v1149 = vpop.f32.mrf.mxu0
      %v1150 = vadd.f32 %v1121, %v1149
      %1151 = vmatmul.bf16.gmra.mxu0 %v1101
      %v1152 = vpop.f32.mrf.mxu0
      %v1153 = vadd.f32 %v1124, %v1152
      %v1154 = vpop.f32.mrf.mxu0
      %v1155 = vadd.f32 %v1126, %v1154
      %1156 = vmatmul.bf16.gmra.mxu0 %v1104
      %v1157 = vpop.f32.mrf.mxu0
      %v1158 = vadd.f32 %v1129, %v1157
      %v1159 = vpop.f32.mrf.mxu0
      %v1160 = vadd.f32 %v1131, %v1159
      %1161 = vmatmul.bf16.gmra.mxu0 %v1107
      %v1162 = vpop.f32.mrf.mxu0
      %v1163 = vadd.f32 %v1134, %v1162
      %v1164 = vpop.f32.mrf.mxu0
      %v1165 = vadd.f32 %v1136, %v1164
      %1166 = vdwg.mxu0
      %v1167 = vadd.f32 %v963, %v1148
      %v1168 = vadd.f32 %v964, %v1150
      %v1169 = vadd.f32 %v965, %v1153
      %v1170 = vadd.f32 %v966, %v1155
      %v1171 = vadd.f32 %v967, %v1158
      %v1172 = vadd.f32 %v968, %v1160
      %v1173 = vadd.f32 %v969, %v1163
      %v1174 = vadd.f32 %v970, %v1165
      %v1175 = vld [vmem:[%s2] sm:$0x1]
      %v1177 = vperm.slane %v1175, 0
      %v1179 = vadd.f32 %v1167, %v1177
      %v1180 = vadd.f32 %v1168, %v1177
      %v1181 = vadd.f32 %v1169, %v1177
      %v1182 = vadd.f32 %v1170, %v1177
      %v1183 = vadd.f32 %v1171, %v1177
      %v1184 = vadd.f32 %v1172, %v1177
      %v1185 = vadd.f32 %v1173, %v1177
      %v1186 = vadd.f32 %v1174, %v1177
      %vm1187 = vcmask 523264
      %1188 = vst.msk [vmem:[#allocation2] sm:$0xff] %vm1187, %v1179
      %1189 = vst.msk [vmem:[#allocation2 + $0x8] sm:$0xff] %vm1187, %v1180
      %1190 = vst.msk [vmem:[#allocation2 + $0x10] sm:$0xff] %vm1187, %v1181
      %1191 = vst.msk [vmem:[#allocation2 + $0x18] sm:$0xff] %vm1187, %v1182
      %1192 = vst.msk [vmem:[#allocation2 + $0x20] sm:$0xff] %vm1187, %v1183
      %1193 = vst.msk [vmem:[#allocation2 + $0x28] sm:$0xff] %vm1187, %v1184
      %1194 = vst.msk [vmem:[#allocation2 + $0x30] sm:$0xff] %vm1187, %v1185
      %1195 = vst.msk [vmem:[#allocation2 + $0x38] sm:$0xff] %vm1187, %v1186
      %v1196 = vld [vmem:[#allocation2] ss:$2 sm:$0xf]
      %s1197 = scalar_lea.vmem [#allocation2], 8
      %v1198 = vld [vmem:[%s1197] ss:$2 sm:$0xf]
      %s1199 = scalar_lea.vmem [#allocation2], 16
      %v1200 = vld [vmem:[%s1199] ss:$2 sm:$0xf]
      %s1201 = scalar_lea.vmem [#allocation2], 24
      %v1202 = vld [vmem:[%s1201] ss:$2 sm:$0xf]
      %s1203 = scalar_lea.vmem [#allocation2], 32
      %v1204 = vld [vmem:[%s1203] ss:$2 sm:$0xf]
      %s1205 = scalar_lea.vmem [#allocation2], 40
      %v1206 = vld [vmem:[%s1205] ss:$2 sm:$0xf]
      %s1207 = scalar_lea.vmem [#allocation2], 48
      %v1208 = vld [vmem:[%s1207] ss:$2 sm:$0xf]
      %s1209 = scalar_lea.vmem [#allocation2], 56
      %v1210 = vld [vmem:[%s1209] ss:$2 sm:$0xf]
      %s1211 = scalar_lea.vmem [#allocation2], 1
      %v1212 = vld [vmem:[%s1211] ss:$2 sm:$0xf]
      %s1213 = scalar_lea.vmem [#allocation2], 9
      %v1214 = vld [vmem:[%s1213] ss:$2 sm:$0xf]
      %s1215 = scalar_lea.vmem [#allocation2], 17
      %v1216 = vld [vmem:[%s1215] ss:$2 sm:$0xf]
      %s1217 = scalar_lea.vmem [#allocation2], 25
      %v1218 = vld [vmem:[%s1217] ss:$2 sm:$0xf]
      %s1219 = scalar_lea.vmem [#allocation2], 33
      %v1220 = vld [vmem:[%s1219] ss:$2 sm:$0xf]
      %s1221 = scalar_lea.vmem [#allocation2], 41
      %v1222 = vld [vmem:[%s1221] ss:$2 sm:$0xf]
      %s1223 = scalar_lea.vmem [#allocation2], 49
      %v1224 = vld [vmem:[%s1223] ss:$2 sm:$0xf]
      %s1225 = scalar_lea.vmem [#allocation2], 57
      %v1226 = vld [vmem:[%s1225] ss:$2 sm:$0xf]
      %v1227 = vmax.f32 %v1196, %v1212
      %v1228 = vmax.f32 %v1198, %v1214
      %v1229 = vmax.f32 %v1200, %v1216
      %v1230 = vmax.f32 %v1202, %v1218
      %v1231 = vmax.f32 %v1204, %v1220
      %v1232 = vmax.f32 %v1206, %v1222
      %v1233 = vmax.f32 %v1208, %v1224
      %v1234 = vmax.f32 %v1210, %v1226
      %vm1235 = vcmask 519168
      %v1236 = vsel %vm1235, %v1227, -inf
      %v1237 = vsel %vm1235, %v1228, -inf
      %v1238 = vmax.f32 %v1236, %v1237
      %v1239 = vsel %vm1235, %v1229, -inf
      %v1240 = vsel %vm1235, %v1230, -inf
      %v1241 = vmax.f32 %v1239, %v1240
      %v1242 = vsel %vm1235, %v1231, -inf
      %v1243 = vsel %vm1235, %v1232, -inf
      %v1244 = vmax.f32 %v1242, %v1243
      %v1245 = vsel %vm1235, %v1233, -inf
      %v1246 = vsel %vm1235, %v1234, -inf
      %v1247 = vmax.f32 %v1245, %v1246
      %v1248 = vpack.c.bf16 %v1238, %v1238
      %v1249 = vpack.c.bf16 %v1241, %v1241
      %v1250 = vpack.c.bf16 %v1244, %v1244
      %v1251 = vpack.c.bf16 %v1247, %v1247
      %vm1252 = vcmask 517120
      %1253 = vst.msk [vmem:[%s170] sm:$0x3] %vm1252, %v1248
      %1254 = vst.msk [vmem:[%s170 + $0x2] sm:$0x3] %vm1252, %v1249
      %1255 = vst.msk [vmem:[%s170 + $0x4] sm:$0x3] %vm1252, %v1250
      %1256 = vst.msk [vmem:[%s170 + $0x6] sm:$0x3] %vm1252, %v1251
      %p1257 = scmp.lt.s32.totalorder %s14, 1
      %s1258 = scalar_select %p1257, %s14, 1
      %s1259 = smul.addr %s1258, 4
      %s1260 = smul.addr %s1259, 2
      %s1261 = scalar_lea.vmem %s3, %s1260
      // Predicated region
      $region33: #{damon_forward.6} parent=31 // pred_check
        %p1262 = pneg %p100
      $region34: #{damon_forward.6} parent=31 // pred_check_branch
        %1264 = sbr.rel (%p1262) target = $region36
      $region35: #{damon_forward.6} parent=31 // pred_region
        _
      $region36: #{damon_forward.6} parent=31 // pred_fallthru
        _
    $region32: #{damon_forward.6} parent=5 // pred_fallthru
      _
    %p1265 = scmp.le.s32.totalorder 2, %s9
    // Predicated region
    $region37: #{damon_forward.6} parent=5 // pred_check
      %p1266 = pneg %p1265
    $region38: #{damon_forward.6} parent=5 // pred_check_branch
      %1268 = sbr.rel (%p1266) target = $region40
    $region39: #{damon_forward.6} parent=5 // pred_region
      %s1269 = ssub.s32 %s9, 2
      // Predicated region
      $region41: #{damon_forward.6} parent=39 // pred_check
        %p1270 = pneg %p106
      $region42: #{damon_forward.6} parent=39 // pred_check_branch
        %1272 = sbr.rel (%p1270) target = $region44
      $region43: #{damon_forward.6} parent=39 // pred_region
        %p1273 = scmp.lt.s32.totalorder %s15, 1
        %s1274 = scalar_select %p1273, %s15, 1
        %s1275 = smul.addr %s1274, 4
        %s1276 = smul.addr %s1275, 2
        %s1277 = scalar_lea.vmem %s3, %s1276
      $region44: #{damon_forward.6} parent=39 // pred_fallthru
        _
    $region40: #{damon_forward.6} parent=5 // pred_fallthru
      _
  $region6: #{damon_forward.6} parent=0 // loop_footer
    %s13 = sadd.s32 1, %s9
  $region7: #{damon_forward.6} parent=0 // loop_footer_branch
    %8 = sbr.rel target = $region3
  $region8: #{damon_forward.6} parent=0 // loop_exit
    _

// kernel: damon_forward.7
$region0: #{damon_forward.7}
  #allocation0 [shape = 'u32[]', space=smem, size = 0x4, offset = 0x4, fixed_abs, tag = 'smem constant byte address 0x4 - core index']
  #allocation1 [shape = 'u32[72,128]{1,0:T(1,128)}', space=vmem, size = 0x9000, scoped, tag = 'internal scratch']
  %s0 = inlined_call_operand.vmem [shape: bf16[2,1024], index: 0, kind: input, shape index: {}]
  %s1 = inlined_call_operand.vmem [shape: bf16[1024,64], index: 1, kind: input, shape index: {}]
  %s2 = inlined_call_operand.vmem [shape: f32[1,64], index: 2, kind: input, shape index: {}]
  %s3 = inlined_call_operand.vmem [shape: bf16[64,10], index: 3, kind: input, shape index: {}]
  %s4 = inlined_call_operand.vmem [shape: f32[1,10], index: 4, kind: input, shape index: {}]
  %s5 = inlined_call_operand.hbm [shape: f32[2,10], index: 5, kind: output, shape index: {}]
  %s6 = sld [smem:[#allocation0]]
  $region30: #{damon_forward.7} parent=0
    _
  %s8 = ssub.s32 1, %s6
  %s9 = scalar_select 0, %s8, %s6
  $region1: #{damon_forward.7} parent=0
    #allocation2 [shape = 'u8[1024]{0}', space=vmem, size = 0x400, scoped, tag = 'output window, operand 0, single buffered']
    #allocation3 [shape = 's32[1]{0}', space=sflag, size = 0x4, scoped, tag = 'scoped memory for damon_forward.7']
    %10 = vsyncpa [#allocation3], 0
    // Predicated region
    $region2: #{damon_forward.7} parent=1 // pred_check
      _
    $region3: #{damon_forward.7} parent=1 // pred_check_branch
      %12 = sbr.rel (0) target = $region5
    $region4: #{damon_forward.7} parent=1 // pred_region
      _
    $region5: #{damon_forward.7} parent=1 // pred_fallthru
      _
    // Predicated region
    $region6: #{damon_forward.7} parent=1 // pred_check
      _
    $region7: #{damon_forward.7} parent=1 // pred_check_branch
      %14 = sbr.rel (0) target = $region9
    $region8: #{damon_forward.7} parent=1 // pred_region
      _
    $region9: #{damon_forward.7} parent=1 // pred_fallthru
      _
    // Predicated region
    $region10: #{damon_forward.7} parent=1 // pred_check
      _
    $region11: #{damon_forward.7} parent=1 // pred_check_branch
      %16 = sbr.rel (0) target = $region13
    $region12: #{damon_forward.7} parent=1 // pred_region
      _
    $region13: #{damon_forward.7} parent=1 // pred_fallthru
      _
    // Predicated region
    $region14: #{damon_forward.7} parent=1 // pred_check
      _
    $region15: #{damon_forward.7} parent=1 // pred_check_branch
      %18 = sbr.rel (0) target = $region17
    $region16: #{damon_forward.7} parent=1 // pred_region
      _
    $region17: #{damon_forward.7} parent=1 // pred_fallthru
      _
    // Predicated region
    $region18: #{damon_forward.7} parent=1 // pred_check
      _
    $region19: #{damon_forward.7} parent=1 // pred_check_branch
      %20 = sbr.rel (0) target = $region21
    $region20: #{damon_forward.7} parent=1 // pred_region
      _
    $region21: #{damon_forward.7} parent=1 // pred_fallthru
      _
    %v22 = vld [vmem:[%s0] sm:$0xff]
    %v23 = vld [vmem:[%s1] sm:$0xf]
    %v24 = vld [vmem:[%s1 + $0x4] sm:$0xf]
    %v25 = vld [vmem:[%s1 + $0x8] sm:$0xf]
    %v26 = vld [vmem:[%s1 + $0xc] sm:$0xf]
    %v27 = vld [vmem:[%s1 + $0x10] sm:$0xf]
    %v28 = vld [vmem:[%s1 + $0x14] sm:$0xf]
    %v29 = vld [vmem:[%s1 + $0x18] sm:$0xf]
    %v30 = vld [vmem:[%s1 + $0x1c] sm:$0xf]
    %v31 = vld [vmem:[%s1 + $0x20] sm:$0xf]
    %v32 = vld [vmem:[%s1 + $0x24] sm:$0xf]
    %v33 = vld [vmem:[%s1 + $0x28] sm:$0xf]
    %v34 = vld [vmem:[%s1 + $0x2c] sm:$0xf]
    %v35 = vld [vmem:[%s1 + $0x30] sm:$0xf]
    %v36 = vld [vmem:[%s1 + $0x34] sm:$0xf]
    %v37 = vld [vmem:[%s1 + $0x38] sm:$0xf]
    %v38 = vld [vmem:[%s1 + $0x3c] sm:$0xf]
    %v39 = vld [vmem:[%s1 + $0x40] sm:$0xf]
    %v40 = vld [vmem:[%s1 + $0x44] sm:$0xf]
    %v41 = vld [vmem:[%s1 + $0x48] sm:$0xf]
    %v42 = vld [vmem:[%s1 + $0x4c] sm:$0xf]
    %v43 = vld [vmem:[%s1 + $0x50] sm:$0xf]
    %v44 = vld [vmem:[%s1 + $0x54] sm:$0xf]
    %v45 = vld [vmem:[%s1 + $0x58] sm:$0xf]
    %v46 = vld [vmem:[%s1 + $0x5c] sm:$0xf]
    %v47 = vld [vmem:[%s1 + $0x60] sm:$0xf]
    %v48 = vld [vmem:[%s1 + $0x64] sm:$0xf]
    %v49 = vld [vmem:[%s1 + $0x68] sm:$0xf]
    %v50 = vld [vmem:[%s1 + $0x6c] sm:$0xf]
    %v51 = vld [vmem:[%s1 + $0x70] sm:$0xf]
    %v52 = vld [vmem:[%s1 + $0x74] sm:$0xf]
    %v53 = vld [vmem:[%s1 + $0x78] sm:$0xf]
    %v54 = vld [vmem:[%s1 + $0x7c] sm:$0xf]
    %v55 = vld [vmem:[%s1 + $0x80] sm:$0xf]
    %v56 = vld [vmem:[%s1 + $0x84] sm:$0xf]
    %v57 = vld [vmem:[%s1 + $0x88] sm:$0xf]
    %v58 = vld [vmem:[%s1 + $0x8c] sm:$0xf]
    %v59 = vld [vmem:[%s1 + $0x90] sm:$0xf]
    %v60 = vld [vmem:[%s1 + $0x94] sm:$0xf]
    %v61 = vld [vmem:[%s1 + $0x98] sm:$0xf]
    %v62 = vld [vmem:[%s1 + $0x9c] sm:$0xf]
    %v63 = vld [vmem:[%s1 + $0xa0] sm:$0xf]
    %v64 = vld [vmem:[%s1 + $0xa4] sm:$0xf]
    %v65 = vld [vmem:[%s1 + $0xa8] sm:$0xf]
    %v66 = vld [vmem:[%s1 + $0xac] sm:$0xf]
    %v67 = vld [vmem:[%s1 + $0xb0] sm:$0xf]
    %v68 = vld [vmem:[%s1 + $0xb4] sm:$0xf]
    %v69 = vld [vmem:[%s1 + $0xb8] sm:$0xf]
    %v70 = vld [vmem:[%s1 + $0xbc] sm:$0xf]
    %v71 = vld [vmem:[%s1 + $0xc0] sm:$0xf]
    %v72 = vld [vmem:[%s1 + $0xc4] sm:$0xf]
    %v73 = vld [vmem:[%s1 + $0xc8] sm:$0xf]
    %v74 = vld [vmem:[%s1 + $0xcc] sm:$0xf]
    %v75 = vld [vmem:[%s1 + $0xd0] sm:$0xf]
    %v76 = vld [vmem:[%s1 + $0xd4] sm:$0xf]
    %v77 = vld [vmem:[%s1 + $0xd8] sm:$0xf]
    %v78 = vld [vmem:[%s1 + $0xdc] sm:$0xf]
    %v79 = vld [vmem:[%s1 + $0xe0] sm:$0xf]
    %v80 = vld [vmem:[%s1 + $0xe4] sm:$0xf]
    %v81 = vld [vmem:[%s1 + $0xe8] sm:$0xf]
    %v82 = vld [vmem:[%s1 + $0xec] sm:$0xf]
    %v83 = vld [vmem:[%s1 + $0xf0] sm:$0xf]
    %v84 = vld [vmem:[%s1 + $0xf4] sm:$0xf]
    %v85 = vld [vmem:[%s1 + $0xf8] sm:$0xf]
    %v86 = vld [vmem:[%s1 + $0xfc] sm:$0xf]
    %v87 = vld [vmem:[%s1 + $0x100] sm:$0xf]
    %v88 = vld [vmem:[%s1 + $0x104] sm:$0xf]
    %v89 = vld [vmem:[%s1 + $0x108] sm:$0xf]
    %v90 = vld [vmem:[%s1 + $0x10c] sm:$0xf]
    %v91 = vld [vmem:[%s1 + $0x110] sm:$0xf]
    %v92 = vld [vmem:[%s1 + $0x114] sm:$0xf]
    %v93 = vld [vmem:[%s1 + $0x118] sm:$0xf]
    %v94 = vld [vmem:[%s1 + $0x11c] sm:$0xf]
    %v95 = vld [vmem:[%s1 + $0x120] sm:$0xf]
    %v96 = vld [vmem:[%s1 + $0x124] sm:$0xf]
    %v97 = vld [vmem:[%s1 + $0x128] sm:$0xf]
    %v98 = vld [vmem:[%s1 + $0x12c] sm:$0xf]
    %v99 = vld [vmem:[%s1 + $0x130] sm:$0xf]
    %v100 = vld [vmem:[%s1 + $0x134] sm:$0xf]
    %v101 = vld [vmem:[%s1 + $0x138] sm:$0xf]
    %v102 = vld [vmem:[%s1 + $0x13c] sm:$0xf]
    %v103 = vld [vmem:[%s1 + $0x140] sm:$0xf]
    %v104 = vld [vmem:[%s1 + $0x144] sm:$0xf]
    %v105 = vld [vmem:[%s1 + $0x148] sm:$0xf]
    %v106 = vld [vmem:[%s1 + $0x14c] sm:$0xf]
    %v107 = vld [vmem:[%s1 + $0x150] sm:$0xf]
    %v108 = vld [vmem:[%s1 + $0x154] sm:$0xf]
    %v109 = vld [vmem:[%s1 + $0x158] sm:$0xf]
    %v110 = vld [vmem:[%s1 + $0x15c] sm:$0xf]
    %v111 = vld [vmem:[%s1 + $0x160] sm:$0xf]
    %v112 = vld [vmem:[%s1 + $0x164] sm:$0xf]
    %v113 = vld [vmem:[%s1 + $0x168] sm:$0xf]
    %v114 = vld [vmem:[%s1 + $0x16c] sm:$0xf]
    %v115 = vld [vmem:[%s1 + $0x170] sm:$0xf]
    %v116 = vld [vmem:[%s1 + $0x174] sm:$0xf]
    %v117 = vld [vmem:[%s1 + $0x178] sm:$0xf]
    %v118 = vld [vmem:[%s1 + $0x17c] sm:$0xf]
    %v119 = vld [vmem:[%s1 + $0x180] sm:$0xf]
    %v120 = vld [vmem:[%s1 + $0x184] sm:$0xf]
    %v121 = vld [vmem:[%s1 + $0x188] sm:$0xf]
    %v122 = vld [vmem:[%s1 + $0x18c] sm:$0xf]
    %v123 = vld [vmem:[%s1 + $0x190] sm:$0xf]
    %v124 = vld [vmem:[%s1 + $0x194] sm:$0xf]
    %v125 = vld [vmem:[%s1 + $0x198] sm:$0xf]
    %v126 = vld [vmem:[%s1 + $0x19c] sm:$0xf]
    %v127 = vld [vmem:[%s1 + $0x1a0] sm:$0xf]
    %v128 = vld [vmem:[%s1 + $0x1a4] sm:$0xf]
    %v129 = vld [vmem:[%s1 + $0x1a8] sm:$0xf]
    %v130 = vld [vmem:[%s1 + $0x1ac] sm:$0xf]
    %v131 = vld [vmem:[%s1 + $0x1b0] sm:$0xf]
    %v132 = vld [vmem:[%s1 + $0x1b4] sm:$0xf]
    %v133 = vld [vmem:[%s1 + $0x1b8] sm:$0xf]
    %v134 = vld [vmem:[%s1 + $0x1bc] sm:$0xf]
    %v135 = vld [vmem:[%s1 + $0x1c0] sm:$0xf]
    %v136 = vld [vmem:[%s1 + $0x1c4] sm:$0xf]
    %v137 = vld [vmem:[%s1 + $0x1c8] sm:$0xf]
    %v138 = vld [vmem:[%s1 + $0x1cc] sm:$0xf]
    %v139 = vld [vmem:[%s1 + $0x1d0] sm:$0xf]
    %v140 = vld [vmem:[%s1 + $0x1d4] sm:$0xf]
    %v141 = vld [vmem:[%s1 + $0x1d8] sm:$0xf]
    %v142 = vld [vmem:[%s1 + $0x1dc] sm:$0xf]
    %v143 = vld [vmem:[%s1 + $0x1e0] sm:$0xf]
    %v144 = vld [vmem:[%s1 + $0x1e4] sm:$0xf]
    %v145 = vld [vmem:[%s1 + $0x1e8] sm:$0xf]
    %v146 = vld [vmem:[%s1 + $0x1ec] sm:$0xf]
    %v147 = vld [vmem:[%s1 + $0x1f0] sm:$0xf]
    %v148 = vld [vmem:[%s1 + $0x1f4] sm:$0xf]
    %v149 = vld [vmem:[%s1 + $0x1f8] sm:$0xf]
    %v150 = vld [vmem:[%s1 + $0x1fc] sm:$0xf]
    %v151 = vld [vmem:[%s2] sm:$0x1]
    %v153 = vperm.slane %v151, 0
    %156 = vst [vmem:[#allocation1] ss:$9 sm:$0xff] %v22
    %v157 = vld [vmem:[#allocation1] sm:$0xff]
    %v158 = vld [vmem:[#allocation1 + $0x9] sm:$0xff]
    %v159 = vld [vmem:[#allocation1 + $0x12] sm:$0xff]
    %v160 = vld [vmem:[#allocation1 + $0x1b] sm:$0xff]
    %v161 = vld [vmem:[#allocation1 + $0x24] sm:$0xff]
    %v162 = vld [vmem:[#allocation1 + $0x2d] sm:$0xff]
    %v163 = vld [vmem:[#allocation1 + $0x36] sm:$0xff]
    %v164 = vld [vmem:[#allocation1 + $0x3f] sm:$0xff]
    %v301 = vunpack.c.l.b16 %v23
    %v302 = vunpack.c.l.b16 %v24
    %v303 = vunpack.c.l.b16 %v25
    %v304 = vunpack.c.l.b16 %v26
    %v305 = vunpack.c.l.b16 %v27
    %v306 = vunpack.c.l.b16 %v28
    %v307 = vunpack.c.l.b16 %v29
    %v308 = vunpack.c.l.b16 %v30
    %v309 = vunpack.c.l.b16 %v31
    %v310 = vunpack.c.l.b16 %v32
    %v311 = vunpack.c.l.b16 %v33
    %v312 = vunpack.c.l.b16 %v34
    %v313 = vunpack.c.l.b16 %v35
    %v314 = vunpack.c.l.b16 %v36
    %v315 = vunpack.c.l.b16 %v37
    %v316 = vunpack.c.l.b16 %v38
    %v317 = vunpack.c.l.b16 %v39
    %v318 = vunpack.c.l.b16 %v40
    %v319 = vunpack.c.l.b16 %v41
    %v320 = vunpack.c.l.b16 %v42
    %v321 = vunpack.c.l.b16 %v43
    %v322 = vunpack.c.l.b16 %v44
    %v323 = vunpack.c.l.b16 %v45
    %v324 = vunpack.c.l.b16 %v46
    %v325 = vunpack.c.l.b16 %v47
    %v326 = vunpack.c.l.b16 %v48
    %v327 = vunpack.c.l.b16 %v49
    %v328 = vunpack.c.l.b16 %v50
    %v329 = vunpack.c.l.b16 %v51
    %v330 = vunpack.c.l.b16 %v52
    %v331 = vunpack.c.l.b16 %v53
    %v332 = vunpack.c.l.b16 %v54
    %v333 = vunpack.c.l.b16 %v55
    %v334 = vunpack.c.l.b16 %v56
    %v335 = vunpack.c.l.b16 %v57
    %v336 = vunpack.c.l.b16 %v58
    %v337 = vunpack.c.l.b16 %v59
    %v338 = vunpack.c.l.b16 %v60
    %v339 = vunpack.c.l.b16 %v61
    %v340 = vunpack.c.l.b16 %v62
    %v341 = vunpack.c.l.b16 %v63
    %v342 = vunpack.c.l.b16 %v64
    %v343 = vunpack.c.l.b16 %v65
    %v344 = vunpack.c.l.b16 %v66
    %v345 = vunpack.c.l.b16 %v67
    %v346 = vunpack.c.l.b16 %v68
    %v347 = vunpack.c.l.b16 %v69
    %v348 = vunpack.c.l.b16 %v70
    %v349 = vunpack.c.l.b16 %v71
    %v350 = vunpack.c.l.b16 %v72
    %v351 = vunpack.c.l.b16 %v73
    %v352 = vunpack.c.l.b16 %v74
    %v353 = vunpack.c.l.b16 %v75
    %v354 = vunpack.c.l.b16 %v76
    %v355 = vunpack.c.l.b16 %v77
    %v356 = vunpack.c.l.b16 %v78
    %v357 = vunpack.c.l.b16 %v79
    %v358 = vunpack.c.l.b16 %v80
    %v359 = vunpack.c.l.b16 %v81
    %v360 = vunpack.c.l.b16 %v82
    %v361 = vunpack.c.l.b16 %v83
    %v362 = vunpack.c.l.b16 %v84
    %v363 = vunpack.c.l.b16 %v85
    %v364 = vunpack.c.l.b16 %v86
    %v365 = vunpack.c.l.b16 %v87
    %v366 = vunpack.c.l.b16 %v88
    %v367 = vunpack.c.l.b16 %v89
    %v368 = vunpack.c.l.b16 %v90
    %v369 = vunpack.c.l.b16 %v91
    %v370 = vunpack.c.l.b16 %v92
    %v371 = vunpack.c.l.b16 %v93
    %v372 = vunpack.c.l.b16 %v94
    %v373 = vunpack.c.l.b16 %v95
    %v374 = vunpack.c.l.b16 %v96
    %v375 = vunpack.c.l.b16 %v97
    %v376 = vunpack.c.l.b16 %v98
    %v377 = vunpack.c.l.b16 %v99
    %v378 = vunpack.c.l.b16 %v100
    %v379 = vunpack.c.l.b16 %v101
    %v380 = vunpack.c.l.b16 %v102
    %v381 = vunpack.c.l.b16 %v103
    %v382 = vunpack.c.l.b16 %v104
    %v383 = vunpack.c.l.b16 %v105
    %v384 = vunpack.c.l.b16 %v106
    %v385 = vunpack.c.l.b16 %v107
    %v386 = vunpack.c.l.b16 %v108
    %v387 = vunpack.c.l.b16 %v109
    %v388 = vunpack.c.l.b16 %v110
    %v389 = vunpack.c.l.b16 %v111
    %v390 = vunpack.c.l.b16 %v112
    %v391 = vunpack.c.l.b16 %v113
    %v392 = vunpack.c.l.b16 %v114
    %v393 = vunpack.c.l.b16 %v115
    %v394 = vunpack.c.l.b16 %v116
    %v395 = vunpack.c.l.b16 %v117
    %v396 = vunpack.c.l.b16 %v118
    %v397 = vunpack.c.l.b16 %v119
    %v398 = vunpack.c.l.b16 %v120
    %v399 = vunpack.c.l.b16 %v121
    %v400 = vunpack.c.l.b16 %v122
    %v401 = vunpack.c.l.b16 %v123
    %v402 = vunpack.c.l.b16 %v124
    %v403 = vunpack.c.l.b16 %v125
    %v404 = vunpack.c.l.b16 %v126
    %v405 = vunpack.c.l.b16 %v127
    %v406 = vunpack.c.l.b16 %v128
    %v407 = vunpack.c.l.b16 %v129
    %v408 = vunpack.c.l.b16 %v130
    %v409 = vunpack.c.l.b16 %v131
    %v410 = vunpack.c.l.b16 %v132
    %v411 = vunpack.c.l.b16 %v133
    %v412 = vunpack.c.l.b16 %v134
    %v413 = vunpack.c.l.b16 %v135
    %v414 = vunpack.c.l.b16 %v136
    %v415 = vunpack.c.l.b16 %v137
    %v416 = vunpack.c.l.b16 %v138
    %v417 = vunpack.c.l.b16 %v139
    %v418 = vunpack.c.l.b16 %v140
    %v419 = vunpack.c.l.b16 %v141
    %v420 = vunpack.c.l.b16 %v142
    %v421 = vunpack.c.l.b16 %v143
    %v422 = vunpack.c.l.b16 %v144
    %v423 = vunpack.c.l.b16 %v145
    %v424 = vunpack.c.l.b16 %v146
    %v425 = vunpack.c.l.b16 %v147
    %v426 = vunpack.c.l.b16 %v148
    %v427 = vunpack.c.l.b16 %v149
    %v428 = vunpack.c.l.b16 %v150
    %v429 = vpack.c.b16 %v302, %v301
    %v430 = vpack.c.b16 %v304, %v303
    %v431 = vpack.c.b16 %v306, %v305
    %v432 = vpack.c.b16 %v308, %v307
    %v433 = vpack.c.b16 %v310, %v309
    %v434 = vpack.c.b16 %v312, %v311
    %v435 = vpack.c.b16 %v314, %v313
    %v436 = vpack.c.b16 %v316, %v315
    %v437 = vpack.c.b16 %v318, %v317
    %v438 = vpack.c.b16 %v320, %v319
    %v439 = vpack.c.b16 %v322, %v321
    %v440 = vpack.c.b16 %v324, %v323
    %v441 = vpack.c.b16 %v326, %v325
    %v442 = vpack.c.b16 %v328, %v327
    %v443 = vpack.c.b16 %v330, %v329
    %v444 = vpack.c.b16 %v332, %v331
    %v445 = vpack.c.b16 %v334, %v333
    %v446 = vpack.c.b16 %v336, %v335
    %v447 = vpack.c.b16 %v338, %v337
    %v448 = vpack.c.b16 %v340, %v339
    %v449 = vpack.c.b16 %v342, %v341
    %v450 = vpack.c.b16 %v344, %v343
    %v451 = vpack.c.b16 %v346, %v345
    %v452 = vpack.c.b16 %v348, %v347
    %v453 = vpack.c.b16 %v350, %v349
    %v454 = vpack.c.b16 %v352, %v351
    %v455 = vpack.c.b16 %v354, %v353
    %v456 = vpack.c.b16 %v356, %v355
    %v457 = vpack.c.b16 %v358, %v357
    %v458 = vpack.c.b16 %v360, %v359
    %v459 = vpack.c.b16 %v362, %v361
    %v460 = vpack.c.b16 %v364, %v363
    %v461 = vpack.c.b16 %v366, %v365
    %v462 = vpack.c.b16 %v368, %v367
    %v463 = vpack.c.b16 %v370, %v369
    %v464 = vpack.c.b16 %v372, %v371
    %v465 = vpack.c.b16 %v374, %v373
    %v466 = vpack.c.b16 %v376, %v375
    %v467 = vpack.c.b16 %v378, %v377
    %v468 = vpack.c.b16 %v380, %v379
    %v469 = vpack.c.b16 %v382, %v381
    %v470 = vpack.c.b16 %v384, %v383
    %v471 = vpack.c.b16 %v386, %v385
    %v472 = vpack.c.b16 %v388, %v387
    %v473 = vpack.c.b16 %v390, %v389
    %v474 = vpack.c.b16 %v392, %v391
    %v475 = vpack.c.b16 %v394, %v393
    %v476 = vpack.c.b16 %v396, %v395
    %v477 = vpack.c.b16 %v398, %v397
    %v478 = vpack.c.b16 %v400, %v399
    %v479 = vpack.c.b16 %v402, %v401
    %v480 = vpack.c.b16 %v404, %v403
    %v481 = vpack.c.b16 %v406, %v405
    %v482 = vpack.c.b16 %v408, %v407
    %v483 = vpack.c.b16 %v410, %v409
    %v484 = vpack.c.b16 %v412, %v411
    %v485 = vpack.c.b16 %v414, %v413
    %v486 = vpack.c.b16 %v416, %v415
    %v487 = vpack.c.b16 %v418, %v417
    %v488 = vpack.c.b16 %v420, %v419
    %v489 = vpack.c.b16 %v422, %v421
    %v490 = vpack.c.b16 %v424, %v423
    %v491 = vpack.c.b16 %v426, %v425
    %v492 = vpack.c.b16 %v428, %v427
    %557 = vmatpush.bf16.msra.mxu0 %v436
    %558 = vmatpush.bf16.msra.mxu0 %v435
    %559 = vmatpush.bf16.msra.mxu0 %v434
    %560 = vmatpush.bf16.msra.mxu0 %v433
    %561 = vmatpush.bf16.msra.mxu0 %v432
    %562 = vmatpush.bf16.msra.mxu0 %v431
    %563 = vmatpush.bf16.msra.mxu0 %v430
    %564 = vmatpush.bf16.msra.mxu0 %v429
    %565 = vmatmul.bf16.gmra.mxu0 %v157
    %v566 = vpop.f32.mrf.mxu0
    %v567 = vadd.f32 %v153, %v566
    %v568 = vpop.f32.mrf.mxu0
    %569 = vdwg.mxu0
    %570 = vmatpush.bf16.msra.mxu0 %v444
    %571 = vmatpush.bf16.msra.mxu0 %v443
    %572 = vmatpush.bf16.msra.mxu0 %v442
    %573 = vmatpush.bf16.msra.mxu0 %v441
    %574 = vmatpush.bf16.msra.mxu0 %v440
    %575 = vmatpush.bf16.msra.mxu0 %v439
    %576 = vmatpush.bf16.msra.mxu0 %v438
    %577 = vmatpush.bf16.msra.mxu0 %v437
    %578 = vmatmul.bf16.gmra.mxu0 %v158
    %v579 = vpop.f32.mrf.mxu0
    %v580 = vadd.f32 %v567, %v579
    %v581 = vpop.f32.mrf.mxu0
    %582 = vdwg.mxu0
    %583 = vmatpush.bf16.msra.mxu0 %v452
    %584 = vmatpush.bf16.msra.mxu0 %v451
    %585 = vmatpush.bf16.msra.mxu0 %v450
    %586 = vmatpush.bf16.msra.mxu0 %v449
    %587 = vmatpush.bf16.msra.mxu0 %v448
    %588 = vmatpush.bf16.msra.mxu0 %v447
    %589 = vmatpush.bf16.msra.mxu0 %v446
    %590 = vmatpush.bf16.msra.mxu0 %v445
    %591 = vmatmul.bf16.gmra.mxu0 %v159
    %v592 = vpop.f32.mrf.mxu0
    %v593 = vadd.f32 %v580, %v592
    %v594 = vpop.f32.mrf.mxu0
    %595 = vdwg.mxu0
    %596 = vmatpush.bf16.msra.mxu0 %v460
    %597 = vmatpush.bf16.msra.mxu0 %v459
    %598 = vmatpush.bf16.msra.mxu0 %v458
    %599 = vmatpush.bf16.msra.mxu0 %v457
    %600 = vmatpush.bf16.msra.mxu0 %v456
    %601 = vmatpush.bf16.msra.mxu0 %v455
    %602 = vmatpush.bf16.msra.mxu0 %v454
    %603 = vmatpush.bf16.msra.mxu0 %v453
    %604 = vmatmul.bf16.gmra.mxu0 %v160
    %v605 = vpop.f32.mrf.mxu0
    %v606 = vadd.f32 %v593, %v605
    %v607 = vpop.f32.mrf.mxu0
    %608 = vdwg.mxu0
    %609 = vmatpush.bf16.msra.mxu0 %v468
    %610 = vmatpush.bf16.msra.mxu0 %v467
    %611 = vmatpush.bf16.msra.mxu0 %v466
    %612 = vmatpush.bf16.msra.mxu0 %v465
    %613 = vmatpush.bf16.msra.mxu0 %v464
    %614 = vmatpush.bf16.msra.mxu0 %v463
    %615 = vmatpush.bf16.msra.mxu0 %v462
    %616 = vmatpush.bf16.msra.mxu0 %v461
    %617 = vmatmul.bf16.gmra.mxu0 %v161
    %v618 = vpop.f32.mrf.mxu0
    %v619 = vadd.f32 %v606, %v618
    %v620 = vpop.f32.mrf.mxu0
    %621 = vdwg.mxu0
    %622 = vmatpush.bf16.msra.mxu0 %v476
    %623 = vmatpush.bf16.msra.mxu0 %v475
    %624 = vmatpush.bf16.msra.mxu0 %v474
    %625 = vmatpush.bf16.msra.mxu0 %v473
    %626 = vmatpush.bf16.msra.mxu0 %v472
    %627 = vmatpush.bf16.msra.mxu0 %v471
    %628 = vmatpush.bf16.msra.mxu0 %v470
    %629 = vmatpush.bf16.msra.mxu0 %v469
    %630 = vmatmul.bf16.gmra.mxu0 %v162
    %v631 = vpop.f32.mrf.mxu0
    %v632 = vadd.f32 %v619, %v631
    %v633 = vpop.f32.mrf.mxu0
    %634 = vdwg.mxu0
    %635 = vmatpush.bf16.msra.mxu0 %v484
    %636 = vmatpush.bf16.msra.mxu0 %v483
    %637 = vmatpush.bf16.msra.mxu0 %v482
    %638 = vmatpush.bf16.msra.mxu0 %v481
    %639 = vmatpush.bf16.msra.mxu0 %v480
    %640 = vmatpush.bf16.msra.mxu0 %v479
    %641 = vmatpush.bf16.msra.mxu0 %v478
    %642 = vmatpush.bf16.msra.mxu0 %v477
    %643 = vmatmul.bf16.gmra.mxu0 %v163
    %v644 = vpop.f32.mrf.mxu0
    %v645 = vadd.f32 %v632, %v644
    %v646 = vpop.f32.mrf.mxu0
    %647 = vdwg.mxu0
    %648 = vmatpush.bf16.msra.mxu0 %v492
    %649 = vmatpush.bf16.msra.mxu0 %v491
    %650 = vmatpush.bf16.msra.mxu0 %v490
    %651 = vmatpush.bf16.msra.mxu0 %v489
    %652 = vmatpush.bf16.msra.mxu0 %v488
    %653 = vmatpush.bf16.msra.mxu0 %v487
    %654 = vmatpush.bf16.msra.mxu0 %v486
    %655 = vmatpush.bf16.msra.mxu0 %v485
    %656 = vmatmul.bf16.gmra.mxu0 %v164
    %v657 = vpop.f32.mrf.mxu0
    %v658 = vadd.f32 %v645, %v657
    %v659 = vpop.f32.mrf.mxu0
    %660 = vdwg.mxu0
    %v661 = vpack.c.bf16 %v658, %v658
    %v662 = vld [vmem:[%s3] sm:$0xf]
    %v663 = vld [vmem:[%s3 + $0x4] sm:$0xf]
    %v664 = vld [vmem:[%s3 + $0x8] sm:$0xf]
    %v665 = vld [vmem:[%s3 + $0xc] sm:$0xf]
    %v666 = vld [vmem:[%s3 + $0x10] sm:$0xf]
    %v667 = vld [vmem:[%s3 + $0x14] sm:$0xf]
    %v668 = vld [vmem:[%s3 + $0x18] sm:$0xf]
    %v669 = vld [vmem:[%s3 + $0x1c] sm:$0xf]
    %v670 = vld [vmem:[%s4] sm:$0x1]
    %v672 = vperm.slane %v670, 0
    %v682 = vunpack.c.l.b16 %v662
    %v683 = vunpack.c.l.b16 %v663
    %v684 = vunpack.c.l.b16 %v664
    %v685 = vunpack.c.l.b16 %v665
    %v686 = vunpack.c.l.b16 %v666
    %v687 = vunpack.c.l.b16 %v667
    %v688 = vunpack.c.l.b16 %v668
    %v689 = vunpack.c.l.b16 %v669
    %v690 = vpack.c.b16 %v683, %v682
    %v691 = vpack.c.b16 %v685, %v684
    %v692 = vpack.c.b16 %v687, %v686
    %v693 = vpack.c.b16 %v689, %v688
    %vm698 = vcmask 523264
    %v700 = vsel %vm698, %v661, 0
    %702 = vmatpush.bf16.msra.mxu0 0
    %703 = vmatpush.bf16.msra.mxu0 0
    %704 = vmatpush.bf16.msra.mxu0 0
    %705 = vmatpush.bf16.msra.mxu0 0
    %706 = vmatpush.bf16.msra.mxu0 %v693
    %707 = vmatpush.bf16.msra.mxu0 %v692
    %708 = vmatpush.bf16.msra.mxu0 %v691
    %709 = vmatpush.bf16.msra.mxu0 %v690
    %710 = vmatmul.bf16.gmra.mxu0 %v700
    %v711 = vpop.f32.mrf.mxu0
    %v712 = vadd.f32 %v672, %v711
    %v713 = vpop.f32.mrf.mxu0
    %714 = vdwg.mxu0
    %vm715 = vcmask 74752
    %716 = vst.msk [vmem:[#allocation2] sm:$0x3] %vm715, %v712
    // Predicated region
    $region22: #{damon_forward.7} parent=1 // pred_check
      _
    $region23: #{damon_forward.7} parent=1 // pred_check_branch
      %718 = sbr.rel (0) target = $region25
    $region24: #{damon_forward.7} parent=1 // pred_region
      %720 = vsyncadd [#allocation3], 0
      %s722 = sshll.u32 [#allocation2], 4
      %s723 = int_to_ptr.vmem [resolvable:$true] %s722
      %s724 = sshll.u32 %s5, 4
      %s725 = int_to_ptr.hbm [resolvable:$true] %s724
      %727 = dma.vmem_to_hbm [thread:$0]  %s723, 32, %s725, [#allocation3]
    $region25: #{damon_forward.7} parent=1 // pred_fallthru
      _
    // Predicated region
    $region26: #{damon_forward.7} parent=1 // pred_check
      _
    $region27: #{damon_forward.7} parent=1 // pred_check_branch
      %729 = sbr.rel (0) target = $region29
    $region28: #{damon_forward.7} parent=1 // pred_region
      %731 = dma.done [#allocation3], 32
    $region29: #{damon_forward.7} parent=1 // pred_fallthru
      _
    %732 = vsyncpa [#allocation3], 1

</llo_original>
